<compile_context>
chip_gen: v5e
topology: v5e:2x2
jax: 0.10.0
libtpu: 0.0.40
codegen_flags: <defaults>
</compile_context>

<pallas_src>
import functools

import jax
import jax.numpy as jnp
import numpy as np
from jax import lax
from jax.experimental import pallas as pl
from jax.experimental.pallas import tpu as pltpu


_VMEM_LIMIT = 48 * 1024 * 1024       # < 64 MiB physical on v7x, plenty on v5e/v6e
_TARGET_LANES = 2048                 # target N (= NB * tp) per MXU push


# ------------------------------------------------------------------ tiling helpers
def _choose_tiling(n_points, max_tp=1024):
    """Lane-dense point tile (multiple of 128, <= max_tp) and padded point extent."""
    if n_points <= max_tp:
        tp = ((n_points + 127) // 128) * 128
    else:
        tp = max_tp
    p_pad = ((n_points + tp - 1) // tp) * tp
    return tp, p_pad


def _choose_nb(n_nodes, tp):
    """Number of tree nodes folded into the lane dim per grid step."""
    nb = min(n_nodes, max(1, _TARGET_LANES // tp))
    while n_nodes % nb:                      # keep the node count evenly blocked
        nb -= 1
    return nb


# --------------------------------------------------------------- kernel A: shared hx
def _hx_kernel(x_ref, w1x_ref, b1_ref, hx_ref, *, n_nets):
    """hx[k] = w1x[k] @ x + b1[k] for the current point tile.

      x_ref   (1024, tp)      bf16
      w1x_ref (K, 256, 1024)  bf16   VMEM resident (constant index map)
      b1_ref  (K, 256, 1)     f32    VMEM resident
      hx_ref  (K, 256, tp)    f32
    """
    x = x_ref[...]

    def body(k, carry):
        hx_ref[k] = (jnp.dot(w1x_ref[k], x, preferred_element_type=jnp.float32)
                     + b1_ref[k])
        return carry

    lax.fori_loop(0, n_nets, body, 0)


def compute_hx(x_cp, w1x, b1, *, tp):
    """x_cp: (1024, P_pad) bf16 -> hx (K, 256, P_pad) f32."""
    n_nets, c_mid, c_in = w1x.shape
    p_pad = x_cp.shape[1]
    n_tiles = p_pad // tp
    kernel = functools.partial(_hx_kernel, n_nets=n_nets)
    return pl.pallas_call(
        kernel,
        out_shape=jax.ShapeDtypeStruct((n_nets, c_mid, p_pad), jnp.float32),
        grid_spec=pltpu.PrefetchScalarGridSpec(
            num_scalar_prefetch=0,
            grid=(n_tiles,),
            in_specs=[
                pl.BlockSpec((c_in, tp), lambda t: (0, t)),
                pl.BlockSpec((n_nets, c_mid, c_in), lambda t: (0, 0, 0)),
                pl.BlockSpec((n_nets, c_mid, 1), lambda t: (0, 0, 0)),
            ],
            out_specs=pl.BlockSpec((n_nets, c_mid, tp), lambda t: (0, 0, t)),
        ),
        compiler_params=pltpu.CompilerParams(
            dimension_semantics=("parallel",),
            vmem_limit_bytes=_VMEM_LIMIT),
    )(x_cp, w1x, b1)


# ------------------------------------------------------ kernel B: node-blocked level
def _node_block_kernel(*refs, n_nets, nb, relu_last, has_feat):
    """One (point-tile, node-block) grid cell of one tree level.

      feat_ref (8, nb*tp)       bf16   NB parent features, nodes folded into lanes
      w1f_ref  (K, 256, 8)      bf16   conv1 weight, parent-feature columns (resident)
      hx_ref   (K, 256, tp)     f32    precomputed W1x @ x + b1 for this point tile
      w2_ref   (K, 64, 256)     bf16   (resident)
      w3_ref   (K, c_out, 64)   bf16   (resident)
      b*_ref   (K, c, 1)        f32    (resident)
      o_ref    (K, c_out, nb*tp) f32
    """
    if has_feat:
        feat_ref, w1f_ref, hx_ref, w2_ref, b2_ref, w3_ref, b3_ref, o_ref = refs
        feat = feat_ref[...]                                     # (8, nb*tp)
    else:
        hx_ref, w2_ref, b2_ref, w3_ref, b3_ref, o_ref = refs
        feat = None

    tp = hx_ref.shape[-1]

    def body(k, carry):
        hx_k = hx_ref[k]                                         # (256, tp) f32
        if has_feat:
            # One push over all NB nodes, then add the shared hx per node slice.
            h1f = jnp.dot(w1f_ref[k], feat, preferred_element_type=jnp.float32)
            parts = [
                jnp.maximum(h1f[:, i * tp:(i + 1) * tp] + hx_k, 0.0
                            ).astype(jnp.bfloat16)
                for i in range(nb)
            ]
        else:                                                    # level 1: conv1(x) == hx
            parts = [jnp.maximum(hx_k, 0.0).astype(jnp.bfloat16)] * nb
        h1 = parts[0] if nb == 1 else jnp.concatenate(parts, axis=-1)   # (256, nb*tp)

        h2 = jnp.dot(w2_ref[k], h1, preferred_element_type=jnp.float32) + b2_ref[k]
        h2 = jnp.maximum(h2, 0.0).astype(jnp.bfloat16)           # (64, nb*tp)
        y = jnp.dot(w3_ref[k], h2, preferred_element_type=jnp.float32) + b3_ref[k]
        if relu_last:                       # `mlp` ReLUs conv3, `final_mlp` does not
            y = jnp.maximum(y, 0.0)
        o_ref[k] = y.astype(o_ref.dtype)                         # (c_out, nb*tp)
        return carry

    lax.fori_loop(0, n_nets, body, 0)


def apply_level(feat, hx, w1f, w2, b2, w3, b3, *, relu_last, nb, tp, has_feat):
    """Apply the level's K nets to every tree node.

    feat: (T, MB, 8, nb*tp) bf16 or None, hx: (K, 256, P_pad) f32.
    Returns (T, MB, K, c_out, nb*tp) f32.
    """
    n_nets = w2.shape[0]
    c_h1 = w2.shape[2]
    c_h2 = w2.shape[1]
    c_out = w3.shape[1]
    p_pad = hx.shape[2]
    n_tiles = p_pad // tp
    n_blocks = feat.shape[1] if has_feat else 1
    lanes = nb * tp

    kernel = functools.partial(_node_block_kernel, n_nets=n_nets, nb=nb,
                               relu_last=relu_last, has_feat=has_feat)

    in_specs = []
    args = []
    if has_feat:
        c_feat = feat.shape[2]
        in_specs += [
            pl.BlockSpec((None, None, c_feat, lanes), lambda t, m: (t, m, 0, 0)),
            pl.BlockSpec((n_nets, c_h1, c_feat), lambda t, m: (0, 0, 0)),
        ]
        args += [feat, w1f]
    in_specs += [
        pl.BlockSpec((n_nets, c_h1, tp), lambda t, m: (0, 0, t)),
        pl.BlockSpec((n_nets, c_h2, c_h1), lambda t, m: (0, 0, 0)),
        pl.BlockSpec((n_nets, c_h2, 1), lambda t, m: (0, 0, 0)),
        pl.BlockSpec((n_nets, c_out, c_h2), lambda t, m: (0, 0, 0)),
        pl.BlockSpec((n_nets, c_out, 1), lambda t, m: (0, 0, 0)),
    ]
    args += [hx, w2, b2, w3, b3]

    return pl.pallas_call(
        kernel,
        out_shape=jax.ShapeDtypeStruct((n_tiles, n_blocks, n_nets, c_out, lanes),
                                       jnp.float32),
        grid_spec=pltpu.PrefetchScalarGridSpec(
            num_scalar_prefetch=0,
            grid=(n_tiles, n_blocks),          # node blocks inner -> hx block is reused
            in_specs=in_specs,
            out_specs=pl.BlockSpec((None, None, n_nets, c_out, lanes),
                                   lambda t, m: (t, m, 0, 0, 0)),
        ),
        compiler_params=pltpu.CompilerParams(
            dimension_semantics=("parallel", "parallel"),
            vmem_limit_bytes=_VMEM_LIMIT),
    )(*args)


# -------------------------------------------------------- inter-level feature regroup
def _regroup_features(out, nb_prev, nb_next):
    """(T, MB_prev, K, C, nb_prev*tp) f32 -> (T, MB_next, C, nb_next*tp) bf16.

    Child-node ordering matches torch: child = parent * K + k, parent = mb*nb_prev + i.
    Pure XLA reshape/transpose on small arrays (layout plumbing, no compute).
    """
    n_tiles, mb_prev, k_prev, c, lanes = out.shape
    tp = lanes // nb_prev
    m_next = mb_prev * nb_prev * k_prev
    f = out.reshape(n_tiles, mb_prev, k_prev, c, nb_prev, tp)
    f = jnp.transpose(f, (0, 1, 4, 2, 3, 5))           # (T, MBp, nbp, K, C, tp)
    f = f.reshape(n_tiles, m_next, c, tp)
    mb_next = m_next // nb_next
    f = f.reshape(n_tiles, mb_next, nb_next, c, tp)
    f = jnp.transpose(f, (0, 1, 3, 2, 4))              # (T, MBn, C, nbn, tp)
    return f.reshape(n_tiles, mb_next, c, nb_next * tp).astype(jnp.bfloat16)


# -------------------------------------------------------------------- parameters
def init_mlp_stack(key, K, c_in, c_out):
    """Deterministic init of K stacked (Conv1d c_in->256->64->c_out) nets (PyTorch-style)."""
    ks = jax.random.split(key, 6)
    s1 = 1.0 / np.sqrt(c_in)
    s2 = 1.0 / np.sqrt(256.0)
    s3 = 1.0 / np.sqrt(64.0)
    w1 = jax.random.uniform(ks[0], (K, 256, c_in), jnp.float32, -s1, s1)
    b1 = jax.random.uniform(ks[1], (K, 256, 1), jnp.float32, -s1, s1)
    w2 = jax.random.uniform(ks[2], (K, 64, 256), jnp.float32, -s2, s2)
    b2 = jax.random.uniform(ks[3], (K, 64, 1), jnp.float32, -s2, s2)
    w3 = jax.random.uniform(ks[4], (K, c_out, 64), jnp.float32, -s3, s3)
    b3 = jax.random.uniform(ks[5], (K, c_out, 1), jnp.float32, -s3, s3)
    return (w1, b1, w2, b2, w3, b3)


def init_topnet_params(key, arch):
    k1, k2, k3, k4 = jax.random.split(key, 4)
    return [
        init_mlp_stack(k1, arch[0], 1024, 8),        # level_1: mlp(1024, 8)
        init_mlp_stack(k2, arch[1], 1024 + 8, 8),    # level_2: mlp(1032, 8)
        init_mlp_stack(k3, arch[2], 1024 + 8, 8),    # level_3: mlp(1032, 8)
        init_mlp_stack(k4, arch[3], 1024 + 8, 3),    # level_4: final_mlp(1032, 3)
    ]


# ----------------------------------------------------------------------- forward
def topnet_decoder_forward(x, params, arch):
    """x: (B, 1024, N) float32 (PyTorch NCL).  Returns pc: (B, 3, prod(arch)*N) f32."""
    bsz, chans, npts = x.shape
    p0 = bsz * npts
    tp, p_pad = _choose_tiling(p0)

    x0 = jnp.transpose(x, (1, 0, 2)).reshape(chans, p0)            # (1024, P0)
    if p_pad != p0:
        x0 = jnp.pad(x0, ((0, 0), (0, p_pad - p0)))                # zero cols are harmless
    x0 = x0.astype(jnp.bfloat16)

    def bf(w):
        return w.astype(jnp.bfloat16)

    # ---- level 1: mlp(1024, 8) on x itself (single tree node, no parent feature) ----
    w1, b1, w2, b2, w3, b3 = params[0]                             # w1: (K1, 256, 1024)
    hx = compute_hx(x0, bf(w1), b1, tp=tp)
    out = apply_level(None, hx, None, bf(w2), b2, bf(w3), b3,
                      relu_last=True, nb=1, tp=tp, has_feat=False)
    nb_prev = 1

    # ---- levels 2..4: mlp/final_mlp(1032, .) on cat([parent_feat(8), x(1024)]) ------
    for lvl in range(1, 4):
        w1, b1, w2, b2, w3, b3 = params[lvl]                       # w1: (K, 256, 1032)
        relu_last = lvl != 3                                       # final_mlp: no ReLU
        n_nodes = out.shape[1] * nb_prev * out.shape[2]            # MB * nb * K parents
        nb = _choose_nb(n_nodes, tp)
        feat = _regroup_features(out, nb_prev, nb)                 # (T, MB, 8, nb*tp)
        # torch cats [feat(8ch), x(1024ch)] -> conv1 weight split: [:8]=feat, [8:]=x.
        hx = compute_hx(x0, bf(w1[:, :, 8:]), b1, tp=tp)
        out = apply_level(feat, hx, bf(w1[:, :, :8]), bf(w2), b2, bf(w3), b3,
                          relu_last=relu_last, nb=nb, tp=tp, has_feat=True)
        nb_prev = nb

    # ---- reorder leaves to the torch layout: pc[b, :, leaf*N + n] --------------------
    n_tiles, mb4, k4, c_out, lanes = out.shape
    out = out.reshape(n_tiles, mb4, k4, c_out, nb_prev, tp)
    out = jnp.transpose(out, (1, 4, 2, 3, 0, 5))       # (MB4, nb4, K4, 3, T, tp)
    leaves = mb4 * nb_prev * k4
    pc = out.reshape(leaves, c_out, n_tiles * tp)[:, :, :p0]        # drop padded points
    pc = pc.reshape(leaves, c_out, bsz, npts)
    pc = jnp.transpose(pc, (2, 1, 0, 3)).reshape(bsz, c_out, leaves * npts)
    return pc


# ---------------------------------------------------- literal (torch-loop) reference
def reference_forward(x, params, arch):
    def mlp_apply(xi, p, k, relu_last):
        w1, b1, w2, b2, w3, b3 = p
        h = jnp.einsum('oc,bcn->bon', w1[k], xi) + b1[k][None]
        h = jnp.maximum(h, 0.0)
        h = jnp.einsum('oc,bcn->bon', w2[k], h) + b2[k][None]
        h = jnp.maximum(h, 0.0)
        y = jnp.einsum('oc,bcn->bon', w3[k], h) + b3[k][None]
        return jnp.maximum(y, 0.0) if relu_last else y

    f1 = [jnp.concatenate([mlp_apply(x, params[0], i, True), x], axis=1)
          for i in range(arch[0])]
    f2 = [jnp.concatenate([mlp_apply(f, params[1], j, True), x], axis=1)
          for f in f1 for j in range(arch[1])]
    f3 = [jnp.concatenate([mlp_apply(f, params[2], j, True), x], axis=1)
          for f in f2 for j in range(arch[2])]
    f4 = [mlp_apply(f, params[3], j, False) for f in f3 for j in range(arch[3])]
    return jnp.concatenate(f4, axis=2)


# --------------------------------------------------------------------------- main
if __name__ == "__main__":
    key = jax.random.PRNGKey(0)
    kx, kp_small, kp_full = jax.random.split(key, 3)

    B, N = 2, 8
    x = jax.random.normal(kx, (B, 1024, N), jnp.float32)

    fwd = jax.jit(topnet_decoder_forward, static_argnums=(2,))

    # Correctness check against a literal PyTorch-loop-structured reference (small arch).
    # NOTE: matmuls run with bf16 inputs and f32 accumulation, and inter-level features
    # are bf16, so the 2e-2 tolerance is load-bearing.
    arch_small = (2, 2, 2, 2)
    params_small = init_topnet_params(kp_small, arch_small)
    out_small = jax.block_until_ready(fwd(x, params_small, arch_small))
    ref_small = jax.block_until_ready(reference_forward(x, params_small, arch_small))
    np.testing.assert_allclose(np.asarray(out_small), np.asarray(ref_small),
                               rtol=2e-2, atol=2e-2)

    # Full default architecture arch=[4, 8, 8, 8].
    arch = (4, 8, 8, 8)
    params = init_topnet_params(kp_full, arch)
    pc = jax.block_until_ready(fwd(x, params, arch))
    assert pc.shape == (B, 3, arch[0] * arch[1] * arch[2] * arch[3] * N), pc.shape
    assert pc.dtype == jnp.float32

    print("KERNEL_OK")
</pallas_src>

<mosaic_0001>
module attributes {stable_mosaic.version = 11 : i64} {
  func.func @_hx_kernel(%arg0: i32, %arg1: memref<1024x128xbf16, #tpu.memory_space<vmem>>, %arg2: memref<2x256x1024xbf16, #tpu.memory_space<vmem>>, %arg3: memref<2x256x1xf32, #tpu.memory_space<vmem>>, %arg4: memref<2x256x128xf32, #tpu.memory_space<vmem>>) attributes {dimension_semantics = [#tpu.dimension_semantics<parallel>], iteration_bounds = array<i64: 1>, scalar_prefetch = 0 : i64, scratch_operands = 0 : i64, tpu.core_type = #tpu.core_type<tc>, window_params = [{transform_indices = @transform_0, window_bounds = array<i64: 1024, 128>}, {pipeline_mode = #tpu.pipeline_mode<synchronous>, transform_indices = @transform_1, window_bounds = array<i64: 2, 256, 1024>}, {pipeline_mode = #tpu.pipeline_mode<synchronous>, transform_indices = @transform_2, window_bounds = array<i64: 2, 256, 1>}, {transform_indices = @transform_3, window_bounds = array<i64: 2, 256, 128>}]} {
    %c0 = arith.constant 0 : index
    %c0_0 = arith.constant 0 : index
    %0 = vector.load %arg1[%c0, %c0_0] : memref<1024x128xbf16, #tpu.memory_space<vmem>>, vector<1024x128xbf16>
    %c0_i32 = arith.constant 0 : i32
    %c2_i32 = arith.constant 2 : i32
    %1 = arith.addi %c0_i32, %c2_i32 : i32
    %c1_i32 = arith.constant 1 : i32
    scf.for %arg5 = %c0_i32 to %1 step %c1_i32  : i32 {
      %2 = arith.index_cast %arg5 : i32 to index
      %c0_2 = arith.constant 0 : index
      %c0_3 = arith.constant 0 : index
      %3 = vector.load %arg2[%2, %c0_2, %c0_3] : memref<2x256x1024xbf16, #tpu.memory_space<vmem>>, vector<1x256x1024xbf16>
      %4 = vector.shape_cast %3 : vector<1x256x1024xbf16> to vector<256x1024xbf16>
      %cst = arith.constant dense<0.000000e+00> : vector<256x128xf32>
      %5 = tpu.matmul %4, %0, %cst {dimension_numbers = #tpu.dot_dimension_numbers<[1], [0], [0], [1], [0, 0, 1, 1], [], []>} : vector<256x1024xbf16>, vector<1024x128xbf16>, vector<256x128xf32> -> vector<256x128xf32>
      %6 = arith.index_cast %arg5 : i32 to index
      %c0_4 = arith.constant 0 : index
      %c0_5 = arith.constant 0 : index
      %7 = vector.load %arg3[%6, %c0_4, %c0_5] : memref<2x256x1xf32, #tpu.memory_space<vmem>>, vector<1x256x1xf32>
      %8 = vector.shape_cast %7 : vector<1x256x1xf32> to vector<256x1xf32>
      %9 = vector.broadcast %8 : vector<256x1xf32> to vector<256x128xf32>
      %10 = arith.addf %5, %9 : vector<256x128xf32>
      %11 = arith.index_cast %arg5 : i32 to index
      %c0_6 = arith.constant 0 : index
      %c0_7 = arith.constant 0 : index
      %12 = vector.load %arg4[%11, %c0_6, %c0_7] : memref<2x256x128xf32, #tpu.memory_space<vmem>>, vector<1x256x128xf32>
      %13 = vector.shape_cast %12 : vector<1x256x128xf32> to vector<256x128xf32>
      %14 = vector.shape_cast %10 : vector<256x128xf32> to vector<1x256x128xf32>
      tpu.vector_store %arg4[%11, %c0_6, %c0_7], %14 {strides = array<i32>} : memref<2x256x128xf32, #tpu.memory_space<vmem>>, vector<1x256x128xf32>,
    }
    %c2_i32_1 = arith.constant 2 : i32
    return
  }
  func.func @transform_0(%arg0: i32) -> (i32, i32) {
    %c0_i32 = arith.constant 0 : i32
    %c0_i32_0 = arith.constant 0 : i32
    return %c0_i32, %arg0 : i32, i32
  }
  func.func @transform_1(%arg0: i32) -> (i32, i32, i32) {
    %c0_i32 = arith.constant 0 : i32
    %c0_i32_0 = arith.constant 0 : i32
    %c0_i32_1 = arith.constant 0 : i32
    %c0_i32_2 = arith.constant 0 : i32
    return %c0_i32, %c0_i32_0, %c0_i32_1 : i32, i32, i32
  }
  func.func @transform_2(%arg0: i32) -> (i32, i32, i32) {
    %c0_i32 = arith.constant 0 : i32
    %c0_i32_0 = arith.constant 0 : i32
    %c0_i32_1 = arith.constant 0 : i32
    %c0_i32_2 = arith.constant 0 : i32
    return %c0_i32, %c0_i32_0, %c0_i32_1 : i32, i32, i32
  }
  func.func @transform_3(%arg0: i32) -> (i32, i32, i32) {
    %c0_i32 = arith.constant 0 : i32
    %c0_i32_0 = arith.constant 0 : i32
    %c0_i32_1 = arith.constant 0 : i32
    return %c0_i32, %c0_i32_0, %arg0 : i32, i32, i32
  }
}

module attributes {stable_mosaic.version = 11 : i64} {
  func.func @_node_block_kernel(%arg0: i32, %arg1: i32, %arg2: memref<2x256x128xf32, #tpu.memory_space<vmem>>, %arg3: memref<2x64x256xbf16, #tpu.memory_space<vmem>>, %arg4: memref<2x64x1xf32, #tpu.memory_space<vmem>>, %arg5: memref<2x8x64xbf16, #tpu.memory_space<vmem>>, %arg6: memref<2x8x1xf32, #tpu.memory_space<vmem>>, %arg7: memref<1x1x2x8x128xf32, #tpu.memory_space<vmem>>) attributes {dimension_semantics = [#tpu.dimension_semantics<parallel>, #tpu.dimension_semantics<parallel>], iteration_bounds = array<i64: 1, 1>, scalar_prefetch = 0 : i64, scratch_operands = 0 : i64, tpu.core_type = #tpu.core_type<tc>, window_params = [{transform_indices = @transform_0, window_bounds = array<i64: 2, 256, 128>}, {pipeline_mode = #tpu.pipeline_mode<synchronous>, transform_indices = @transform_1, window_bounds = array<i64: 2, 64, 256>}, {pipeline_mode = #tpu.pipeline_mode<synchronous>, transform_indices = @transform_2, window_bounds = array<i64: 2, 64, 1>}, {pipeline_mode = #tpu.pipeline_mode<synchronous>, transform_indices = @transform_3, window_bounds = array<i64: 2, 8, 64>}, {pipeline_mode = #tpu.pipeline_mode<synchronous>, transform_indices = @transform_4, window_bounds = array<i64: 2, 8, 1>}, {transform_indices = @transform_5, window_bounds = array<i64: 1, 1, 2, 8, 128>}]} {
    %c0_i32 = arith.constant 0 : i32
    %c2_i32 = arith.constant 2 : i32
    %0 = arith.addi %c0_i32, %c2_i32 : i32
    %c1_i32 = arith.constant 1 : i32
    scf.for %arg8 = %c0_i32 to %0 step %c1_i32  : i32 {
      %1 = arith.index_cast %arg8 : i32 to index
      %c0 = arith.constant 0 : index
      %c0_1 = arith.constant 0 : index
      %2 = vector.load %arg2[%1, %c0, %c0_1] : memref<2x256x128xf32, #tpu.memory_space<vmem>>, vector<1x256x128xf32>
      %3 = vector.shape_cast %2 : vector<1x256x128xf32> to vector<256x128xf32>
      %cst = arith.constant 0.000000e+00 : f32
      %4 = vector.broadcast %cst : f32 to vector<256x128xf32>
      %5 = arith.maximumf %3, %4 : vector<256x128xf32>
      %6 = arith.truncf %5 : vector<256x128xf32> to vector<256x128xbf16>
      %7 = arith.index_cast %arg8 : i32 to index
      %c0_2 = arith.constant 0 : index
      %c0_3 = arith.constant 0 : index
      %8 = vector.load %arg3[%7, %c0_2, %c0_3] : memref<2x64x256xbf16, #tpu.memory_space<vmem>>, vector<1x64x256xbf16>
      %9 = vector.shape_cast %8 : vector<1x64x256xbf16> to vector<64x256xbf16>
      %cst_4 = arith.constant dense<0.000000e+00> : vector<64x128xf32>
      %10 = tpu.matmul %9, %6, %cst_4 {dimension_numbers = #tpu.dot_dimension_numbers<[1], [0], [0], [1], [0, 0, 1, 1], [], []>} : vector<64x256xbf16>, vector<256x128xbf16>, vector<64x128xf32> -> vector<64x128xf32>
      %11 = arith.index_cast %arg8 : i32 to index
      %c0_5 = arith.constant 0 : index
      %c0_6 = arith.constant 0 : index
      %12 = vector.load %arg4[%11, %c0_5, %c0_6] : memref<2x64x1xf32, #tpu.memory_space<vmem>>, vector<1x64x1xf32>
      %13 = vector.shape_cast %12 : vector<1x64x1xf32> to vector<64x1xf32>
      %14 = vector.broadcast %13 : vector<64x1xf32> to vector<64x128xf32>
      %15 = arith.addf %10, %14 : vector<64x128xf32>
      %cst_7 = arith.constant 0.000000e+00 : f32
      %16 = vector.broadcast %cst_7 : f32 to vector<64x128xf32>
      %17 = arith.maximumf %15, %16 : vector<64x128xf32>
      %18 = arith.truncf %17 : vector<64x128xf32> to vector<64x128xbf16>
      %19 = arith.index_cast %arg8 : i32 to index
      %c0_8 = arith.constant 0 : index
      %c0_9 = arith.constant 0 : index
      %20 = vector.load %arg5[%19, %c0_8, %c0_9] : memref<2x8x64xbf16, #tpu.memory_space<vmem>>, vector<1x8x64xbf16>
      %21 = vector.shape_cast %20 : vector<1x8x64xbf16> to vector<8x64xbf16>
      %cst_10 = arith.constant dense<0.000000e+00> : vector<8x128xf32>
      %22 = tpu.matmul %21, %18, %cst_10 {dimension_numbers = #tpu.dot_dimension_numbers<[1], [0], [0], [1], [0, 0, 1, 1], [], []>} : vector<8x64xbf16>, vector<64x128xbf16>, vector<8x128xf32> -> vector<8x128xf32>
      %23 = arith.index_cast %arg8 : i32 to index
      %c0_11 = arith.constant 0 : index
      %c0_12 = arith.constant 0 : index
      %24 = vector.load %arg6[%23, %c0_11, %c0_12] : memref<2x8x1xf32, #tpu.memory_space<vmem>>, vector<1x8x1xf32>
      %25 = vector.shape_cast %24 : vector<1x8x1xf32> to vector<8x1xf32>
      %26 = vector.broadcast %25 : vector<8x1xf32> to vector<8x128xf32>
      %27 = arith.addf %22, %26 : vector<8x128xf32>
      %cst_13 = arith.constant 0.000000e+00 : f32
      %28 = vector.broadcast %cst_13 : f32 to vector<8x128xf32>
      %29 = arith.maximumf %27, %28 : vector<8x128xf32>
      %c0_14 = arith.constant 0 : index
      %c0_15 = arith.constant 0 : index
      %30 = arith.index_cast %arg8 : i32 to index
      %c0_16 = arith.constant 0 : index
      %c0_17 = arith.constant 0 : index
      %31 = vector.load %arg7[%c0_14, %c0_15, %30, %c0_16, %c0_17] : memref<1x1x2x8x128xf32, #tpu.memory_space<vmem>>, vector<1x1x1x8x128xf32>
      %32 = vector.shape_cast %31 : vector<1x1x1x8x128xf32> to vector<8x128xf32>
      %33 = vector.shape_cast %29 : vector<8x128xf32> to vector<1x1x1x8x128xf32>
      tpu.vector_store %arg7[%c0_14, %c0_15, %30, %c0_16, %c0_17], %33 {strides = array<i32>} : memref<1x1x2x8x128xf32, #tpu.memory_space<vmem>>, vector<1x1x1x8x128xf32>,
    }
    %c2_i32_0 = arith.constant 2 : i32
    return
  }
  func.func @transform_0(%arg0: i32, %arg1: i32) -> (i32, i32, i32) {
    %c0_i32 = arith.constant 0 : i32
    %c0_i32_0 = arith.constant 0 : i32
    %c0_i32_1 = arith.constant 0 : i32
    return %c0_i32, %c0_i32_0, %arg0 : i32, i32, i32
  }
  func.func @transform_1(%arg0: i32, %arg1: i32) -> (i32, i32, i32) {
    %c0_i32 = arith.constant 0 : i32
    %c0_i32_0 = arith.constant 0 : i32
    %c0_i32_1 = arith.constant 0 : i32
    %c0_i32_2 = arith.constant 0 : i32
    return %c0_i32, %c0_i32_0, %c0_i32_1 : i32, i32, i32
  }
  func.func @transform_2(%arg0: i32, %arg1: i32) -> (i32, i32, i32) {
    %c0_i32 = arith.constant 0 : i32
    %c0_i32_0 = arith.constant 0 : i32
    %c0_i32_1 = arith.constant 0 : i32
    %c0_i32_2 = arith.constant 0 : i32
    return %c0_i32, %c0_i32_0, %c0_i32_1 : i32, i32, i32
  }
  func.func @transform_3(%arg0: i32, %arg1: i32) -> (i32, i32, i32) {
    %c0_i32 = arith.constant 0 : i32
    %c0_i32_0 = arith.constant 0 : i32
    %c0_i32_1 = arith.constant 0 : i32
    %c0_i32_2 = arith.constant 0 : i32
    return %c0_i32, %c0_i32_0, %c0_i32_1 : i32, i32, i32
  }
  func.func @transform_4(%arg0: i32, %arg1: i32) -> (i32, i32, i32) {
    %c0_i32 = arith.constant 0 : i32
    %c0_i32_0 = arith.constant 0 : i32
    %c0_i32_1 = arith.constant 0 : i32
    %c0_i32_2 = arith.constant 0 : i32
    return %c0_i32, %c0_i32_0, %c0_i32_1 : i32, i32, i32
  }
  func.func @transform_5(%arg0: i32, %arg1: i32) -> (i32, i32, i32, i32, i32) {
    %c0_i32 = arith.constant 0 : i32
    %c0_i32_0 = arith.constant 0 : i32
    %c0_i32_1 = arith.constant 0 : i32
    %c0_i32_2 = arith.constant 0 : i32
    return %arg0, %arg1, %c0_i32, %c0_i32_0, %c0_i32_1 : i32, i32, i32, i32, i32
  }
}

module attributes {stable_mosaic.version = 11 : i64} {
  func.func @_node_block_kernel(%arg0: i32, %arg1: i32, %arg2: memref<1x1x8x256xbf16, #tpu.memory_space<vmem>>, %arg3: memref<2x256x8xbf16, #tpu.memory_space<vmem>>, %arg4: memref<2x256x128xf32, #tpu.memory_space<vmem>>, %arg5: memref<2x64x256xbf16, #tpu.memory_space<vmem>>, %arg6: memref<2x64x1xf32, #tpu.memory_space<vmem>>, %arg7: memref<2x8x64xbf16, #tpu.memory_space<vmem>>, %arg8: memref<2x8x1xf32, #tpu.memory_space<vmem>>, %arg9: memref<1x1x2x8x256xf32, #tpu.memory_space<vmem>>) attributes {dimension_semantics = [#tpu.dimension_semantics<parallel>, #tpu.dimension_semantics<parallel>], iteration_bounds = array<i64: 1, 1>, scalar_prefetch = 0 : i64, scratch_operands = 0 : i64, tpu.core_type = #tpu.core_type<tc>, window_params = [{transform_indices = @transform_0, window_bounds = array<i64: 1, 1, 8, 256>}, {pipeline_mode = #tpu.pipeline_mode<synchronous>, transform_indices = @transform_1, window_bounds = array<i64: 2, 256, 8>}, {transform_indices = @transform_2, window_bounds = array<i64: 2, 256, 128>}, {pipeline_mode = #tpu.pipeline_mode<synchronous>, transform_indices = @transform_3, window_bounds = array<i64: 2, 64, 256>}, {pipeline_mode = #tpu.pipeline_mode<synchronous>, transform_indices = @transform_4, window_bounds = array<i64: 2, 64, 1>}, {pipeline_mode = #tpu.pipeline_mode<synchronous>, transform_indices = @transform_5, window_bounds = array<i64: 2, 8, 64>}, {pipeline_mode = #tpu.pipeline_mode<synchronous>, transform_indices = @transform_6, window_bounds = array<i64: 2, 8, 1>}, {transform_indices = @transform_7, window_bounds = array<i64: 1, 1, 2, 8, 256>}]} {
    %c0 = arith.constant 0 : index
    %c0_0 = arith.constant 0 : index
    %c0_1 = arith.constant 0 : index
    %c0_2 = arith.constant 0 : index
    %0 = vector.load %arg2[%c0, %c0_0, %c0_1, %c0_2] : memref<1x1x8x256xbf16, #tpu.memory_space<vmem>>, vector<1x1x8x256xbf16>
    %1 = vector.shape_cast %0 : vector<1x1x8x256xbf16> to vector<8x256xbf16>
    %c0_i32 = arith.constant 0 : i32
    %c2_i32 = arith.constant 2 : i32
    %2 = arith.addi %c0_i32, %c2_i32 : i32
    %c1_i32 = arith.constant 1 : i32
    scf.for %arg10 = %c0_i32 to %2 step %c1_i32  : i32 {
      %3 = arith.index_cast %arg10 : i32 to index
      %c0_4 = arith.constant 0 : index
      %c0_5 = arith.constant 0 : index
      %4 = vector.load %arg4[%3, %c0_4, %c0_5] : memref<2x256x128xf32, #tpu.memory_space<vmem>>, vector<1x256x128xf32>
      %5 = vector.shape_cast %4 : vector<1x256x128xf32> to vector<256x128xf32>
      %6 = arith.index_cast %arg10 : i32 to index
      %c0_6 = arith.constant 0 : index
      %c0_7 = arith.constant 0 : index
      %7 = vector.load %arg3[%6, %c0_6, %c0_7] : memref<2x256x8xbf16, #tpu.memory_space<vmem>>, vector<1x256x8xbf16>
      %8 = vector.shape_cast %7 : vector<1x256x8xbf16> to vector<256x8xbf16>
      %cst = arith.constant dense<0.000000e+00> : vector<256x256xf32>
      %9 = tpu.matmul %8, %1, %cst {dimension_numbers = #tpu.dot_dimension_numbers<[1], [0], [0], [1], [0, 0, 1, 1], [], []>} : vector<256x8xbf16>, vector<8x256xbf16>, vector<256x256xf32> -> vector<256x256xf32>
      %10 = vector.extract_strided_slice %9 {offsets = [0, 0], sizes = [256, 128], strides = [1, 1]} : vector<256x256xf32> to vector<256x128xf32>
      %11 = arith.addf %10, %5 : vector<256x128xf32>
      %cst_8 = arith.constant 0.000000e+00 : f32
      %12 = vector.broadcast %cst_8 : f32 to vector<256x128xf32>
      %13 = arith.maximumf %11, %12 : vector<256x128xf32>
      %14 = arith.truncf %13 : vector<256x128xf32> to vector<256x128xbf16>
      %15 = vector.extract_strided_slice %9 {offsets = [0, 128], sizes = [256, 128], strides = [1, 1]} : vector<256x256xf32> to vector<256x128xf32>
      %16 = arith.addf %15, %5 : vector<256x128xf32>
      %cst_9 = arith.constant 0.000000e+00 : f32
      %17 = vector.broadcast %cst_9 : f32 to vector<256x128xf32>
      %18 = arith.maximumf %16, %17 : vector<256x128xf32>
      %19 = arith.truncf %18 : vector<256x128xf32> to vector<256x128xbf16>
      %20 = tpu.concatenate %14, %19 in 1 : vector<256x128xbf16>, vector<256x128xbf16> -> vector<256x256xbf16>
      %21 = arith.index_cast %arg10 : i32 to index
      %c0_10 = arith.constant 0 : index
      %c0_11 = arith.constant 0 : index
      %22 = vector.load %arg5[%21, %c0_10, %c0_11] : memref<2x64x256xbf16, #tpu.memory_space<vmem>>, vector<1x64x256xbf16>
      %23 = vector.shape_cast %22 : vector<1x64x256xbf16> to vector<64x256xbf16>
      %cst_12 = arith.constant dense<0.000000e+00> : vector<64x256xf32>
      %24 = tpu.matmul %23, %20, %cst_12 {dimension_numbers = #tpu.dot_dimension_numbers<[1], [0], [0], [1], [0, 0, 1, 1], [], []>} : vector<64x256xbf16>, vector<256x256xbf16>, vector<64x256xf32> -> vector<64x256xf32>
      %25 = arith.index_cast %arg10 : i32 to index
      %c0_13 = arith.constant 0 : index
      %c0_14 = arith.constant 0 : index
      %26 = vector.load %arg6[%25, %c0_13, %c0_14] : memref<2x64x1xf32, #tpu.memory_space<vmem>>, vector<1x64x1xf32>
      %27 = vector.shape_cast %26 : vector<1x64x1xf32> to vector<64x1xf32>
      %28 = vector.broadcast %27 : vector<64x1xf32> to vector<64x256xf32>
      %29 = arith.addf %24, %28 : vector<64x256xf32>
      %cst_15 = arith.constant 0.000000e+00 : f32
      %30 = vector.broadcast %cst_15 : f32 to vector<64x256xf32>
      %31 = arith.maximumf %29, %30 : vector<64x256xf32>
      %32 = arith.truncf %31 : vector<64x256xf32> to vector<64x256xbf16>
      %33 = arith.index_cast %arg10 : i32 to index
      %c0_16 = arith.constant 0 : index
      %c0_17 = arith.constant 0 : index
      %34 = vector.load %arg7[%33, %c0_16, %c0_17] : memref<2x8x64xbf16, #tpu.memory_space<vmem>>, vector<1x8x64xbf16>
      %35 = vector.shape_cast %34 : vector<1x8x64xbf16> to vector<8x64xbf16>
      %cst_18 = arith.constant dense<0.000000e+00> : vector<8x256xf32>
      %36 = tpu.matmul %35, %32, %cst_18 {dimension_numbers = #tpu.dot_dimension_numbers<[1], [0], [0], [1], [0, 0, 1, 1], [], []>} : vector<8x64xbf16>, vector<64x256xbf16>, vector<8x256xf32> -> vector<8x256xf32>
      %37 = arith.index_cast %arg10 : i32 to index
      %c0_19 = arith.constant 0 : index
      %c0_20 = arith.constant 0 : index
      %38 = vector.load %arg8[%37, %c0_19, %c0_20] : memref<2x8x1xf32, #tpu.memory_space<vmem>>, vector<1x8x1xf32>
      %39 = vector.shape_cast %38 : vector<1x8x1xf32> to vector<8x1xf32>
      %40 = vector.broadcast %39 : vector<8x1xf32> to vector<8x256xf32>
      %41 = arith.addf %36, %40 : vector<8x256xf32>
      %cst_21 = arith.constant 0.000000e+00 : f32
      %42 = vector.broadcast %cst_21 : f32 to vector<8x256xf32>
      %43 = arith.maximumf %41, %42 : vector<8x256xf32>
      %c0_22 = arith.constant 0 : index
      %c0_23 = arith.constant 0 : index
      %44 = arith.index_cast %arg10 : i32 to index
      %c0_24 = arith.constant 0 : index
      %c0_25 = arith.constant 0 : index
      %45 = vector.load %arg9[%c0_22, %c0_23, %44, %c0_24, %c0_25] : memref<1x1x2x8x256xf32, #tpu.memory_space<vmem>>, vector<1x1x1x8x256xf32>
      %46 = vector.shape_cast %45 : vector<1x1x1x8x256xf32> to vector<8x256xf32>
      %47 = vector.shape_cast %43 : vector<8x256xf32> to vector<1x1x1x8x256xf32>
      tpu.vector_store %arg9[%c0_22, %c0_23, %44, %c0_24, %c0_25], %47 {strides = array<i32>} : memref<1x1x2x8x256xf32, #tpu.memory_space<vmem>>, vector<1x1x1x8x256xf32>,
    }
    %c2_i32_3 = arith.constant 2 : i32
    return
  }
  func.func @transform_0(%arg0: i32, %arg1: i32) -> (i32, i32, i32, i32) {
    %c0_i32 = arith.constant 0 : i32
    %c0_i32_0 = arith.constant 0 : i32
    %c0_i32_1 = arith.constant 0 : i32
    return %arg0, %arg1, %c0_i32, %c0_i32_0 : i32, i32, i32, i32
  }
  func.func @transform_1(%arg0: i32, %arg1: i32) -> (i32, i32, i32) {
    %c0_i32 = arith.constant 0 : i32
    %c0_i32_0 = arith.constant 0 : i32
    %c0_i32_1 = arith.constant 0 : i32
    %c0_i32_2 = arith.constant 0 : i32
    return %c0_i32, %c0_i32_0, %c0_i32_1 : i32, i32, i32
  }
  func.func @transform_2(%arg0: i32, %arg1: i32) -> (i32, i32, i32) {
    %c0_i32 = arith.constant 0 : i32
    %c0_i32_0 = arith.constant 0 : i32
    %c0_i32_1 = arith.constant 0 : i32
    return %c0_i32, %c0_i32_0, %arg0 : i32, i32, i32
  }
  func.func @transform_3(%arg0: i32, %arg1: i32) -> (i32, i32, i32) {
    %c0_i32 = arith.constant 0 : i32
    %c0_i32_0 = arith.constant 0 : i32
    %c0_i32_1 = arith.constant 0 : i32
    %c0_i32_2 = arith.constant 0 : i32
    return %c0_i32, %c0_i32_0, %c0_i32_1 : i32, i32, i32
  }
  func.func @transform_4(%arg0: i32, %arg1: i32) -> (i32, i32, i32) {
    %c0_i32 = arith.constant 0 : i32
    %c0_i32_0 = arith.constant 0 : i32
    %c0_i32_1 = arith.constant 0 : i32
    %c0_i32_2 = arith.constant 0 : i32
    return %c0_i32, %c0_i32_0, %c0_i32_1 : i32, i32, i32
  }
  func.func @transform_5(%arg0: i32, %arg1: i32) -> (i32, i32, i32) {
    %c0_i32 = arith.constant 0 : i32
    %c0_i32_0 = arith.constant 0 : i32
    %c0_i32_1 = arith.constant 0 : i32
    %c0_i32_2 = arith.constant 0 : i32
    return %c0_i32, %c0_i32_0, %c0_i32_1 : i32, i32, i32
  }
  func.func @transform_6(%arg0: i32, %arg1: i32) -> (i32, i32, i32) {
    %c0_i32 = arith.constant 0 : i32
    %c0_i32_0 = arith.constant 0 : i32
    %c0_i32_1 = arith.constant 0 : i32
    %c0_i32_2 = arith.constant 0 : i32
    return %c0_i32, %c0_i32_0, %c0_i32_1 : i32, i32, i32
  }
  func.func @transform_7(%arg0: i32, %arg1: i32) -> (i32, i32, i32, i32, i32) {
    %c0_i32 = arith.constant 0 : i32
    %c0_i32_0 = arith.constant 0 : i32
    %c0_i32_1 = arith.constant 0 : i32
    %c0_i32_2 = arith.constant 0 : i32
    return %arg0, %arg1, %c0_i32, %c0_i32_0, %c0_i32_1 : i32, i32, i32, i32, i32
  }
}

module attributes {stable_mosaic.version = 11 : i64} {
  func.func @_node_block_kernel(%arg0: i32, %arg1: i32, %arg2: memref<1x1x8x512xbf16, #tpu.memory_space<vmem>>, %arg3: memref<2x256x8xbf16, #tpu.memory_space<vmem>>, %arg4: memref<2x256x128xf32, #tpu.memory_space<vmem>>, %arg5: memref<2x64x256xbf16, #tpu.memory_space<vmem>>, %arg6: memref<2x64x1xf32, #tpu.memory_space<vmem>>, %arg7: memref<2x8x64xbf16, #tpu.memory_space<vmem>>, %arg8: memref<2x8x1xf32, #tpu.memory_space<vmem>>, %arg9: memref<1x1x2x8x512xf32, #tpu.memory_space<vmem>>) attributes {dimension_semantics = [#tpu.dimension_semantics<parallel>, #tpu.dimension_semantics<parallel>], iteration_bounds = array<i64: 1, 1>, scalar_prefetch = 0 : i64, scratch_operands = 0 : i64, tpu.core_type = #tpu.core_type<tc>, window_params = [{transform_indices = @transform_0, window_bounds = array<i64: 1, 1, 8, 512>}, {pipeline_mode = #tpu.pipeline_mode<synchronous>, transform_indices = @transform_1, window_bounds = array<i64: 2, 256, 8>}, {transform_indices = @transform_2, window_bounds = array<i64: 2, 256, 128>}, {pipeline_mode = #tpu.pipeline_mode<synchronous>, transform_indices = @transform_3, window_bounds = array<i64: 2, 64, 256>}, {pipeline_mode = #tpu.pipeline_mode<synchronous>, transform_indices = @transform_4, window_bounds = array<i64: 2, 64, 1>}, {pipeline_mode = #tpu.pipeline_mode<synchronous>, transform_indices = @transform_5, window_bounds = array<i64: 2, 8, 64>}, {pipeline_mode = #tpu.pipeline_mode<synchronous>, transform_indices = @transform_6, window_bounds = array<i64: 2, 8, 1>}, {transform_indices = @transform_7, window_bounds = array<i64: 1, 1, 2, 8, 512>}]} {
    %c0 = arith.constant 0 : index
    %c0_0 = arith.constant 0 : index
    %c0_1 = arith.constant 0 : index
    %c0_2 = arith.constant 0 : index
    %0 = vector.load %arg2[%c0, %c0_0, %c0_1, %c0_2] : memref<1x1x8x512xbf16, #tpu.memory_space<vmem>>, vector<1x1x8x512xbf16>
    %1 = vector.shape_cast %0 : vector<1x1x8x512xbf16> to vector<8x512xbf16>
    %c0_i32 = arith.constant 0 : i32
    %c2_i32 = arith.constant 2 : i32
    %2 = arith.addi %c0_i32, %c2_i32 : i32
    %c1_i32 = arith.constant 1 : i32
    scf.for %arg10 = %c0_i32 to %2 step %c1_i32  : i32 {
      %3 = arith.index_cast %arg10 : i32 to index
      %c0_4 = arith.constant 0 : index
      %c0_5 = arith.constant 0 : index
      %4 = vector.load %arg4[%3, %c0_4, %c0_5] : memref<2x256x128xf32, #tpu.memory_space<vmem>>, vector<1x256x128xf32>
      %5 = vector.shape_cast %4 : vector<1x256x128xf32> to vector<256x128xf32>
      %6 = arith.index_cast %arg10 : i32 to index
      %c0_6 = arith.constant 0 : index
      %c0_7 = arith.constant 0 : index
      %7 = vector.load %arg3[%6, %c0_6, %c0_7] : memref<2x256x8xbf16, #tpu.memory_space<vmem>>, vector<1x256x8xbf16>
      %8 = vector.shape_cast %7 : vector<1x256x8xbf16> to vector<256x8xbf16>
      %cst = arith.constant dense<0.000000e+00> : vector<256x512xf32>
      %9 = tpu.matmul %8, %1, %cst {dimension_numbers = #tpu.dot_dimension_numbers<[1], [0], [0], [1], [0, 0, 1, 1], [], []>} : vector<256x8xbf16>, vector<8x512xbf16>, vector<256x512xf32> -> vector<256x512xf32>
      %10 = vector.extract_strided_slice %9 {offsets = [0, 0], sizes = [256, 128], strides = [1, 1]} : vector<256x512xf32> to vector<256x128xf32>
      %11 = arith.addf %10, %5 : vector<256x128xf32>
      %cst_8 = arith.constant 0.000000e+00 : f32
      %12 = vector.broadcast %cst_8 : f32 to vector<256x128xf32>
      %13 = arith.maximumf %11, %12 : vector<256x128xf32>
      %14 = arith.truncf %13 : vector<256x128xf32> to vector<256x128xbf16>
      %15 = vector.extract_strided_slice %9 {offsets = [0, 128], sizes = [256, 128], strides = [1, 1]} : vector<256x512xf32> to vector<256x128xf32>
      %16 = arith.addf %15, %5 : vector<256x128xf32>
      %cst_9 = arith.constant 0.000000e+00 : f32
      %17 = vector.broadcast %cst_9 : f32 to vector<256x128xf32>
      %18 = arith.maximumf %16, %17 : vector<256x128xf32>
      %19 = arith.truncf %18 : vector<256x128xf32> to vector<256x128xbf16>
      %20 = vector.extract_strided_slice %9 {offsets = [0, 256], sizes = [256, 128], strides = [1, 1]} : vector<256x512xf32> to vector<256x128xf32>
      %21 = arith.addf %20, %5 : vector<256x128xf32>
      %cst_10 = arith.constant 0.000000e+00 : f32
      %22 = vector.broadcast %cst_10 : f32 to vector<256x128xf32>
      %23 = arith.maximumf %21, %22 : vector<256x128xf32>
      %24 = arith.truncf %23 : vector<256x128xf32> to vector<256x128xbf16>
      %25 = vector.extract_strided_slice %9 {offsets = [0, 384], sizes = [256, 128], strides = [1, 1]} : vector<256x512xf32> to vector<256x128xf32>
      %26 = arith.addf %25, %5 : vector<256x128xf32>
      %cst_11 = arith.constant 0.000000e+00 : f32
      %27 = vector.broadcast %cst_11 : f32 to vector<256x128xf32>
      %28 = arith.maximumf %26, %27 : vector<256x128xf32>
      %29 = arith.truncf %28 : vector<256x128xf32> to vector<256x128xbf16>
      %30 = tpu.concatenate %14, %19, %24, %29 in 1 : vector<256x128xbf16>, vector<256x128xbf16>, vector<256x128xbf16>, vector<256x128xbf16> -> vector<256x512xbf16>
      %31 = arith.index_cast %arg10 : i32 to index
      %c0_12 = arith.constant 0 : index
      %c0_13 = arith.constant 0 : index
      %32 = vector.load %arg5[%31, %c0_12, %c0_13] : memref<2x64x256xbf16, #tpu.memory_space<vmem>>, vector<1x64x256xbf16>
      %33 = vector.shape_cast %32 : vector<1x64x256xbf16> to vector<64x256xbf16>
      %cst_14 = arith.constant dense<0.000000e+00> : vector<64x512xf32>
      %34 = tpu.matmul %33, %30, %cst_14 {dimension_numbers = #tpu.dot_dimension_numbers<[1], [0], [0], [1], [0, 0, 1, 1], [], []>} : vector<64x256xbf16>, vector<256x512xbf16>, vector<64x512xf32> -> vector<64x512xf32>
      %35 = arith.index_cast %arg10 : i32 to index
      %c0_15 = arith.constant 0 : index
      %c0_16 = arith.constant 0 : index
      %36 = vector.load %arg6[%35, %c0_15, %c0_16] : memref<2x64x1xf32, #tpu.memory_space<vmem>>, vector<1x64x1xf32>
      %37 = vector.shape_cast %36 : vector<1x64x1xf32> to vector<64x1xf32>
      %38 = vector.broadcast %37 : vector<64x1xf32> to vector<64x512xf32>
      %39 = arith.addf %34, %38 : vector<64x512xf32>
      %cst_17 = arith.constant 0.000000e+00 : f32
      %40 = vector.broadcast %cst_17 : f32 to vector<64x512xf32>
      %41 = arith.maximumf %39, %40 : vector<64x512xf32>
      %42 = arith.truncf %41 : vector<64x512xf32> to vector<64x512xbf16>
      %43 = arith.index_cast %arg10 : i32 to index
      %c0_18 = arith.constant 0 : index
      %c0_19 = arith.constant 0 : index
      %44 = vector.load %arg7[%43, %c0_18, %c0_19] : memref<2x8x64xbf16, #tpu.memory_space<vmem>>, vector<1x8x64xbf16>
      %45 = vector.shape_cast %44 : vector<1x8x64xbf16> to vector<8x64xbf16>
      %cst_20 = arith.constant dense<0.000000e+00> : vector<8x512xf32>
      %46 = tpu.matmul %45, %42, %cst_20 {dimension_numbers = #tpu.dot_dimension_numbers<[1], [0], [0], [1], [0, 0, 1, 1], [], []>} : vector<8x64xbf16>, vector<64x512xbf16>, vector<8x512xf32> -> vector<8x512xf32>
      %47 = arith.index_cast %arg10 : i32 to index
      %c0_21 = arith.constant 0 : index
      %c0_22 = arith.constant 0 : index
      %48 = vector.load %arg8[%47, %c0_21, %c0_22] : memref<2x8x1xf32, #tpu.memory_space<vmem>>, vector<1x8x1xf32>
      %49 = vector.shape_cast %48 : vector<1x8x1xf32> to vector<8x1xf32>
      %50 = vector.broadcast %49 : vector<8x1xf32> to vector<8x512xf32>
      %51 = arith.addf %46, %50 : vector<8x512xf32>
      %cst_23 = arith.constant 0.000000e+00 : f32
      %52 = vector.broadcast %cst_23 : f32 to vector<8x512xf32>
      %53 = arith.maximumf %51, %52 : vector<8x512xf32>
      %c0_24 = arith.constant 0 : index
      %c0_25 = arith.constant 0 : index
      %54 = arith.index_cast %arg10 : i32 to index
      %c0_26 = arith.constant 0 : index
      %c0_27 = arith.constant 0 : index
      %55 = vector.load %arg9[%c0_24, %c0_25, %54, %c0_26, %c0_27] : memref<1x1x2x8x512xf32, #tpu.memory_space<vmem>>, vector<1x1x1x8x512xf32>
      %56 = vector.shape_cast %55 : vector<1x1x1x8x512xf32> to vector<8x512xf32>
      %57 = vector.shape_cast %53 : vector<8x512xf32> to vector<1x1x1x8x512xf32>
      tpu.vector_store %arg9[%c0_24, %c0_25, %54, %c0_26, %c0_27], %57 {strides = array<i32>} : memref<1x1x2x8x512xf32, #tpu.memory_space<vmem>>, vector<1x1x1x8x512xf32>,
    }
    %c2_i32_3 = arith.constant 2 : i32
    return
  }
  func.func @transform_0(%arg0: i32, %arg1: i32) -> (i32, i32, i32, i32) {
    %c0_i32 = arith.constant 0 : i32
    %c0_i32_0 = arith.constant 0 : i32
    %c0_i32_1 = arith.constant 0 : i32
    return %arg0, %arg1, %c0_i32, %c0_i32_0 : i32, i32, i32, i32
  }
  func.func @transform_1(%arg0: i32, %arg1: i32) -> (i32, i32, i32) {
    %c0_i32 = arith.constant 0 : i32
    %c0_i32_0 = arith.constant 0 : i32
    %c0_i32_1 = arith.constant 0 : i32
    %c0_i32_2 = arith.constant 0 : i32
    return %c0_i32, %c0_i32_0, %c0_i32_1 : i32, i32, i32
  }
  func.func @transform_2(%arg0: i32, %arg1: i32) -> (i32, i32, i32) {
    %c0_i32 = arith.constant 0 : i32
    %c0_i32_0 = arith.constant 0 : i32
    %c0_i32_1 = arith.constant 0 : i32
    return %c0_i32, %c0_i32_0, %arg0 : i32, i32, i32
  }
  func.func @transform_3(%arg0: i32, %arg1: i32) -> (i32, i32, i32) {
    %c0_i32 = arith.constant 0 : i32
    %c0_i32_0 = arith.constant 0 : i32
    %c0_i32_1 = arith.constant 0 : i32
    %c0_i32_2 = arith.constant 0 : i32
    return %c0_i32, %c0_i32_0, %c0_i32_1 : i32, i32, i32
  }
  func.func @transform_4(%arg0: i32, %arg1: i32) -> (i32, i32, i32) {
    %c0_i32 = arith.constant 0 : i32
    %c0_i32_0 = arith.constant 0 : i32
    %c0_i32_1 = arith.constant 0 : i32
    %c0_i32_2 = arith.constant 0 : i32
    return %c0_i32, %c0_i32_0, %c0_i32_1 : i32, i32, i32
  }
  func.func @transform_5(%arg0: i32, %arg1: i32) -> (i32, i32, i32) {
    %c0_i32 = arith.constant 0 : i32
    %c0_i32_0 = arith.constant 0 : i32
    %c0_i32_1 = arith.constant 0 : i32
    %c0_i32_2 = arith.constant 0 : i32
    return %c0_i32, %c0_i32_0, %c0_i32_1 : i32, i32, i32
  }
  func.func @transform_6(%arg0: i32, %arg1: i32) -> (i32, i32, i32) {
    %c0_i32 = arith.constant 0 : i32
    %c0_i32_0 = arith.constant 0 : i32
    %c0_i32_1 = arith.constant 0 : i32
    %c0_i32_2 = arith.constant 0 : i32
    return %c0_i32, %c0_i32_0, %c0_i32_1 : i32, i32, i32
  }
  func.func @transform_7(%arg0: i32, %arg1: i32) -> (i32, i32, i32, i32, i32) {
    %c0_i32 = arith.constant 0 : i32
    %c0_i32_0 = arith.constant 0 : i32
    %c0_i32_1 = arith.constant 0 : i32
    %c0_i32_2 = arith.constant 0 : i32
    return %arg0, %arg1, %c0_i32, %c0_i32_0, %c0_i32_1 : i32, i32, i32, i32, i32
  }
}

module attributes {stable_mosaic.version = 11 : i64} {
  func.func @_node_block_kernel(%arg0: i32, %arg1: i32, %arg2: memref<1x1x8x1024xbf16, #tpu.memory_space<vmem>>, %arg3: memref<2x256x8xbf16, #tpu.memory_space<vmem>>, %arg4: memref<2x256x128xf32, #tpu.memory_space<vmem>>, %arg5: memref<2x64x256xbf16, #tpu.memory_space<vmem>>, %arg6: memref<2x64x1xf32, #tpu.memory_space<vmem>>, %arg7: memref<2x3x64xbf16, #tpu.memory_space<vmem>>, %arg8: memref<2x3x1xf32, #tpu.memory_space<vmem>>, %arg9: memref<1x1x2x3x1024xf32, #tpu.memory_space<vmem>>) attributes {dimension_semantics = [#tpu.dimension_semantics<parallel>, #tpu.dimension_semantics<parallel>], iteration_bounds = array<i64: 1, 1>, scalar_prefetch = 0 : i64, scratch_operands = 0 : i64, tpu.core_type = #tpu.core_type<tc>, window_params = [{transform_indices = @transform_0, window_bounds = array<i64: 1, 1, 8, 1024>}, {pipeline_mode = #tpu.pipeline_mode<synchronous>, transform_indices = @transform_1, window_bounds = array<i64: 2, 256, 8>}, {transform_indices = @transform_2, window_bounds = array<i64: 2, 256, 128>}, {pipeline_mode = #tpu.pipeline_mode<synchronous>, transform_indices = @transform_3, window_bounds = array<i64: 2, 64, 256>}, {pipeline_mode = #tpu.pipeline_mode<synchronous>, transform_indices = @transform_4, window_bounds = array<i64: 2, 64, 1>}, {pipeline_mode = #tpu.pipeline_mode<synchronous>, transform_indices = @transform_5, window_bounds = array<i64: 2, 3, 64>}, {pipeline_mode = #tpu.pipeline_mode<synchronous>, transform_indices = @transform_6, window_bounds = array<i64: 2, 3, 1>}, {transform_indices = @transform_7, window_bounds = array<i64: 1, 1, 2, 3, 1024>}]} {
    %c0 = arith.constant 0 : index
    %c0_0 = arith.constant 0 : index
    %c0_1 = arith.constant 0 : index
    %c0_2 = arith.constant 0 : index
    %0 = vector.load %arg2[%c0, %c0_0, %c0_1, %c0_2] : memref<1x1x8x1024xbf16, #tpu.memory_space<vmem>>, vector<1x1x8x1024xbf16>
    %1 = vector.shape_cast %0 : vector<1x1x8x1024xbf16> to vector<8x1024xbf16>
    %c0_i32 = arith.constant 0 : i32
    %c2_i32 = arith.constant 2 : i32
    %2 = arith.addi %c0_i32, %c2_i32 : i32
    %c1_i32 = arith.constant 1 : i32
    scf.for %arg10 = %c0_i32 to %2 step %c1_i32  : i32 {
      %3 = arith.index_cast %arg10 : i32 to index
      %c0_4 = arith.constant 0 : index
      %c0_5 = arith.constant 0 : index
      %4 = vector.load %arg4[%3, %c0_4, %c0_5] : memref<2x256x128xf32, #tpu.memory_space<vmem>>, vector<1x256x128xf32>
      %5 = vector.shape_cast %4 : vector<1x256x128xf32> to vector<256x128xf32>
      %6 = arith.index_cast %arg10 : i32 to index
      %c0_6 = arith.constant 0 : index
      %c0_7 = arith.constant 0 : index
      %7 = vector.load %arg3[%6, %c0_6, %c0_7] : memref<2x256x8xbf16, #tpu.memory_space<vmem>>, vector<1x256x8xbf16>
      %8 = vector.shape_cast %7 : vector<1x256x8xbf16> to vector<256x8xbf16>
      %cst = arith.constant dense<0.000000e+00> : vector<256x1024xf32>
      %9 = tpu.matmul %8, %1, %cst {dimension_numbers = #tpu.dot_dimension_numbers<[1], [0], [0], [1], [0, 0, 1, 1], [], []>} : vector<256x8xbf16>, vector<8x1024xbf16>, vector<256x1024xf32> -> vector<256x1024xf32>
      %10 = vector.extract_strided_slice %9 {offsets = [0, 0], sizes = [256, 128], strides = [1, 1]} : vector<256x1024xf32> to vector<256x128xf32>
      %11 = arith.addf %10, %5 : vector<256x128xf32>
      %cst_8 = arith.constant 0.000000e+00 : f32
      %12 = vector.broadcast %cst_8 : f32 to vector<256x128xf32>
      %13 = arith.maximumf %11, %12 : vector<256x128xf32>
      %14 = arith.truncf %13 : vector<256x128xf32> to vector<256x128xbf16>
      %15 = vector.extract_strided_slice %9 {offsets = [0, 128], sizes = [256, 128], strides = [1, 1]} : vector<256x1024xf32> to vector<256x128xf32>
      %16 = arith.addf %15, %5 : vector<256x128xf32>
      %cst_9 = arith.constant 0.000000e+00 : f32
      %17 = vector.broadcast %cst_9 : f32 to vector<256x128xf32>
      %18 = arith.maximumf %16, %17 : vector<256x128xf32>
      %19 = arith.truncf %18 : vector<256x128xf32> to vector<256x128xbf16>
      %20 = vector.extract_strided_slice %9 {offsets = [0, 256], sizes = [256, 128], strides = [1, 1]} : vector<256x1024xf32> to vector<256x128xf32>
      %21 = arith.addf %20, %5 : vector<256x128xf32>
      %cst_10 = arith.constant 0.000000e+00 : f32
      %22 = vector.broadcast %cst_10 : f32 to vector<256x128xf32>
      %23 = arith.maximumf %21, %22 : vector<256x128xf32>
      %24 = arith.truncf %23 : vector<256x128xf32> to vector<256x128xbf16>
      %25 = vector.extract_strided_slice %9 {offsets = [0, 384], sizes = [256, 128], strides = [1, 1]} : vector<256x1024xf32> to vector<256x128xf32>
      %26 = arith.addf %25, %5 : vector<256x128xf32>
      %cst_11 = arith.constant 0.000000e+00 : f32
      %27 = vector.broadcast %cst_11 : f32 to vector<256x128xf32>
      %28 = arith.maximumf %26, %27 : vector<256x128xf32>
      %29 = arith.truncf %28 : vector<256x128xf32> to vector<256x128xbf16>
      %30 = vector.extract_strided_slice %9 {offsets = [0, 512], sizes = [256, 128], strides = [1, 1]} : vector<256x1024xf32> to vector<256x128xf32>
      %31 = arith.addf %30, %5 : vector<256x128xf32>
      %cst_12 = arith.constant 0.000000e+00 : f32
      %32 = vector.broadcast %cst_12 : f32 to vector<256x128xf32>
      %33 = arith.maximumf %31, %32 : vector<256x128xf32>
      %34 = arith.truncf %33 : vector<256x128xf32> to vector<256x128xbf16>
      %35 = vector.extract_strided_slice %9 {offsets = [0, 640], sizes = [256, 128], strides = [1, 1]} : vector<256x1024xf32> to vector<256x128xf32>
      %36 = arith.addf %35, %5 : vector<256x128xf32>
      %cst_13 = arith.constant 0.000000e+00 : f32
      %37 = vector.broadcast %cst_13 : f32 to vector<256x128xf32>
      %38 = arith.maximumf %36, %37 : vector<256x128xf32>
      %39 = arith.truncf %38 : vector<256x128xf32> to vector<256x128xbf16>
      %40 = vector.extract_strided_slice %9 {offsets = [0, 768], sizes = [256, 128], strides = [1, 1]} : vector<256x1024xf32> to vector<256x128xf32>
      %41 = arith.addf %40, %5 : vector<256x128xf32>
      %cst_14 = arith.constant 0.000000e+00 : f32
      %42 = vector.broadcast %cst_14 : f32 to vector<256x128xf32>
      %43 = arith.maximumf %41, %42 : vector<256x128xf32>
      %44 = arith.truncf %43 : vector<256x128xf32> to vector<256x128xbf16>
      %45 = vector.extract_strided_slice %9 {offsets = [0, 896], sizes = [256, 128], strides = [1, 1]} : vector<256x1024xf32> to vector<256x128xf32>
      %46 = arith.addf %45, %5 : vector<256x128xf32>
      %cst_15 = arith.constant 0.000000e+00 : f32
      %47 = vector.broadcast %cst_15 : f32 to vector<256x128xf32>
      %48 = arith.maximumf %46, %47 : vector<256x128xf32>
      %49 = arith.truncf %48 : vector<256x128xf32> to vector<256x128xbf16>
      %50 = tpu.concatenate %14, %19, %24, %29, %34, %39, %44, %49 in 1 : vector<256x128xbf16>, vector<256x128xbf16>, vector<256x128xbf16>, vector<256x128xbf16>, vector<256x128xbf16>, vector<256x128xbf16>, vector<256x128xbf16>, vector<256x128xbf16> -> vector<256x1024xbf16>
      %51 = arith.index_cast %arg10 : i32 to index
      %c0_16 = arith.constant 0 : index
      %c0_17 = arith.constant 0 : index
      %52 = vector.load %arg5[%51, %c0_16, %c0_17] : memref<2x64x256xbf16, #tpu.memory_space<vmem>>, vector<1x64x256xbf16>
      %53 = vector.shape_cast %52 : vector<1x64x256xbf16> to vector<64x256xbf16>
      %cst_18 = arith.constant dense<0.000000e+00> : vector<64x1024xf32>
      %54 = tpu.matmul %53, %50, %cst_18 {dimension_numbers = #tpu.dot_dimension_numbers<[1], [0], [0], [1], [0, 0, 1, 1], [], []>} : vector<64x256xbf16>, vector<256x1024xbf16>, vector<64x1024xf32> -> vector<64x1024xf32>
      %55 = arith.index_cast %arg10 : i32 to index
      %c0_19 = arith.constant 0 : index
      %c0_20 = arith.constant 0 : index
      %56 = vector.load %arg6[%55, %c0_19, %c0_20] : memref<2x64x1xf32, #tpu.memory_space<vmem>>, vector<1x64x1xf32>
      %57 = vector.shape_cast %56 : vector<1x64x1xf32> to vector<64x1xf32>
      %58 = vector.broadcast %57 : vector<64x1xf32> to vector<64x1024xf32>
      %59 = arith.addf %54, %58 : vector<64x1024xf32>
      %cst_21 = arith.constant 0.000000e+00 : f32
      %60 = vector.broadcast %cst_21 : f32 to vector<64x1024xf32>
      %61 = arith.maximumf %59, %60 : vector<64x1024xf32>
      %62 = arith.truncf %61 : vector<64x1024xf32> to vector<64x1024xbf16>
      %63 = arith.index_cast %arg10 : i32 to index
      %c0_22 = arith.constant 0 : index
      %c0_23 = arith.constant 0 : index
      %64 = vector.load %arg7[%63, %c0_22, %c0_23] : memref<2x3x64xbf16, #tpu.memory_space<vmem>>, vector<1x3x64xbf16>
      %65 = vector.shape_cast %64 : vector<1x3x64xbf16> to vector<3x64xbf16>
      %cst_24 = arith.constant dense<0.000000e+00> : vector<3x1024xf32>
      %66 = tpu.matmul %65, %62, %cst_24 {dimension_numbers = #tpu.dot_dimension_numbers<[1], [0], [0], [1], [0, 0, 1, 1], [], []>} : vector<3x64xbf16>, vector<64x1024xbf16>, vector<3x1024xf32> -> vector<3x1024xf32>
      %67 = arith.index_cast %arg10 : i32 to index
      %c0_25 = arith.constant 0 : index
      %c0_26 = arith.constant 0 : index
      %68 = vector.load %arg8[%67, %c0_25, %c0_26] : memref<2x3x1xf32, #tpu.memory_space<vmem>>, vector<1x3x1xf32>
      %69 = vector.shape_cast %68 : vector<1x3x1xf32> to vector<3x1xf32>
      %70 = vector.broadcast %69 : vector<3x1xf32> to vector<3x1024xf32>
      %71 = arith.addf %66, %70 : vector<3x1024xf32>
      %c0_27 = arith.constant 0 : index
      %c0_28 = arith.constant 0 : index
      %72 = arith.index_cast %arg10 : i32 to index
      %c0_29 = arith.constant 0 : index
      %c0_30 = arith.constant 0 : index
      %73 = vector.load %arg9[%c0_27, %c0_28, %72, %c0_29, %c0_30] : memref<1x1x2x3x1024xf32, #tpu.memory_space<vmem>>, vector<1x1x1x3x1024xf32>
      %74 = vector.shape_cast %73 : vector<1x1x1x3x1024xf32> to vector<3x1024xf32>
      %75 = vector.shape_cast %71 : vector<3x1024xf32> to vector<1x1x1x3x1024xf32>
      tpu.vector_store %arg9[%c0_27, %c0_28, %72, %c0_29, %c0_30], %75 {strides = array<i32>} : memref<1x1x2x3x1024xf32, #tpu.memory_space<vmem>>, vector<1x1x1x3x1024xf32>,
    }
    %c2_i32_3 = arith.constant 2 : i32
    return
  }
  func.func @transform_0(%arg0: i32, %arg1: i32) -> (i32, i32, i32, i32) {
    %c0_i32 = arith.constant 0 : i32
    %c0_i32_0 = arith.constant 0 : i32
    %c0_i32_1 = arith.constant 0 : i32
    return %arg0, %arg1, %c0_i32, %c0_i32_0 : i32, i32, i32, i32
  }
  func.func @transform_1(%arg0: i32, %arg1: i32) -> (i32, i32, i32) {
    %c0_i32 = arith.constant 0 : i32
    %c0_i32_0 = arith.constant 0 : i32
    %c0_i32_1 = arith.constant 0 : i32
    %c0_i32_2 = arith.constant 0 : i32
    return %c0_i32, %c0_i32_0, %c0_i32_1 : i32, i32, i32
  }
  func.func @transform_2(%arg0: i32, %arg1: i32) -> (i32, i32, i32) {
    %c0_i32 = arith.constant 0 : i32
    %c0_i32_0 = arith.constant 0 : i32
    %c0_i32_1 = arith.constant 0 : i32
    return %c0_i32, %c0_i32_0, %arg0 : i32, i32, i32
  }
  func.func @transform_3(%arg0: i32, %arg1: i32) -> (i32, i32, i32) {
    %c0_i32 = arith.constant 0 : i32
    %c0_i32_0 = arith.constant 0 : i32
    %c0_i32_1 = arith.constant 0 : i32
    %c0_i32_2 = arith.constant 0 : i32
    return %c0_i32, %c0_i32_0, %c0_i32_1 : i32, i32, i32
  }
  func.func @transform_4(%arg0: i32, %arg1: i32) -> (i32, i32, i32) {
    %c0_i32 = arith.constant 0 : i32
    %c0_i32_0 = arith.constant 0 : i32
    %c0_i32_1 = arith.constant 0 : i32
    %c0_i32_2 = arith.constant 0 : i32
    return %c0_i32, %c0_i32_0, %c0_i32_1 : i32, i32, i32
  }
  func.func @transform_5(%arg0: i32, %arg1: i32) -> (i32, i32, i32) {
    %c0_i32 = arith.constant 0 : i32
    %c0_i32_0 = arith.constant 0 : i32
    %c0_i32_1 = arith.constant 0 : i32
    %c0_i32_2 = arith.constant 0 : i32
    return %c0_i32, %c0_i32_0, %c0_i32_1 : i32, i32, i32
  }
  func.func @transform_6(%arg0: i32, %arg1: i32) -> (i32, i32, i32) {
    %c0_i32 = arith.constant 0 : i32
    %c0_i32_0 = arith.constant 0 : i32
    %c0_i32_1 = arith.constant 0 : i32
    %c0_i32_2 = arith.constant 0 : i32
    return %c0_i32, %c0_i32_0, %c0_i32_1 : i32, i32, i32
  }
  func.func @transform_7(%arg0: i32, %arg1: i32) -> (i32, i32, i32, i32, i32) {
    %c0_i32 = arith.constant 0 : i32
    %c0_i32_0 = arith.constant 0 : i32
    %c0_i32_1 = arith.constant 0 : i32
    %c0_i32_2 = arith.constant 0 : i32
    return %arg0, %arg1, %c0_i32, %c0_i32_0, %c0_i32_1 : i32, i32, i32, i32, i32
  }
}

</mosaic_0001>

<llo_original>
// kernel: topnet_decoder_forward.9
$region0: #{topnet_decoder_forward.9}
  #allocation0 [shape = 'u32[]', space=smem, size = 0x4, offset = 0x4, fixed_abs, tag = 'smem constant byte address 0x4 - core index']
  #allocation1 [shape = 'u32[72,128]{1,0:T(1,128)}', space=vmem, size = 0x9000, scoped, tag = 'internal scratch']
  %s0 = inlined_call_operand.vmem [shape: f32[2,256,128], index: 0, kind: input, shape index: {}]
  %s1 = inlined_call_operand.vmem [shape: bf16[2,64,256], index: 1, kind: input, shape index: {}]
  %s2 = inlined_call_operand.vmem [shape: f32[2,64,1], index: 2, kind: input, shape index: {}]
  %s3 = inlined_call_operand.vmem [shape: bf16[2,8,64], index: 3, kind: input, shape index: {}]
  %s4 = inlined_call_operand.vmem [shape: f32[2,8,1], index: 4, kind: input, shape index: {}]
  %s5 = inlined_call_operand.vmem [shape: f32[1,1,2,8,128], index: 5, kind: output, shape index: {}]
  %s6 = sld [smem:[#allocation0]]
  $region37: #{topnet_decoder_forward.9} parent=0
    _
  %s8 = ssub.s32 1, %s6
  %s9 = scalar_select 0, %s8, %s6
  // Predicated region
  $region2: #{topnet_decoder_forward.9} parent=0 // pred_check
    _
  $region3: #{topnet_decoder_forward.9} parent=0 // pred_check_branch
    %11 = sbr.rel (0) target = $region5
  $region4: #{topnet_decoder_forward.9} parent=0 // pred_region
    _
  $region5: #{topnet_decoder_forward.9} parent=0 // pred_fallthru
    _
  // Predicated region
  $region6: #{topnet_decoder_forward.9} parent=0 // pred_check
    _
  $region7: #{topnet_decoder_forward.9} parent=0 // pred_check_branch
    %13 = sbr.rel (0) target = $region9
  $region8: #{topnet_decoder_forward.9} parent=0 // pred_region
    _
  $region9: #{topnet_decoder_forward.9} parent=0 // pred_fallthru
    _
  // Predicated region
  $region10: #{topnet_decoder_forward.9} parent=0 // pred_check
    _
  $region11: #{topnet_decoder_forward.9} parent=0 // pred_check_branch
    %15 = sbr.rel (0) target = $region13
  $region12: #{topnet_decoder_forward.9} parent=0 // pred_region
    _
  $region13: #{topnet_decoder_forward.9} parent=0 // pred_fallthru
    _
  // Predicated region
  $region14: #{topnet_decoder_forward.9} parent=0 // pred_check
    _
  $region15: #{topnet_decoder_forward.9} parent=0 // pred_check_branch
    %17 = sbr.rel (0) target = $region17
  $region16: #{topnet_decoder_forward.9} parent=0 // pred_region
    _
  $region17: #{topnet_decoder_forward.9} parent=0 // pred_fallthru
    _
  // Predicated region
  $region18: #{topnet_decoder_forward.9} parent=0 // pred_check
    _
  $region19: #{topnet_decoder_forward.9} parent=0 // pred_check_branch
    %19 = sbr.rel (0) target = $region21
  $region20: #{topnet_decoder_forward.9} parent=0 // pred_region
    _
  $region21: #{topnet_decoder_forward.9} parent=0 // pred_fallthru
    _
  loop: start=0, step=1, limit=2
  $region22: #{topnet_decoder_forward.9} parent=0 // loop_pre_header
    _
  $region23: #{topnet_decoder_forward.9} parent=0 // loop_header
    %s22 = sphi 0, %s26
    %p23 = scmp.ge.s32.totalorder %s22, 2
  $region24: #{topnet_decoder_forward.9} parent=0 // loop_header_branch
    %25 = sbr.rel (%p23) target = $region28
  $region25: #{topnet_decoder_forward.9} parent=0 // loop_body
    %s27 = smul.u32 %s22, 256
    %s28 = scalar_lea.vmem %s0, %s27
    %v29 = vld [vmem:[%s28] sm:$0xff]
    %v30 = vld [vmem:[%s28 + $0x8] sm:$0xff]
    %v31 = vld [vmem:[%s28 + $0x10] sm:$0xff]
    %v32 = vld [vmem:[%s28 + $0x18] sm:$0xff]
    %v33 = vld [vmem:[%s28 + $0x20] sm:$0xff]
    %v34 = vld [vmem:[%s28 + $0x28] sm:$0xff]
    %v35 = vld [vmem:[%s28 + $0x30] sm:$0xff]
    %v36 = vld [vmem:[%s28 + $0x38] sm:$0xff]
    %v37 = vld [vmem:[%s28 + $0x40] sm:$0xff]
    %v38 = vld [vmem:[%s28 + $0x48] sm:$0xff]
    %v39 = vld [vmem:[%s28 + $0x50] sm:$0xff]
    %v40 = vld [vmem:[%s28 + $0x58] sm:$0xff]
    %v41 = vld [vmem:[%s28 + $0x60] sm:$0xff]
    %v42 = vld [vmem:[%s28 + $0x68] sm:$0xff]
    %v43 = vld [vmem:[%s28 + $0x70] sm:$0xff]
    %v44 = vld [vmem:[%s28 + $0x78] sm:$0xff]
    %v45 = vld [vmem:[%s28 + $0x80] sm:$0xff]
    %v46 = vld [vmem:[%s28 + $0x88] sm:$0xff]
    %v47 = vld [vmem:[%s28 + $0x90] sm:$0xff]
    %v48 = vld [vmem:[%s28 + $0x98] sm:$0xff]
    %v49 = vld [vmem:[%s28 + $0xa0] sm:$0xff]
    %v50 = vld [vmem:[%s28 + $0xa8] sm:$0xff]
    %v51 = vld [vmem:[%s28 + $0xb0] sm:$0xff]
    %v52 = vld [vmem:[%s28 + $0xb8] sm:$0xff]
    %v53 = vld [vmem:[%s28 + $0xc0] sm:$0xff]
    %v54 = vld [vmem:[%s28 + $0xc8] sm:$0xff]
    %v55 = vld [vmem:[%s28 + $0xd0] sm:$0xff]
    %v56 = vld [vmem:[%s28 + $0xd8] sm:$0xff]
    %v57 = vld [vmem:[%s28 + $0xe0] sm:$0xff]
    %v58 = vld [vmem:[%s28 + $0xe8] sm:$0xff]
    %v59 = vld [vmem:[%s28 + $0xf0] sm:$0xff]
    %v60 = vld [vmem:[%s28 + $0xf8] sm:$0xff]
    %v61 = vmax.f32 %v29, 0.0
    %v62 = vmax.f32 %v30, 0.0
    %v63 = vmax.f32 %v31, 0.0
    %v64 = vmax.f32 %v32, 0.0
    %v65 = vmax.f32 %v33, 0.0
    %v66 = vmax.f32 %v34, 0.0
    %v67 = vmax.f32 %v35, 0.0
    %v68 = vmax.f32 %v36, 0.0
    %v69 = vmax.f32 %v37, 0.0
    %v70 = vmax.f32 %v38, 0.0
    %v71 = vmax.f32 %v39, 0.0
    %v72 = vmax.f32 %v40, 0.0
    %v73 = vmax.f32 %v41, 0.0
    %v74 = vmax.f32 %v42, 0.0
    %v75 = vmax.f32 %v43, 0.0
    %v76 = vmax.f32 %v44, 0.0
    %v77 = vmax.f32 %v45, 0.0
    %v78 = vmax.f32 %v46, 0.0
    %v79 = vmax.f32 %v47, 0.0
    %v80 = vmax.f32 %v48, 0.0
    %v81 = vmax.f32 %v49, 0.0
    %v82 = vmax.f32 %v50, 0.0
    %v83 = vmax.f32 %v51, 0.0
    %v84 = vmax.f32 %v52, 0.0
    %v85 = vmax.f32 %v53, 0.0
    %v86 = vmax.f32 %v54, 0.0
    %v87 = vmax.f32 %v55, 0.0
    %v88 = vmax.f32 %v56, 0.0
    %v89 = vmax.f32 %v57, 0.0
    %v90 = vmax.f32 %v58, 0.0
    %v91 = vmax.f32 %v59, 0.0
    %v92 = vmax.f32 %v60, 0.0
    %v93 = vpack.c.bf16 %v62, %v61
    %v94 = vpack.c.bf16 %v64, %v63
    %v95 = vpack.c.bf16 %v66, %v65
    %v96 = vpack.c.bf16 %v68, %v67
    %v97 = vpack.c.bf16 %v70, %v69
    %v98 = vpack.c.bf16 %v72, %v71
    %v99 = vpack.c.bf16 %v74, %v73
    %v100 = vpack.c.bf16 %v76, %v75
    %v101 = vpack.c.bf16 %v78, %v77
    %v102 = vpack.c.bf16 %v80, %v79
    %v103 = vpack.c.bf16 %v82, %v81
    %v104 = vpack.c.bf16 %v84, %v83
    %v105 = vpack.c.bf16 %v86, %v85
    %v106 = vpack.c.bf16 %v88, %v87
    %v107 = vpack.c.bf16 %v90, %v89
    %v108 = vpack.c.bf16 %v92, %v91
    %s109 = smul.u32 %s22, 16
    %s110 = smul.addr %s109, 4
    %s111 = scalar_lea.vmem %s1, %s110
    %v112 = vld [vmem:[%s111] sm:$0xff]
    %v113 = vld [vmem:[%s111 + $0x8] sm:$0xff]
    %v114 = vld [vmem:[%s111 + $0x10] sm:$0xff]
    %v115 = vld [vmem:[%s111 + $0x18] sm:$0xff]
    %v116 = vld [vmem:[%s111 + $0x20] sm:$0xff]
    %v117 = vld [vmem:[%s111 + $0x28] sm:$0xff]
    %v118 = vld [vmem:[%s111 + $0x30] sm:$0xff]
    %v119 = vld [vmem:[%s111 + $0x38] sm:$0xff]
    %s120 = smul.u32 %s22, 64
    %s121 = scalar_lea.vmem %s2, %s120
    %v122 = vld [vmem:[%s121] sm:$0xff]
    %v123 = vld [vmem:[%s121 + $0x8] sm:$0xff]
    %v124 = vld [vmem:[%s121 + $0x10] sm:$0xff]
    %v125 = vld [vmem:[%s121 + $0x18] sm:$0xff]
    %v126 = vld [vmem:[%s121 + $0x20] sm:$0xff]
    %v127 = vld [vmem:[%s121 + $0x28] sm:$0xff]
    %v128 = vld [vmem:[%s121 + $0x30] sm:$0xff]
    %v129 = vld [vmem:[%s121 + $0x38] sm:$0xff]
    %131 = vset.pattern.permute.xlu0 0
    %132 = vperm.xlu0 %131, %v122
    %v133 = vpop.permute.xlu0 %132
    %136 = vset.pattern.permute.xlu0 0
    %137 = vperm.xlu0 %136, %v123
    %v138 = vpop.permute.xlu0 %137
    %141 = vset.pattern.permute.xlu0 0
    %142 = vperm.xlu0 %141, %v124
    %v143 = vpop.permute.xlu0 %142
    %146 = vset.pattern.permute.xlu0 0
    %147 = vperm.xlu0 %146, %v125
    %v148 = vpop.permute.xlu0 %147
    %151 = vset.pattern.permute.xlu0 0
    %152 = vperm.xlu0 %151, %v126
    %v153 = vpop.permute.xlu0 %152
    %156 = vset.pattern.permute.xlu0 0
    %157 = vperm.xlu0 %156, %v127
    %v158 = vpop.permute.xlu0 %157
    %161 = vset.pattern.permute.xlu0 0
    %162 = vperm.xlu0 %161, %v128
    %v163 = vpop.permute.xlu0 %162
    %166 = vset.pattern.permute.xlu0 0
    %167 = vperm.xlu0 %166, %v129
    %v168 = vpop.permute.xlu0 %167
    %v178 = vunpack.c.l.b16 %v112
    %v179 = vunpack.c.h.b16 %v112
    %v180 = vunpack.c.l.b16 %v113
    %v181 = vunpack.c.h.b16 %v113
    %v182 = vunpack.c.l.b16 %v114
    %v183 = vunpack.c.h.b16 %v114
    %v184 = vunpack.c.l.b16 %v115
    %v185 = vunpack.c.h.b16 %v115
    %v186 = vunpack.c.l.b16 %v116
    %v187 = vunpack.c.h.b16 %v116
    %v188 = vunpack.c.l.b16 %v117
    %v189 = vunpack.c.h.b16 %v117
    %v190 = vunpack.c.l.b16 %v118
    %v191 = vunpack.c.h.b16 %v118
    %v192 = vunpack.c.l.b16 %v119
    %v193 = vunpack.c.h.b16 %v119
    %v194 = vpack.c.b16 %v180, %v178
    %v195 = vpack.c.b16 %v181, %v179
    %v196 = vpack.c.b16 %v184, %v182
    %v197 = vpack.c.b16 %v185, %v183
    %v198 = vpack.c.b16 %v188, %v186
    %v199 = vpack.c.b16 %v189, %v187
    %v200 = vpack.c.b16 %v192, %v190
    %v201 = vpack.c.b16 %v193, %v191
    %210 = vmatpush.bf16.msra.mxu0 %v100
    %211 = vmatpush.bf16.msra.mxu0 %v99
    %212 = vmatpush.bf16.msra.mxu0 %v98
    %213 = vmatpush.bf16.msra.mxu0 %v97
    %214 = vmatpush.bf16.msra.mxu0 %v96
    %215 = vmatpush.bf16.msra.mxu0 %v95
    %216 = vmatpush.bf16.msra.mxu0 %v94
    %217 = vmatpush.bf16.msra.mxu0 %v93
    %218 = vmatmul.bf16.gmra.mxu0 %v194
    %v219 = vpop.f32.mrf.mxu0
    %v220 = vadd.f32 %v133, %v219
    %v221 = vpop.f32.mrf.mxu0
    %v222 = vadd.f32 %v138, %v221
    %223 = vmatmul.bf16.gmra.mxu0 %v196
    %v224 = vpop.f32.mrf.mxu0
    %v225 = vadd.f32 %v143, %v224
    %v226 = vpop.f32.mrf.mxu0
    %v227 = vadd.f32 %v148, %v226
    %228 = vmatmul.bf16.gmra.mxu0 %v198
    %v229 = vpop.f32.mrf.mxu0
    %v230 = vadd.f32 %v153, %v229
    %v231 = vpop.f32.mrf.mxu0
    %v232 = vadd.f32 %v158, %v231
    %233 = vmatmul.bf16.gmra.mxu0 %v200
    %v234 = vpop.f32.mrf.mxu0
    %v235 = vadd.f32 %v163, %v234
    %v236 = vpop.f32.mrf.mxu0
    %v237 = vadd.f32 %v168, %v236
    %238 = vdwg.mxu0
    %239 = vmatpush.bf16.msra.mxu0 %v108
    %240 = vmatpush.bf16.msra.mxu0 %v107
    %241 = vmatpush.bf16.msra.mxu0 %v106
    %242 = vmatpush.bf16.msra.mxu0 %v105
    %243 = vmatpush.bf16.msra.mxu0 %v104
    %244 = vmatpush.bf16.msra.mxu0 %v103
    %245 = vmatpush.bf16.msra.mxu0 %v102
    %246 = vmatpush.bf16.msra.mxu0 %v101
    %247 = vmatmul.bf16.gmra.mxu0 %v195
    %v248 = vpop.f32.mrf.mxu0
    %v249 = vadd.f32 %v220, %v248
    %v250 = vpop.f32.mrf.mxu0
    %v251 = vadd.f32 %v222, %v250
    %252 = vmatmul.bf16.gmra.mxu0 %v197
    %v253 = vpop.f32.mrf.mxu0
    %v254 = vadd.f32 %v225, %v253
    %v255 = vpop.f32.mrf.mxu0
    %v256 = vadd.f32 %v227, %v255
    %257 = vmatmul.bf16.gmra.mxu0 %v199
    %v258 = vpop.f32.mrf.mxu0
    %v259 = vadd.f32 %v230, %v258
    %v260 = vpop.f32.mrf.mxu0
    %v261 = vadd.f32 %v232, %v260
    %262 = vmatmul.bf16.gmra.mxu0 %v201
    %v263 = vpop.f32.mrf.mxu0
    %v264 = vadd.f32 %v235, %v263
    %v265 = vpop.f32.mrf.mxu0
    %v266 = vadd.f32 %v237, %v265
    %267 = vdwg.mxu0
    %v268 = vmax.f32 %v249, 0.0
    %v269 = vmax.f32 %v251, 0.0
    %v270 = vmax.f32 %v254, 0.0
    %v271 = vmax.f32 %v256, 0.0
    %v272 = vmax.f32 %v259, 0.0
    %v273 = vmax.f32 %v261, 0.0
    %v274 = vmax.f32 %v264, 0.0
    %v275 = vmax.f32 %v266, 0.0
    %v276 = vpack.c.bf16 %v269, %v268
    %v277 = vpack.c.bf16 %v271, %v270
    %v278 = vpack.c.bf16 %v273, %v272
    %v279 = vpack.c.bf16 %v275, %v274
    %s280 = smul.addr %s22, 4
    %s281 = scalar_lea.vmem %s3, %s280
    %v282 = vld [vmem:[%s281] sm:$0xf]
    %s283 = smul.u32 %s22, 8
    %s284 = scalar_lea.vmem %s4, %s283
    %v285 = vld [vmem:[%s284] sm:$0xff]
    %287 = vset.pattern.permute.xlu0 0
    %288 = vperm.xlu0 %287, %v285
    %v289 = vpop.permute.xlu0 %288
    %vm291 = vcmask 523264
    %v293 = vsel %vm291, %v282, 0
    %295 = vmatpush.bf16.msra.mxu0 0
    %296 = vmatpush.bf16.msra.mxu0 0
    %297 = vmatpush.bf16.msra.mxu0 0
    %298 = vmatpush.bf16.msra.mxu0 0
    %299 = vmatpush.bf16.msra.mxu0 %v279
    %300 = vmatpush.bf16.msra.mxu0 %v278
    %301 = vmatpush.bf16.msra.mxu0 %v277
    %302 = vmatpush.bf16.msra.mxu0 %v276
    %303 = vmatmul.bf16.gmra.mxu0 %v293
    %v304 = vpop.f32.mrf.mxu0
    %v305 = vadd.f32 %v289, %v304
    %v306 = vpop.f32.mrf.mxu0
    %307 = vdwg.mxu0
    %v308 = vmax.f32 %v305, 0.0
    %s309 = scalar_lea.vmem %s5, %s283
    %310 = vst [vmem:[%s309] sm:$0xff] %v308
  $region26: #{topnet_decoder_forward.9} parent=0 // loop_footer
    %s26 = sadd.s32 1, %s22
  $region27: #{topnet_decoder_forward.9} parent=0 // loop_footer_branch
    %21 = sbr.rel target = $region23
  $region28: #{topnet_decoder_forward.9} parent=0 // loop_exit
    _
  // Predicated region
  $region29: #{topnet_decoder_forward.9} parent=0 // pred_check
    _
  $region30: #{topnet_decoder_forward.9} parent=0 // pred_check_branch
    %312 = sbr.rel (0) target = $region32
  $region31: #{topnet_decoder_forward.9} parent=0 // pred_region
    _
  $region32: #{topnet_decoder_forward.9} parent=0 // pred_fallthru
    _
  // Predicated region
  $region33: #{topnet_decoder_forward.9} parent=0 // pred_check
    _
  $region34: #{topnet_decoder_forward.9} parent=0 // pred_check_branch
    %314 = sbr.rel (0) target = $region36
  $region35: #{topnet_decoder_forward.9} parent=0 // pred_region
    _
  $region36: #{topnet_decoder_forward.9} parent=0 // pred_fallthru
    _

// kernel: topnet_decoder_forward.8
$region0: #{topnet_decoder_forward.8}
  #allocation0 [shape = 'u32[]', space=smem, size = 0x4, offset = 0x4, fixed_abs, tag = 'smem constant byte address 0x4 - core index']
  #allocation1 [shape = 'u32[72,128]{1,0:T(1,128)}', space=vmem, size = 0x9000, scoped, tag = 'internal scratch']
  %s0 = inlined_call_operand.vmem [shape: bf16[1024,128], index: 0, kind: input, shape index: {}]
  %s1 = inlined_call_operand.vmem [shape: bf16[2,256,1024], index: 1, kind: input, shape index: {}]
  %s2 = inlined_call_operand.vmem [shape: f32[2,256,1], index: 2, kind: input, shape index: {}]
  %s3 = inlined_call_operand.vmem [shape: f32[2,256,128], index: 3, kind: output, shape index: {}]
  %s4 = sld [smem:[#allocation0]]
  $region29: #{topnet_decoder_forward.8} parent=0
    _
  %s6 = ssub.s32 1, %s4
  %s7 = scalar_select 0, %s6, %s4
  // Predicated region
  $region2: #{topnet_decoder_forward.8} parent=0 // pred_check
    _
  $region3: #{topnet_decoder_forward.8} parent=0 // pred_check_branch
    %9 = sbr.rel (0) target = $region5
  $region4: #{topnet_decoder_forward.8} parent=0 // pred_region
    _
  $region5: #{topnet_decoder_forward.8} parent=0 // pred_fallthru
    _
  // Predicated region
  $region6: #{topnet_decoder_forward.8} parent=0 // pred_check
    _
  $region7: #{topnet_decoder_forward.8} parent=0 // pred_check_branch
    %11 = sbr.rel (0) target = $region9
  $region8: #{topnet_decoder_forward.8} parent=0 // pred_region
    _
  $region9: #{topnet_decoder_forward.8} parent=0 // pred_fallthru
    _
  // Predicated region
  $region10: #{topnet_decoder_forward.8} parent=0 // pred_check
    _
  $region11: #{topnet_decoder_forward.8} parent=0 // pred_check_branch
    %13 = sbr.rel (0) target = $region13
  $region12: #{topnet_decoder_forward.8} parent=0 // pred_region
    _
  $region13: #{topnet_decoder_forward.8} parent=0 // pred_fallthru
    _
  %v14 = vld [vmem:[%s0] sm:$0xf]
  %v15 = vld [vmem:[%s0 + $0x4] sm:$0xf]
  %v16 = vld [vmem:[%s0 + $0x8] sm:$0xf]
  %v17 = vld [vmem:[%s0 + $0xc] sm:$0xf]
  %v18 = vld [vmem:[%s0 + $0x10] sm:$0xf]
  %v19 = vld [vmem:[%s0 + $0x14] sm:$0xf]
  %v20 = vld [vmem:[%s0 + $0x18] sm:$0xf]
  %v21 = vld [vmem:[%s0 + $0x1c] sm:$0xf]
  %v22 = vld [vmem:[%s0 + $0x20] sm:$0xf]
  %v23 = vld [vmem:[%s0 + $0x24] sm:$0xf]
  %v24 = vld [vmem:[%s0 + $0x28] sm:$0xf]
  %v25 = vld [vmem:[%s0 + $0x2c] sm:$0xf]
  %v26 = vld [vmem:[%s0 + $0x30] sm:$0xf]
  %v27 = vld [vmem:[%s0 + $0x34] sm:$0xf]
  %v28 = vld [vmem:[%s0 + $0x38] sm:$0xf]
  %v29 = vld [vmem:[%s0 + $0x3c] sm:$0xf]
  %v30 = vld [vmem:[%s0 + $0x40] sm:$0xf]
  %v31 = vld [vmem:[%s0 + $0x44] sm:$0xf]
  %v32 = vld [vmem:[%s0 + $0x48] sm:$0xf]
  %v33 = vld [vmem:[%s0 + $0x4c] sm:$0xf]
  %v34 = vld [vmem:[%s0 + $0x50] sm:$0xf]
  %v35 = vld [vmem:[%s0 + $0x54] sm:$0xf]
  %v36 = vld [vmem:[%s0 + $0x58] sm:$0xf]
  %v37 = vld [vmem:[%s0 + $0x5c] sm:$0xf]
  %v38 = vld [vmem:[%s0 + $0x60] sm:$0xf]
  %v39 = vld [vmem:[%s0 + $0x64] sm:$0xf]
  %v40 = vld [vmem:[%s0 + $0x68] sm:$0xf]
  %v41 = vld [vmem:[%s0 + $0x6c] sm:$0xf]
  %v42 = vld [vmem:[%s0 + $0x70] sm:$0xf]
  %v43 = vld [vmem:[%s0 + $0x74] sm:$0xf]
  %v44 = vld [vmem:[%s0 + $0x78] sm:$0xf]
  %v45 = vld [vmem:[%s0 + $0x7c] sm:$0xf]
  %v46 = vld [vmem:[%s0 + $0x80] sm:$0xf]
  %v47 = vld [vmem:[%s0 + $0x84] sm:$0xf]
  %v48 = vld [vmem:[%s0 + $0x88] sm:$0xf]
  %v49 = vld [vmem:[%s0 + $0x8c] sm:$0xf]
  %v50 = vld [vmem:[%s0 + $0x90] sm:$0xf]
  %v51 = vld [vmem:[%s0 + $0x94] sm:$0xf]
  %v52 = vld [vmem:[%s0 + $0x98] sm:$0xf]
  %v53 = vld [vmem:[%s0 + $0x9c] sm:$0xf]
  %v54 = vld [vmem:[%s0 + $0xa0] sm:$0xf]
  %v55 = vld [vmem:[%s0 + $0xa4] sm:$0xf]
  %v56 = vld [vmem:[%s0 + $0xa8] sm:$0xf]
  %v57 = vld [vmem:[%s0 + $0xac] sm:$0xf]
  %v58 = vld [vmem:[%s0 + $0xb0] sm:$0xf]
  %v59 = vld [vmem:[%s0 + $0xb4] sm:$0xf]
  %v60 = vld [vmem:[%s0 + $0xb8] sm:$0xf]
  %v61 = vld [vmem:[%s0 + $0xbc] sm:$0xf]
  %v62 = vld [vmem:[%s0 + $0xc0] sm:$0xf]
  %v63 = vld [vmem:[%s0 + $0xc4] sm:$0xf]
  %v64 = vld [vmem:[%s0 + $0xc8] sm:$0xf]
  %v65 = vld [vmem:[%s0 + $0xcc] sm:$0xf]
  %v66 = vld [vmem:[%s0 + $0xd0] sm:$0xf]
  %v67 = vld [vmem:[%s0 + $0xd4] sm:$0xf]
  %v68 = vld [vmem:[%s0 + $0xd8] sm:$0xf]
  %v69 = vld [vmem:[%s0 + $0xdc] sm:$0xf]
  %v70 = vld [vmem:[%s0 + $0xe0] sm:$0xf]
  %v71 = vld [vmem:[%s0 + $0xe4] sm:$0xf]
  %v72 = vld [vmem:[%s0 + $0xe8] sm:$0xf]
  %v73 = vld [vmem:[%s0 + $0xec] sm:$0xf]
  %v74 = vld [vmem:[%s0 + $0xf0] sm:$0xf]
  %v75 = vld [vmem:[%s0 + $0xf4] sm:$0xf]
  %v76 = vld [vmem:[%s0 + $0xf8] sm:$0xf]
  %v77 = vld [vmem:[%s0 + $0xfc] sm:$0xf]
  %v78 = vld [vmem:[%s0 + $0x100] sm:$0xf]
  %v79 = vld [vmem:[%s0 + $0x104] sm:$0xf]
  %v80 = vld [vmem:[%s0 + $0x108] sm:$0xf]
  %v81 = vld [vmem:[%s0 + $0x10c] sm:$0xf]
  %v82 = vld [vmem:[%s0 + $0x110] sm:$0xf]
  %v83 = vld [vmem:[%s0 + $0x114] sm:$0xf]
  %v84 = vld [vmem:[%s0 + $0x118] sm:$0xf]
  %v85 = vld [vmem:[%s0 + $0x11c] sm:$0xf]
  %v86 = vld [vmem:[%s0 + $0x120] sm:$0xf]
  %v87 = vld [vmem:[%s0 + $0x124] sm:$0xf]
  %v88 = vld [vmem:[%s0 + $0x128] sm:$0xf]
  %v89 = vld [vmem:[%s0 + $0x12c] sm:$0xf]
  %v90 = vld [vmem:[%s0 + $0x130] sm:$0xf]
  %v91 = vld [vmem:[%s0 + $0x134] sm:$0xf]
  %v92 = vld [vmem:[%s0 + $0x138] sm:$0xf]
  %v93 = vld [vmem:[%s0 + $0x13c] sm:$0xf]
  %v94 = vld [vmem:[%s0 + $0x140] sm:$0xf]
  %v95 = vld [vmem:[%s0 + $0x144] sm:$0xf]
  %v96 = vld [vmem:[%s0 + $0x148] sm:$0xf]
  %v97 = vld [vmem:[%s0 + $0x14c] sm:$0xf]
  %v98 = vld [vmem:[%s0 + $0x150] sm:$0xf]
  %v99 = vld [vmem:[%s0 + $0x154] sm:$0xf]
  %v100 = vld [vmem:[%s0 + $0x158] sm:$0xf]
  %v101 = vld [vmem:[%s0 + $0x15c] sm:$0xf]
  %v102 = vld [vmem:[%s0 + $0x160] sm:$0xf]
  %v103 = vld [vmem:[%s0 + $0x164] sm:$0xf]
  %v104 = vld [vmem:[%s0 + $0x168] sm:$0xf]
  %v105 = vld [vmem:[%s0 + $0x16c] sm:$0xf]
  %v106 = vld [vmem:[%s0 + $0x170] sm:$0xf]
  %v107 = vld [vmem:[%s0 + $0x174] sm:$0xf]
  %v108 = vld [vmem:[%s0 + $0x178] sm:$0xf]
  %v109 = vld [vmem:[%s0 + $0x17c] sm:$0xf]
  %v110 = vld [vmem:[%s0 + $0x180] sm:$0xf]
  %v111 = vld [vmem:[%s0 + $0x184] sm:$0xf]
  %v112 = vld [vmem:[%s0 + $0x188] sm:$0xf]
  %v113 = vld [vmem:[%s0 + $0x18c] sm:$0xf]
  %v114 = vld [vmem:[%s0 + $0x190] sm:$0xf]
  %v115 = vld [vmem:[%s0 + $0x194] sm:$0xf]
  %v116 = vld [vmem:[%s0 + $0x198] sm:$0xf]
  %v117 = vld [vmem:[%s0 + $0x19c] sm:$0xf]
  %v118 = vld [vmem:[%s0 + $0x1a0] sm:$0xf]
  %v119 = vld [vmem:[%s0 + $0x1a4] sm:$0xf]
  %v120 = vld [vmem:[%s0 + $0x1a8] sm:$0xf]
  %v121 = vld [vmem:[%s0 + $0x1ac] sm:$0xf]
  %v122 = vld [vmem:[%s0 + $0x1b0] sm:$0xf]
  %v123 = vld [vmem:[%s0 + $0x1b4] sm:$0xf]
  %v124 = vld [vmem:[%s0 + $0x1b8] sm:$0xf]
  %v125 = vld [vmem:[%s0 + $0x1bc] sm:$0xf]
  %v126 = vld [vmem:[%s0 + $0x1c0] sm:$0xf]
  %v127 = vld [vmem:[%s0 + $0x1c4] sm:$0xf]
  %v128 = vld [vmem:[%s0 + $0x1c8] sm:$0xf]
  %v129 = vld [vmem:[%s0 + $0x1cc] sm:$0xf]
  %v130 = vld [vmem:[%s0 + $0x1d0] sm:$0xf]
  %v131 = vld [vmem:[%s0 + $0x1d4] sm:$0xf]
  %v132 = vld [vmem:[%s0 + $0x1d8] sm:$0xf]
  %v133 = vld [vmem:[%s0 + $0x1dc] sm:$0xf]
  %v134 = vld [vmem:[%s0 + $0x1e0] sm:$0xf]
  %v135 = vld [vmem:[%s0 + $0x1e4] sm:$0xf]
  %v136 = vld [vmem:[%s0 + $0x1e8] sm:$0xf]
  %v137 = vld [vmem:[%s0 + $0x1ec] sm:$0xf]
  %v138 = vld [vmem:[%s0 + $0x1f0] sm:$0xf]
  %v139 = vld [vmem:[%s0 + $0x1f4] sm:$0xf]
  %v140 = vld [vmem:[%s0 + $0x1f8] sm:$0xf]
  %v141 = vld [vmem:[%s0 + $0x1fc] sm:$0xf]
  loop: start=0, step=1, limit=2
  $region14: #{topnet_decoder_forward.8} parent=0 // loop_pre_header
    _
  $region15: #{topnet_decoder_forward.8} parent=0 // loop_header
    %s143 = sphi 0, %s147
    %p144 = scmp.ge.s32.totalorder %s143, 2
  $region16: #{topnet_decoder_forward.8} parent=0 // loop_header_branch
    %146 = sbr.rel (%p144) target = $region20
  $region17: #{topnet_decoder_forward.8} parent=0 // loop_body
    %s148 = smul.u32 %s143, 256
    %s149 = smul.addr %s148, 4
    %s150 = scalar_lea.vmem %s1, %s149
    %v151 = vld [vmem:[%s150] sm:$0xff]
    %v152 = vld [vmem:[%s150 + $0x8] sm:$0xff]
    %v153 = vld [vmem:[%s150 + $0x10] sm:$0xff]
    %v154 = vld [vmem:[%s150 + $0x18] sm:$0xff]
    %v155 = vld [vmem:[%s150 + $0x20] sm:$0xff]
    %v156 = vld [vmem:[%s150 + $0x28] sm:$0xff]
    %v157 = vld [vmem:[%s150 + $0x30] sm:$0xff]
    %v158 = vld [vmem:[%s150 + $0x38] sm:$0xff]
    %v159 = vld [vmem:[%s150 + $0x40] sm:$0xff]
    %v160 = vld [vmem:[%s150 + $0x48] sm:$0xff]
    %v161 = vld [vmem:[%s150 + $0x50] sm:$0xff]
    %v162 = vld [vmem:[%s150 + $0x58] sm:$0xff]
    %v163 = vld [vmem:[%s150 + $0x60] sm:$0xff]
    %v164 = vld [vmem:[%s150 + $0x68] sm:$0xff]
    %v165 = vld [vmem:[%s150 + $0x70] sm:$0xff]
    %v166 = vld [vmem:[%s150 + $0x78] sm:$0xff]
    %v167 = vld [vmem:[%s150 + $0x80] sm:$0xff]
    %v168 = vld [vmem:[%s150 + $0x88] sm:$0xff]
    %v169 = vld [vmem:[%s150 + $0x90] sm:$0xff]
    %v170 = vld [vmem:[%s150 + $0x98] sm:$0xff]
    %v171 = vld [vmem:[%s150 + $0xa0] sm:$0xff]
    %v172 = vld [vmem:[%s150 + $0xa8] sm:$0xff]
    %v173 = vld [vmem:[%s150 + $0xb0] sm:$0xff]
    %v174 = vld [vmem:[%s150 + $0xb8] sm:$0xff]
    %v175 = vld [vmem:[%s150 + $0xc0] sm:$0xff]
    %v176 = vld [vmem:[%s150 + $0xc8] sm:$0xff]
    %v177 = vld [vmem:[%s150 + $0xd0] sm:$0xff]
    %v178 = vld [vmem:[%s150 + $0xd8] sm:$0xff]
    %v179 = vld [vmem:[%s150 + $0xe0] sm:$0xff]
    %v180 = vld [vmem:[%s150 + $0xe8] sm:$0xff]
    %v181 = vld [vmem:[%s150 + $0xf0] sm:$0xff]
    %v182 = vld [vmem:[%s150 + $0xf8] sm:$0xff]
    %v183 = vld [vmem:[%s150 + $0x100] sm:$0xff]
    %v184 = vld [vmem:[%s150 + $0x108] sm:$0xff]
    %v185 = vld [vmem:[%s150 + $0x110] sm:$0xff]
    %v186 = vld [vmem:[%s150 + $0x118] sm:$0xff]
    %v187 = vld [vmem:[%s150 + $0x120] sm:$0xff]
    %v188 = vld [vmem:[%s150 + $0x128] sm:$0xff]
    %v189 = vld [vmem:[%s150 + $0x130] sm:$0xff]
    %v190 = vld [vmem:[%s150 + $0x138] sm:$0xff]
    %v191 = vld [vmem:[%s150 + $0x140] sm:$0xff]
    %v192 = vld [vmem:[%s150 + $0x148] sm:$0xff]
    %v193 = vld [vmem:[%s150 + $0x150] sm:$0xff]
    %v194 = vld [vmem:[%s150 + $0x158] sm:$0xff]
    %v195 = vld [vmem:[%s150 + $0x160] sm:$0xff]
    %v196 = vld [vmem:[%s150 + $0x168] sm:$0xff]
    %v197 = vld [vmem:[%s150 + $0x170] sm:$0xff]
    %v198 = vld [vmem:[%s150 + $0x178] sm:$0xff]
    %v199 = vld [vmem:[%s150 + $0x180] sm:$0xff]
    %v200 = vld [vmem:[%s150 + $0x188] sm:$0xff]
    %v201 = vld [vmem:[%s150 + $0x190] sm:$0xff]
    %v202 = vld [vmem:[%s150 + $0x198] sm:$0xff]
    %v203 = vld [vmem:[%s150 + $0x1a0] sm:$0xff]
    %v204 = vld [vmem:[%s150 + $0x1a8] sm:$0xff]
    %v205 = vld [vmem:[%s150 + $0x1b0] sm:$0xff]
    %v206 = vld [vmem:[%s150 + $0x1b8] sm:$0xff]
    %v207 = vld [vmem:[%s150 + $0x1c0] sm:$0xff]
    %v208 = vld [vmem:[%s150 + $0x1c8] sm:$0xff]
    %v209 = vld [vmem:[%s150 + $0x1d0] sm:$0xff]
    %v210 = vld [vmem:[%s150 + $0x1d8] sm:$0xff]
    %v211 = vld [vmem:[%s150 + $0x1e0] sm:$0xff]
    %v212 = vld [vmem:[%s150 + $0x1e8] sm:$0xff]
    %v213 = vld [vmem:[%s150 + $0x1f0] sm:$0xff]
    %v214 = vld [vmem:[%s150 + $0x1f8] sm:$0xff]
    %v215 = vld [vmem:[%s150 + $0x200] sm:$0xff]
    %v216 = vld [vmem:[%s150 + $0x208] sm:$0xff]
    %v217 = vld [vmem:[%s150 + $0x210] sm:$0xff]
    %v218 = vld [vmem:[%s150 + $0x218] sm:$0xff]
    %v219 = vld [vmem:[%s150 + $0x220] sm:$0xff]
    %v220 = vld [vmem:[%s150 + $0x228] sm:$0xff]
    %v221 = vld [vmem:[%s150 + $0x230] sm:$0xff]
    %v222 = vld [vmem:[%s150 + $0x238] sm:$0xff]
    %v223 = vld [vmem:[%s150 + $0x240] sm:$0xff]
    %v224 = vld [vmem:[%s150 + $0x248] sm:$0xff]
    %v225 = vld [vmem:[%s150 + $0x250] sm:$0xff]
    %v226 = vld [vmem:[%s150 + $0x258] sm:$0xff]
    %v227 = vld [vmem:[%s150 + $0x260] sm:$0xff]
    %v228 = vld [vmem:[%s150 + $0x268] sm:$0xff]
    %v229 = vld [vmem:[%s150 + $0x270] sm:$0xff]
    %v230 = vld [vmem:[%s150 + $0x278] sm:$0xff]
    %v231 = vld [vmem:[%s150 + $0x280] sm:$0xff]
    %v232 = vld [vmem:[%s150 + $0x288] sm:$0xff]
    %v233 = vld [vmem:[%s150 + $0x290] sm:$0xff]
    %v234 = vld [vmem:[%s150 + $0x298] sm:$0xff]
    %v235 = vld [vmem:[%s150 + $0x2a0] sm:$0xff]
    %v236 = vld [vmem:[%s150 + $0x2a8] sm:$0xff]
    %v237 = vld [vmem:[%s150 + $0x2b0] sm:$0xff]
    %v238 = vld [vmem:[%s150 + $0x2b8] sm:$0xff]
    %v239 = vld [vmem:[%s150 + $0x2c0] sm:$0xff]
    %v240 = vld [vmem:[%s150 + $0x2c8] sm:$0xff]
    %v241 = vld [vmem:[%s150 + $0x2d0] sm:$0xff]
    %v242 = vld [vmem:[%s150 + $0x2d8] sm:$0xff]
    %v243 = vld [vmem:[%s150 + $0x2e0] sm:$0xff]
    %v244 = vld [vmem:[%s150 + $0x2e8] sm:$0xff]
    %v245 = vld [vmem:[%s150 + $0x2f0] sm:$0xff]
    %v246 = vld [vmem:[%s150 + $0x2f8] sm:$0xff]
    %v247 = vld [vmem:[%s150 + $0x300] sm:$0xff]
    %v248 = vld [vmem:[%s150 + $0x308] sm:$0xff]
    %v249 = vld [vmem:[%s150 + $0x310] sm:$0xff]
    %v250 = vld [vmem:[%s150 + $0x318] sm:$0xff]
    %v251 = vld [vmem:[%s150 + $0x320] sm:$0xff]
    %v252 = vld [vmem:[%s150 + $0x328] sm:$0xff]
    %v253 = vld [vmem:[%s150 + $0x330] sm:$0xff]
    %v254 = vld [vmem:[%s150 + $0x338] sm:$0xff]
    %v255 = vld [vmem:[%s150 + $0x340] sm:$0xff]
    %v256 = vld [vmem:[%s150 + $0x348] sm:$0xff]
    %v257 = vld [vmem:[%s150 + $0x350] sm:$0xff]
    %v258 = vld [vmem:[%s150 + $0x358] sm:$0xff]
    %v259 = vld [vmem:[%s150 + $0x360] sm:$0xff]
    %v260 = vld [vmem:[%s150 + $0x368] sm:$0xff]
    %v261 = vld [vmem:[%s150 + $0x370] sm:$0xff]
    %v262 = vld [vmem:[%s150 + $0x378] sm:$0xff]
    %v263 = vld [vmem:[%s150 + $0x380] sm:$0xff]
    %v264 = vld [vmem:[%s150 + $0x388] sm:$0xff]
    %v265 = vld [vmem:[%s150 + $0x390] sm:$0xff]
    %v266 = vld [vmem:[%s150 + $0x398] sm:$0xff]
    %v267 = vld [vmem:[%s150 + $0x3a0] sm:$0xff]
    %v268 = vld [vmem:[%s150 + $0x3a8] sm:$0xff]
    %v269 = vld [vmem:[%s150 + $0x3b0] sm:$0xff]
    %v270 = vld [vmem:[%s150 + $0x3b8] sm:$0xff]
    %v271 = vld [vmem:[%s150 + $0x3c0] sm:$0xff]
    %v272 = vld [vmem:[%s150 + $0x3c8] sm:$0xff]
    %v273 = vld [vmem:[%s150 + $0x3d0] sm:$0xff]
    %v274 = vld [vmem:[%s150 + $0x3d8] sm:$0xff]
    %v275 = vld [vmem:[%s150 + $0x3e0] sm:$0xff]
    %v276 = vld [vmem:[%s150 + $0x3e8] sm:$0xff]
    %v277 = vld [vmem:[%s150 + $0x3f0] sm:$0xff]
    %v278 = vld [vmem:[%s150 + $0x3f8] sm:$0xff]
    %s279 = scalar_lea.vmem %s2, %s148
    %v280 = vld [vmem:[%s279] sm:$0xff]
    %v281 = vld [vmem:[%s279 + $0x8] sm:$0xff]
    %v282 = vld [vmem:[%s279 + $0x10] sm:$0xff]
    %v283 = vld [vmem:[%s279 + $0x18] sm:$0xff]
    %v284 = vld [vmem:[%s279 + $0x20] sm:$0xff]
    %v285 = vld [vmem:[%s279 + $0x28] sm:$0xff]
    %v286 = vld [vmem:[%s279 + $0x30] sm:$0xff]
    %v287 = vld [vmem:[%s279 + $0x38] sm:$0xff]
    %v288 = vld [vmem:[%s279 + $0x40] sm:$0xff]
    %v289 = vld [vmem:[%s279 + $0x48] sm:$0xff]
    %v290 = vld [vmem:[%s279 + $0x50] sm:$0xff]
    %v291 = vld [vmem:[%s279 + $0x58] sm:$0xff]
    %v292 = vld [vmem:[%s279 + $0x60] sm:$0xff]
    %v293 = vld [vmem:[%s279 + $0x68] sm:$0xff]
    %v294 = vld [vmem:[%s279 + $0x70] sm:$0xff]
    %v295 = vld [vmem:[%s279 + $0x78] sm:$0xff]
    %v296 = vld [vmem:[%s279 + $0x80] sm:$0xff]
    %v297 = vld [vmem:[%s279 + $0x88] sm:$0xff]
    %v298 = vld [vmem:[%s279 + $0x90] sm:$0xff]
    %v299 = vld [vmem:[%s279 + $0x98] sm:$0xff]
    %v300 = vld [vmem:[%s279 + $0xa0] sm:$0xff]
    %v301 = vld [vmem:[%s279 + $0xa8] sm:$0xff]
    %v302 = vld [vmem:[%s279 + $0xb0] sm:$0xff]
    %v303 = vld [vmem:[%s279 + $0xb8] sm:$0xff]
    %v304 = vld [vmem:[%s279 + $0xc0] sm:$0xff]
    %v305 = vld [vmem:[%s279 + $0xc8] sm:$0xff]
    %v306 = vld [vmem:[%s279 + $0xd0] sm:$0xff]
    %v307 = vld [vmem:[%s279 + $0xd8] sm:$0xff]
    %v308 = vld [vmem:[%s279 + $0xe0] sm:$0xff]
    %v309 = vld [vmem:[%s279 + $0xe8] sm:$0xff]
    %v310 = vld [vmem:[%s279 + $0xf0] sm:$0xff]
    %v311 = vld [vmem:[%s279 + $0xf8] sm:$0xff]
    %313 = vset.pattern.permute.xlu0 0
    %314 = vperm.xlu0 %313, %v280
    %v315 = vpop.permute.xlu0 %314
    %318 = vset.pattern.permute.xlu0 0
    %319 = vperm.xlu0 %318, %v281
    %v320 = vpop.permute.xlu0 %319
    %323 = vset.pattern.permute.xlu0 0
    %324 = vperm.xlu0 %323, %v282
    %v325 = vpop.permute.xlu0 %324
    %328 = vset.pattern.permute.xlu0 0
    %329 = vperm.xlu0 %328, %v283
    %v330 = vpop.permute.xlu0 %329
    %333 = vset.pattern.permute.xlu0 0
    %334 = vperm.xlu0 %333, %v284
    %v335 = vpop.permute.xlu0 %334
    %338 = vset.pattern.permute.xlu0 0
    %339 = vperm.xlu0 %338, %v285
    %v340 = vpop.permute.xlu0 %339
    %343 = vset.pattern.permute.xlu0 0
    %344 = vperm.xlu0 %343, %v286
    %v345 = vpop.permute.xlu0 %344
    %348 = vset.pattern.permute.xlu0 0
    %349 = vperm.xlu0 %348, %v287
    %v350 = vpop.permute.xlu0 %349
    %353 = vset.pattern.permute.xlu0 0
    %354 = vperm.xlu0 %353, %v288
    %v355 = vpop.permute.xlu0 %354
    %358 = vset.pattern.permute.xlu0 0
    %359 = vperm.xlu0 %358, %v289
    %v360 = vpop.permute.xlu0 %359
    %363 = vset.pattern.permute.xlu0 0
    %364 = vperm.xlu0 %363, %v290
    %v365 = vpop.permute.xlu0 %364
    %368 = vset.pattern.permute.xlu0 0
    %369 = vperm.xlu0 %368, %v291
    %v370 = vpop.permute.xlu0 %369
    %373 = vset.pattern.permute.xlu0 0
    %374 = vperm.xlu0 %373, %v292
    %v375 = vpop.permute.xlu0 %374
    %378 = vset.pattern.permute.xlu0 0
    %379 = vperm.xlu0 %378, %v293
    %v380 = vpop.permute.xlu0 %379
    %383 = vset.pattern.permute.xlu0 0
    %384 = vperm.xlu0 %383, %v294
    %v385 = vpop.permute.xlu0 %384
    %388 = vset.pattern.permute.xlu0 0
    %389 = vperm.xlu0 %388, %v295
    %v390 = vpop.permute.xlu0 %389
    %393 = vset.pattern.permute.xlu0 0
    %394 = vperm.xlu0 %393, %v296
    %v395 = vpop.permute.xlu0 %394
    %398 = vset.pattern.permute.xlu0 0
    %399 = vperm.xlu0 %398, %v297
    %v400 = vpop.permute.xlu0 %399
    %403 = vset.pattern.permute.xlu0 0
    %404 = vperm.xlu0 %403, %v298
    %v405 = vpop.permute.xlu0 %404
    %408 = vset.pattern.permute.xlu0 0
    %409 = vperm.xlu0 %408, %v299
    %v410 = vpop.permute.xlu0 %409
    %413 = vset.pattern.permute.xlu0 0
    %414 = vperm.xlu0 %413, %v300
    %v415 = vpop.permute.xlu0 %414
    %418 = vset.pattern.permute.xlu0 0
    %419 = vperm.xlu0 %418, %v301
    %v420 = vpop.permute.xlu0 %419
    %423 = vset.pattern.permute.xlu0 0
    %424 = vperm.xlu0 %423, %v302
    %v425 = vpop.permute.xlu0 %424
    %428 = vset.pattern.permute.xlu0 0
    %429 = vperm.xlu0 %428, %v303
    %v430 = vpop.permute.xlu0 %429
    %433 = vset.pattern.permute.xlu0 0
    %434 = vperm.xlu0 %433, %v304
    %v435 = vpop.permute.xlu0 %434
    %438 = vset.pattern.permute.xlu0 0
    %439 = vperm.xlu0 %438, %v305
    %v440 = vpop.permute.xlu0 %439
    %443 = vset.pattern.permute.xlu0 0
    %444 = vperm.xlu0 %443, %v306
    %v445 = vpop.permute.xlu0 %444
    %448 = vset.pattern.permute.xlu0 0
    %449 = vperm.xlu0 %448, %v307
    %v450 = vpop.permute.xlu0 %449
    %453 = vset.pattern.permute.xlu0 0
    %454 = vperm.xlu0 %453, %v308
    %v455 = vpop.permute.xlu0 %454
    %458 = vset.pattern.permute.xlu0 0
    %459 = vperm.xlu0 %458, %v309
    %v460 = vpop.permute.xlu0 %459
    %463 = vset.pattern.permute.xlu0 0
    %464 = vperm.xlu0 %463, %v310
    %v465 = vpop.permute.xlu0 %464
    %468 = vset.pattern.permute.xlu0 0
    %469 = vperm.xlu0 %468, %v311
    %v470 = vpop.permute.xlu0 %469
    %v600 = vunpack.c.l.b16 %v151
    %v601 = vunpack.c.h.b16 %v151
    %v602 = vunpack.c.l.b16 %v152
    %v603 = vunpack.c.h.b16 %v152
    %v604 = vunpack.c.l.b16 %v153
    %v605 = vunpack.c.h.b16 %v153
    %v606 = vunpack.c.l.b16 %v154
    %v607 = vunpack.c.h.b16 %v154
    %v608 = vunpack.c.l.b16 %v155
    %v609 = vunpack.c.h.b16 %v155
    %v610 = vunpack.c.l.b16 %v156
    %v611 = vunpack.c.h.b16 %v156
    %v612 = vunpack.c.l.b16 %v157
    %v613 = vunpack.c.h.b16 %v157
    %v614 = vunpack.c.l.b16 %v158
    %v615 = vunpack.c.h.b16 %v158
    %v616 = vunpack.c.l.b16 %v159
    %v617 = vunpack.c.h.b16 %v159
    %v618 = vunpack.c.l.b16 %v160
    %v619 = vunpack.c.h.b16 %v160
    %v620 = vunpack.c.l.b16 %v161
    %v621 = vunpack.c.h.b16 %v161
    %v622 = vunpack.c.l.b16 %v162
    %v623 = vunpack.c.h.b16 %v162
    %v624 = vunpack.c.l.b16 %v163
    %v625 = vunpack.c.h.b16 %v163
    %v626 = vunpack.c.l.b16 %v164
    %v627 = vunpack.c.h.b16 %v164
    %v628 = vunpack.c.l.b16 %v165
    %v629 = vunpack.c.h.b16 %v165
    %v630 = vunpack.c.l.b16 %v166
    %v631 = vunpack.c.h.b16 %v166
    %v632 = vunpack.c.l.b16 %v167
    %v633 = vunpack.c.h.b16 %v167
    %v634 = vunpack.c.l.b16 %v168
    %v635 = vunpack.c.h.b16 %v168
    %v636 = vunpack.c.l.b16 %v169
    %v637 = vunpack.c.h.b16 %v169
    %v638 = vunpack.c.l.b16 %v170
    %v639 = vunpack.c.h.b16 %v170
    %v640 = vunpack.c.l.b16 %v171
    %v641 = vunpack.c.h.b16 %v171
    %v642 = vunpack.c.l.b16 %v172
    %v643 = vunpack.c.h.b16 %v172
    %v644 = vunpack.c.l.b16 %v173
    %v645 = vunpack.c.h.b16 %v173
    %v646 = vunpack.c.l.b16 %v174
    %v647 = vunpack.c.h.b16 %v174
    %v648 = vunpack.c.l.b16 %v175
    %v649 = vunpack.c.h.b16 %v175
    %v650 = vunpack.c.l.b16 %v176
    %v651 = vunpack.c.h.b16 %v176
    %v652 = vunpack.c.l.b16 %v177
    %v653 = vunpack.c.h.b16 %v177
    %v654 = vunpack.c.l.b16 %v178
    %v655 = vunpack.c.h.b16 %v178
    %v656 = vunpack.c.l.b16 %v179
    %v657 = vunpack.c.h.b16 %v179
    %v658 = vunpack.c.l.b16 %v180
    %v659 = vunpack.c.h.b16 %v180
    %v660 = vunpack.c.l.b16 %v181
    %v661 = vunpack.c.h.b16 %v181
    %v662 = vunpack.c.l.b16 %v182
    %v663 = vunpack.c.h.b16 %v182
    %v664 = vunpack.c.l.b16 %v183
    %v665 = vunpack.c.h.b16 %v183
    %v666 = vunpack.c.l.b16 %v184
    %v667 = vunpack.c.h.b16 %v184
    %v668 = vunpack.c.l.b16 %v185
    %v669 = vunpack.c.h.b16 %v185
    %v670 = vunpack.c.l.b16 %v186
    %v671 = vunpack.c.h.b16 %v186
    %v672 = vunpack.c.l.b16 %v187
    %v673 = vunpack.c.h.b16 %v187
    %v674 = vunpack.c.l.b16 %v188
    %v675 = vunpack.c.h.b16 %v188
    %v676 = vunpack.c.l.b16 %v189
    %v677 = vunpack.c.h.b16 %v189
    %v678 = vunpack.c.l.b16 %v190
    %v679 = vunpack.c.h.b16 %v190
    %v680 = vunpack.c.l.b16 %v191
    %v681 = vunpack.c.h.b16 %v191
    %v682 = vunpack.c.l.b16 %v192
    %v683 = vunpack.c.h.b16 %v192
    %v684 = vunpack.c.l.b16 %v193
    %v685 = vunpack.c.h.b16 %v193
    %v686 = vunpack.c.l.b16 %v194
    %v687 = vunpack.c.h.b16 %v194
    %v688 = vunpack.c.l.b16 %v195
    %v689 = vunpack.c.h.b16 %v195
    %v690 = vunpack.c.l.b16 %v196
    %v691 = vunpack.c.h.b16 %v196
    %v692 = vunpack.c.l.b16 %v197
    %v693 = vunpack.c.h.b16 %v197
    %v694 = vunpack.c.l.b16 %v198
    %v695 = vunpack.c.h.b16 %v198
    %v696 = vunpack.c.l.b16 %v199
    %v697 = vunpack.c.h.b16 %v199
    %v698 = vunpack.c.l.b16 %v200
    %v699 = vunpack.c.h.b16 %v200
    %v700 = vunpack.c.l.b16 %v201
    %v701 = vunpack.c.h.b16 %v201
    %v702 = vunpack.c.l.b16 %v202
    %v703 = vunpack.c.h.b16 %v202
    %v704 = vunpack.c.l.b16 %v203
    %v705 = vunpack.c.h.b16 %v203
    %v706 = vunpack.c.l.b16 %v204
    %v707 = vunpack.c.h.b16 %v204
    %v708 = vunpack.c.l.b16 %v205
    %v709 = vunpack.c.h.b16 %v205
    %v710 = vunpack.c.l.b16 %v206
    %v711 = vunpack.c.h.b16 %v206
    %v712 = vunpack.c.l.b16 %v207
    %v713 = vunpack.c.h.b16 %v207
    %v714 = vunpack.c.l.b16 %v208
    %v715 = vunpack.c.h.b16 %v208
    %v716 = vunpack.c.l.b16 %v209
    %v717 = vunpack.c.h.b16 %v209
    %v718 = vunpack.c.l.b16 %v210
    %v719 = vunpack.c.h.b16 %v210
    %v720 = vunpack.c.l.b16 %v211
    %v721 = vunpack.c.h.b16 %v211
    %v722 = vunpack.c.l.b16 %v212
    %v723 = vunpack.c.h.b16 %v212
    %v724 = vunpack.c.l.b16 %v213
    %v725 = vunpack.c.h.b16 %v213
    %v726 = vunpack.c.l.b16 %v214
    %v727 = vunpack.c.h.b16 %v214
    %v728 = vunpack.c.l.b16 %v215
    %v729 = vunpack.c.h.b16 %v215
    %v730 = vunpack.c.l.b16 %v216
    %v731 = vunpack.c.h.b16 %v216
    %v732 = vunpack.c.l.b16 %v217
    %v733 = vunpack.c.h.b16 %v217
    %v734 = vunpack.c.l.b16 %v218
    %v735 = vunpack.c.h.b16 %v218
    %v736 = vunpack.c.l.b16 %v219
    %v737 = vunpack.c.h.b16 %v219
    %v738 = vunpack.c.l.b16 %v220
    %v739 = vunpack.c.h.b16 %v220
    %v740 = vunpack.c.l.b16 %v221
    %v741 = vunpack.c.h.b16 %v221
    %v742 = vunpack.c.l.b16 %v222
    %v743 = vunpack.c.h.b16 %v222
    %v744 = vunpack.c.l.b16 %v223
    %v745 = vunpack.c.h.b16 %v223
    %v746 = vunpack.c.l.b16 %v224
    %v747 = vunpack.c.h.b16 %v224
    %v748 = vunpack.c.l.b16 %v225
    %v749 = vunpack.c.h.b16 %v225
    %v750 = vunpack.c.l.b16 %v226
    %v751 = vunpack.c.h.b16 %v226
    %v752 = vunpack.c.l.b16 %v227
    %v753 = vunpack.c.h.b16 %v227
    %v754 = vunpack.c.l.b16 %v228
    %v755 = vunpack.c.h.b16 %v228
    %v756 = vunpack.c.l.b16 %v229
    %v757 = vunpack.c.h.b16 %v229
    %v758 = vunpack.c.l.b16 %v230
    %v759 = vunpack.c.h.b16 %v230
    %v760 = vunpack.c.l.b16 %v231
    %v761 = vunpack.c.h.b16 %v231
    %v762 = vunpack.c.l.b16 %v232
    %v763 = vunpack.c.h.b16 %v232
    %v764 = vunpack.c.l.b16 %v233
    %v765 = vunpack.c.h.b16 %v233
    %v766 = vunpack.c.l.b16 %v234
    %v767 = vunpack.c.h.b16 %v234
    %v768 = vunpack.c.l.b16 %v235
    %v769 = vunpack.c.h.b16 %v235
    %v770 = vunpack.c.l.b16 %v236
    %v771 = vunpack.c.h.b16 %v236
    %v772 = vunpack.c.l.b16 %v237
    %v773 = vunpack.c.h.b16 %v237
    %v774 = vunpack.c.l.b16 %v238
    %v775 = vunpack.c.h.b16 %v238
    %v776 = vunpack.c.l.b16 %v239
    %v777 = vunpack.c.h.b16 %v239
    %v778 = vunpack.c.l.b16 %v240
    %v779 = vunpack.c.h.b16 %v240
    %v780 = vunpack.c.l.b16 %v241
    %v781 = vunpack.c.h.b16 %v241
    %v782 = vunpack.c.l.b16 %v242
    %v783 = vunpack.c.h.b16 %v242
    %v784 = vunpack.c.l.b16 %v243
    %v785 = vunpack.c.h.b16 %v243
    %v786 = vunpack.c.l.b16 %v244
    %v787 = vunpack.c.h.b16 %v244
    %v788 = vunpack.c.l.b16 %v245
    %v789 = vunpack.c.h.b16 %v245
    %v790 = vunpack.c.l.b16 %v246
    %v791 = vunpack.c.h.b16 %v246
    %v792 = vunpack.c.l.b16 %v247
    %v793 = vunpack.c.h.b16 %v247
    %v794 = vunpack.c.l.b16 %v248
    %v795 = vunpack.c.h.b16 %v248
    %v796 = vunpack.c.l.b16 %v249
    %v797 = vunpack.c.h.b16 %v249
    %v798 = vunpack.c.l.b16 %v250
    %v799 = vunpack.c.h.b16 %v250
    %v800 = vunpack.c.l.b16 %v251
    %v801 = vunpack.c.h.b16 %v251
    %v802 = vunpack.c.l.b16 %v252
    %v803 = vunpack.c.h.b16 %v252
    %v804 = vunpack.c.l.b16 %v253
    %v805 = vunpack.c.h.b16 %v253
    %v806 = vunpack.c.l.b16 %v254
    %v807 = vunpack.c.h.b16 %v254
    %v808 = vunpack.c.l.b16 %v255
    %v809 = vunpack.c.h.b16 %v255
    %v810 = vunpack.c.l.b16 %v256
    %v811 = vunpack.c.h.b16 %v256
    %v812 = vunpack.c.l.b16 %v257
    %v813 = vunpack.c.h.b16 %v257
    %v814 = vunpack.c.l.b16 %v258
    %v815 = vunpack.c.h.b16 %v258
    %v816 = vunpack.c.l.b16 %v259
    %v817 = vunpack.c.h.b16 %v259
    %v818 = vunpack.c.l.b16 %v260
    %v819 = vunpack.c.h.b16 %v260
    %v820 = vunpack.c.l.b16 %v261
    %v821 = vunpack.c.h.b16 %v261
    %v822 = vunpack.c.l.b16 %v262
    %v823 = vunpack.c.h.b16 %v262
    %v824 = vunpack.c.l.b16 %v263
    %v825 = vunpack.c.h.b16 %v263
    %v826 = vunpack.c.l.b16 %v264
    %v827 = vunpack.c.h.b16 %v264
    %v828 = vunpack.c.l.b16 %v265
    %v829 = vunpack.c.h.b16 %v265
    %v830 = vunpack.c.l.b16 %v266
    %v831 = vunpack.c.h.b16 %v266
    %v832 = vunpack.c.l.b16 %v267
    %v833 = vunpack.c.h.b16 %v267
    %v834 = vunpack.c.l.b16 %v268
    %v835 = vunpack.c.h.b16 %v268
    %v836 = vunpack.c.l.b16 %v269
    %v837 = vunpack.c.h.b16 %v269
    %v838 = vunpack.c.l.b16 %v270
    %v839 = vunpack.c.h.b16 %v270
    %v840 = vunpack.c.l.b16 %v271
    %v841 = vunpack.c.h.b16 %v271
    %v842 = vunpack.c.l.b16 %v272
    %v843 = vunpack.c.h.b16 %v272
    %v844 = vunpack.c.l.b16 %v273
    %v845 = vunpack.c.h.b16 %v273
    %v846 = vunpack.c.l.b16 %v274
    %v847 = vunpack.c.h.b16 %v274
    %v848 = vunpack.c.l.b16 %v275
    %v849 = vunpack.c.h.b16 %v275
    %v850 = vunpack.c.l.b16 %v276
    %v851 = vunpack.c.h.b16 %v276
    %v852 = vunpack.c.l.b16 %v277
    %v853 = vunpack.c.h.b16 %v277
    %v854 = vunpack.c.l.b16 %v278
    %v855 = vunpack.c.h.b16 %v278
    %v856 = vpack.c.b16 %v608, %v600
    %v857 = vpack.c.b16 %v609, %v601
    %v858 = vpack.c.b16 %v610, %v602
    %v859 = vpack.c.b16 %v611, %v603
    %v860 = vpack.c.b16 %v612, %v604
    %v861 = vpack.c.b16 %v613, %v605
    %v862 = vpack.c.b16 %v614, %v606
    %v863 = vpack.c.b16 %v615, %v607
    %v864 = vpack.c.b16 %v624, %v616
    %v865 = vpack.c.b16 %v625, %v617
    %v866 = vpack.c.b16 %v626, %v618
    %v867 = vpack.c.b16 %v627, %v619
    %v868 = vpack.c.b16 %v628, %v620
    %v869 = vpack.c.b16 %v629, %v621
    %v870 = vpack.c.b16 %v630, %v622
    %v871 = vpack.c.b16 %v631, %v623
    %v872 = vpack.c.b16 %v640, %v632
    %v873 = vpack.c.b16 %v641, %v633
    %v874 = vpack.c.b16 %v642, %v634
    %v875 = vpack.c.b16 %v643, %v635
    %v876 = vpack.c.b16 %v644, %v636
    %v877 = vpack.c.b16 %v645, %v637
    %v878 = vpack.c.b16 %v646, %v638
    %v879 = vpack.c.b16 %v647, %v639
    %v880 = vpack.c.b16 %v656, %v648
    %v881 = vpack.c.b16 %v657, %v649
    %v882 = vpack.c.b16 %v658, %v650
    %v883 = vpack.c.b16 %v659, %v651
    %v884 = vpack.c.b16 %v660, %v652
    %v885 = vpack.c.b16 %v661, %v653
    %v886 = vpack.c.b16 %v662, %v654
    %v887 = vpack.c.b16 %v663, %v655
    %v888 = vpack.c.b16 %v672, %v664
    %v889 = vpack.c.b16 %v673, %v665
    %v890 = vpack.c.b16 %v674, %v666
    %v891 = vpack.c.b16 %v675, %v667
    %v892 = vpack.c.b16 %v676, %v668
    %v893 = vpack.c.b16 %v677, %v669
    %v894 = vpack.c.b16 %v678, %v670
    %v895 = vpack.c.b16 %v679, %v671
    %v896 = vpack.c.b16 %v688, %v680
    %v897 = vpack.c.b16 %v689, %v681
    %v898 = vpack.c.b16 %v690, %v682
    %v899 = vpack.c.b16 %v691, %v683
    %v900 = vpack.c.b16 %v692, %v684
    %v901 = vpack.c.b16 %v693, %v685
    %v902 = vpack.c.b16 %v694, %v686
    %v903 = vpack.c.b16 %v695, %v687
    %v904 = vpack.c.b16 %v704, %v696
    %v905 = vpack.c.b16 %v705, %v697
    %v906 = vpack.c.b16 %v706, %v698
    %v907 = vpack.c.b16 %v707, %v699
    %v908 = vpack.c.b16 %v708, %v700
    %v909 = vpack.c.b16 %v709, %v701
    %v910 = vpack.c.b16 %v710, %v702
    %v911 = vpack.c.b16 %v711, %v703
    %v912 = vpack.c.b16 %v720, %v712
    %v913 = vpack.c.b16 %v721, %v713
    %v914 = vpack.c.b16 %v722, %v714
    %v915 = vpack.c.b16 %v723, %v715
    %v916 = vpack.c.b16 %v724, %v716
    %v917 = vpack.c.b16 %v725, %v717
    %v918 = vpack.c.b16 %v726, %v718
    %v919 = vpack.c.b16 %v727, %v719
    %v920 = vpack.c.b16 %v736, %v728
    %v921 = vpack.c.b16 %v737, %v729
    %v922 = vpack.c.b16 %v738, %v730
    %v923 = vpack.c.b16 %v739, %v731
    %v924 = vpack.c.b16 %v740, %v732
    %v925 = vpack.c.b16 %v741, %v733
    %v926 = vpack.c.b16 %v742, %v734
    %v927 = vpack.c.b16 %v743, %v735
    %v928 = vpack.c.b16 %v752, %v744
    %v929 = vpack.c.b16 %v753, %v745
    %v930 = vpack.c.b16 %v754, %v746
    %v931 = vpack.c.b16 %v755, %v747
    %v932 = vpack.c.b16 %v756, %v748
    %v933 = vpack.c.b16 %v757, %v749
    %v934 = vpack.c.b16 %v758, %v750
    %v935 = vpack.c.b16 %v759, %v751
    %v936 = vpack.c.b16 %v768, %v760
    %v937 = vpack.c.b16 %v769, %v761
    %v938 = vpack.c.b16 %v770, %v762
    %v939 = vpack.c.b16 %v771, %v763
    %v940 = vpack.c.b16 %v772, %v764
    %v941 = vpack.c.b16 %v773, %v765
    %v942 = vpack.c.b16 %v774, %v766
    %v943 = vpack.c.b16 %v775, %v767
    %v944 = vpack.c.b16 %v784, %v776
    %v945 = vpack.c.b16 %v785, %v777
    %v946 = vpack.c.b16 %v786, %v778
    %v947 = vpack.c.b16 %v787, %v779
    %v948 = vpack.c.b16 %v788, %v780
    %v949 = vpack.c.b16 %v789, %v781
    %v950 = vpack.c.b16 %v790, %v782
    %v951 = vpack.c.b16 %v791, %v783
    %v952 = vpack.c.b16 %v800, %v792
    %v953 = vpack.c.b16 %v801, %v793
    %v954 = vpack.c.b16 %v802, %v794
    %v955 = vpack.c.b16 %v803, %v795
    %v956 = vpack.c.b16 %v804, %v796
    %v957 = vpack.c.b16 %v805, %v797
    %v958 = vpack.c.b16 %v806, %v798
    %v959 = vpack.c.b16 %v807, %v799
    %v960 = vpack.c.b16 %v816, %v808
    %v961 = vpack.c.b16 %v817, %v809
    %v962 = vpack.c.b16 %v818, %v810
    %v963 = vpack.c.b16 %v819, %v811
    %v964 = vpack.c.b16 %v820, %v812
    %v965 = vpack.c.b16 %v821, %v813
    %v966 = vpack.c.b16 %v822, %v814
    %v967 = vpack.c.b16 %v823, %v815
    %v968 = vpack.c.b16 %v832, %v824
    %v969 = vpack.c.b16 %v833, %v825
    %v970 = vpack.c.b16 %v834, %v826
    %v971 = vpack.c.b16 %v835, %v827
    %v972 = vpack.c.b16 %v836, %v828
    %v973 = vpack.c.b16 %v837, %v829
    %v974 = vpack.c.b16 %v838, %v830
    %v975 = vpack.c.b16 %v839, %v831
    %v976 = vpack.c.b16 %v848, %v840
    %v977 = vpack.c.b16 %v849, %v841
    %v978 = vpack.c.b16 %v850, %v842
    %v979 = vpack.c.b16 %v851, %v843
    %v980 = vpack.c.b16 %v852, %v844
    %v981 = vpack.c.b16 %v853, %v845
    %v982 = vpack.c.b16 %v854, %v846
    %v983 = vpack.c.b16 %v855, %v847
    %v1240 = vunpack.c.l.b16 %v14
    %v1241 = vunpack.c.l.b16 %v15
    %v1242 = vunpack.c.l.b16 %v16
    %v1243 = vunpack.c.l.b16 %v17
    %v1244 = vunpack.c.l.b16 %v18
    %v1245 = vunpack.c.l.b16 %v19
    %v1246 = vunpack.c.l.b16 %v20
    %v1247 = vunpack.c.l.b16 %v21
    %v1248 = vunpack.c.l.b16 %v22
    %v1249 = vunpack.c.l.b16 %v23
    %v1250 = vunpack.c.l.b16 %v24
    %v1251 = vunpack.c.l.b16 %v25
    %v1252 = vunpack.c.l.b16 %v26
    %v1253 = vunpack.c.l.b16 %v27
    %v1254 = vunpack.c.l.b16 %v28
    %v1255 = vunpack.c.l.b16 %v29
    %v1256 = vunpack.c.l.b16 %v30
    %v1257 = vunpack.c.l.b16 %v31
    %v1258 = vunpack.c.l.b16 %v32
    %v1259 = vunpack.c.l.b16 %v33
    %v1260 = vunpack.c.l.b16 %v34
    %v1261 = vunpack.c.l.b16 %v35
    %v1262 = vunpack.c.l.b16 %v36
    %v1263 = vunpack.c.l.b16 %v37
    %v1264 = vunpack.c.l.b16 %v38
    %v1265 = vunpack.c.l.b16 %v39
    %v1266 = vunpack.c.l.b16 %v40
    %v1267 = vunpack.c.l.b16 %v41
    %v1268 = vunpack.c.l.b16 %v42
    %v1269 = vunpack.c.l.b16 %v43
    %v1270 = vunpack.c.l.b16 %v44
    %v1271 = vunpack.c.l.b16 %v45
    %v1272 = vunpack.c.l.b16 %v46
    %v1273 = vunpack.c.l.b16 %v47
    %v1274 = vunpack.c.l.b16 %v48
    %v1275 = vunpack.c.l.b16 %v49
    %v1276 = vunpack.c.l.b16 %v50
    %v1277 = vunpack.c.l.b16 %v51
    %v1278 = vunpack.c.l.b16 %v52
    %v1279 = vunpack.c.l.b16 %v53
    %v1280 = vunpack.c.l.b16 %v54
    %v1281 = vunpack.c.l.b16 %v55
    %v1282 = vunpack.c.l.b16 %v56
    %v1283 = vunpack.c.l.b16 %v57
    %v1284 = vunpack.c.l.b16 %v58
    %v1285 = vunpack.c.l.b16 %v59
    %v1286 = vunpack.c.l.b16 %v60
    %v1287 = vunpack.c.l.b16 %v61
    %v1288 = vunpack.c.l.b16 %v62
    %v1289 = vunpack.c.l.b16 %v63
    %v1290 = vunpack.c.l.b16 %v64
    %v1291 = vunpack.c.l.b16 %v65
    %v1292 = vunpack.c.l.b16 %v66
    %v1293 = vunpack.c.l.b16 %v67
    %v1294 = vunpack.c.l.b16 %v68
    %v1295 = vunpack.c.l.b16 %v69
    %v1296 = vunpack.c.l.b16 %v70
    %v1297 = vunpack.c.l.b16 %v71
    %v1298 = vunpack.c.l.b16 %v72
    %v1299 = vunpack.c.l.b16 %v73
    %v1300 = vunpack.c.l.b16 %v74
    %v1301 = vunpack.c.l.b16 %v75
    %v1302 = vunpack.c.l.b16 %v76
    %v1303 = vunpack.c.l.b16 %v77
    %v1304 = vunpack.c.l.b16 %v78
    %v1305 = vunpack.c.l.b16 %v79
    %v1306 = vunpack.c.l.b16 %v80
    %v1307 = vunpack.c.l.b16 %v81
    %v1308 = vunpack.c.l.b16 %v82
    %v1309 = vunpack.c.l.b16 %v83
    %v1310 = vunpack.c.l.b16 %v84
    %v1311 = vunpack.c.l.b16 %v85
    %v1312 = vunpack.c.l.b16 %v86
    %v1313 = vunpack.c.l.b16 %v87
    %v1314 = vunpack.c.l.b16 %v88
    %v1315 = vunpack.c.l.b16 %v89
    %v1316 = vunpack.c.l.b16 %v90
    %v1317 = vunpack.c.l.b16 %v91
    %v1318 = vunpack.c.l.b16 %v92
    %v1319 = vunpack.c.l.b16 %v93
    %v1320 = vunpack.c.l.b16 %v94
    %v1321 = vunpack.c.l.b16 %v95
    %v1322 = vunpack.c.l.b16 %v96
    %v1323 = vunpack.c.l.b16 %v97
    %v1324 = vunpack.c.l.b16 %v98
    %v1325 = vunpack.c.l.b16 %v99
    %v1326 = vunpack.c.l.b16 %v100
    %v1327 = vunpack.c.l.b16 %v101
    %v1328 = vunpack.c.l.b16 %v102
    %v1329 = vunpack.c.l.b16 %v103
    %v1330 = vunpack.c.l.b16 %v104
    %v1331 = vunpack.c.l.b16 %v105
    %v1332 = vunpack.c.l.b16 %v106
    %v1333 = vunpack.c.l.b16 %v107
    %v1334 = vunpack.c.l.b16 %v108
    %v1335 = vunpack.c.l.b16 %v109
    %v1336 = vunpack.c.l.b16 %v110
    %v1337 = vunpack.c.l.b16 %v111
    %v1338 = vunpack.c.l.b16 %v112
    %v1339 = vunpack.c.l.b16 %v113
    %v1340 = vunpack.c.l.b16 %v114
    %v1341 = vunpack.c.l.b16 %v115
    %v1342 = vunpack.c.l.b16 %v116
    %v1343 = vunpack.c.l.b16 %v117
    %v1344 = vunpack.c.l.b16 %v118
    %v1345 = vunpack.c.l.b16 %v119
    %v1346 = vunpack.c.l.b16 %v120
    %v1347 = vunpack.c.l.b16 %v121
    %v1348 = vunpack.c.l.b16 %v122
    %v1349 = vunpack.c.l.b16 %v123
    %v1350 = vunpack.c.l.b16 %v124
    %v1351 = vunpack.c.l.b16 %v125
    %v1352 = vunpack.c.l.b16 %v126
    %v1353 = vunpack.c.l.b16 %v127
    %v1354 = vunpack.c.l.b16 %v128
    %v1355 = vunpack.c.l.b16 %v129
    %v1356 = vunpack.c.l.b16 %v130
    %v1357 = vunpack.c.l.b16 %v131
    %v1358 = vunpack.c.l.b16 %v132
    %v1359 = vunpack.c.l.b16 %v133
    %v1360 = vunpack.c.l.b16 %v134
    %v1361 = vunpack.c.l.b16 %v135
    %v1362 = vunpack.c.l.b16 %v136
    %v1363 = vunpack.c.l.b16 %v137
    %v1364 = vunpack.c.l.b16 %v138
    %v1365 = vunpack.c.l.b16 %v139
    %v1366 = vunpack.c.l.b16 %v140
    %v1367 = vunpack.c.l.b16 %v141
    %v1368 = vpack.c.b16 %v1241, %v1240
    %v1369 = vpack.c.b16 %v1243, %v1242
    %v1370 = vpack.c.b16 %v1245, %v1244
    %v1371 = vpack.c.b16 %v1247, %v1246
    %v1372 = vpack.c.b16 %v1249, %v1248
    %v1373 = vpack.c.b16 %v1251, %v1250
    %v1374 = vpack.c.b16 %v1253, %v1252
    %v1375 = vpack.c.b16 %v1255, %v1254
    %v1376 = vpack.c.b16 %v1257, %v1256
    %v1377 = vpack.c.b16 %v1259, %v1258
    %v1378 = vpack.c.b16 %v1261, %v1260
    %v1379 = vpack.c.b16 %v1263, %v1262
    %v1380 = vpack.c.b16 %v1265, %v1264
    %v1381 = vpack.c.b16 %v1267, %v1266
    %v1382 = vpack.c.b16 %v1269, %v1268
    %v1383 = vpack.c.b16 %v1271, %v1270
    %v1384 = vpack.c.b16 %v1273, %v1272
    %v1385 = vpack.c.b16 %v1275, %v1274
    %v1386 = vpack.c.b16 %v1277, %v1276
    %v1387 = vpack.c.b16 %v1279, %v1278
    %v1388 = vpack.c.b16 %v1281, %v1280
    %v1389 = vpack.c.b16 %v1283, %v1282
    %v1390 = vpack.c.b16 %v1285, %v1284
    %v1391 = vpack.c.b16 %v1287, %v1286
    %v1392 = vpack.c.b16 %v1289, %v1288
    %v1393 = vpack.c.b16 %v1291, %v1290
    %v1394 = vpack.c.b16 %v1293, %v1292
    %v1395 = vpack.c.b16 %v1295, %v1294
    %v1396 = vpack.c.b16 %v1297, %v1296
    %v1397 = vpack.c.b16 %v1299, %v1298
    %v1398 = vpack.c.b16 %v1301, %v1300
    %v1399 = vpack.c.b16 %v1303, %v1302
    %v1400 = vpack.c.b16 %v1305, %v1304
    %v1401 = vpack.c.b16 %v1307, %v1306
    %v1402 = vpack.c.b16 %v1309, %v1308
    %v1403 = vpack.c.b16 %v1311, %v1310
    %v1404 = vpack.c.b16 %v1313, %v1312
    %v1405 = vpack.c.b16 %v1315, %v1314
    %v1406 = vpack.c.b16 %v1317, %v1316
    %v1407 = vpack.c.b16 %v1319, %v1318
    %v1408 = vpack.c.b16 %v1321, %v1320
    %v1409 = vpack.c.b16 %v1323, %v1322
    %v1410 = vpack.c.b16 %v1325, %v1324
    %v1411 = vpack.c.b16 %v1327, %v1326
    %v1412 = vpack.c.b16 %v1329, %v1328
    %v1413 = vpack.c.b16 %v1331, %v1330
    %v1414 = vpack.c.b16 %v1333, %v1332
    %v1415 = vpack.c.b16 %v1335, %v1334
    %v1416 = vpack.c.b16 %v1337, %v1336
    %v1417 = vpack.c.b16 %v1339, %v1338
    %v1418 = vpack.c.b16 %v1341, %v1340
    %v1419 = vpack.c.b16 %v1343, %v1342
    %v1420 = vpack.c.b16 %v1345, %v1344
    %v1421 = vpack.c.b16 %v1347, %v1346
    %v1422 = vpack.c.b16 %v1349, %v1348
    %v1423 = vpack.c.b16 %v1351, %v1350
    %v1424 = vpack.c.b16 %v1353, %v1352
    %v1425 = vpack.c.b16 %v1355, %v1354
    %v1426 = vpack.c.b16 %v1357, %v1356
    %v1427 = vpack.c.b16 %v1359, %v1358
    %v1428 = vpack.c.b16 %v1361, %v1360
    %v1429 = vpack.c.b16 %v1363, %v1362
    %v1430 = vpack.c.b16 %v1365, %v1364
    %v1431 = vpack.c.b16 %v1367, %v1366
    %1496 = vmatpush.bf16.msra.mxu0 %v1375
    %1497 = vmatpush.bf16.msra.mxu0 %v1374
    %1498 = vmatpush.bf16.msra.mxu0 %v1373
    %1499 = vmatpush.bf16.msra.mxu0 %v1372
    %1500 = vmatpush.bf16.msra.mxu0 %v1371
    %1501 = vmatpush.bf16.msra.mxu0 %v1370
    %1502 = vmatpush.bf16.msra.mxu0 %v1369
    %1503 = vmatpush.bf16.msra.mxu0 %v1368
    %1504 = vmatmul.bf16.gmra.mxu0 %v856
    %v1505 = vpop.f32.mrf.mxu0
    %v1506 = vadd.f32 %v315, %v1505
    %v1507 = vpop.f32.mrf.mxu0
    %v1508 = vadd.f32 %v320, %v1507
    %1509 = vmatmul.bf16.gmra.mxu0 %v864
    %v1510 = vpop.f32.mrf.mxu0
    %v1511 = vadd.f32 %v325, %v1510
    %v1512 = vpop.f32.mrf.mxu0
    %v1513 = vadd.f32 %v330, %v1512
    %1514 = vmatmul.bf16.gmra.mxu0 %v872
    %v1515 = vpop.f32.mrf.mxu0
    %v1516 = vadd.f32 %v335, %v1515
    %v1517 = vpop.f32.mrf.mxu0
    %v1518 = vadd.f32 %v340, %v1517
    %1519 = vmatmul.bf16.gmra.mxu0 %v880
    %v1520 = vpop.f32.mrf.mxu0
    %v1521 = vadd.f32 %v345, %v1520
    %v1522 = vpop.f32.mrf.mxu0
    %v1523 = vadd.f32 %v350, %v1522
    %1524 = vmatmul.bf16.gmra.mxu0 %v888
    %v1525 = vpop.f32.mrf.mxu0
    %v1526 = vadd.f32 %v355, %v1525
    %v1527 = vpop.f32.mrf.mxu0
    %v1528 = vadd.f32 %v360, %v1527
    %1529 = vmatmul.bf16.gmra.mxu0 %v896
    %v1530 = vpop.f32.mrf.mxu0
    %v1531 = vadd.f32 %v365, %v1530
    %v1532 = vpop.f32.mrf.mxu0
    %v1533 = vadd.f32 %v370, %v1532
    %1534 = vmatmul.bf16.gmra.mxu0 %v904
    %v1535 = vpop.f32.mrf.mxu0
    %v1536 = vadd.f32 %v375, %v1535
    %v1537 = vpop.f32.mrf.mxu0
    %v1538 = vadd.f32 %v380, %v1537
    %1539 = vmatmul.bf16.gmra.mxu0 %v912
    %v1540 = vpop.f32.mrf.mxu0
    %v1541 = vadd.f32 %v385, %v1540
    %v1542 = vpop.f32.mrf.mxu0
    %v1543 = vadd.f32 %v390, %v1542
    %1544 = vmatmul.bf16.gmra.mxu0 %v920
    %v1545 = vpop.f32.mrf.mxu0
    %v1546 = vadd.f32 %v395, %v1545
    %v1547 = vpop.f32.mrf.mxu0
    %v1548 = vadd.f32 %v400, %v1547
    %1549 = vmatmul.bf16.gmra.mxu0 %v928
    %v1550 = vpop.f32.mrf.mxu0
    %v1551 = vadd.f32 %v405, %v1550
    %v1552 = vpop.f32.mrf.mxu0
    %v1553 = vadd.f32 %v410, %v1552
    %1554 = vmatmul.bf16.gmra.mxu0 %v936
    %v1555 = vpop.f32.mrf.mxu0
    %v1556 = vadd.f32 %v415, %v1555
    %v1557 = vpop.f32.mrf.mxu0
    %v1558 = vadd.f32 %v420, %v1557
    %1559 = vmatmul.bf16.gmra.mxu0 %v944
    %v1560 = vpop.f32.mrf.mxu0
    %v1561 = vadd.f32 %v425, %v1560
    %v1562 = vpop.f32.mrf.mxu0
    %v1563 = vadd.f32 %v430, %v1562
    %1564 = vmatmul.bf16.gmra.mxu0 %v952
    %v1565 = vpop.f32.mrf.mxu0
    %v1566 = vadd.f32 %v435, %v1565
    %v1567 = vpop.f32.mrf.mxu0
    %v1568 = vadd.f32 %v440, %v1567
    %1569 = vmatmul.bf16.gmra.mxu0 %v960
    %v1570 = vpop.f32.mrf.mxu0
    %v1571 = vadd.f32 %v445, %v1570
    %v1572 = vpop.f32.mrf.mxu0
    %v1573 = vadd.f32 %v450, %v1572
    %1574 = vmatmul.bf16.gmra.mxu0 %v968
    %v1575 = vpop.f32.mrf.mxu0
    %v1576 = vadd.f32 %v455, %v1575
    %v1577 = vpop.f32.mrf.mxu0
    %v1578 = vadd.f32 %v460, %v1577
    %1579 = vmatmul.bf16.gmra.mxu0 %v976
    %v1580 = vpop.f32.mrf.mxu0
    %v1581 = vadd.f32 %v465, %v1580
    %v1582 = vpop.f32.mrf.mxu0
    %v1583 = vadd.f32 %v470, %v1582
    %1584 = vdwg.mxu0
    %1585 = vmatpush.bf16.msra.mxu0 %v1383
    %1586 = vmatpush.bf16.msra.mxu0 %v1382
    %1587 = vmatpush.bf16.msra.mxu0 %v1381
    %1588 = vmatpush.bf16.msra.mxu0 %v1380
    %1589 = vmatpush.bf16.msra.mxu0 %v1379
    %1590 = vmatpush.bf16.msra.mxu0 %v1378
    %1591 = vmatpush.bf16.msra.mxu0 %v1377
    %1592 = vmatpush.bf16.msra.mxu0 %v1376
    %1593 = vmatmul.bf16.gmra.mxu0 %v857
    %v1594 = vpop.f32.mrf.mxu0
    %v1595 = vadd.f32 %v1506, %v1594
    %v1596 = vpop.f32.mrf.mxu0
    %v1597 = vadd.f32 %v1508, %v1596
    %1598 = vmatmul.bf16.gmra.mxu0 %v865
    %v1599 = vpop.f32.mrf.mxu0
    %v1600 = vadd.f32 %v1511, %v1599
    %v1601 = vpop.f32.mrf.mxu0
    %v1602 = vadd.f32 %v1513, %v1601
    %1603 = vmatmul.bf16.gmra.mxu0 %v873
    %v1604 = vpop.f32.mrf.mxu0
    %v1605 = vadd.f32 %v1516, %v1604
    %v1606 = vpop.f32.mrf.mxu0
    %v1607 = vadd.f32 %v1518, %v1606
    %1608 = vmatmul.bf16.gmra.mxu0 %v881
    %v1609 = vpop.f32.mrf.mxu0
    %v1610 = vadd.f32 %v1521, %v1609
    %v1611 = vpop.f32.mrf.mxu0
    %v1612 = vadd.f32 %v1523, %v1611
    %1613 = vmatmul.bf16.gmra.mxu0 %v889
    %v1614 = vpop.f32.mrf.mxu0
    %v1615 = vadd.f32 %v1526, %v1614
    %v1616 = vpop.f32.mrf.mxu0
    %v1617 = vadd.f32 %v1528, %v1616
    %1618 = vmatmul.bf16.gmra.mxu0 %v897
    %v1619 = vpop.f32.mrf.mxu0
    %v1620 = vadd.f32 %v1531, %v1619
    %v1621 = vpop.f32.mrf.mxu0
    %v1622 = vadd.f32 %v1533, %v1621
    %1623 = vmatmul.bf16.gmra.mxu0 %v905
    %v1624 = vpop.f32.mrf.mxu0
    %v1625 = vadd.f32 %v1536, %v1624
    %v1626 = vpop.f32.mrf.mxu0
    %v1627 = vadd.f32 %v1538, %v1626
    %1628 = vmatmul.bf16.gmra.mxu0 %v913
    %v1629 = vpop.f32.mrf.mxu0
    %v1630 = vadd.f32 %v1541, %v1629
    %v1631 = vpop.f32.mrf.mxu0
    %v1632 = vadd.f32 %v1543, %v1631
    %1633 = vmatmul.bf16.gmra.mxu0 %v921
    %v1634 = vpop.f32.mrf.mxu0
    %v1635 = vadd.f32 %v1546, %v1634
    %v1636 = vpop.f32.mrf.mxu0
    %v1637 = vadd.f32 %v1548, %v1636
    %1638 = vmatmul.bf16.gmra.mxu0 %v929
    %v1639 = vpop.f32.mrf.mxu0
    %v1640 = vadd.f32 %v1551, %v1639
    %v1641 = vpop.f32.mrf.mxu0
    %v1642 = vadd.f32 %v1553, %v1641
    %1643 = vmatmul.bf16.gmra.mxu0 %v937
    %v1644 = vpop.f32.mrf.mxu0
    %v1645 = vadd.f32 %v1556, %v1644
    %v1646 = vpop.f32.mrf.mxu0
    %v1647 = vadd.f32 %v1558, %v1646
    %1648 = vmatmul.bf16.gmra.mxu0 %v945
    %v1649 = vpop.f32.mrf.mxu0
    %v1650 = vadd.f32 %v1561, %v1649
    %v1651 = vpop.f32.mrf.mxu0
    %v1652 = vadd.f32 %v1563, %v1651
    %1653 = vmatmul.bf16.gmra.mxu0 %v953
    %v1654 = vpop.f32.mrf.mxu0
    %v1655 = vadd.f32 %v1566, %v1654
    %v1656 = vpop.f32.mrf.mxu0
    %v1657 = vadd.f32 %v1568, %v1656
    %1658 = vmatmul.bf16.gmra.mxu0 %v961
    %v1659 = vpop.f32.mrf.mxu0
    %v1660 = vadd.f32 %v1571, %v1659
    %v1661 = vpop.f32.mrf.mxu0
    %v1662 = vadd.f32 %v1573, %v1661
    %1663 = vmatmul.bf16.gmra.mxu0 %v969
    %v1664 = vpop.f32.mrf.mxu0
    %v1665 = vadd.f32 %v1576, %v1664
    %v1666 = vpop.f32.mrf.mxu0
    %v1667 = vadd.f32 %v1578, %v1666
    %1668 = vmatmul.bf16.gmra.mxu0 %v977
    %v1669 = vpop.f32.mrf.mxu0
    %v1670 = vadd.f32 %v1581, %v1669
    %v1671 = vpop.f32.mrf.mxu0
    %v1672 = vadd.f32 %v1583, %v1671
    %1673 = vdwg.mxu0
    %1674 = vmatpush.bf16.msra.mxu0 %v1391
    %1675 = vmatpush.bf16.msra.mxu0 %v1390
    %1676 = vmatpush.bf16.msra.mxu0 %v1389
    %1677 = vmatpush.bf16.msra.mxu0 %v1388
    %1678 = vmatpush.bf16.msra.mxu0 %v1387
    %1679 = vmatpush.bf16.msra.mxu0 %v1386
    %1680 = vmatpush.bf16.msra.mxu0 %v1385
    %1681 = vmatpush.bf16.msra.mxu0 %v1384
    %1682 = vmatmul.bf16.gmra.mxu0 %v858
    %v1683 = vpop.f32.mrf.mxu0
    %v1684 = vadd.f32 %v1595, %v1683
    %v1685 = vpop.f32.mrf.mxu0
    %v1686 = vadd.f32 %v1597, %v1685
    %1687 = vmatmul.bf16.gmra.mxu0 %v866
    %v1688 = vpop.f32.mrf.mxu0
    %v1689 = vadd.f32 %v1600, %v1688
    %v1690 = vpop.f32.mrf.mxu0
    %v1691 = vadd.f32 %v1602, %v1690
    %1692 = vmatmul.bf16.gmra.mxu0 %v874
    %v1693 = vpop.f32.mrf.mxu0
    %v1694 = vadd.f32 %v1605, %v1693
    %v1695 = vpop.f32.mrf.mxu0
    %v1696 = vadd.f32 %v1607, %v1695
    %1697 = vmatmul.bf16.gmra.mxu0 %v882
    %v1698 = vpop.f32.mrf.mxu0
    %v1699 = vadd.f32 %v1610, %v1698
    %v1700 = vpop.f32.mrf.mxu0
    %v1701 = vadd.f32 %v1612, %v1700
    %1702 = vmatmul.bf16.gmra.mxu0 %v890
    %v1703 = vpop.f32.mrf.mxu0
    %v1704 = vadd.f32 %v1615, %v1703
    %v1705 = vpop.f32.mrf.mxu0
    %v1706 = vadd.f32 %v1617, %v1705
    %1707 = vmatmul.bf16.gmra.mxu0 %v898
    %v1708 = vpop.f32.mrf.mxu0
    %v1709 = vadd.f32 %v1620, %v1708
    %v1710 = vpop.f32.mrf.mxu0
    %v1711 = vadd.f32 %v1622, %v1710
    %1712 = vmatmul.bf16.gmra.mxu0 %v906
    %v1713 = vpop.f32.mrf.mxu0
    %v1714 = vadd.f32 %v1625, %v1713
    %v1715 = vpop.f32.mrf.mxu0
    %v1716 = vadd.f32 %v1627, %v1715
    %1717 = vmatmul.bf16.gmra.mxu0 %v914
    %v1718 = vpop.f32.mrf.mxu0
    %v1719 = vadd.f32 %v1630, %v1718
    %v1720 = vpop.f32.mrf.mxu0
    %v1721 = vadd.f32 %v1632, %v1720
    %1722 = vmatmul.bf16.gmra.mxu0 %v922
    %v1723 = vpop.f32.mrf.mxu0
    %v1724 = vadd.f32 %v1635, %v1723
    %v1725 = vpop.f32.mrf.mxu0
    %v1726 = vadd.f32 %v1637, %v1725
    %1727 = vmatmul.bf16.gmra.mxu0 %v930
    %v1728 = vpop.f32.mrf.mxu0
    %v1729 = vadd.f32 %v1640, %v1728
    %v1730 = vpop.f32.mrf.mxu0
    %v1731 = vadd.f32 %v1642, %v1730
    %1732 = vmatmul.bf16.gmra.mxu0 %v938
    %v1733 = vpop.f32.mrf.mxu0
    %v1734 = vadd.f32 %v1645, %v1733
    %v1735 = vpop.f32.mrf.mxu0
    %v1736 = vadd.f32 %v1647, %v1735
    %1737 = vmatmul.bf16.gmra.mxu0 %v946
    %v1738 = vpop.f32.mrf.mxu0
    %v1739 = vadd.f32 %v1650, %v1738
    %v1740 = vpop.f32.mrf.mxu0
    %v1741 = vadd.f32 %v1652, %v1740
    %1742 = vmatmul.bf16.gmra.mxu0 %v954
    %v1743 = vpop.f32.mrf.mxu0
    %v1744 = vadd.f32 %v1655, %v1743
    %v1745 = vpop.f32.mrf.mxu0
    %v1746 = vadd.f32 %v1657, %v1745
    %1747 = vmatmul.bf16.gmra.mxu0 %v962
    %v1748 = vpop.f32.mrf.mxu0
    %v1749 = vadd.f32 %v1660, %v1748
    %v1750 = vpop.f32.mrf.mxu0
    %v1751 = vadd.f32 %v1662, %v1750
    %1752 = vmatmul.bf16.gmra.mxu0 %v970
    %v1753 = vpop.f32.mrf.mxu0
    %v1754 = vadd.f32 %v1665, %v1753
    %v1755 = vpop.f32.mrf.mxu0
    %v1756 = vadd.f32 %v1667, %v1755
    %1757 = vmatmul.bf16.gmra.mxu0 %v978
    %v1758 = vpop.f32.mrf.mxu0
    %v1759 = vadd.f32 %v1670, %v1758
    %v1760 = vpop.f32.mrf.mxu0
    %v1761 = vadd.f32 %v1672, %v1760
    %1762 = vdwg.mxu0
    %1763 = vmatpush.bf16.msra.mxu0 %v1399
    %1764 = vmatpush.bf16.msra.mxu0 %v1398
    %1765 = vmatpush.bf16.msra.mxu0 %v1397
    %1766 = vmatpush.bf16.msra.mxu0 %v1396
    %1767 = vmatpush.bf16.msra.mxu0 %v1395
    %1768 = vmatpush.bf16.msra.mxu0 %v1394
    %1769 = vmatpush.bf16.msra.mxu0 %v1393
    %1770 = vmatpush.bf16.msra.mxu0 %v1392
    %1771 = vmatmul.bf16.gmra.mxu0 %v859
    %v1772 = vpop.f32.mrf.mxu0
    %v1773 = vadd.f32 %v1684, %v1772
    %v1774 = vpop.f32.mrf.mxu0
    %v1775 = vadd.f32 %v1686, %v1774
    %1776 = vmatmul.bf16.gmra.mxu0 %v867
    %v1777 = vpop.f32.mrf.mxu0
    %v1778 = vadd.f32 %v1689, %v1777
    %v1779 = vpop.f32.mrf.mxu0
    %v1780 = vadd.f32 %v1691, %v1779
    %1781 = vmatmul.bf16.gmra.mxu0 %v875
    %v1782 = vpop.f32.mrf.mxu0
    %v1783 = vadd.f32 %v1694, %v1782
    %v1784 = vpop.f32.mrf.mxu0
    %v1785 = vadd.f32 %v1696, %v1784
    %1786 = vmatmul.bf16.gmra.mxu0 %v883
    %v1787 = vpop.f32.mrf.mxu0
    %v1788 = vadd.f32 %v1699, %v1787
    %v1789 = vpop.f32.mrf.mxu0
    %v1790 = vadd.f32 %v1701, %v1789
    %1791 = vmatmul.bf16.gmra.mxu0 %v891
    %v1792 = vpop.f32.mrf.mxu0
    %v1793 = vadd.f32 %v1704, %v1792
    %v1794 = vpop.f32.mrf.mxu0
    %v1795 = vadd.f32 %v1706, %v1794
    %1796 = vmatmul.bf16.gmra.mxu0 %v899
    %v1797 = vpop.f32.mrf.mxu0
    %v1798 = vadd.f32 %v1709, %v1797
    %v1799 = vpop.f32.mrf.mxu0
    %v1800 = vadd.f32 %v1711, %v1799
    %1801 = vmatmul.bf16.gmra.mxu0 %v907
    %v1802 = vpop.f32.mrf.mxu0
    %v1803 = vadd.f32 %v1714, %v1802
    %v1804 = vpop.f32.mrf.mxu0
    %v1805 = vadd.f32 %v1716, %v1804
    %1806 = vmatmul.bf16.gmra.mxu0 %v915
    %v1807 = vpop.f32.mrf.mxu0
    %v1808 = vadd.f32 %v1719, %v1807
    %v1809 = vpop.f32.mrf.mxu0
    %v1810 = vadd.f32 %v1721, %v1809
    %1811 = vmatmul.bf16.gmra.mxu0 %v923
    %v1812 = vpop.f32.mrf.mxu0
    %v1813 = vadd.f32 %v1724, %v1812
    %v1814 = vpop.f32.mrf.mxu0
    %v1815 = vadd.f32 %v1726, %v1814
    %1816 = vmatmul.bf16.gmra.mxu0 %v931
    %v1817 = vpop.f32.mrf.mxu0
    %v1818 = vadd.f32 %v1729, %v1817
    %v1819 = vpop.f32.mrf.mxu0
    %v1820 = vadd.f32 %v1731, %v1819
    %1821 = vmatmul.bf16.gmra.mxu0 %v939
    %v1822 = vpop.f32.mrf.mxu0
    %v1823 = vadd.f32 %v1734, %v1822
    %v1824 = vpop.f32.mrf.mxu0
    %v1825 = vadd.f32 %v1736, %v1824
    %1826 = vmatmul.bf16.gmra.mxu0 %v947
    %v1827 = vpop.f32.mrf.mxu0
    %v1828 = vadd.f32 %v1739, %v1827
    %v1829 = vpop.f32.mrf.mxu0
    %v1830 = vadd.f32 %v1741, %v1829
    %1831 = vmatmul.bf16.gmra.mxu0 %v955
    %v1832 = vpop.f32.mrf.mxu0
    %v1833 = vadd.f32 %v1744, %v1832
    %v1834 = vpop.f32.mrf.mxu0
    %v1835 = vadd.f32 %v1746, %v1834
    %1836 = vmatmul.bf16.gmra.mxu0 %v963
    %v1837 = vpop.f32.mrf.mxu0
    %v1838 = vadd.f32 %v1749, %v1837
    %v1839 = vpop.f32.mrf.mxu0
    %v1840 = vadd.f32 %v1751, %v1839
    %1841 = vmatmul.bf16.gmra.mxu0 %v971
    %v1842 = vpop.f32.mrf.mxu0
    %v1843 = vadd.f32 %v1754, %v1842
    %v1844 = vpop.f32.mrf.mxu0
    %v1845 = vadd.f32 %v1756, %v1844
    %1846 = vmatmul.bf16.gmra.mxu0 %v979
    %v1847 = vpop.f32.mrf.mxu0
    %v1848 = vadd.f32 %v1759, %v1847
    %v1849 = vpop.f32.mrf.mxu0
    %v1850 = vadd.f32 %v1761, %v1849
    %1851 = vdwg.mxu0
    %1852 = vmatpush.bf16.msra.mxu0 %v1407
    %1853 = vmatpush.bf16.msra.mxu0 %v1406
    %1854 = vmatpush.bf16.msra.mxu0 %v1405
    %1855 = vmatpush.bf16.msra.mxu0 %v1404
    %1856 = vmatpush.bf16.msra.mxu0 %v1403
    %1857 = vmatpush.bf16.msra.mxu0 %v1402
    %1858 = vmatpush.bf16.msra.mxu0 %v1401
    %1859 = vmatpush.bf16.msra.mxu0 %v1400
    %1860 = vmatmul.bf16.gmra.mxu0 %v860
    %v1861 = vpop.f32.mrf.mxu0
    %v1862 = vadd.f32 %v1773, %v1861
    %v1863 = vpop.f32.mrf.mxu0
    %v1864 = vadd.f32 %v1775, %v1863
    %1865 = vmatmul.bf16.gmra.mxu0 %v868
    %v1866 = vpop.f32.mrf.mxu0
    %v1867 = vadd.f32 %v1778, %v1866
    %v1868 = vpop.f32.mrf.mxu0
    %v1869 = vadd.f32 %v1780, %v1868
    %1870 = vmatmul.bf16.gmra.mxu0 %v876
    %v1871 = vpop.f32.mrf.mxu0
    %v1872 = vadd.f32 %v1783, %v1871
    %v1873 = vpop.f32.mrf.mxu0
    %v1874 = vadd.f32 %v1785, %v1873
    %1875 = vmatmul.bf16.gmra.mxu0 %v884
    %v1876 = vpop.f32.mrf.mxu0
    %v1877 = vadd.f32 %v1788, %v1876
    %v1878 = vpop.f32.mrf.mxu0
    %v1879 = vadd.f32 %v1790, %v1878
    %1880 = vmatmul.bf16.gmra.mxu0 %v892
    %v1881 = vpop.f32.mrf.mxu0
    %v1882 = vadd.f32 %v1793, %v1881
    %v1883 = vpop.f32.mrf.mxu0
    %v1884 = vadd.f32 %v1795, %v1883
    %1885 = vmatmul.bf16.gmra.mxu0 %v900
    %v1886 = vpop.f32.mrf.mxu0
    %v1887 = vadd.f32 %v1798, %v1886
    %v1888 = vpop.f32.mrf.mxu0
    %v1889 = vadd.f32 %v1800, %v1888
    %1890 = vmatmul.bf16.gmra.mxu0 %v908
    %v1891 = vpop.f32.mrf.mxu0
    %v1892 = vadd.f32 %v1803, %v1891
    %v1893 = vpop.f32.mrf.mxu0
    %v1894 = vadd.f32 %v1805, %v1893
    %1895 = vmatmul.bf16.gmra.mxu0 %v916
    %v1896 = vpop.f32.mrf.mxu0
    %v1897 = vadd.f32 %v1808, %v1896
    %v1898 = vpop.f32.mrf.mxu0
    %v1899 = vadd.f32 %v1810, %v1898
    %1900 = vmatmul.bf16.gmra.mxu0 %v924
    %v1901 = vpop.f32.mrf.mxu0
    %v1902 = vadd.f32 %v1813, %v1901
    %v1903 = vpop.f32.mrf.mxu0
    %v1904 = vadd.f32 %v1815, %v1903
    %1905 = vmatmul.bf16.gmra.mxu0 %v932
    %v1906 = vpop.f32.mrf.mxu0
    %v1907 = vadd.f32 %v1818, %v1906
    %v1908 = vpop.f32.mrf.mxu0
    %v1909 = vadd.f32 %v1820, %v1908
    %1910 = vmatmul.bf16.gmra.mxu0 %v940
    %v1911 = vpop.f32.mrf.mxu0
    %v1912 = vadd.f32 %v1823, %v1911
    %v1913 = vpop.f32.mrf.mxu0
    %v1914 = vadd.f32 %v1825, %v1913
    %1915 = vmatmul.bf16.gmra.mxu0 %v948
    %v1916 = vpop.f32.mrf.mxu0
    %v1917 = vadd.f32 %v1828, %v1916
    %v1918 = vpop.f32.mrf.mxu0
    %v1919 = vadd.f32 %v1830, %v1918
    %1920 = vmatmul.bf16.gmra.mxu0 %v956
    %v1921 = vpop.f32.mrf.mxu0
    %v1922 = vadd.f32 %v1833, %v1921
    %v1923 = vpop.f32.mrf.mxu0
    %v1924 = vadd.f32 %v1835, %v1923
    %1925 = vmatmul.bf16.gmra.mxu0 %v964
    %v1926 = vpop.f32.mrf.mxu0
    %v1927 = vadd.f32 %v1838, %v1926
    %v1928 = vpop.f32.mrf.mxu0
    %v1929 = vadd.f32 %v1840, %v1928
    %1930 = vmatmul.bf16.gmra.mxu0 %v972
    %v1931 = vpop.f32.mrf.mxu0
    %v1932 = vadd.f32 %v1843, %v1931
    %v1933 = vpop.f32.mrf.mxu0
    %v1934 = vadd.f32 %v1845, %v1933
    %1935 = vmatmul.bf16.gmra.mxu0 %v980
    %v1936 = vpop.f32.mrf.mxu0
    %v1937 = vadd.f32 %v1848, %v1936
    %v1938 = vpop.f32.mrf.mxu0
    %v1939 = vadd.f32 %v1850, %v1938
    %1940 = vdwg.mxu0
    %1941 = vmatpush.bf16.msra.mxu0 %v1415
    %1942 = vmatpush.bf16.msra.mxu0 %v1414
    %1943 = vmatpush.bf16.msra.mxu0 %v1413
    %1944 = vmatpush.bf16.msra.mxu0 %v1412
    %1945 = vmatpush.bf16.msra.mxu0 %v1411
    %1946 = vmatpush.bf16.msra.mxu0 %v1410
    %1947 = vmatpush.bf16.msra.mxu0 %v1409
    %1948 = vmatpush.bf16.msra.mxu0 %v1408
    %1949 = vmatmul.bf16.gmra.mxu0 %v861
    %v1950 = vpop.f32.mrf.mxu0
    %v1951 = vadd.f32 %v1862, %v1950
    %v1952 = vpop.f32.mrf.mxu0
    %v1953 = vadd.f32 %v1864, %v1952
    %1954 = vmatmul.bf16.gmra.mxu0 %v869
    %v1955 = vpop.f32.mrf.mxu0
    %v1956 = vadd.f32 %v1867, %v1955
    %v1957 = vpop.f32.mrf.mxu0
    %v1958 = vadd.f32 %v1869, %v1957
    %1959 = vmatmul.bf16.gmra.mxu0 %v877
    %v1960 = vpop.f32.mrf.mxu0
    %v1961 = vadd.f32 %v1872, %v1960
    %v1962 = vpop.f32.mrf.mxu0
    %v1963 = vadd.f32 %v1874, %v1962
    %1964 = vmatmul.bf16.gmra.mxu0 %v885
    %v1965 = vpop.f32.mrf.mxu0
    %v1966 = vadd.f32 %v1877, %v1965
    %v1967 = vpop.f32.mrf.mxu0
    %v1968 = vadd.f32 %v1879, %v1967
    %1969 = vmatmul.bf16.gmra.mxu0 %v893
    %v1970 = vpop.f32.mrf.mxu0
    %v1971 = vadd.f32 %v1882, %v1970
    %v1972 = vpop.f32.mrf.mxu0
    %v1973 = vadd.f32 %v1884, %v1972
    %1974 = vmatmul.bf16.gmra.mxu0 %v901
    %v1975 = vpop.f32.mrf.mxu0
    %v1976 = vadd.f32 %v1887, %v1975
    %v1977 = vpop.f32.mrf.mxu0
    %v1978 = vadd.f32 %v1889, %v1977
    %1979 = vmatmul.bf16.gmra.mxu0 %v909
    %v1980 = vpop.f32.mrf.mxu0
    %v1981 = vadd.f32 %v1892, %v1980
    %v1982 = vpop.f32.mrf.mxu0
    %v1983 = vadd.f32 %v1894, %v1982
    %1984 = vmatmul.bf16.gmra.mxu0 %v917
    %v1985 = vpop.f32.mrf.mxu0
    %v1986 = vadd.f32 %v1897, %v1985
    %v1987 = vpop.f32.mrf.mxu0
    %v1988 = vadd.f32 %v1899, %v1987
    %1989 = vmatmul.bf16.gmra.mxu0 %v925
    %v1990 = vpop.f32.mrf.mxu0
    %v1991 = vadd.f32 %v1902, %v1990
    %v1992 = vpop.f32.mrf.mxu0
    %v1993 = vadd.f32 %v1904, %v1992
    %1994 = vmatmul.bf16.gmra.mxu0 %v933
    %v1995 = vpop.f32.mrf.mxu0
    %v1996 = vadd.f32 %v1907, %v1995
    %v1997 = vpop.f32.mrf.mxu0
    %v1998 = vadd.f32 %v1909, %v1997
    %1999 = vmatmul.bf16.gmra.mxu0 %v941
    %v2000 = vpop.f32.mrf.mxu0
    %v2001 = vadd.f32 %v1912, %v2000
    %v2002 = vpop.f32.mrf.mxu0
    %v2003 = vadd.f32 %v1914, %v2002
    %2004 = vmatmul.bf16.gmra.mxu0 %v949
    %v2005 = vpop.f32.mrf.mxu0
    %v2006 = vadd.f32 %v1917, %v2005
    %v2007 = vpop.f32.mrf.mxu0
    %v2008 = vadd.f32 %v1919, %v2007
    %2009 = vmatmul.bf16.gmra.mxu0 %v957
    %v2010 = vpop.f32.mrf.mxu0
    %v2011 = vadd.f32 %v1922, %v2010
    %v2012 = vpop.f32.mrf.mxu0
    %v2013 = vadd.f32 %v1924, %v2012
    %2014 = vmatmul.bf16.gmra.mxu0 %v965
    %v2015 = vpop.f32.mrf.mxu0
    %v2016 = vadd.f32 %v1927, %v2015
    %v2017 = vpop.f32.mrf.mxu0
    %v2018 = vadd.f32 %v1929, %v2017
    %2019 = vmatmul.bf16.gmra.mxu0 %v973
    %v2020 = vpop.f32.mrf.mxu0
    %v2021 = vadd.f32 %v1932, %v2020
    %v2022 = vpop.f32.mrf.mxu0
    %v2023 = vadd.f32 %v1934, %v2022
    %2024 = vmatmul.bf16.gmra.mxu0 %v981
    %v2025 = vpop.f32.mrf.mxu0
    %v2026 = vadd.f32 %v1937, %v2025
    %v2027 = vpop.f32.mrf.mxu0
    %v2028 = vadd.f32 %v1939, %v2027
    %2029 = vdwg.mxu0
    %2030 = vmatpush.bf16.msra.mxu0 %v1423
    %2031 = vmatpush.bf16.msra.mxu0 %v1422
    %2032 = vmatpush.bf16.msra.mxu0 %v1421
    %2033 = vmatpush.bf16.msra.mxu0 %v1420
    %2034 = vmatpush.bf16.msra.mxu0 %v1419
    %2035 = vmatpush.bf16.msra.mxu0 %v1418
    %2036 = vmatpush.bf16.msra.mxu0 %v1417
    %2037 = vmatpush.bf16.msra.mxu0 %v1416
    %2038 = vmatmul.bf16.gmra.mxu0 %v862
    %v2039 = vpop.f32.mrf.mxu0
    %v2040 = vadd.f32 %v1951, %v2039
    %v2041 = vpop.f32.mrf.mxu0
    %v2042 = vadd.f32 %v1953, %v2041
    %2043 = vmatmul.bf16.gmra.mxu0 %v870
    %v2044 = vpop.f32.mrf.mxu0
    %v2045 = vadd.f32 %v1956, %v2044
    %v2046 = vpop.f32.mrf.mxu0
    %v2047 = vadd.f32 %v1958, %v2046
    %2048 = vmatmul.bf16.gmra.mxu0 %v878
    %v2049 = vpop.f32.mrf.mxu0
    %v2050 = vadd.f32 %v1961, %v2049
    %v2051 = vpop.f32.mrf.mxu0
    %v2052 = vadd.f32 %v1963, %v2051
    %2053 = vmatmul.bf16.gmra.mxu0 %v886
    %v2054 = vpop.f32.mrf.mxu0
    %v2055 = vadd.f32 %v1966, %v2054
    %v2056 = vpop.f32.mrf.mxu0
    %v2057 = vadd.f32 %v1968, %v2056
    %2058 = vmatmul.bf16.gmra.mxu0 %v894
    %v2059 = vpop.f32.mrf.mxu0
    %v2060 = vadd.f32 %v1971, %v2059
    %v2061 = vpop.f32.mrf.mxu0
    %v2062 = vadd.f32 %v1973, %v2061
    %2063 = vmatmul.bf16.gmra.mxu0 %v902
    %v2064 = vpop.f32.mrf.mxu0
    %v2065 = vadd.f32 %v1976, %v2064
    %v2066 = vpop.f32.mrf.mxu0
    %v2067 = vadd.f32 %v1978, %v2066
    %2068 = vmatmul.bf16.gmra.mxu0 %v910
    %v2069 = vpop.f32.mrf.mxu0
    %v2070 = vadd.f32 %v1981, %v2069
    %v2071 = vpop.f32.mrf.mxu0
    %v2072 = vadd.f32 %v1983, %v2071
    %2073 = vmatmul.bf16.gmra.mxu0 %v918
    %v2074 = vpop.f32.mrf.mxu0
    %v2075 = vadd.f32 %v1986, %v2074
    %v2076 = vpop.f32.mrf.mxu0
    %v2077 = vadd.f32 %v1988, %v2076
    %2078 = vmatmul.bf16.gmra.mxu0 %v926
    %v2079 = vpop.f32.mrf.mxu0
    %v2080 = vadd.f32 %v1991, %v2079
    %v2081 = vpop.f32.mrf.mxu0
    %v2082 = vadd.f32 %v1993, %v2081
    %2083 = vmatmul.bf16.gmra.mxu0 %v934
    %v2084 = vpop.f32.mrf.mxu0
    %v2085 = vadd.f32 %v1996, %v2084
    %v2086 = vpop.f32.mrf.mxu0
    %v2087 = vadd.f32 %v1998, %v2086
    %2088 = vmatmul.bf16.gmra.mxu0 %v942
    %v2089 = vpop.f32.mrf.mxu0
    %v2090 = vadd.f32 %v2001, %v2089
    %v2091 = vpop.f32.mrf.mxu0
    %v2092 = vadd.f32 %v2003, %v2091
    %2093 = vmatmul.bf16.gmra.mxu0 %v950
    %v2094 = vpop.f32.mrf.mxu0
    %v2095 = vadd.f32 %v2006, %v2094
    %v2096 = vpop.f32.mrf.mxu0
    %v2097 = vadd.f32 %v2008, %v2096
    %2098 = vmatmul.bf16.gmra.mxu0 %v958
    %v2099 = vpop.f32.mrf.mxu0
    %v2100 = vadd.f32 %v2011, %v2099
    %v2101 = vpop.f32.mrf.mxu0
    %v2102 = vadd.f32 %v2013, %v2101
    %2103 = vmatmul.bf16.gmra.mxu0 %v966
    %v2104 = vpop.f32.mrf.mxu0
    %v2105 = vadd.f32 %v2016, %v2104
    %v2106 = vpop.f32.mrf.mxu0
    %v2107 = vadd.f32 %v2018, %v2106
    %2108 = vmatmul.bf16.gmra.mxu0 %v974
    %v2109 = vpop.f32.mrf.mxu0
    %v2110 = vadd.f32 %v2021, %v2109
    %v2111 = vpop.f32.mrf.mxu0
    %v2112 = vadd.f32 %v2023, %v2111
    %2113 = vmatmul.bf16.gmra.mxu0 %v982
    %v2114 = vpop.f32.mrf.mxu0
    %v2115 = vadd.f32 %v2026, %v2114
    %v2116 = vpop.f32.mrf.mxu0
    %v2117 = vadd.f32 %v2028, %v2116
    %2118 = vdwg.mxu0
    %2119 = vmatpush.bf16.msra.mxu0 %v1431
    %2120 = vmatpush.bf16.msra.mxu0 %v1430
    %2121 = vmatpush.bf16.msra.mxu0 %v1429
    %2122 = vmatpush.bf16.msra.mxu0 %v1428
    %2123 = vmatpush.bf16.msra.mxu0 %v1427
    %2124 = vmatpush.bf16.msra.mxu0 %v1426
    %2125 = vmatpush.bf16.msra.mxu0 %v1425
    %2126 = vmatpush.bf16.msra.mxu0 %v1424
    %2127 = vmatmul.bf16.gmra.mxu0 %v863
    %v2128 = vpop.f32.mrf.mxu0
    %v2129 = vadd.f32 %v2040, %v2128
    %v2130 = vpop.f32.mrf.mxu0
    %v2131 = vadd.f32 %v2042, %v2130
    %2132 = vmatmul.bf16.gmra.mxu0 %v871
    %v2133 = vpop.f32.mrf.mxu0
    %v2134 = vadd.f32 %v2045, %v2133
    %v2135 = vpop.f32.mrf.mxu0
    %v2136 = vadd.f32 %v2047, %v2135
    %2137 = vmatmul.bf16.gmra.mxu0 %v879
    %v2138 = vpop.f32.mrf.mxu0
    %v2139 = vadd.f32 %v2050, %v2138
    %v2140 = vpop.f32.mrf.mxu0
    %v2141 = vadd.f32 %v2052, %v2140
    %2142 = vmatmul.bf16.gmra.mxu0 %v887
    %v2143 = vpop.f32.mrf.mxu0
    %v2144 = vadd.f32 %v2055, %v2143
    %v2145 = vpop.f32.mrf.mxu0
    %v2146 = vadd.f32 %v2057, %v2145
    %2147 = vmatmul.bf16.gmra.mxu0 %v895
    %v2148 = vpop.f32.mrf.mxu0
    %v2149 = vadd.f32 %v2060, %v2148
    %v2150 = vpop.f32.mrf.mxu0
    %v2151 = vadd.f32 %v2062, %v2150
    %2152 = vmatmul.bf16.gmra.mxu0 %v903
    %v2153 = vpop.f32.mrf.mxu0
    %v2154 = vadd.f32 %v2065, %v2153
    %v2155 = vpop.f32.mrf.mxu0
    %v2156 = vadd.f32 %v2067, %v2155
    %2157 = vmatmul.bf16.gmra.mxu0 %v911
    %v2158 = vpop.f32.mrf.mxu0
    %v2159 = vadd.f32 %v2070, %v2158
    %v2160 = vpop.f32.mrf.mxu0
    %v2161 = vadd.f32 %v2072, %v2160
    %2162 = vmatmul.bf16.gmra.mxu0 %v919
    %v2163 = vpop.f32.mrf.mxu0
    %v2164 = vadd.f32 %v2075, %v2163
    %v2165 = vpop.f32.mrf.mxu0
    %v2166 = vadd.f32 %v2077, %v2165
    %2167 = vmatmul.bf16.gmra.mxu0 %v927
    %v2168 = vpop.f32.mrf.mxu0
    %v2169 = vadd.f32 %v2080, %v2168
    %v2170 = vpop.f32.mrf.mxu0
    %v2171 = vadd.f32 %v2082, %v2170
    %2172 = vmatmul.bf16.gmra.mxu0 %v935
    %v2173 = vpop.f32.mrf.mxu0
    %v2174 = vadd.f32 %v2085, %v2173
    %v2175 = vpop.f32.mrf.mxu0
    %v2176 = vadd.f32 %v2087, %v2175
    %2177 = vmatmul.bf16.gmra.mxu0 %v943
    %v2178 = vpop.f32.mrf.mxu0
    %v2179 = vadd.f32 %v2090, %v2178
    %v2180 = vpop.f32.mrf.mxu0
    %v2181 = vadd.f32 %v2092, %v2180
    %2182 = vmatmul.bf16.gmra.mxu0 %v951
    %v2183 = vpop.f32.mrf.mxu0
    %v2184 = vadd.f32 %v2095, %v2183
    %v2185 = vpop.f32.mrf.mxu0
    %v2186 = vadd.f32 %v2097, %v2185
    %2187 = vmatmul.bf16.gmra.mxu0 %v959
    %v2188 = vpop.f32.mrf.mxu0
    %v2189 = vadd.f32 %v2100, %v2188
    %v2190 = vpop.f32.mrf.mxu0
    %v2191 = vadd.f32 %v2102, %v2190
    %2192 = vmatmul.bf16.gmra.mxu0 %v967
    %v2193 = vpop.f32.mrf.mxu0
    %v2194 = vadd.f32 %v2105, %v2193
    %v2195 = vpop.f32.mrf.mxu0
    %v2196 = vadd.f32 %v2107, %v2195
    %2197 = vmatmul.bf16.gmra.mxu0 %v975
    %v2198 = vpop.f32.mrf.mxu0
    %v2199 = vadd.f32 %v2110, %v2198
    %v2200 = vpop.f32.mrf.mxu0
    %v2201 = vadd.f32 %v2112, %v2200
    %2202 = vmatmul.bf16.gmra.mxu0 %v983
    %v2203 = vpop.f32.mrf.mxu0
    %v2204 = vadd.f32 %v2115, %v2203
    %v2205 = vpop.f32.mrf.mxu0
    %v2206 = vadd.f32 %v2117, %v2205
    %2207 = vdwg.mxu0
    %s2208 = scalar_lea.vmem %s3, %s148
    %2209 = vst [vmem:[%s2208] sm:$0xff] %v2129
    %2210 = vst [vmem:[%s2208 + $0x8] sm:$0xff] %v2131
    %2211 = vst [vmem:[%s2208 + $0x10] sm:$0xff] %v2134
    %2212 = vst [vmem:[%s2208 + $0x18] sm:$0xff] %v2136
    %2213 = vst [vmem:[%s2208 + $0x20] sm:$0xff] %v2139
    %2214 = vst [vmem:[%s2208 + $0x28] sm:$0xff] %v2141
    %2215 = vst [vmem:[%s2208 + $0x30] sm:$0xff] %v2144
    %2216 = vst [vmem:[%s2208 + $0x38] sm:$0xff] %v2146
    %2217 = vst [vmem:[%s2208 + $0x40] sm:$0xff] %v2149
    %2218 = vst [vmem:[%s2208 + $0x48] sm:$0xff] %v2151
    %2219 = vst [vmem:[%s2208 + $0x50] sm:$0xff] %v2154
    %2220 = vst [vmem:[%s2208 + $0x58] sm:$0xff] %v2156
    %2221 = vst [vmem:[%s2208 + $0x60] sm:$0xff] %v2159
    %2222 = vst [vmem:[%s2208 + $0x68] sm:$0xff] %v2161
    %2223 = vst [vmem:[%s2208 + $0x70] sm:$0xff] %v2164
    %2224 = vst [vmem:[%s2208 + $0x78] sm:$0xff] %v2166
    %2225 = vst [vmem:[%s2208 + $0x80] sm:$0xff] %v2169
    %2226 = vst [vmem:[%s2208 + $0x88] sm:$0xff] %v2171
    %2227 = vst [vmem:[%s2208 + $0x90] sm:$0xff] %v2174
    %2228 = vst [vmem:[%s2208 + $0x98] sm:$0xff] %v2176
    %2229 = vst [vmem:[%s2208 + $0xa0] sm:$0xff] %v2179
    %2230 = vst [vmem:[%s2208 + $0xa8] sm:$0xff] %v2181
    %2231 = vst [vmem:[%s2208 + $0xb0] sm:$0xff] %v2184
    %2232 = vst [vmem:[%s2208 + $0xb8] sm:$0xff] %v2186
    %2233 = vst [vmem:[%s2208 + $0xc0] sm:$0xff] %v2189
    %2234 = vst [vmem:[%s2208 + $0xc8] sm:$0xff] %v2191
    %2235 = vst [vmem:[%s2208 + $0xd0] sm:$0xff] %v2194
    %2236 = vst [vmem:[%s2208 + $0xd8] sm:$0xff] %v2196
    %2237 = vst [vmem:[%s2208 + $0xe0] sm:$0xff] %v2199
    %2238 = vst [vmem:[%s2208 + $0xe8] sm:$0xff] %v2201
    %2239 = vst [vmem:[%s2208 + $0xf0] sm:$0xff] %v2204
    %2240 = vst [vmem:[%s2208 + $0xf8] sm:$0xff] %v2206
  $region18: #{topnet_decoder_forward.8} parent=0 // loop_footer
    %s147 = sadd.s32 1, %s143
  $region19: #{topnet_decoder_forward.8} parent=0 // loop_footer_branch
    %142 = sbr.rel target = $region15
  $region20: #{topnet_decoder_forward.8} parent=0 // loop_exit
    _
  // Predicated region
  $region21: #{topnet_decoder_forward.8} parent=0 // pred_check
    _
  $region22: #{topnet_decoder_forward.8} parent=0 // pred_check_branch
    %2242 = sbr.rel (0) target = $region24
  $region23: #{topnet_decoder_forward.8} parent=0 // pred_region
    _
  $region24: #{topnet_decoder_forward.8} parent=0 // pred_fallthru
    _
  // Predicated region
  $region25: #{topnet_decoder_forward.8} parent=0 // pred_check
    _
  $region26: #{topnet_decoder_forward.8} parent=0 // pred_check_branch
    %2244 = sbr.rel (0) target = $region28
  $region27: #{topnet_decoder_forward.8} parent=0 // pred_region
    _
  $region28: #{topnet_decoder_forward.8} parent=0 // pred_fallthru
    _

// kernel: topnet_decoder_forward.11
$region0: #{topnet_decoder_forward.11}
  #allocation0 [shape = 'u32[]', space=smem, size = 0x4, offset = 0x4, fixed_abs, tag = 'smem constant byte address 0x4 - core index']
  #allocation1 [shape = 'u32[72,128]{1,0:T(1,128)}', space=vmem, size = 0x9000, scoped, tag = 'internal scratch']
  %s0 = inlined_call_operand.vmem [shape: bf16[1,1,8,256], index: 0, kind: input, shape index: {}]
  %s1 = inlined_call_operand.vmem [shape: bf16[2,256,8], index: 1, kind: input, shape index: {}]
  %s2 = inlined_call_operand.vmem [shape: f32[2,256,128], index: 2, kind: input, shape index: {}]
  %s3 = inlined_call_operand.vmem [shape: bf16[2,64,256], index: 3, kind: input, shape index: {}]
  %s4 = inlined_call_operand.vmem [shape: f32[2,64,1], index: 4, kind: input, shape index: {}]
  %s5 = inlined_call_operand.vmem [shape: bf16[2,8,64], index: 5, kind: input, shape index: {}]
  %s6 = inlined_call_operand.vmem [shape: f32[2,8,1], index: 6, kind: input, shape index: {}]
  %s7 = inlined_call_operand.vmem [shape: f32[1,1,2,8,256], index: 7, kind: output, shape index: {}]
  %s8 = sld [smem:[#allocation0]]
  $region45: #{topnet_decoder_forward.11} parent=0
    _
  %s10 = ssub.s32 1, %s8
  %s11 = scalar_select 0, %s10, %s8
  // Predicated region
  $region2: #{topnet_decoder_forward.11} parent=0 // pred_check
    _
  $region3: #{topnet_decoder_forward.11} parent=0 // pred_check_branch
    %13 = sbr.rel (0) target = $region5
  $region4: #{topnet_decoder_forward.11} parent=0 // pred_region
    _
  $region5: #{topnet_decoder_forward.11} parent=0 // pred_fallthru
    _
  // Predicated region
  $region6: #{topnet_decoder_forward.11} parent=0 // pred_check
    _
  $region7: #{topnet_decoder_forward.11} parent=0 // pred_check_branch
    %15 = sbr.rel (0) target = $region9
  $region8: #{topnet_decoder_forward.11} parent=0 // pred_region
    _
  $region9: #{topnet_decoder_forward.11} parent=0 // pred_fallthru
    _
  // Predicated region
  $region10: #{topnet_decoder_forward.11} parent=0 // pred_check
    _
  $region11: #{topnet_decoder_forward.11} parent=0 // pred_check_branch
    %17 = sbr.rel (0) target = $region13
  $region12: #{topnet_decoder_forward.11} parent=0 // pred_region
    _
  $region13: #{topnet_decoder_forward.11} parent=0 // pred_fallthru
    _
  // Predicated region
  $region14: #{topnet_decoder_forward.11} parent=0 // pred_check
    _
  $region15: #{topnet_decoder_forward.11} parent=0 // pred_check_branch
    %19 = sbr.rel (0) target = $region17
  $region16: #{topnet_decoder_forward.11} parent=0 // pred_region
    _
  $region17: #{topnet_decoder_forward.11} parent=0 // pred_fallthru
    _
  // Predicated region
  $region18: #{topnet_decoder_forward.11} parent=0 // pred_check
    _
  $region19: #{topnet_decoder_forward.11} parent=0 // pred_check_branch
    %21 = sbr.rel (0) target = $region21
  $region20: #{topnet_decoder_forward.11} parent=0 // pred_region
    _
  $region21: #{topnet_decoder_forward.11} parent=0 // pred_fallthru
    _
  // Predicated region
  $region22: #{topnet_decoder_forward.11} parent=0 // pred_check
    _
  $region23: #{topnet_decoder_forward.11} parent=0 // pred_check_branch
    %23 = sbr.rel (0) target = $region25
  $region24: #{topnet_decoder_forward.11} parent=0 // pred_region
    _
  $region25: #{topnet_decoder_forward.11} parent=0 // pred_fallthru
    _
  // Predicated region
  $region26: #{topnet_decoder_forward.11} parent=0 // pred_check
    _
  $region27: #{topnet_decoder_forward.11} parent=0 // pred_check_branch
    %25 = sbr.rel (0) target = $region29
  $region28: #{topnet_decoder_forward.11} parent=0 // pred_region
    _
  $region29: #{topnet_decoder_forward.11} parent=0 // pred_fallthru
    _
  %v27 = vld [vmem:[%s0] sm:$0xff]
  loop: start=0, step=1, limit=2
  $region30: #{topnet_decoder_forward.11} parent=0 // loop_pre_header
    _
  $region31: #{topnet_decoder_forward.11} parent=0 // loop_header
    %s29 = sphi 0, %s33
    %p30 = scmp.ge.s32.totalorder %s29, 2
  $region32: #{topnet_decoder_forward.11} parent=0 // loop_header_branch
    %32 = sbr.rel (%p30) target = $region36
  $region33: #{topnet_decoder_forward.11} parent=0 // loop_body
    %s34 = smul.u32 %s29, 256
    %s35 = scalar_lea.vmem %s2, %s34
    %v36 = vld [vmem:[%s35] sm:$0xff]
    %v37 = vld [vmem:[%s35 + $0x8] sm:$0xff]
    %v38 = vld [vmem:[%s35 + $0x10] sm:$0xff]
    %v39 = vld [vmem:[%s35 + $0x18] sm:$0xff]
    %v40 = vld [vmem:[%s35 + $0x20] sm:$0xff]
    %v41 = vld [vmem:[%s35 + $0x28] sm:$0xff]
    %v42 = vld [vmem:[%s35 + $0x30] sm:$0xff]
    %v43 = vld [vmem:[%s35 + $0x38] sm:$0xff]
    %v44 = vld [vmem:[%s35 + $0x40] sm:$0xff]
    %v45 = vld [vmem:[%s35 + $0x48] sm:$0xff]
    %v46 = vld [vmem:[%s35 + $0x50] sm:$0xff]
    %v47 = vld [vmem:[%s35 + $0x58] sm:$0xff]
    %v48 = vld [vmem:[%s35 + $0x60] sm:$0xff]
    %v49 = vld [vmem:[%s35 + $0x68] sm:$0xff]
    %v50 = vld [vmem:[%s35 + $0x70] sm:$0xff]
    %v51 = vld [vmem:[%s35 + $0x78] sm:$0xff]
    %v52 = vld [vmem:[%s35 + $0x80] sm:$0xff]
    %v53 = vld [vmem:[%s35 + $0x88] sm:$0xff]
    %v54 = vld [vmem:[%s35 + $0x90] sm:$0xff]
    %v55 = vld [vmem:[%s35 + $0x98] sm:$0xff]
    %v56 = vld [vmem:[%s35 + $0xa0] sm:$0xff]
    %v57 = vld [vmem:[%s35 + $0xa8] sm:$0xff]
    %v58 = vld [vmem:[%s35 + $0xb0] sm:$0xff]
    %v59 = vld [vmem:[%s35 + $0xb8] sm:$0xff]
    %v60 = vld [vmem:[%s35 + $0xc0] sm:$0xff]
    %v61 = vld [vmem:[%s35 + $0xc8] sm:$0xff]
    %v62 = vld [vmem:[%s35 + $0xd0] sm:$0xff]
    %v63 = vld [vmem:[%s35 + $0xd8] sm:$0xff]
    %v64 = vld [vmem:[%s35 + $0xe0] sm:$0xff]
    %v65 = vld [vmem:[%s35 + $0xe8] sm:$0xff]
    %v66 = vld [vmem:[%s35 + $0xf0] sm:$0xff]
    %v67 = vld [vmem:[%s35 + $0xf8] sm:$0xff]
    %s68 = smul.u32 %s29, 32
    %s69 = smul.addr %s68, 4
    %s70 = scalar_lea.vmem %s1, %s69
    %v71 = vld [vmem:[%s70] sm:$0xf]
    %v72 = vld [vmem:[%s70 + $0x4] sm:$0xf]
    %v73 = vld [vmem:[%s70 + $0x8] sm:$0xf]
    %v74 = vld [vmem:[%s70 + $0xc] sm:$0xf]
    %v75 = vld [vmem:[%s70 + $0x10] sm:$0xf]
    %v76 = vld [vmem:[%s70 + $0x14] sm:$0xf]
    %v77 = vld [vmem:[%s70 + $0x18] sm:$0xf]
    %v78 = vld [vmem:[%s70 + $0x1c] sm:$0xf]
    %v79 = vld [vmem:[%s70 + $0x20] sm:$0xf]
    %v80 = vld [vmem:[%s70 + $0x24] sm:$0xf]
    %v81 = vld [vmem:[%s70 + $0x28] sm:$0xf]
    %v82 = vld [vmem:[%s70 + $0x2c] sm:$0xf]
    %v83 = vld [vmem:[%s70 + $0x30] sm:$0xf]
    %v84 = vld [vmem:[%s70 + $0x34] sm:$0xf]
    %v85 = vld [vmem:[%s70 + $0x38] sm:$0xf]
    %v86 = vld [vmem:[%s70 + $0x3c] sm:$0xf]
    %v87 = vld [vmem:[%s70 + $0x40] sm:$0xf]
    %v88 = vld [vmem:[%s70 + $0x44] sm:$0xf]
    %v89 = vld [vmem:[%s70 + $0x48] sm:$0xf]
    %v90 = vld [vmem:[%s70 + $0x4c] sm:$0xf]
    %v91 = vld [vmem:[%s70 + $0x50] sm:$0xf]
    %v92 = vld [vmem:[%s70 + $0x54] sm:$0xf]
    %v93 = vld [vmem:[%s70 + $0x58] sm:$0xf]
    %v94 = vld [vmem:[%s70 + $0x5c] sm:$0xf]
    %v95 = vld [vmem:[%s70 + $0x60] sm:$0xf]
    %v96 = vld [vmem:[%s70 + $0x64] sm:$0xf]
    %v97 = vld [vmem:[%s70 + $0x68] sm:$0xf]
    %v98 = vld [vmem:[%s70 + $0x6c] sm:$0xf]
    %v99 = vld [vmem:[%s70 + $0x70] sm:$0xf]
    %v100 = vld [vmem:[%s70 + $0x74] sm:$0xf]
    %v101 = vld [vmem:[%s70 + $0x78] sm:$0xf]
    %v102 = vld [vmem:[%s70 + $0x7c] sm:$0xf]
    %v135 = vunpack.c.l.b16 %v71
    %v136 = vunpack.c.l.b16 %v72
    %v137 = vunpack.c.l.b16 %v73
    %v138 = vunpack.c.l.b16 %v74
    %v139 = vunpack.c.l.b16 %v75
    %v140 = vunpack.c.l.b16 %v76
    %v141 = vunpack.c.l.b16 %v77
    %v142 = vunpack.c.l.b16 %v78
    %v143 = vunpack.c.l.b16 %v79
    %v144 = vunpack.c.l.b16 %v80
    %v145 = vunpack.c.l.b16 %v81
    %v146 = vunpack.c.l.b16 %v82
    %v147 = vunpack.c.l.b16 %v83
    %v148 = vunpack.c.l.b16 %v84
    %v149 = vunpack.c.l.b16 %v85
    %v150 = vunpack.c.l.b16 %v86
    %v151 = vunpack.c.l.b16 %v87
    %v152 = vunpack.c.l.b16 %v88
    %v153 = vunpack.c.l.b16 %v89
    %v154 = vunpack.c.l.b16 %v90
    %v155 = vunpack.c.l.b16 %v91
    %v156 = vunpack.c.l.b16 %v92
    %v157 = vunpack.c.l.b16 %v93
    %v158 = vunpack.c.l.b16 %v94
    %v159 = vunpack.c.l.b16 %v95
    %v160 = vunpack.c.l.b16 %v96
    %v161 = vunpack.c.l.b16 %v97
    %v162 = vunpack.c.l.b16 %v98
    %v163 = vunpack.c.l.b16 %v99
    %v164 = vunpack.c.l.b16 %v100
    %v165 = vunpack.c.l.b16 %v101
    %v166 = vunpack.c.l.b16 %v102
    %v167 = vpack.c.b16 %v136, %v135
    %v168 = vpack.c.b16 %v138, %v137
    %v169 = vpack.c.b16 %v140, %v139
    %v170 = vpack.c.b16 %v142, %v141
    %v171 = vpack.c.b16 %v144, %v143
    %v172 = vpack.c.b16 %v146, %v145
    %v173 = vpack.c.b16 %v148, %v147
    %v174 = vpack.c.b16 %v150, %v149
    %v175 = vpack.c.b16 %v152, %v151
    %v176 = vpack.c.b16 %v154, %v153
    %v177 = vpack.c.b16 %v156, %v155
    %v178 = vpack.c.b16 %v158, %v157
    %v179 = vpack.c.b16 %v160, %v159
    %v180 = vpack.c.b16 %v162, %v161
    %v181 = vpack.c.b16 %v164, %v163
    %v182 = vpack.c.b16 %v166, %v165
    %v184 = vunpack.c.l.b16 %v27
    %v185 = vunpack.c.h.b16 %v27
    %v186 = vpack.c.b16 %v184, %v184
    %v187 = vpack.c.b16 %v185, %v185
    %vm188 = vcmask 64512
    %v190 = vsel %vm188, %v167, 0
    %v193 = vsel %vm188, %v168, 0
    %v196 = vsel %vm188, %v169, 0
    %v199 = vsel %vm188, %v170, 0
    %v202 = vsel %vm188, %v171, 0
    %v205 = vsel %vm188, %v172, 0
    %v208 = vsel %vm188, %v173, 0
    %v211 = vsel %vm188, %v174, 0
    %v214 = vsel %vm188, %v175, 0
    %v217 = vsel %vm188, %v176, 0
    %v220 = vsel %vm188, %v177, 0
    %v223 = vsel %vm188, %v178, 0
    %v226 = vsel %vm188, %v179, 0
    %v229 = vsel %vm188, %v180, 0
    %v232 = vsel %vm188, %v181, 0
    %v235 = vsel %vm188, %v182, 0
    %vm237 = vcmask 1043456
    %v239 = vsel %vm237, %v186, 0
    %v242 = vsel %vm237, %v187, 0
    %244 = vmatpush.bf16.msra.mxu0 0
    %245 = vmatpush.bf16.msra.mxu0 0
    %246 = vmatpush.bf16.msra.mxu0 0
    %247 = vmatpush.bf16.msra.mxu0 0
    %248 = vmatpush.bf16.msra.mxu0 0
    %249 = vmatpush.bf16.msra.mxu0 0
    %250 = vmatpush.bf16.msra.mxu0 0
    %251 = vmatpush.bf16.msra.mxu0 %v239
    %252 = vmatmul.bf16.gmra.mxu0 %v190
    %v253 = vpop.f32.mrf.mxu0
    %v254 = vadd.f32 0.0, %v253
    %v255 = vpop.f32.mrf.mxu0
    %v256 = vadd.f32 0.0, %v255
    %257 = vmatmul.bf16.gmra.mxu0 %v193
    %v258 = vpop.f32.mrf.mxu0
    %v259 = vadd.f32 0.0, %v258
    %v260 = vpop.f32.mrf.mxu0
    %v261 = vadd.f32 0.0, %v260
    %262 = vmatmul.bf16.gmra.mxu0 %v196
    %v263 = vpop.f32.mrf.mxu0
    %v264 = vadd.f32 0.0, %v263
    %v265 = vpop.f32.mrf.mxu0
    %v266 = vadd.f32 0.0, %v265
    %267 = vmatmul.bf16.gmra.mxu0 %v199
    %v268 = vpop.f32.mrf.mxu0
    %v269 = vadd.f32 0.0, %v268
    %v270 = vpop.f32.mrf.mxu0
    %v271 = vadd.f32 0.0, %v270
    %272 = vmatmul.bf16.gmra.mxu0 %v202
    %v273 = vpop.f32.mrf.mxu0
    %v274 = vadd.f32 0.0, %v273
    %v275 = vpop.f32.mrf.mxu0
    %v276 = vadd.f32 0.0, %v275
    %277 = vmatmul.bf16.gmra.mxu0 %v205
    %v278 = vpop.f32.mrf.mxu0
    %v279 = vadd.f32 0.0, %v278
    %v280 = vpop.f32.mrf.mxu0
    %v281 = vadd.f32 0.0, %v280
    %282 = vmatmul.bf16.gmra.mxu0 %v208
    %v283 = vpop.f32.mrf.mxu0
    %v284 = vadd.f32 0.0, %v283
    %v285 = vpop.f32.mrf.mxu0
    %v286 = vadd.f32 0.0, %v285
    %287 = vmatmul.bf16.gmra.mxu0 %v211
    %v288 = vpop.f32.mrf.mxu0
    %v289 = vadd.f32 0.0, %v288
    %v290 = vpop.f32.mrf.mxu0
    %v291 = vadd.f32 0.0, %v290
    %292 = vmatmul.bf16.gmra.mxu0 %v214
    %v293 = vpop.f32.mrf.mxu0
    %v294 = vadd.f32 0.0, %v293
    %v295 = vpop.f32.mrf.mxu0
    %v296 = vadd.f32 0.0, %v295
    %297 = vmatmul.bf16.gmra.mxu0 %v217
    %v298 = vpop.f32.mrf.mxu0
    %v299 = vadd.f32 0.0, %v298
    %v300 = vpop.f32.mrf.mxu0
    %v301 = vadd.f32 0.0, %v300
    %302 = vmatmul.bf16.gmra.mxu0 %v220
    %v303 = vpop.f32.mrf.mxu0
    %v304 = vadd.f32 0.0, %v303
    %v305 = vpop.f32.mrf.mxu0
    %v306 = vadd.f32 0.0, %v305
    %307 = vmatmul.bf16.gmra.mxu0 %v223
    %v308 = vpop.f32.mrf.mxu0
    %v309 = vadd.f32 0.0, %v308
    %v310 = vpop.f32.mrf.mxu0
    %v311 = vadd.f32 0.0, %v310
    %312 = vmatmul.bf16.gmra.mxu0 %v226
    %v313 = vpop.f32.mrf.mxu0
    %v314 = vadd.f32 0.0, %v313
    %v315 = vpop.f32.mrf.mxu0
    %v316 = vadd.f32 0.0, %v315
    %317 = vmatmul.bf16.gmra.mxu0 %v229
    %v318 = vpop.f32.mrf.mxu0
    %v319 = vadd.f32 0.0, %v318
    %v320 = vpop.f32.mrf.mxu0
    %v321 = vadd.f32 0.0, %v320
    %322 = vmatmul.bf16.gmra.mxu0 %v232
    %v323 = vpop.f32.mrf.mxu0
    %v324 = vadd.f32 0.0, %v323
    %v325 = vpop.f32.mrf.mxu0
    %v326 = vadd.f32 0.0, %v325
    %327 = vmatmul.bf16.gmra.mxu0 %v235
    %v328 = vpop.f32.mrf.mxu0
    %v329 = vadd.f32 0.0, %v328
    %v330 = vpop.f32.mrf.mxu0
    %v331 = vadd.f32 0.0, %v330
    %332 = vdwg.mxu0
    %333 = vmatpush.bf16.msra.mxu0 0
    %334 = vmatpush.bf16.msra.mxu0 0
    %335 = vmatpush.bf16.msra.mxu0 0
    %336 = vmatpush.bf16.msra.mxu0 0
    %337 = vmatpush.bf16.msra.mxu0 0
    %338 = vmatpush.bf16.msra.mxu0 0
    %339 = vmatpush.bf16.msra.mxu0 0
    %340 = vmatpush.bf16.msra.mxu0 %v242
    %341 = vmatmul.bf16.gmra.mxu0 %v190
    %v342 = vpop.f32.mrf.mxu0
    %v343 = vadd.f32 0.0, %v342
    %v344 = vpop.f32.mrf.mxu0
    %v345 = vadd.f32 0.0, %v344
    %346 = vmatmul.bf16.gmra.mxu0 %v193
    %v347 = vpop.f32.mrf.mxu0
    %v348 = vadd.f32 0.0, %v347
    %v349 = vpop.f32.mrf.mxu0
    %v350 = vadd.f32 0.0, %v349
    %351 = vmatmul.bf16.gmra.mxu0 %v196
    %v352 = vpop.f32.mrf.mxu0
    %v353 = vadd.f32 0.0, %v352
    %v354 = vpop.f32.mrf.mxu0
    %v355 = vadd.f32 0.0, %v354
    %356 = vmatmul.bf16.gmra.mxu0 %v199
    %v357 = vpop.f32.mrf.mxu0
    %v358 = vadd.f32 0.0, %v357
    %v359 = vpop.f32.mrf.mxu0
    %v360 = vadd.f32 0.0, %v359
    %361 = vmatmul.bf16.gmra.mxu0 %v202
    %v362 = vpop.f32.mrf.mxu0
    %v363 = vadd.f32 0.0, %v362
    %v364 = vpop.f32.mrf.mxu0
    %v365 = vadd.f32 0.0, %v364
    %366 = vmatmul.bf16.gmra.mxu0 %v205
    %v367 = vpop.f32.mrf.mxu0
    %v368 = vadd.f32 0.0, %v367
    %v369 = vpop.f32.mrf.mxu0
    %v370 = vadd.f32 0.0, %v369
    %371 = vmatmul.bf16.gmra.mxu0 %v208
    %v372 = vpop.f32.mrf.mxu0
    %v373 = vadd.f32 0.0, %v372
    %v374 = vpop.f32.mrf.mxu0
    %v375 = vadd.f32 0.0, %v374
    %376 = vmatmul.bf16.gmra.mxu0 %v211
    %v377 = vpop.f32.mrf.mxu0
    %v378 = vadd.f32 0.0, %v377
    %v379 = vpop.f32.mrf.mxu0
    %v380 = vadd.f32 0.0, %v379
    %381 = vmatmul.bf16.gmra.mxu0 %v214
    %v382 = vpop.f32.mrf.mxu0
    %v383 = vadd.f32 0.0, %v382
    %v384 = vpop.f32.mrf.mxu0
    %v385 = vadd.f32 0.0, %v384
    %386 = vmatmul.bf16.gmra.mxu0 %v217
    %v387 = vpop.f32.mrf.mxu0
    %v388 = vadd.f32 0.0, %v387
    %v389 = vpop.f32.mrf.mxu0
    %v390 = vadd.f32 0.0, %v389
    %391 = vmatmul.bf16.gmra.mxu0 %v220
    %v392 = vpop.f32.mrf.mxu0
    %v393 = vadd.f32 0.0, %v392
    %v394 = vpop.f32.mrf.mxu0
    %v395 = vadd.f32 0.0, %v394
    %396 = vmatmul.bf16.gmra.mxu0 %v223
    %v397 = vpop.f32.mrf.mxu0
    %v398 = vadd.f32 0.0, %v397
    %v399 = vpop.f32.mrf.mxu0
    %v400 = vadd.f32 0.0, %v399
    %401 = vmatmul.bf16.gmra.mxu0 %v226
    %v402 = vpop.f32.mrf.mxu0
    %v403 = vadd.f32 0.0, %v402
    %v404 = vpop.f32.mrf.mxu0
    %v405 = vadd.f32 0.0, %v404
    %406 = vmatmul.bf16.gmra.mxu0 %v229
    %v407 = vpop.f32.mrf.mxu0
    %v408 = vadd.f32 0.0, %v407
    %v409 = vpop.f32.mrf.mxu0
    %v410 = vadd.f32 0.0, %v409
    %411 = vmatmul.bf16.gmra.mxu0 %v232
    %v412 = vpop.f32.mrf.mxu0
    %v413 = vadd.f32 0.0, %v412
    %v414 = vpop.f32.mrf.mxu0
    %v415 = vadd.f32 0.0, %v414
    %416 = vmatmul.bf16.gmra.mxu0 %v235
    %v417 = vpop.f32.mrf.mxu0
    %v418 = vadd.f32 0.0, %v417
    %v419 = vpop.f32.mrf.mxu0
    %v420 = vadd.f32 0.0, %v419
    %421 = vdwg.mxu0
    %v422 = vadd.f32 %v254, %v36
    %v423 = vadd.f32 %v256, %v37
    %v424 = vadd.f32 %v259, %v38
    %v425 = vadd.f32 %v261, %v39
    %v426 = vadd.f32 %v264, %v40
    %v427 = vadd.f32 %v266, %v41
    %v428 = vadd.f32 %v269, %v42
    %v429 = vadd.f32 %v271, %v43
    %v430 = vadd.f32 %v274, %v44
    %v431 = vadd.f32 %v276, %v45
    %v432 = vadd.f32 %v279, %v46
    %v433 = vadd.f32 %v281, %v47
    %v434 = vadd.f32 %v284, %v48
    %v435 = vadd.f32 %v286, %v49
    %v436 = vadd.f32 %v289, %v50
    %v437 = vadd.f32 %v291, %v51
    %v438 = vadd.f32 %v294, %v52
    %v439 = vadd.f32 %v296, %v53
    %v440 = vadd.f32 %v299, %v54
    %v441 = vadd.f32 %v301, %v55
    %v442 = vadd.f32 %v304, %v56
    %v443 = vadd.f32 %v306, %v57
    %v444 = vadd.f32 %v309, %v58
    %v445 = vadd.f32 %v311, %v59
    %v446 = vadd.f32 %v314, %v60
    %v447 = vadd.f32 %v316, %v61
    %v448 = vadd.f32 %v319, %v62
    %v449 = vadd.f32 %v321, %v63
    %v450 = vadd.f32 %v324, %v64
    %v451 = vadd.f32 %v326, %v65
    %v452 = vadd.f32 %v329, %v66
    %v453 = vadd.f32 %v331, %v67
    %v454 = vmax.f32 %v422, 0.0
    %v455 = vmax.f32 %v423, 0.0
    %v456 = vmax.f32 %v424, 0.0
    %v457 = vmax.f32 %v425, 0.0
    %v458 = vmax.f32 %v426, 0.0
    %v459 = vmax.f32 %v427, 0.0
    %v460 = vmax.f32 %v428, 0.0
    %v461 = vmax.f32 %v429, 0.0
    %v462 = vmax.f32 %v430, 0.0
    %v463 = vmax.f32 %v431, 0.0
    %v464 = vmax.f32 %v432, 0.0
    %v465 = vmax.f32 %v433, 0.0
    %v466 = vmax.f32 %v434, 0.0
    %v467 = vmax.f32 %v435, 0.0
    %v468 = vmax.f32 %v436, 0.0
    %v469 = vmax.f32 %v437, 0.0
    %v470 = vmax.f32 %v438, 0.0
    %v471 = vmax.f32 %v439, 0.0
    %v472 = vmax.f32 %v440, 0.0
    %v473 = vmax.f32 %v441, 0.0
    %v474 = vmax.f32 %v442, 0.0
    %v475 = vmax.f32 %v443, 0.0
    %v476 = vmax.f32 %v444, 0.0
    %v477 = vmax.f32 %v445, 0.0
    %v478 = vmax.f32 %v446, 0.0
    %v479 = vmax.f32 %v447, 0.0
    %v480 = vmax.f32 %v448, 0.0
    %v481 = vmax.f32 %v449, 0.0
    %v482 = vmax.f32 %v450, 0.0
    %v483 = vmax.f32 %v451, 0.0
    %v484 = vmax.f32 %v452, 0.0
    %v485 = vmax.f32 %v453, 0.0
    %v486 = vpack.c.bf16 %v454, %v454
    %v487 = vpack.c.bf16 %v455, %v455
    %v488 = vpack.c.bf16 %v456, %v456
    %v489 = vpack.c.bf16 %v457, %v457
    %v490 = vpack.c.bf16 %v458, %v458
    %v491 = vpack.c.bf16 %v459, %v459
    %v492 = vpack.c.bf16 %v460, %v460
    %v493 = vpack.c.bf16 %v461, %v461
    %v494 = vpack.c.bf16 %v462, %v462
    %v495 = vpack.c.bf16 %v463, %v463
    %v496 = vpack.c.bf16 %v464, %v464
    %v497 = vpack.c.bf16 %v465, %v465
    %v498 = vpack.c.bf16 %v466, %v466
    %v499 = vpack.c.bf16 %v467, %v467
    %v500 = vpack.c.bf16 %v468, %v468
    %v501 = vpack.c.bf16 %v469, %v469
    %v502 = vpack.c.bf16 %v470, %v470
    %v503 = vpack.c.bf16 %v471, %v471
    %v504 = vpack.c.bf16 %v472, %v472
    %v505 = vpack.c.bf16 %v473, %v473
    %v506 = vpack.c.bf16 %v474, %v474
    %v507 = vpack.c.bf16 %v475, %v475
    %v508 = vpack.c.bf16 %v476, %v476
    %v509 = vpack.c.bf16 %v477, %v477
    %v510 = vpack.c.bf16 %v478, %v478
    %v511 = vpack.c.bf16 %v479, %v479
    %v512 = vpack.c.bf16 %v480, %v480
    %v513 = vpack.c.bf16 %v481, %v481
    %v514 = vpack.c.bf16 %v482, %v482
    %v515 = vpack.c.bf16 %v483, %v483
    %v516 = vpack.c.bf16 %v484, %v484
    %v517 = vpack.c.bf16 %v485, %v485
    %v518 = vadd.f32 %v343, %v36
    %v519 = vadd.f32 %v345, %v37
    %v520 = vadd.f32 %v348, %v38
    %v521 = vadd.f32 %v350, %v39
    %v522 = vadd.f32 %v353, %v40
    %v523 = vadd.f32 %v355, %v41
    %v524 = vadd.f32 %v358, %v42
    %v525 = vadd.f32 %v360, %v43
    %v526 = vadd.f32 %v363, %v44
    %v527 = vadd.f32 %v365, %v45
    %v528 = vadd.f32 %v368, %v46
    %v529 = vadd.f32 %v370, %v47
    %v530 = vadd.f32 %v373, %v48
    %v531 = vadd.f32 %v375, %v49
    %v532 = vadd.f32 %v378, %v50
    %v533 = vadd.f32 %v380, %v51
    %v534 = vadd.f32 %v383, %v52
    %v535 = vadd.f32 %v385, %v53
    %v536 = vadd.f32 %v388, %v54
    %v537 = vadd.f32 %v390, %v55
    %v538 = vadd.f32 %v393, %v56
    %v539 = vadd.f32 %v395, %v57
    %v540 = vadd.f32 %v398, %v58
    %v541 = vadd.f32 %v400, %v59
    %v542 = vadd.f32 %v403, %v60
    %v543 = vadd.f32 %v405, %v61
    %v544 = vadd.f32 %v408, %v62
    %v545 = vadd.f32 %v410, %v63
    %v546 = vadd.f32 %v413, %v64
    %v547 = vadd.f32 %v415, %v65
    %v548 = vadd.f32 %v418, %v66
    %v549 = vadd.f32 %v420, %v67
    %v550 = vmax.f32 %v518, 0.0
    %v551 = vmax.f32 %v519, 0.0
    %v552 = vmax.f32 %v520, 0.0
    %v553 = vmax.f32 %v521, 0.0
    %v554 = vmax.f32 %v522, 0.0
    %v555 = vmax.f32 %v523, 0.0
    %v556 = vmax.f32 %v524, 0.0
    %v557 = vmax.f32 %v525, 0.0
    %v558 = vmax.f32 %v526, 0.0
    %v559 = vmax.f32 %v527, 0.0
    %v560 = vmax.f32 %v528, 0.0
    %v561 = vmax.f32 %v529, 0.0
    %v562 = vmax.f32 %v530, 0.0
    %v563 = vmax.f32 %v531, 0.0
    %v564 = vmax.f32 %v532, 0.0
    %v565 = vmax.f32 %v533, 0.0
    %v566 = vmax.f32 %v534, 0.0
    %v567 = vmax.f32 %v535, 0.0
    %v568 = vmax.f32 %v536, 0.0
    %v569 = vmax.f32 %v537, 0.0
    %v570 = vmax.f32 %v538, 0.0
    %v571 = vmax.f32 %v539, 0.0
    %v572 = vmax.f32 %v540, 0.0
    %v573 = vmax.f32 %v541, 0.0
    %v574 = vmax.f32 %v542, 0.0
    %v575 = vmax.f32 %v543, 0.0
    %v576 = vmax.f32 %v544, 0.0
    %v577 = vmax.f32 %v545, 0.0
    %v578 = vmax.f32 %v546, 0.0
    %v579 = vmax.f32 %v547, 0.0
    %v580 = vmax.f32 %v548, 0.0
    %v581 = vmax.f32 %v549, 0.0
    %v582 = vpack.c.bf16 %v550, %v550
    %v583 = vpack.c.bf16 %v551, %v551
    %v584 = vpack.c.bf16 %v552, %v552
    %v585 = vpack.c.bf16 %v553, %v553
    %v586 = vpack.c.bf16 %v554, %v554
    %v587 = vpack.c.bf16 %v555, %v555
    %v588 = vpack.c.bf16 %v556, %v556
    %v589 = vpack.c.bf16 %v557, %v557
    %v590 = vpack.c.bf16 %v558, %v558
    %v591 = vpack.c.bf16 %v559, %v559
    %v592 = vpack.c.bf16 %v560, %v560
    %v593 = vpack.c.bf16 %v561, %v561
    %v594 = vpack.c.bf16 %v562, %v562
    %v595 = vpack.c.bf16 %v563, %v563
    %v596 = vpack.c.bf16 %v564, %v564
    %v597 = vpack.c.bf16 %v565, %v565
    %v598 = vpack.c.bf16 %v566, %v566
    %v599 = vpack.c.bf16 %v567, %v567
    %v600 = vpack.c.bf16 %v568, %v568
    %v601 = vpack.c.bf16 %v569, %v569
    %v602 = vpack.c.bf16 %v570, %v570
    %v603 = vpack.c.bf16 %v571, %v571
    %v604 = vpack.c.bf16 %v572, %v572
    %v605 = vpack.c.bf16 %v573, %v573
    %v606 = vpack.c.bf16 %v574, %v574
    %v607 = vpack.c.bf16 %v575, %v575
    %v608 = vpack.c.bf16 %v576, %v576
    %v609 = vpack.c.bf16 %v577, %v577
    %v610 = vpack.c.bf16 %v578, %v578
    %v611 = vpack.c.bf16 %v579, %v579
    %v612 = vpack.c.bf16 %v580, %v580
    %v613 = vpack.c.bf16 %v581, %v581
    %v646 = vunpack.c.l.b16 %v486
    %v647 = vunpack.c.l.b16 %v487
    %v648 = vunpack.c.l.b16 %v488
    %v649 = vunpack.c.l.b16 %v489
    %v650 = vunpack.c.l.b16 %v490
    %v651 = vunpack.c.l.b16 %v491
    %v652 = vunpack.c.l.b16 %v492
    %v653 = vunpack.c.l.b16 %v493
    %v654 = vunpack.c.l.b16 %v494
    %v655 = vunpack.c.l.b16 %v495
    %v656 = vunpack.c.l.b16 %v496
    %v657 = vunpack.c.l.b16 %v497
    %v658 = vunpack.c.l.b16 %v498
    %v659 = vunpack.c.l.b16 %v499
    %v660 = vunpack.c.l.b16 %v500
    %v661 = vunpack.c.l.b16 %v501
    %v662 = vunpack.c.l.b16 %v502
    %v663 = vunpack.c.l.b16 %v503
    %v664 = vunpack.c.l.b16 %v504
    %v665 = vunpack.c.l.b16 %v505
    %v666 = vunpack.c.l.b16 %v506
    %v667 = vunpack.c.l.b16 %v507
    %v668 = vunpack.c.l.b16 %v508
    %v669 = vunpack.c.l.b16 %v509
    %v670 = vunpack.c.l.b16 %v510
    %v671 = vunpack.c.l.b16 %v511
    %v672 = vunpack.c.l.b16 %v512
    %v673 = vunpack.c.l.b16 %v513
    %v674 = vunpack.c.l.b16 %v514
    %v675 = vunpack.c.l.b16 %v515
    %v676 = vunpack.c.l.b16 %v516
    %v677 = vunpack.c.l.b16 %v517
    %v678 = vpack.c.b16 %v647, %v646
    %v679 = vpack.c.b16 %v649, %v648
    %v680 = vpack.c.b16 %v651, %v650
    %v681 = vpack.c.b16 %v653, %v652
    %v682 = vpack.c.b16 %v655, %v654
    %v683 = vpack.c.b16 %v657, %v656
    %v684 = vpack.c.b16 %v659, %v658
    %v685 = vpack.c.b16 %v661, %v660
    %v686 = vpack.c.b16 %v663, %v662
    %v687 = vpack.c.b16 %v665, %v664
    %v688 = vpack.c.b16 %v667, %v666
    %v689 = vpack.c.b16 %v669, %v668
    %v690 = vpack.c.b16 %v671, %v670
    %v691 = vpack.c.b16 %v673, %v672
    %v692 = vpack.c.b16 %v675, %v674
    %v693 = vpack.c.b16 %v677, %v676
    %v742 = vunpack.c.l.b16 %v582
    %v743 = vunpack.c.l.b16 %v583
    %v744 = vunpack.c.l.b16 %v584
    %v745 = vunpack.c.l.b16 %v585
    %v746 = vunpack.c.l.b16 %v586
    %v747 = vunpack.c.l.b16 %v587
    %v748 = vunpack.c.l.b16 %v588
    %v749 = vunpack.c.l.b16 %v589
    %v750 = vunpack.c.l.b16 %v590
    %v751 = vunpack.c.l.b16 %v591
    %v752 = vunpack.c.l.b16 %v592
    %v753 = vunpack.c.l.b16 %v593
    %v754 = vunpack.c.l.b16 %v594
    %v755 = vunpack.c.l.b16 %v595
    %v756 = vunpack.c.l.b16 %v596
    %v757 = vunpack.c.l.b16 %v597
    %v758 = vunpack.c.l.b16 %v598
    %v759 = vunpack.c.l.b16 %v599
    %v760 = vunpack.c.l.b16 %v600
    %v761 = vunpack.c.l.b16 %v601
    %v762 = vunpack.c.l.b16 %v602
    %v763 = vunpack.c.l.b16 %v603
    %v764 = vunpack.c.l.b16 %v604
    %v765 = vunpack.c.l.b16 %v605
    %v766 = vunpack.c.l.b16 %v606
    %v767 = vunpack.c.l.b16 %v607
    %v768 = vunpack.c.l.b16 %v608
    %v769 = vunpack.c.l.b16 %v609
    %v770 = vunpack.c.l.b16 %v610
    %v771 = vunpack.c.l.b16 %v611
    %v772 = vunpack.c.l.b16 %v612
    %v773 = vunpack.c.l.b16 %v613
    %v774 = vpack.c.b16 %v743, %v742
    %v775 = vpack.c.b16 %v745, %v744
    %v776 = vpack.c.b16 %v747, %v746
    %v777 = vpack.c.b16 %v749, %v748
    %v778 = vpack.c.b16 %v751, %v750
    %v779 = vpack.c.b16 %v753, %v752
    %v780 = vpack.c.b16 %v755, %v754
    %v781 = vpack.c.b16 %v757, %v756
    %v782 = vpack.c.b16 %v759, %v758
    %v783 = vpack.c.b16 %v761, %v760
    %v784 = vpack.c.b16 %v763, %v762
    %v785 = vpack.c.b16 %v765, %v764
    %v786 = vpack.c.b16 %v767, %v766
    %v787 = vpack.c.b16 %v769, %v768
    %v788 = vpack.c.b16 %v771, %v770
    %v789 = vpack.c.b16 %v773, %v772
    %s806 = smul.u32 %s29, 16
    %s807 = smul.addr %s806, 4
    %s808 = scalar_lea.vmem %s3, %s807
    %v809 = vld [vmem:[%s808] sm:$0xff]
    %v810 = vld [vmem:[%s808 + $0x8] sm:$0xff]
    %v811 = vld [vmem:[%s808 + $0x10] sm:$0xff]
    %v812 = vld [vmem:[%s808 + $0x18] sm:$0xff]
    %v813 = vld [vmem:[%s808 + $0x20] sm:$0xff]
    %v814 = vld [vmem:[%s808 + $0x28] sm:$0xff]
    %v815 = vld [vmem:[%s808 + $0x30] sm:$0xff]
    %v816 = vld [vmem:[%s808 + $0x38] sm:$0xff]
    %s817 = smul.u32 %s29, 64
    %s818 = scalar_lea.vmem %s4, %s817
    %v819 = vld [vmem:[%s818] sm:$0xff]
    %v820 = vld [vmem:[%s818 + $0x8] sm:$0xff]
    %v821 = vld [vmem:[%s818 + $0x10] sm:$0xff]
    %v822 = vld [vmem:[%s818 + $0x18] sm:$0xff]
    %v823 = vld [vmem:[%s818 + $0x20] sm:$0xff]
    %v824 = vld [vmem:[%s818 + $0x28] sm:$0xff]
    %v825 = vld [vmem:[%s818 + $0x30] sm:$0xff]
    %v826 = vld [vmem:[%s818 + $0x38] sm:$0xff]
    %828 = vset.pattern.permute.xlu0 0
    %829 = vperm.xlu0 %828, %v819
    %v830 = vpop.permute.xlu0 %829
    %833 = vset.pattern.permute.xlu0 0
    %834 = vperm.xlu0 %833, %v820
    %v835 = vpop.permute.xlu0 %834
    %838 = vset.pattern.permute.xlu0 0
    %839 = vperm.xlu0 %838, %v821
    %v840 = vpop.permute.xlu0 %839
    %843 = vset.pattern.permute.xlu0 0
    %844 = vperm.xlu0 %843, %v822
    %v845 = vpop.permute.xlu0 %844
    %848 = vset.pattern.permute.xlu0 0
    %849 = vperm.xlu0 %848, %v823
    %v850 = vpop.permute.xlu0 %849
    %853 = vset.pattern.permute.xlu0 0
    %854 = vperm.xlu0 %853, %v824
    %v855 = vpop.permute.xlu0 %854
    %858 = vset.pattern.permute.xlu0 0
    %859 = vperm.xlu0 %858, %v825
    %v860 = vpop.permute.xlu0 %859
    %863 = vset.pattern.permute.xlu0 0
    %864 = vperm.xlu0 %863, %v826
    %v865 = vpop.permute.xlu0 %864
    %v875 = vunpack.c.l.b16 %v809
    %v876 = vunpack.c.h.b16 %v809
    %v877 = vunpack.c.l.b16 %v810
    %v878 = vunpack.c.h.b16 %v810
    %v879 = vunpack.c.l.b16 %v811
    %v880 = vunpack.c.h.b16 %v811
    %v881 = vunpack.c.l.b16 %v812
    %v882 = vunpack.c.h.b16 %v812
    %v883 = vunpack.c.l.b16 %v813
    %v884 = vunpack.c.h.b16 %v813
    %v885 = vunpack.c.l.b16 %v814
    %v886 = vunpack.c.h.b16 %v814
    %v887 = vunpack.c.l.b16 %v815
    %v888 = vunpack.c.h.b16 %v815
    %v889 = vunpack.c.l.b16 %v816
    %v890 = vunpack.c.h.b16 %v816
    %v891 = vpack.c.b16 %v877, %v875
    %v892 = vpack.c.b16 %v878, %v876
    %v893 = vpack.c.b16 %v881, %v879
    %v894 = vpack.c.b16 %v882, %v880
    %v895 = vpack.c.b16 %v885, %v883
    %v896 = vpack.c.b16 %v886, %v884
    %v897 = vpack.c.b16 %v889, %v887
    %v898 = vpack.c.b16 %v890, %v888
    %907 = vmatpush.bf16.msra.mxu0 %v685
    %908 = vmatpush.bf16.msra.mxu0 %v684
    %909 = vmatpush.bf16.msra.mxu0 %v683
    %910 = vmatpush.bf16.msra.mxu0 %v682
    %911 = vmatpush.bf16.msra.mxu0 %v681
    %912 = vmatpush.bf16.msra.mxu0 %v680
    %913 = vmatpush.bf16.msra.mxu0 %v679
    %914 = vmatpush.bf16.msra.mxu0 %v678
    %915 = vmatmul.bf16.gmra.mxu0 %v891
    %v916 = vpop.f32.mrf.mxu0
    %v917 = vadd.f32 %v830, %v916
    %v918 = vpop.f32.mrf.mxu0
    %v919 = vadd.f32 %v835, %v918
    %920 = vmatmul.bf16.gmra.mxu0 %v893
    %v921 = vpop.f32.mrf.mxu0
    %v922 = vadd.f32 %v840, %v921
    %v923 = vpop.f32.mrf.mxu0
    %v924 = vadd.f32 %v845, %v923
    %925 = vmatmul.bf16.gmra.mxu0 %v895
    %v926 = vpop.f32.mrf.mxu0
    %v927 = vadd.f32 %v850, %v926
    %v928 = vpop.f32.mrf.mxu0
    %v929 = vadd.f32 %v855, %v928
    %930 = vmatmul.bf16.gmra.mxu0 %v897
    %v931 = vpop.f32.mrf.mxu0
    %v932 = vadd.f32 %v860, %v931
    %v933 = vpop.f32.mrf.mxu0
    %v934 = vadd.f32 %v865, %v933
    %935 = vdwg.mxu0
    %936 = vmatpush.bf16.msra.mxu0 %v693
    %937 = vmatpush.bf16.msra.mxu0 %v692
    %938 = vmatpush.bf16.msra.mxu0 %v691
    %939 = vmatpush.bf16.msra.mxu0 %v690
    %940 = vmatpush.bf16.msra.mxu0 %v689
    %941 = vmatpush.bf16.msra.mxu0 %v688
    %942 = vmatpush.bf16.msra.mxu0 %v687
    %943 = vmatpush.bf16.msra.mxu0 %v686
    %944 = vmatmul.bf16.gmra.mxu0 %v892
    %v945 = vpop.f32.mrf.mxu0
    %v946 = vadd.f32 %v917, %v945
    %v947 = vpop.f32.mrf.mxu0
    %v948 = vadd.f32 %v919, %v947
    %949 = vmatmul.bf16.gmra.mxu0 %v894
    %v950 = vpop.f32.mrf.mxu0
    %v951 = vadd.f32 %v922, %v950
    %v952 = vpop.f32.mrf.mxu0
    %v953 = vadd.f32 %v924, %v952
    %954 = vmatmul.bf16.gmra.mxu0 %v896
    %v955 = vpop.f32.mrf.mxu0
    %v956 = vadd.f32 %v927, %v955
    %v957 = vpop.f32.mrf.mxu0
    %v958 = vadd.f32 %v929, %v957
    %959 = vmatmul.bf16.gmra.mxu0 %v898
    %v960 = vpop.f32.mrf.mxu0
    %v961 = vadd.f32 %v932, %v960
    %v962 = vpop.f32.mrf.mxu0
    %v963 = vadd.f32 %v934, %v962
    %964 = vdwg.mxu0
    %965 = vmatpush.bf16.msra.mxu0 %v781
    %966 = vmatpush.bf16.msra.mxu0 %v780
    %967 = vmatpush.bf16.msra.mxu0 %v779
    %968 = vmatpush.bf16.msra.mxu0 %v778
    %969 = vmatpush.bf16.msra.mxu0 %v777
    %970 = vmatpush.bf16.msra.mxu0 %v776
    %971 = vmatpush.bf16.msra.mxu0 %v775
    %972 = vmatpush.bf16.msra.mxu0 %v774
    %973 = vmatmul.bf16.gmra.mxu0 %v891
    %v974 = vpop.f32.mrf.mxu0
    %v975 = vadd.f32 %v830, %v974
    %v976 = vpop.f32.mrf.mxu0
    %v977 = vadd.f32 %v835, %v976
    %978 = vmatmul.bf16.gmra.mxu0 %v893
    %v979 = vpop.f32.mrf.mxu0
    %v980 = vadd.f32 %v840, %v979
    %v981 = vpop.f32.mrf.mxu0
    %v982 = vadd.f32 %v845, %v981
    %983 = vmatmul.bf16.gmra.mxu0 %v895
    %v984 = vpop.f32.mrf.mxu0
    %v985 = vadd.f32 %v850, %v984
    %v986 = vpop.f32.mrf.mxu0
    %v987 = vadd.f32 %v855, %v986
    %988 = vmatmul.bf16.gmra.mxu0 %v897
    %v989 = vpop.f32.mrf.mxu0
    %v990 = vadd.f32 %v860, %v989
    %v991 = vpop.f32.mrf.mxu0
    %v992 = vadd.f32 %v865, %v991
    %993 = vdwg.mxu0
    %994 = vmatpush.bf16.msra.mxu0 %v789
    %995 = vmatpush.bf16.msra.mxu0 %v788
    %996 = vmatpush.bf16.msra.mxu0 %v787
    %997 = vmatpush.bf16.msra.mxu0 %v786
    %998 = vmatpush.bf16.msra.mxu0 %v785
    %999 = vmatpush.bf16.msra.mxu0 %v784
    %1000 = vmatpush.bf16.msra.mxu0 %v783
    %1001 = vmatpush.bf16.msra.mxu0 %v782
    %1002 = vmatmul.bf16.gmra.mxu0 %v892
    %v1003 = vpop.f32.mrf.mxu0
    %v1004 = vadd.f32 %v975, %v1003
    %v1005 = vpop.f32.mrf.mxu0
    %v1006 = vadd.f32 %v977, %v1005
    %1007 = vmatmul.bf16.gmra.mxu0 %v894
    %v1008 = vpop.f32.mrf.mxu0
    %v1009 = vadd.f32 %v980, %v1008
    %v1010 = vpop.f32.mrf.mxu0
    %v1011 = vadd.f32 %v982, %v1010
    %1012 = vmatmul.bf16.gmra.mxu0 %v896
    %v1013 = vpop.f32.mrf.mxu0
    %v1014 = vadd.f32 %v985, %v1013
    %v1015 = vpop.f32.mrf.mxu0
    %v1016 = vadd.f32 %v987, %v1015
    %1017 = vmatmul.bf16.gmra.mxu0 %v898
    %v1018 = vpop.f32.mrf.mxu0
    %v1019 = vadd.f32 %v990, %v1018
    %v1020 = vpop.f32.mrf.mxu0
    %v1021 = vadd.f32 %v992, %v1020
    %1022 = vdwg.mxu0
    %v1023 = vmax.f32 %v946, 0.0
    %v1024 = vmax.f32 %v1004, 0.0
    %v1025 = vmax.f32 %v948, 0.0
    %v1026 = vmax.f32 %v1006, 0.0
    %v1027 = vmax.f32 %v951, 0.0
    %v1028 = vmax.f32 %v1009, 0.0
    %v1029 = vmax.f32 %v953, 0.0
    %v1030 = vmax.f32 %v1011, 0.0
    %v1031 = vmax.f32 %v956, 0.0
    %v1032 = vmax.f32 %v1014, 0.0
    %v1033 = vmax.f32 %v958, 0.0
    %v1034 = vmax.f32 %v1016, 0.0
    %v1035 = vmax.f32 %v961, 0.0
    %v1036 = vmax.f32 %v1019, 0.0
    %v1037 = vmax.f32 %v963, 0.0
    %v1038 = vmax.f32 %v1021, 0.0
    %v1039 = vpack.c.bf16 %v1025, %v1023
    %v1040 = vpack.c.bf16 %v1026, %v1024
    %v1041 = vpack.c.bf16 %v1029, %v1027
    %v1042 = vpack.c.bf16 %v1030, %v1028
    %v1043 = vpack.c.bf16 %v1033, %v1031
    %v1044 = vpack.c.bf16 %v1034, %v1032
    %v1045 = vpack.c.bf16 %v1037, %v1035
    %v1046 = vpack.c.bf16 %v1038, %v1036
    %s1047 = smul.addr %s29, 4
    %s1048 = scalar_lea.vmem %s5, %s1047
    %v1049 = vld [vmem:[%s1048] sm:$0xf]
    %s1050 = smul.u32 %s29, 8
    %s1051 = scalar_lea.vmem %s6, %s1050
    %v1052 = vld [vmem:[%s1051] sm:$0xff]
    %1054 = vset.pattern.permute.xlu0 0
    %1055 = vperm.xlu0 %1054, %v1052
    %v1056 = vpop.permute.xlu0 %1055
    %vm1058 = vcmask 523264
    %v1060 = vsel %vm1058, %v1049, 0
    %1062 = vmatpush.bf16.msra.mxu0 0
    %1063 = vmatpush.bf16.msra.mxu0 0
    %1064 = vmatpush.bf16.msra.mxu0 0
    %1065 = vmatpush.bf16.msra.mxu0 0
    %1066 = vmatpush.bf16.msra.mxu0 %v1045
    %1067 = vmatpush.bf16.msra.mxu0 %v1043
    %1068 = vmatpush.bf16.msra.mxu0 %v1041
    %1069 = vmatpush.bf16.msra.mxu0 %v1039
    %1070 = vmatmul.bf16.gmra.mxu0 %v1060
    %v1071 = vpop.f32.mrf.mxu0
    %v1072 = vadd.f32 %v1056, %v1071
    %v1073 = vpop.f32.mrf.mxu0
    %1074 = vdwg.mxu0
    %1075 = vmatpush.bf16.msra.mxu0 0
    %1076 = vmatpush.bf16.msra.mxu0 0
    %1077 = vmatpush.bf16.msra.mxu0 0
    %1078 = vmatpush.bf16.msra.mxu0 0
    %1079 = vmatpush.bf16.msra.mxu0 %v1046
    %1080 = vmatpush.bf16.msra.mxu0 %v1044
    %1081 = vmatpush.bf16.msra.mxu0 %v1042
    %1082 = vmatpush.bf16.msra.mxu0 %v1040
    %1083 = vmatmul.bf16.gmra.mxu0 %v1060
    %v1084 = vpop.f32.mrf.mxu0
    %v1085 = vadd.f32 %v1056, %v1084
    %v1086 = vpop.f32.mrf.mxu0
    %1087 = vdwg.mxu0
    %v1088 = vmax.f32 %v1072, 0.0
    %v1089 = vmax.f32 %v1085, 0.0
    %s1090 = smul.u32 %s29, 2
    %s1091 = smul.addr %s1090, 8
    %s1092 = scalar_lea.vmem %s7, %s1091
    %1093 = vst [vmem:[%s1092] sm:$0xff] %v1088
    %1094 = vst [vmem:[%s1092 + $0x8] sm:$0xff] %v1089
  $region34: #{topnet_decoder_forward.11} parent=0 // loop_footer
    %s33 = sadd.s32 1, %s29
  $region35: #{topnet_decoder_forward.11} parent=0 // loop_footer_branch
    %28 = sbr.rel target = $region31
  $region36: #{topnet_decoder_forward.11} parent=0 // loop_exit
    _
  // Predicated region
  $region37: #{topnet_decoder_forward.11} parent=0 // pred_check
    _
  $region38: #{topnet_decoder_forward.11} parent=0 // pred_check_branch
    %1096 = sbr.rel (0) target = $region40
  $region39: #{topnet_decoder_forward.11} parent=0 // pred_region
    _
  $region40: #{topnet_decoder_forward.11} parent=0 // pred_fallthru
    _
  // Predicated region
  $region41: #{topnet_decoder_forward.11} parent=0 // pred_check
    _
  $region42: #{topnet_decoder_forward.11} parent=0 // pred_check_branch
    %1098 = sbr.rel (0) target = $region44
  $region43: #{topnet_decoder_forward.11} parent=0 // pred_region
    _
  $region44: #{topnet_decoder_forward.11} parent=0 // pred_fallthru
    _

// kernel: topnet_decoder_forward.13
$region0: #{topnet_decoder_forward.13}
  #allocation0 [shape = 'u32[]', space=smem, size = 0x4, offset = 0x4, fixed_abs, tag = 'smem constant byte address 0x4 - core index']
  #allocation1 [shape = 'u32[72,128]{1,0:T(1,128)}', space=vmem, size = 0x9000, scoped, tag = 'internal scratch']
  %s0 = inlined_call_operand.vmem [shape: bf16[1,1,8,512], index: 0, kind: input, shape index: {}]
  %s1 = inlined_call_operand.vmem [shape: bf16[2,256,8], index: 1, kind: input, shape index: {}]
  %s2 = inlined_call_operand.vmem [shape: f32[2,256,128], index: 2, kind: input, shape index: {}]
  %s3 = inlined_call_operand.vmem [shape: bf16[2,64,256], index: 3, kind: input, shape index: {}]
  %s4 = inlined_call_operand.vmem [shape: f32[2,64,1], index: 4, kind: input, shape index: {}]
  %s5 = inlined_call_operand.vmem [shape: bf16[2,8,64], index: 5, kind: input, shape index: {}]
  %s6 = inlined_call_operand.vmem [shape: f32[2,8,1], index: 6, kind: input, shape index: {}]
  %s7 = inlined_call_operand.vmem [shape: f32[1,1,2,8,512], index: 7, kind: output, shape index: {}]
  %s8 = sld [smem:[#allocation0]]
  $region45: #{topnet_decoder_forward.13} parent=0
    _
  %s10 = ssub.s32 1, %s8
  %s11 = scalar_select 0, %s10, %s8
  // Predicated region
  $region2: #{topnet_decoder_forward.13} parent=0 // pred_check
    _
  $region3: #{topnet_decoder_forward.13} parent=0 // pred_check_branch
    %13 = sbr.rel (0) target = $region5
  $region4: #{topnet_decoder_forward.13} parent=0 // pred_region
    _
  $region5: #{topnet_decoder_forward.13} parent=0 // pred_fallthru
    _
  // Predicated region
  $region6: #{topnet_decoder_forward.13} parent=0 // pred_check
    _
  $region7: #{topnet_decoder_forward.13} parent=0 // pred_check_branch
    %15 = sbr.rel (0) target = $region9
  $region8: #{topnet_decoder_forward.13} parent=0 // pred_region
    _
  $region9: #{topnet_decoder_forward.13} parent=0 // pred_fallthru
    _
  // Predicated region
  $region10: #{topnet_decoder_forward.13} parent=0 // pred_check
    _
  $region11: #{topnet_decoder_forward.13} parent=0 // pred_check_branch
    %17 = sbr.rel (0) target = $region13
  $region12: #{topnet_decoder_forward.13} parent=0 // pred_region
    _
  $region13: #{topnet_decoder_forward.13} parent=0 // pred_fallthru
    _
  // Predicated region
  $region14: #{topnet_decoder_forward.13} parent=0 // pred_check
    _
  $region15: #{topnet_decoder_forward.13} parent=0 // pred_check_branch
    %19 = sbr.rel (0) target = $region17
  $region16: #{topnet_decoder_forward.13} parent=0 // pred_region
    _
  $region17: #{topnet_decoder_forward.13} parent=0 // pred_fallthru
    _
  // Predicated region
  $region18: #{topnet_decoder_forward.13} parent=0 // pred_check
    _
  $region19: #{topnet_decoder_forward.13} parent=0 // pred_check_branch
    %21 = sbr.rel (0) target = $region21
  $region20: #{topnet_decoder_forward.13} parent=0 // pred_region
    _
  $region21: #{topnet_decoder_forward.13} parent=0 // pred_fallthru
    _
  // Predicated region
  $region22: #{topnet_decoder_forward.13} parent=0 // pred_check
    _
  $region23: #{topnet_decoder_forward.13} parent=0 // pred_check_branch
    %23 = sbr.rel (0) target = $region25
  $region24: #{topnet_decoder_forward.13} parent=0 // pred_region
    _
  $region25: #{topnet_decoder_forward.13} parent=0 // pred_fallthru
    _
  // Predicated region
  $region26: #{topnet_decoder_forward.13} parent=0 // pred_check
    _
  $region27: #{topnet_decoder_forward.13} parent=0 // pred_check_branch
    %25 = sbr.rel (0) target = $region29
  $region28: #{topnet_decoder_forward.13} parent=0 // pred_region
    _
  $region29: #{topnet_decoder_forward.13} parent=0 // pred_fallthru
    _
  %v27 = vld [vmem:[%s0] sm:$0xff]
  %v28 = vld [vmem:[%s0 + $0x8] sm:$0xff]
  loop: start=0, step=1, limit=2
  $region30: #{topnet_decoder_forward.13} parent=0 // loop_pre_header
    _
  $region31: #{topnet_decoder_forward.13} parent=0 // loop_header
    %s30 = sphi 0, %s34
    %p31 = scmp.ge.s32.totalorder %s30, 2
  $region32: #{topnet_decoder_forward.13} parent=0 // loop_header_branch
    %33 = sbr.rel (%p31) target = $region36
  $region33: #{topnet_decoder_forward.13} parent=0 // loop_body
    %s35 = smul.u32 %s30, 256
    %s36 = scalar_lea.vmem %s2, %s35
    %v37 = vld [vmem:[%s36] sm:$0xff]
    %v38 = vld [vmem:[%s36 + $0x8] sm:$0xff]
    %v39 = vld [vmem:[%s36 + $0x10] sm:$0xff]
    %v40 = vld [vmem:[%s36 + $0x18] sm:$0xff]
    %v41 = vld [vmem:[%s36 + $0x20] sm:$0xff]
    %v42 = vld [vmem:[%s36 + $0x28] sm:$0xff]
    %v43 = vld [vmem:[%s36 + $0x30] sm:$0xff]
    %v44 = vld [vmem:[%s36 + $0x38] sm:$0xff]
    %v45 = vld [vmem:[%s36 + $0x40] sm:$0xff]
    %v46 = vld [vmem:[%s36 + $0x48] sm:$0xff]
    %v47 = vld [vmem:[%s36 + $0x50] sm:$0xff]
    %v48 = vld [vmem:[%s36 + $0x58] sm:$0xff]
    %v49 = vld [vmem:[%s36 + $0x60] sm:$0xff]
    %v50 = vld [vmem:[%s36 + $0x68] sm:$0xff]
    %v51 = vld [vmem:[%s36 + $0x70] sm:$0xff]
    %v52 = vld [vmem:[%s36 + $0x78] sm:$0xff]
    %v53 = vld [vmem:[%s36 + $0x80] sm:$0xff]
    %v54 = vld [vmem:[%s36 + $0x88] sm:$0xff]
    %v55 = vld [vmem:[%s36 + $0x90] sm:$0xff]
    %v56 = vld [vmem:[%s36 + $0x98] sm:$0xff]
    %v57 = vld [vmem:[%s36 + $0xa0] sm:$0xff]
    %v58 = vld [vmem:[%s36 + $0xa8] sm:$0xff]
    %v59 = vld [vmem:[%s36 + $0xb0] sm:$0xff]
    %v60 = vld [vmem:[%s36 + $0xb8] sm:$0xff]
    %v61 = vld [vmem:[%s36 + $0xc0] sm:$0xff]
    %v62 = vld [vmem:[%s36 + $0xc8] sm:$0xff]
    %v63 = vld [vmem:[%s36 + $0xd0] sm:$0xff]
    %v64 = vld [vmem:[%s36 + $0xd8] sm:$0xff]
    %v65 = vld [vmem:[%s36 + $0xe0] sm:$0xff]
    %v66 = vld [vmem:[%s36 + $0xe8] sm:$0xff]
    %v67 = vld [vmem:[%s36 + $0xf0] sm:$0xff]
    %v68 = vld [vmem:[%s36 + $0xf8] sm:$0xff]
    %s69 = smul.u32 %s30, 32
    %s70 = smul.addr %s69, 4
    %s71 = scalar_lea.vmem %s1, %s70
    %v72 = vld [vmem:[%s71] sm:$0xf]
    %v73 = vld [vmem:[%s71 + $0x4] sm:$0xf]
    %v74 = vld [vmem:[%s71 + $0x8] sm:$0xf]
    %v75 = vld [vmem:[%s71 + $0xc] sm:$0xf]
    %v76 = vld [vmem:[%s71 + $0x10] sm:$0xf]
    %v77 = vld [vmem:[%s71 + $0x14] sm:$0xf]
    %v78 = vld [vmem:[%s71 + $0x18] sm:$0xf]
    %v79 = vld [vmem:[%s71 + $0x1c] sm:$0xf]
    %v80 = vld [vmem:[%s71 + $0x20] sm:$0xf]
    %v81 = vld [vmem:[%s71 + $0x24] sm:$0xf]
    %v82 = vld [vmem:[%s71 + $0x28] sm:$0xf]
    %v83 = vld [vmem:[%s71 + $0x2c] sm:$0xf]
    %v84 = vld [vmem:[%s71 + $0x30] sm:$0xf]
    %v85 = vld [vmem:[%s71 + $0x34] sm:$0xf]
    %v86 = vld [vmem:[%s71 + $0x38] sm:$0xf]
    %v87 = vld [vmem:[%s71 + $0x3c] sm:$0xf]
    %v88 = vld [vmem:[%s71 + $0x40] sm:$0xf]
    %v89 = vld [vmem:[%s71 + $0x44] sm:$0xf]
    %v90 = vld [vmem:[%s71 + $0x48] sm:$0xf]
    %v91 = vld [vmem:[%s71 + $0x4c] sm:$0xf]
    %v92 = vld [vmem:[%s71 + $0x50] sm:$0xf]
    %v93 = vld [vmem:[%s71 + $0x54] sm:$0xf]
    %v94 = vld [vmem:[%s71 + $0x58] sm:$0xf]
    %v95 = vld [vmem:[%s71 + $0x5c] sm:$0xf]
    %v96 = vld [vmem:[%s71 + $0x60] sm:$0xf]
    %v97 = vld [vmem:[%s71 + $0x64] sm:$0xf]
    %v98 = vld [vmem:[%s71 + $0x68] sm:$0xf]
    %v99 = vld [vmem:[%s71 + $0x6c] sm:$0xf]
    %v100 = vld [vmem:[%s71 + $0x70] sm:$0xf]
    %v101 = vld [vmem:[%s71 + $0x74] sm:$0xf]
    %v102 = vld [vmem:[%s71 + $0x78] sm:$0xf]
    %v103 = vld [vmem:[%s71 + $0x7c] sm:$0xf]
    %v136 = vunpack.c.l.b16 %v72
    %v137 = vunpack.c.l.b16 %v73
    %v138 = vunpack.c.l.b16 %v74
    %v139 = vunpack.c.l.b16 %v75
    %v140 = vunpack.c.l.b16 %v76
    %v141 = vunpack.c.l.b16 %v77
    %v142 = vunpack.c.l.b16 %v78
    %v143 = vunpack.c.l.b16 %v79
    %v144 = vunpack.c.l.b16 %v80
    %v145 = vunpack.c.l.b16 %v81
    %v146 = vunpack.c.l.b16 %v82
    %v147 = vunpack.c.l.b16 %v83
    %v148 = vunpack.c.l.b16 %v84
    %v149 = vunpack.c.l.b16 %v85
    %v150 = vunpack.c.l.b16 %v86
    %v151 = vunpack.c.l.b16 %v87
    %v152 = vunpack.c.l.b16 %v88
    %v153 = vunpack.c.l.b16 %v89
    %v154 = vunpack.c.l.b16 %v90
    %v155 = vunpack.c.l.b16 %v91
    %v156 = vunpack.c.l.b16 %v92
    %v157 = vunpack.c.l.b16 %v93
    %v158 = vunpack.c.l.b16 %v94
    %v159 = vunpack.c.l.b16 %v95
    %v160 = vunpack.c.l.b16 %v96
    %v161 = vunpack.c.l.b16 %v97
    %v162 = vunpack.c.l.b16 %v98
    %v163 = vunpack.c.l.b16 %v99
    %v164 = vunpack.c.l.b16 %v100
    %v165 = vunpack.c.l.b16 %v101
    %v166 = vunpack.c.l.b16 %v102
    %v167 = vunpack.c.l.b16 %v103
    %v168 = vpack.c.b16 %v137, %v136
    %v169 = vpack.c.b16 %v139, %v138
    %v170 = vpack.c.b16 %v141, %v140
    %v171 = vpack.c.b16 %v143, %v142
    %v172 = vpack.c.b16 %v145, %v144
    %v173 = vpack.c.b16 %v147, %v146
    %v174 = vpack.c.b16 %v149, %v148
    %v175 = vpack.c.b16 %v151, %v150
    %v176 = vpack.c.b16 %v153, %v152
    %v177 = vpack.c.b16 %v155, %v154
    %v178 = vpack.c.b16 %v157, %v156
    %v179 = vpack.c.b16 %v159, %v158
    %v180 = vpack.c.b16 %v161, %v160
    %v181 = vpack.c.b16 %v163, %v162
    %v182 = vpack.c.b16 %v165, %v164
    %v183 = vpack.c.b16 %v167, %v166
    %v186 = vunpack.c.l.b16 %v27
    %v187 = vunpack.c.h.b16 %v27
    %v188 = vunpack.c.l.b16 %v28
    %v189 = vunpack.c.h.b16 %v28
    %v190 = vpack.c.b16 %v186, %v186
    %v191 = vpack.c.b16 %v187, %v187
    %v192 = vpack.c.b16 %v188, %v188
    %v193 = vpack.c.b16 %v189, %v189
    %vm194 = vcmask 64512
    %v196 = vsel %vm194, %v168, 0
    %v199 = vsel %vm194, %v169, 0
    %v202 = vsel %vm194, %v170, 0
    %v205 = vsel %vm194, %v171, 0
    %v208 = vsel %vm194, %v172, 0
    %v211 = vsel %vm194, %v173, 0
    %v214 = vsel %vm194, %v174, 0
    %v217 = vsel %vm194, %v175, 0
    %v220 = vsel %vm194, %v176, 0
    %v223 = vsel %vm194, %v177, 0
    %v226 = vsel %vm194, %v178, 0
    %v229 = vsel %vm194, %v179, 0
    %v232 = vsel %vm194, %v180, 0
    %v235 = vsel %vm194, %v181, 0
    %v238 = vsel %vm194, %v182, 0
    %v241 = vsel %vm194, %v183, 0
    %vm243 = vcmask 1043456
    %v245 = vsel %vm243, %v190, 0
    %v248 = vsel %vm243, %v191, 0
    %v251 = vsel %vm243, %v192, 0
    %v254 = vsel %vm243, %v193, 0
    %256 = vmatpush.bf16.msra.mxu0 0
    %257 = vmatpush.bf16.msra.mxu0 0
    %258 = vmatpush.bf16.msra.mxu0 0
    %259 = vmatpush.bf16.msra.mxu0 0
    %260 = vmatpush.bf16.msra.mxu0 0
    %261 = vmatpush.bf16.msra.mxu0 0
    %262 = vmatpush.bf16.msra.mxu0 0
    %263 = vmatpush.bf16.msra.mxu0 %v245
    %264 = vmatmul.bf16.gmra.mxu0 %v196
    %v265 = vpop.f32.mrf.mxu0
    %v266 = vadd.f32 0.0, %v265
    %v267 = vpop.f32.mrf.mxu0
    %v268 = vadd.f32 0.0, %v267
    %269 = vmatmul.bf16.gmra.mxu0 %v199
    %v270 = vpop.f32.mrf.mxu0
    %v271 = vadd.f32 0.0, %v270
    %v272 = vpop.f32.mrf.mxu0
    %v273 = vadd.f32 0.0, %v272
    %274 = vmatmul.bf16.gmra.mxu0 %v202
    %v275 = vpop.f32.mrf.mxu0
    %v276 = vadd.f32 0.0, %v275
    %v277 = vpop.f32.mrf.mxu0
    %v278 = vadd.f32 0.0, %v277
    %279 = vmatmul.bf16.gmra.mxu0 %v205
    %v280 = vpop.f32.mrf.mxu0
    %v281 = vadd.f32 0.0, %v280
    %v282 = vpop.f32.mrf.mxu0
    %v283 = vadd.f32 0.0, %v282
    %284 = vmatmul.bf16.gmra.mxu0 %v208
    %v285 = vpop.f32.mrf.mxu0
    %v286 = vadd.f32 0.0, %v285
    %v287 = vpop.f32.mrf.mxu0
    %v288 = vadd.f32 0.0, %v287
    %289 = vmatmul.bf16.gmra.mxu0 %v211
    %v290 = vpop.f32.mrf.mxu0
    %v291 = vadd.f32 0.0, %v290
    %v292 = vpop.f32.mrf.mxu0
    %v293 = vadd.f32 0.0, %v292
    %294 = vmatmul.bf16.gmra.mxu0 %v214
    %v295 = vpop.f32.mrf.mxu0
    %v296 = vadd.f32 0.0, %v295
    %v297 = vpop.f32.mrf.mxu0
    %v298 = vadd.f32 0.0, %v297
    %299 = vmatmul.bf16.gmra.mxu0 %v217
    %v300 = vpop.f32.mrf.mxu0
    %v301 = vadd.f32 0.0, %v300
    %v302 = vpop.f32.mrf.mxu0
    %v303 = vadd.f32 0.0, %v302
    %304 = vmatmul.bf16.gmra.mxu0 %v220
    %v305 = vpop.f32.mrf.mxu0
    %v306 = vadd.f32 0.0, %v305
    %v307 = vpop.f32.mrf.mxu0
    %v308 = vadd.f32 0.0, %v307
    %309 = vmatmul.bf16.gmra.mxu0 %v223
    %v310 = vpop.f32.mrf.mxu0
    %v311 = vadd.f32 0.0, %v310
    %v312 = vpop.f32.mrf.mxu0
    %v313 = vadd.f32 0.0, %v312
    %314 = vmatmul.bf16.gmra.mxu0 %v226
    %v315 = vpop.f32.mrf.mxu0
    %v316 = vadd.f32 0.0, %v315
    %v317 = vpop.f32.mrf.mxu0
    %v318 = vadd.f32 0.0, %v317
    %319 = vmatmul.bf16.gmra.mxu0 %v229
    %v320 = vpop.f32.mrf.mxu0
    %v321 = vadd.f32 0.0, %v320
    %v322 = vpop.f32.mrf.mxu0
    %v323 = vadd.f32 0.0, %v322
    %324 = vmatmul.bf16.gmra.mxu0 %v232
    %v325 = vpop.f32.mrf.mxu0
    %v326 = vadd.f32 0.0, %v325
    %v327 = vpop.f32.mrf.mxu0
    %v328 = vadd.f32 0.0, %v327
    %329 = vmatmul.bf16.gmra.mxu0 %v235
    %v330 = vpop.f32.mrf.mxu0
    %v331 = vadd.f32 0.0, %v330
    %v332 = vpop.f32.mrf.mxu0
    %v333 = vadd.f32 0.0, %v332
    %334 = vmatmul.bf16.gmra.mxu0 %v238
    %v335 = vpop.f32.mrf.mxu0
    %v336 = vadd.f32 0.0, %v335
    %v337 = vpop.f32.mrf.mxu0
    %v338 = vadd.f32 0.0, %v337
    %339 = vmatmul.bf16.gmra.mxu0 %v241
    %v340 = vpop.f32.mrf.mxu0
    %v341 = vadd.f32 0.0, %v340
    %v342 = vpop.f32.mrf.mxu0
    %v343 = vadd.f32 0.0, %v342
    %344 = vdwg.mxu0
    %345 = vmatpush.bf16.msra.mxu0 0
    %346 = vmatpush.bf16.msra.mxu0 0
    %347 = vmatpush.bf16.msra.mxu0 0
    %348 = vmatpush.bf16.msra.mxu0 0
    %349 = vmatpush.bf16.msra.mxu0 0
    %350 = vmatpush.bf16.msra.mxu0 0
    %351 = vmatpush.bf16.msra.mxu0 0
    %352 = vmatpush.bf16.msra.mxu0 %v248
    %353 = vmatmul.bf16.gmra.mxu0 %v196
    %v354 = vpop.f32.mrf.mxu0
    %v355 = vadd.f32 0.0, %v354
    %v356 = vpop.f32.mrf.mxu0
    %v357 = vadd.f32 0.0, %v356
    %358 = vmatmul.bf16.gmra.mxu0 %v199
    %v359 = vpop.f32.mrf.mxu0
    %v360 = vadd.f32 0.0, %v359
    %v361 = vpop.f32.mrf.mxu0
    %v362 = vadd.f32 0.0, %v361
    %363 = vmatmul.bf16.gmra.mxu0 %v202
    %v364 = vpop.f32.mrf.mxu0
    %v365 = vadd.f32 0.0, %v364
    %v366 = vpop.f32.mrf.mxu0
    %v367 = vadd.f32 0.0, %v366
    %368 = vmatmul.bf16.gmra.mxu0 %v205
    %v369 = vpop.f32.mrf.mxu0
    %v370 = vadd.f32 0.0, %v369
    %v371 = vpop.f32.mrf.mxu0
    %v372 = vadd.f32 0.0, %v371
    %373 = vmatmul.bf16.gmra.mxu0 %v208
    %v374 = vpop.f32.mrf.mxu0
    %v375 = vadd.f32 0.0, %v374
    %v376 = vpop.f32.mrf.mxu0
    %v377 = vadd.f32 0.0, %v376
    %378 = vmatmul.bf16.gmra.mxu0 %v211
    %v379 = vpop.f32.mrf.mxu0
    %v380 = vadd.f32 0.0, %v379
    %v381 = vpop.f32.mrf.mxu0
    %v382 = vadd.f32 0.0, %v381
    %383 = vmatmul.bf16.gmra.mxu0 %v214
    %v384 = vpop.f32.mrf.mxu0
    %v385 = vadd.f32 0.0, %v384
    %v386 = vpop.f32.mrf.mxu0
    %v387 = vadd.f32 0.0, %v386
    %388 = vmatmul.bf16.gmra.mxu0 %v217
    %v389 = vpop.f32.mrf.mxu0
    %v390 = vadd.f32 0.0, %v389
    %v391 = vpop.f32.mrf.mxu0
    %v392 = vadd.f32 0.0, %v391
    %393 = vmatmul.bf16.gmra.mxu0 %v220
    %v394 = vpop.f32.mrf.mxu0
    %v395 = vadd.f32 0.0, %v394
    %v396 = vpop.f32.mrf.mxu0
    %v397 = vadd.f32 0.0, %v396
    %398 = vmatmul.bf16.gmra.mxu0 %v223
    %v399 = vpop.f32.mrf.mxu0
    %v400 = vadd.f32 0.0, %v399
    %v401 = vpop.f32.mrf.mxu0
    %v402 = vadd.f32 0.0, %v401
    %403 = vmatmul.bf16.gmra.mxu0 %v226
    %v404 = vpop.f32.mrf.mxu0
    %v405 = vadd.f32 0.0, %v404
    %v406 = vpop.f32.mrf.mxu0
    %v407 = vadd.f32 0.0, %v406
    %408 = vmatmul.bf16.gmra.mxu0 %v229
    %v409 = vpop.f32.mrf.mxu0
    %v410 = vadd.f32 0.0, %v409
    %v411 = vpop.f32.mrf.mxu0
    %v412 = vadd.f32 0.0, %v411
    %413 = vmatmul.bf16.gmra.mxu0 %v232
    %v414 = vpop.f32.mrf.mxu0
    %v415 = vadd.f32 0.0, %v414
    %v416 = vpop.f32.mrf.mxu0
    %v417 = vadd.f32 0.0, %v416
    %418 = vmatmul.bf16.gmra.mxu0 %v235
    %v419 = vpop.f32.mrf.mxu0
    %v420 = vadd.f32 0.0, %v419
    %v421 = vpop.f32.mrf.mxu0
    %v422 = vadd.f32 0.0, %v421
    %423 = vmatmul.bf16.gmra.mxu0 %v238
    %v424 = vpop.f32.mrf.mxu0
    %v425 = vadd.f32 0.0, %v424
    %v426 = vpop.f32.mrf.mxu0
    %v427 = vadd.f32 0.0, %v426
    %428 = vmatmul.bf16.gmra.mxu0 %v241
    %v429 = vpop.f32.mrf.mxu0
    %v430 = vadd.f32 0.0, %v429
    %v431 = vpop.f32.mrf.mxu0
    %v432 = vadd.f32 0.0, %v431
    %433 = vdwg.mxu0
    %434 = vmatpush.bf16.msra.mxu0 0
    %435 = vmatpush.bf16.msra.mxu0 0
    %436 = vmatpush.bf16.msra.mxu0 0
    %437 = vmatpush.bf16.msra.mxu0 0
    %438 = vmatpush.bf16.msra.mxu0 0
    %439 = vmatpush.bf16.msra.mxu0 0
    %440 = vmatpush.bf16.msra.mxu0 0
    %441 = vmatpush.bf16.msra.mxu0 %v251
    %442 = vmatmul.bf16.gmra.mxu0 %v196
    %v443 = vpop.f32.mrf.mxu0
    %v444 = vadd.f32 0.0, %v443
    %v445 = vpop.f32.mrf.mxu0
    %v446 = vadd.f32 0.0, %v445
    %447 = vmatmul.bf16.gmra.mxu0 %v199
    %v448 = vpop.f32.mrf.mxu0
    %v449 = vadd.f32 0.0, %v448
    %v450 = vpop.f32.mrf.mxu0
    %v451 = vadd.f32 0.0, %v450
    %452 = vmatmul.bf16.gmra.mxu0 %v202
    %v453 = vpop.f32.mrf.mxu0
    %v454 = vadd.f32 0.0, %v453
    %v455 = vpop.f32.mrf.mxu0
    %v456 = vadd.f32 0.0, %v455
    %457 = vmatmul.bf16.gmra.mxu0 %v205
    %v458 = vpop.f32.mrf.mxu0
    %v459 = vadd.f32 0.0, %v458
    %v460 = vpop.f32.mrf.mxu0
    %v461 = vadd.f32 0.0, %v460
    %462 = vmatmul.bf16.gmra.mxu0 %v208
    %v463 = vpop.f32.mrf.mxu0
    %v464 = vadd.f32 0.0, %v463
    %v465 = vpop.f32.mrf.mxu0
    %v466 = vadd.f32 0.0, %v465
    %467 = vmatmul.bf16.gmra.mxu0 %v211
    %v468 = vpop.f32.mrf.mxu0
    %v469 = vadd.f32 0.0, %v468
    %v470 = vpop.f32.mrf.mxu0
    %v471 = vadd.f32 0.0, %v470
    %472 = vmatmul.bf16.gmra.mxu0 %v214
    %v473 = vpop.f32.mrf.mxu0
    %v474 = vadd.f32 0.0, %v473
    %v475 = vpop.f32.mrf.mxu0
    %v476 = vadd.f32 0.0, %v475
    %477 = vmatmul.bf16.gmra.mxu0 %v217
    %v478 = vpop.f32.mrf.mxu0
    %v479 = vadd.f32 0.0, %v478
    %v480 = vpop.f32.mrf.mxu0
    %v481 = vadd.f32 0.0, %v480
    %482 = vmatmul.bf16.gmra.mxu0 %v220
    %v483 = vpop.f32.mrf.mxu0
    %v484 = vadd.f32 0.0, %v483
    %v485 = vpop.f32.mrf.mxu0
    %v486 = vadd.f32 0.0, %v485
    %487 = vmatmul.bf16.gmra.mxu0 %v223
    %v488 = vpop.f32.mrf.mxu0
    %v489 = vadd.f32 0.0, %v488
    %v490 = vpop.f32.mrf.mxu0
    %v491 = vadd.f32 0.0, %v490
    %492 = vmatmul.bf16.gmra.mxu0 %v226
    %v493 = vpop.f32.mrf.mxu0
    %v494 = vadd.f32 0.0, %v493
    %v495 = vpop.f32.mrf.mxu0
    %v496 = vadd.f32 0.0, %v495
    %497 = vmatmul.bf16.gmra.mxu0 %v229
    %v498 = vpop.f32.mrf.mxu0
    %v499 = vadd.f32 0.0, %v498
    %v500 = vpop.f32.mrf.mxu0
    %v501 = vadd.f32 0.0, %v500
    %502 = vmatmul.bf16.gmra.mxu0 %v232
    %v503 = vpop.f32.mrf.mxu0
    %v504 = vadd.f32 0.0, %v503
    %v505 = vpop.f32.mrf.mxu0
    %v506 = vadd.f32 0.0, %v505
    %507 = vmatmul.bf16.gmra.mxu0 %v235
    %v508 = vpop.f32.mrf.mxu0
    %v509 = vadd.f32 0.0, %v508
    %v510 = vpop.f32.mrf.mxu0
    %v511 = vadd.f32 0.0, %v510
    %512 = vmatmul.bf16.gmra.mxu0 %v238
    %v513 = vpop.f32.mrf.mxu0
    %v514 = vadd.f32 0.0, %v513
    %v515 = vpop.f32.mrf.mxu0
    %v516 = vadd.f32 0.0, %v515
    %517 = vmatmul.bf16.gmra.mxu0 %v241
    %v518 = vpop.f32.mrf.mxu0
    %v519 = vadd.f32 0.0, %v518
    %v520 = vpop.f32.mrf.mxu0
    %v521 = vadd.f32 0.0, %v520
    %522 = vdwg.mxu0
    %523 = vmatpush.bf16.msra.mxu0 0
    %524 = vmatpush.bf16.msra.mxu0 0
    %525 = vmatpush.bf16.msra.mxu0 0
    %526 = vmatpush.bf16.msra.mxu0 0
    %527 = vmatpush.bf16.msra.mxu0 0
    %528 = vmatpush.bf16.msra.mxu0 0
    %529 = vmatpush.bf16.msra.mxu0 0
    %530 = vmatpush.bf16.msra.mxu0 %v254
    %531 = vmatmul.bf16.gmra.mxu0 %v196
    %v532 = vpop.f32.mrf.mxu0
    %v533 = vadd.f32 0.0, %v532
    %v534 = vpop.f32.mrf.mxu0
    %v535 = vadd.f32 0.0, %v534
    %536 = vmatmul.bf16.gmra.mxu0 %v199
    %v537 = vpop.f32.mrf.mxu0
    %v538 = vadd.f32 0.0, %v537
    %v539 = vpop.f32.mrf.mxu0
    %v540 = vadd.f32 0.0, %v539
    %541 = vmatmul.bf16.gmra.mxu0 %v202
    %v542 = vpop.f32.mrf.mxu0
    %v543 = vadd.f32 0.0, %v542
    %v544 = vpop.f32.mrf.mxu0
    %v545 = vadd.f32 0.0, %v544
    %546 = vmatmul.bf16.gmra.mxu0 %v205
    %v547 = vpop.f32.mrf.mxu0
    %v548 = vadd.f32 0.0, %v547
    %v549 = vpop.f32.mrf.mxu0
    %v550 = vadd.f32 0.0, %v549
    %551 = vmatmul.bf16.gmra.mxu0 %v208
    %v552 = vpop.f32.mrf.mxu0
    %v553 = vadd.f32 0.0, %v552
    %v554 = vpop.f32.mrf.mxu0
    %v555 = vadd.f32 0.0, %v554
    %556 = vmatmul.bf16.gmra.mxu0 %v211
    %v557 = vpop.f32.mrf.mxu0
    %v558 = vadd.f32 0.0, %v557
    %v559 = vpop.f32.mrf.mxu0
    %v560 = vadd.f32 0.0, %v559
    %561 = vmatmul.bf16.gmra.mxu0 %v214
    %v562 = vpop.f32.mrf.mxu0
    %v563 = vadd.f32 0.0, %v562
    %v564 = vpop.f32.mrf.mxu0
    %v565 = vadd.f32 0.0, %v564
    %566 = vmatmul.bf16.gmra.mxu0 %v217
    %v567 = vpop.f32.mrf.mxu0
    %v568 = vadd.f32 0.0, %v567
    %v569 = vpop.f32.mrf.mxu0
    %v570 = vadd.f32 0.0, %v569
    %571 = vmatmul.bf16.gmra.mxu0 %v220
    %v572 = vpop.f32.mrf.mxu0
    %v573 = vadd.f32 0.0, %v572
    %v574 = vpop.f32.mrf.mxu0
    %v575 = vadd.f32 0.0, %v574
    %576 = vmatmul.bf16.gmra.mxu0 %v223
    %v577 = vpop.f32.mrf.mxu0
    %v578 = vadd.f32 0.0, %v577
    %v579 = vpop.f32.mrf.mxu0
    %v580 = vadd.f32 0.0, %v579
    %581 = vmatmul.bf16.gmra.mxu0 %v226
    %v582 = vpop.f32.mrf.mxu0
    %v583 = vadd.f32 0.0, %v582
    %v584 = vpop.f32.mrf.mxu0
    %v585 = vadd.f32 0.0, %v584
    %586 = vmatmul.bf16.gmra.mxu0 %v229
    %v587 = vpop.f32.mrf.mxu0
    %v588 = vadd.f32 0.0, %v587
    %v589 = vpop.f32.mrf.mxu0
    %v590 = vadd.f32 0.0, %v589
    %591 = vmatmul.bf16.gmra.mxu0 %v232
    %v592 = vpop.f32.mrf.mxu0
    %v593 = vadd.f32 0.0, %v592
    %v594 = vpop.f32.mrf.mxu0
    %v595 = vadd.f32 0.0, %v594
    %596 = vmatmul.bf16.gmra.mxu0 %v235
    %v597 = vpop.f32.mrf.mxu0
    %v598 = vadd.f32 0.0, %v597
    %v599 = vpop.f32.mrf.mxu0
    %v600 = vadd.f32 0.0, %v599
    %601 = vmatmul.bf16.gmra.mxu0 %v238
    %v602 = vpop.f32.mrf.mxu0
    %v603 = vadd.f32 0.0, %v602
    %v604 = vpop.f32.mrf.mxu0
    %v605 = vadd.f32 0.0, %v604
    %606 = vmatmul.bf16.gmra.mxu0 %v241
    %v607 = vpop.f32.mrf.mxu0
    %v608 = vadd.f32 0.0, %v607
    %v609 = vpop.f32.mrf.mxu0
    %v610 = vadd.f32 0.0, %v609
    %611 = vdwg.mxu0
    %v612 = vadd.f32 %v266, %v37
    %v613 = vadd.f32 %v268, %v38
    %v614 = vadd.f32 %v271, %v39
    %v615 = vadd.f32 %v273, %v40
    %v616 = vadd.f32 %v276, %v41
    %v617 = vadd.f32 %v278, %v42
    %v618 = vadd.f32 %v281, %v43
    %v619 = vadd.f32 %v283, %v44
    %v620 = vadd.f32 %v286, %v45
    %v621 = vadd.f32 %v288, %v46
    %v622 = vadd.f32 %v291, %v47
    %v623 = vadd.f32 %v293, %v48
    %v624 = vadd.f32 %v296, %v49
    %v625 = vadd.f32 %v298, %v50
    %v626 = vadd.f32 %v301, %v51
    %v627 = vadd.f32 %v303, %v52
    %v628 = vadd.f32 %v306, %v53
    %v629 = vadd.f32 %v308, %v54
    %v630 = vadd.f32 %v311, %v55
    %v631 = vadd.f32 %v313, %v56
    %v632 = vadd.f32 %v316, %v57
    %v633 = vadd.f32 %v318, %v58
    %v634 = vadd.f32 %v321, %v59
    %v635 = vadd.f32 %v323, %v60
    %v636 = vadd.f32 %v326, %v61
    %v637 = vadd.f32 %v328, %v62
    %v638 = vadd.f32 %v331, %v63
    %v639 = vadd.f32 %v333, %v64
    %v640 = vadd.f32 %v336, %v65
    %v641 = vadd.f32 %v338, %v66
    %v642 = vadd.f32 %v341, %v67
    %v643 = vadd.f32 %v343, %v68
    %v644 = vmax.f32 %v612, 0.0
    %v645 = vmax.f32 %v613, 0.0
    %v646 = vmax.f32 %v614, 0.0
    %v647 = vmax.f32 %v615, 0.0
    %v648 = vmax.f32 %v616, 0.0
    %v649 = vmax.f32 %v617, 0.0
    %v650 = vmax.f32 %v618, 0.0
    %v651 = vmax.f32 %v619, 0.0
    %v652 = vmax.f32 %v620, 0.0
    %v653 = vmax.f32 %v621, 0.0
    %v654 = vmax.f32 %v622, 0.0
    %v655 = vmax.f32 %v623, 0.0
    %v656 = vmax.f32 %v624, 0.0
    %v657 = vmax.f32 %v625, 0.0
    %v658 = vmax.f32 %v626, 0.0
    %v659 = vmax.f32 %v627, 0.0
    %v660 = vmax.f32 %v628, 0.0
    %v661 = vmax.f32 %v629, 0.0
    %v662 = vmax.f32 %v630, 0.0
    %v663 = vmax.f32 %v631, 0.0
    %v664 = vmax.f32 %v632, 0.0
    %v665 = vmax.f32 %v633, 0.0
    %v666 = vmax.f32 %v634, 0.0
    %v667 = vmax.f32 %v635, 0.0
    %v668 = vmax.f32 %v636, 0.0
    %v669 = vmax.f32 %v637, 0.0
    %v670 = vmax.f32 %v638, 0.0
    %v671 = vmax.f32 %v639, 0.0
    %v672 = vmax.f32 %v640, 0.0
    %v673 = vmax.f32 %v641, 0.0
    %v674 = vmax.f32 %v642, 0.0
    %v675 = vmax.f32 %v643, 0.0
    %v676 = vpack.c.bf16 %v644, %v644
    %v677 = vpack.c.bf16 %v645, %v645
    %v678 = vpack.c.bf16 %v646, %v646
    %v679 = vpack.c.bf16 %v647, %v647
    %v680 = vpack.c.bf16 %v648, %v648
    %v681 = vpack.c.bf16 %v649, %v649
    %v682 = vpack.c.bf16 %v650, %v650
    %v683 = vpack.c.bf16 %v651, %v651
    %v684 = vpack.c.bf16 %v652, %v652
    %v685 = vpack.c.bf16 %v653, %v653
    %v686 = vpack.c.bf16 %v654, %v654
    %v687 = vpack.c.bf16 %v655, %v655
    %v688 = vpack.c.bf16 %v656, %v656
    %v689 = vpack.c.bf16 %v657, %v657
    %v690 = vpack.c.bf16 %v658, %v658
    %v691 = vpack.c.bf16 %v659, %v659
    %v692 = vpack.c.bf16 %v660, %v660
    %v693 = vpack.c.bf16 %v661, %v661
    %v694 = vpack.c.bf16 %v662, %v662
    %v695 = vpack.c.bf16 %v663, %v663
    %v696 = vpack.c.bf16 %v664, %v664
    %v697 = vpack.c.bf16 %v665, %v665
    %v698 = vpack.c.bf16 %v666, %v666
    %v699 = vpack.c.bf16 %v667, %v667
    %v700 = vpack.c.bf16 %v668, %v668
    %v701 = vpack.c.bf16 %v669, %v669
    %v702 = vpack.c.bf16 %v670, %v670
    %v703 = vpack.c.bf16 %v671, %v671
    %v704 = vpack.c.bf16 %v672, %v672
    %v705 = vpack.c.bf16 %v673, %v673
    %v706 = vpack.c.bf16 %v674, %v674
    %v707 = vpack.c.bf16 %v675, %v675
    %v708 = vadd.f32 %v355, %v37
    %v709 = vadd.f32 %v357, %v38
    %v710 = vadd.f32 %v360, %v39
    %v711 = vadd.f32 %v362, %v40
    %v712 = vadd.f32 %v365, %v41
    %v713 = vadd.f32 %v367, %v42
    %v714 = vadd.f32 %v370, %v43
    %v715 = vadd.f32 %v372, %v44
    %v716 = vadd.f32 %v375, %v45
    %v717 = vadd.f32 %v377, %v46
    %v718 = vadd.f32 %v380, %v47
    %v719 = vadd.f32 %v382, %v48
    %v720 = vadd.f32 %v385, %v49
    %v721 = vadd.f32 %v387, %v50
    %v722 = vadd.f32 %v390, %v51
    %v723 = vadd.f32 %v392, %v52
    %v724 = vadd.f32 %v395, %v53
    %v725 = vadd.f32 %v397, %v54
    %v726 = vadd.f32 %v400, %v55
    %v727 = vadd.f32 %v402, %v56
    %v728 = vadd.f32 %v405, %v57
    %v729 = vadd.f32 %v407, %v58
    %v730 = vadd.f32 %v410, %v59
    %v731 = vadd.f32 %v412, %v60
    %v732 = vadd.f32 %v415, %v61
    %v733 = vadd.f32 %v417, %v62
    %v734 = vadd.f32 %v420, %v63
    %v735 = vadd.f32 %v422, %v64
    %v736 = vadd.f32 %v425, %v65
    %v737 = vadd.f32 %v427, %v66
    %v738 = vadd.f32 %v430, %v67
    %v739 = vadd.f32 %v432, %v68
    %v740 = vmax.f32 %v708, 0.0
    %v741 = vmax.f32 %v709, 0.0
    %v742 = vmax.f32 %v710, 0.0
    %v743 = vmax.f32 %v711, 0.0
    %v744 = vmax.f32 %v712, 0.0
    %v745 = vmax.f32 %v713, 0.0
    %v746 = vmax.f32 %v714, 0.0
    %v747 = vmax.f32 %v715, 0.0
    %v748 = vmax.f32 %v716, 0.0
    %v749 = vmax.f32 %v717, 0.0
    %v750 = vmax.f32 %v718, 0.0
    %v751 = vmax.f32 %v719, 0.0
    %v752 = vmax.f32 %v720, 0.0
    %v753 = vmax.f32 %v721, 0.0
    %v754 = vmax.f32 %v722, 0.0
    %v755 = vmax.f32 %v723, 0.0
    %v756 = vmax.f32 %v724, 0.0
    %v757 = vmax.f32 %v725, 0.0
    %v758 = vmax.f32 %v726, 0.0
    %v759 = vmax.f32 %v727, 0.0
    %v760 = vmax.f32 %v728, 0.0
    %v761 = vmax.f32 %v729, 0.0
    %v762 = vmax.f32 %v730, 0.0
    %v763 = vmax.f32 %v731, 0.0
    %v764 = vmax.f32 %v732, 0.0
    %v765 = vmax.f32 %v733, 0.0
    %v766 = vmax.f32 %v734, 0.0
    %v767 = vmax.f32 %v735, 0.0
    %v768 = vmax.f32 %v736, 0.0
    %v769 = vmax.f32 %v737, 0.0
    %v770 = vmax.f32 %v738, 0.0
    %v771 = vmax.f32 %v739, 0.0
    %v772 = vpack.c.bf16 %v740, %v740
    %v773 = vpack.c.bf16 %v741, %v741
    %v774 = vpack.c.bf16 %v742, %v742
    %v775 = vpack.c.bf16 %v743, %v743
    %v776 = vpack.c.bf16 %v744, %v744
    %v777 = vpack.c.bf16 %v745, %v745
    %v778 = vpack.c.bf16 %v746, %v746
    %v779 = vpack.c.bf16 %v747, %v747
    %v780 = vpack.c.bf16 %v748, %v748
    %v781 = vpack.c.bf16 %v749, %v749
    %v782 = vpack.c.bf16 %v750, %v750
    %v783 = vpack.c.bf16 %v751, %v751
    %v784 = vpack.c.bf16 %v752, %v752
    %v785 = vpack.c.bf16 %v753, %v753
    %v786 = vpack.c.bf16 %v754, %v754
    %v787 = vpack.c.bf16 %v755, %v755
    %v788 = vpack.c.bf16 %v756, %v756
    %v789 = vpack.c.bf16 %v757, %v757
    %v790 = vpack.c.bf16 %v758, %v758
    %v791 = vpack.c.bf16 %v759, %v759
    %v792 = vpack.c.bf16 %v760, %v760
    %v793 = vpack.c.bf16 %v761, %v761
    %v794 = vpack.c.bf16 %v762, %v762
    %v795 = vpack.c.bf16 %v763, %v763
    %v796 = vpack.c.bf16 %v764, %v764
    %v797 = vpack.c.bf16 %v765, %v765
    %v798 = vpack.c.bf16 %v766, %v766
    %v799 = vpack.c.bf16 %v767, %v767
    %v800 = vpack.c.bf16 %v768, %v768
    %v801 = vpack.c.bf16 %v769, %v769
    %v802 = vpack.c.bf16 %v770, %v770
    %v803 = vpack.c.bf16 %v771, %v771
    %v804 = vadd.f32 %v444, %v37
    %v805 = vadd.f32 %v446, %v38
    %v806 = vadd.f32 %v449, %v39
    %v807 = vadd.f32 %v451, %v40
    %v808 = vadd.f32 %v454, %v41
    %v809 = vadd.f32 %v456, %v42
    %v810 = vadd.f32 %v459, %v43
    %v811 = vadd.f32 %v461, %v44
    %v812 = vadd.f32 %v464, %v45
    %v813 = vadd.f32 %v466, %v46
    %v814 = vadd.f32 %v469, %v47
    %v815 = vadd.f32 %v471, %v48
    %v816 = vadd.f32 %v474, %v49
    %v817 = vadd.f32 %v476, %v50
    %v818 = vadd.f32 %v479, %v51
    %v819 = vadd.f32 %v481, %v52
    %v820 = vadd.f32 %v484, %v53
    %v821 = vadd.f32 %v486, %v54
    %v822 = vadd.f32 %v489, %v55
    %v823 = vadd.f32 %v491, %v56
    %v824 = vadd.f32 %v494, %v57
    %v825 = vadd.f32 %v496, %v58
    %v826 = vadd.f32 %v499, %v59
    %v827 = vadd.f32 %v501, %v60
    %v828 = vadd.f32 %v504, %v61
    %v829 = vadd.f32 %v506, %v62
    %v830 = vadd.f32 %v509, %v63
    %v831 = vadd.f32 %v511, %v64
    %v832 = vadd.f32 %v514, %v65
    %v833 = vadd.f32 %v516, %v66
    %v834 = vadd.f32 %v519, %v67
    %v835 = vadd.f32 %v521, %v68
    %v836 = vmax.f32 %v804, 0.0
    %v837 = vmax.f32 %v805, 0.0
    %v838 = vmax.f32 %v806, 0.0
    %v839 = vmax.f32 %v807, 0.0
    %v840 = vmax.f32 %v808, 0.0
    %v841 = vmax.f32 %v809, 0.0
    %v842 = vmax.f32 %v810, 0.0
    %v843 = vmax.f32 %v811, 0.0
    %v844 = vmax.f32 %v812, 0.0
    %v845 = vmax.f32 %v813, 0.0
    %v846 = vmax.f32 %v814, 0.0
    %v847 = vmax.f32 %v815, 0.0
    %v848 = vmax.f32 %v816, 0.0
    %v849 = vmax.f32 %v817, 0.0
    %v850 = vmax.f32 %v818, 0.0
    %v851 = vmax.f32 %v819, 0.0
    %v852 = vmax.f32 %v820, 0.0
    %v853 = vmax.f32 %v821, 0.0
    %v854 = vmax.f32 %v822, 0.0
    %v855 = vmax.f32 %v823, 0.0
    %v856 = vmax.f32 %v824, 0.0
    %v857 = vmax.f32 %v825, 0.0
    %v858 = vmax.f32 %v826, 0.0
    %v859 = vmax.f32 %v827, 0.0
    %v860 = vmax.f32 %v828, 0.0
    %v861 = vmax.f32 %v829, 0.0
    %v862 = vmax.f32 %v830, 0.0
    %v863 = vmax.f32 %v831, 0.0
    %v864 = vmax.f32 %v832, 0.0
    %v865 = vmax.f32 %v833, 0.0
    %v866 = vmax.f32 %v834, 0.0
    %v867 = vmax.f32 %v835, 0.0
    %v868 = vpack.c.bf16 %v836, %v836
    %v869 = vpack.c.bf16 %v837, %v837
    %v870 = vpack.c.bf16 %v838, %v838
    %v871 = vpack.c.bf16 %v839, %v839
    %v872 = vpack.c.bf16 %v840, %v840
    %v873 = vpack.c.bf16 %v841, %v841
    %v874 = vpack.c.bf16 %v842, %v842
    %v875 = vpack.c.bf16 %v843, %v843
    %v876 = vpack.c.bf16 %v844, %v844
    %v877 = vpack.c.bf16 %v845, %v845
    %v878 = vpack.c.bf16 %v846, %v846
    %v879 = vpack.c.bf16 %v847, %v847
    %v880 = vpack.c.bf16 %v848, %v848
    %v881 = vpack.c.bf16 %v849, %v849
    %v882 = vpack.c.bf16 %v850, %v850
    %v883 = vpack.c.bf16 %v851, %v851
    %v884 = vpack.c.bf16 %v852, %v852
    %v885 = vpack.c.bf16 %v853, %v853
    %v886 = vpack.c.bf16 %v854, %v854
    %v887 = vpack.c.bf16 %v855, %v855
    %v888 = vpack.c.bf16 %v856, %v856
    %v889 = vpack.c.bf16 %v857, %v857
    %v890 = vpack.c.bf16 %v858, %v858
    %v891 = vpack.c.bf16 %v859, %v859
    %v892 = vpack.c.bf16 %v860, %v860
    %v893 = vpack.c.bf16 %v861, %v861
    %v894 = vpack.c.bf16 %v862, %v862
    %v895 = vpack.c.bf16 %v863, %v863
    %v896 = vpack.c.bf16 %v864, %v864
    %v897 = vpack.c.bf16 %v865, %v865
    %v898 = vpack.c.bf16 %v866, %v866
    %v899 = vpack.c.bf16 %v867, %v867
    %v900 = vadd.f32 %v533, %v37
    %v901 = vadd.f32 %v535, %v38
    %v902 = vadd.f32 %v538, %v39
    %v903 = vadd.f32 %v540, %v40
    %v904 = vadd.f32 %v543, %v41
    %v905 = vadd.f32 %v545, %v42
    %v906 = vadd.f32 %v548, %v43
    %v907 = vadd.f32 %v550, %v44
    %v908 = vadd.f32 %v553, %v45
    %v909 = vadd.f32 %v555, %v46
    %v910 = vadd.f32 %v558, %v47
    %v911 = vadd.f32 %v560, %v48
    %v912 = vadd.f32 %v563, %v49
    %v913 = vadd.f32 %v565, %v50
    %v914 = vadd.f32 %v568, %v51
    %v915 = vadd.f32 %v570, %v52
    %v916 = vadd.f32 %v573, %v53
    %v917 = vadd.f32 %v575, %v54
    %v918 = vadd.f32 %v578, %v55
    %v919 = vadd.f32 %v580, %v56
    %v920 = vadd.f32 %v583, %v57
    %v921 = vadd.f32 %v585, %v58
    %v922 = vadd.f32 %v588, %v59
    %v923 = vadd.f32 %v590, %v60
    %v924 = vadd.f32 %v593, %v61
    %v925 = vadd.f32 %v595, %v62
    %v926 = vadd.f32 %v598, %v63
    %v927 = vadd.f32 %v600, %v64
    %v928 = vadd.f32 %v603, %v65
    %v929 = vadd.f32 %v605, %v66
    %v930 = vadd.f32 %v608, %v67
    %v931 = vadd.f32 %v610, %v68
    %v932 = vmax.f32 %v900, 0.0
    %v933 = vmax.f32 %v901, 0.0
    %v934 = vmax.f32 %v902, 0.0
    %v935 = vmax.f32 %v903, 0.0
    %v936 = vmax.f32 %v904, 0.0
    %v937 = vmax.f32 %v905, 0.0
    %v938 = vmax.f32 %v906, 0.0
    %v939 = vmax.f32 %v907, 0.0
    %v940 = vmax.f32 %v908, 0.0
    %v941 = vmax.f32 %v909, 0.0
    %v942 = vmax.f32 %v910, 0.0
    %v943 = vmax.f32 %v911, 0.0
    %v944 = vmax.f32 %v912, 0.0
    %v945 = vmax.f32 %v913, 0.0
    %v946 = vmax.f32 %v914, 0.0
    %v947 = vmax.f32 %v915, 0.0
    %v948 = vmax.f32 %v916, 0.0
    %v949 = vmax.f32 %v917, 0.0
    %v950 = vmax.f32 %v918, 0.0
    %v951 = vmax.f32 %v919, 0.0
    %v952 = vmax.f32 %v920, 0.0
    %v953 = vmax.f32 %v921, 0.0
    %v954 = vmax.f32 %v922, 0.0
    %v955 = vmax.f32 %v923, 0.0
    %v956 = vmax.f32 %v924, 0.0
    %v957 = vmax.f32 %v925, 0.0
    %v958 = vmax.f32 %v926, 0.0
    %v959 = vmax.f32 %v927, 0.0
    %v960 = vmax.f32 %v928, 0.0
    %v961 = vmax.f32 %v929, 0.0
    %v962 = vmax.f32 %v930, 0.0
    %v963 = vmax.f32 %v931, 0.0
    %v964 = vpack.c.bf16 %v932, %v932
    %v965 = vpack.c.bf16 %v933, %v933
    %v966 = vpack.c.bf16 %v934, %v934
    %v967 = vpack.c.bf16 %v935, %v935
    %v968 = vpack.c.bf16 %v936, %v936
    %v969 = vpack.c.bf16 %v937, %v937
    %v970 = vpack.c.bf16 %v938, %v938
    %v971 = vpack.c.bf16 %v939, %v939
    %v972 = vpack.c.bf16 %v940, %v940
    %v973 = vpack.c.bf16 %v941, %v941
    %v974 = vpack.c.bf16 %v942, %v942
    %v975 = vpack.c.bf16 %v943, %v943
    %v976 = vpack.c.bf16 %v944, %v944
    %v977 = vpack.c.bf16 %v945, %v945
    %v978 = vpack.c.bf16 %v946, %v946
    %v979 = vpack.c.bf16 %v947, %v947
    %v980 = vpack.c.bf16 %v948, %v948
    %v981 = vpack.c.bf16 %v949, %v949
    %v982 = vpack.c.bf16 %v950, %v950
    %v983 = vpack.c.bf16 %v951, %v951
    %v984 = vpack.c.bf16 %v952, %v952
    %v985 = vpack.c.bf16 %v953, %v953
    %v986 = vpack.c.bf16 %v954, %v954
    %v987 = vpack.c.bf16 %v955, %v955
    %v988 = vpack.c.bf16 %v956, %v956
    %v989 = vpack.c.bf16 %v957, %v957
    %v990 = vpack.c.bf16 %v958, %v958
    %v991 = vpack.c.bf16 %v959, %v959
    %v992 = vpack.c.bf16 %v960, %v960
    %v993 = vpack.c.bf16 %v961, %v961
    %v994 = vpack.c.bf16 %v962, %v962
    %v995 = vpack.c.bf16 %v963, %v963
    %v1028 = vunpack.c.l.b16 %v676
    %v1029 = vunpack.c.l.b16 %v677
    %v1030 = vunpack.c.l.b16 %v678
    %v1031 = vunpack.c.l.b16 %v679
    %v1032 = vunpack.c.l.b16 %v680
    %v1033 = vunpack.c.l.b16 %v681
    %v1034 = vunpack.c.l.b16 %v682
    %v1035 = vunpack.c.l.b16 %v683
    %v1036 = vunpack.c.l.b16 %v684
    %v1037 = vunpack.c.l.b16 %v685
    %v1038 = vunpack.c.l.b16 %v686
    %v1039 = vunpack.c.l.b16 %v687
    %v1040 = vunpack.c.l.b16 %v688
    %v1041 = vunpack.c.l.b16 %v689
    %v1042 = vunpack.c.l.b16 %v690
    %v1043 = vunpack.c.l.b16 %v691
    %v1044 = vunpack.c.l.b16 %v692
    %v1045 = vunpack.c.l.b16 %v693
    %v1046 = vunpack.c.l.b16 %v694
    %v1047 = vunpack.c.l.b16 %v695
    %v1048 = vunpack.c.l.b16 %v696
    %v1049 = vunpack.c.l.b16 %v697
    %v1050 = vunpack.c.l.b16 %v698
    %v1051 = vunpack.c.l.b16 %v699
    %v1052 = vunpack.c.l.b16 %v700
    %v1053 = vunpack.c.l.b16 %v701
    %v1054 = vunpack.c.l.b16 %v702
    %v1055 = vunpack.c.l.b16 %v703
    %v1056 = vunpack.c.l.b16 %v704
    %v1057 = vunpack.c.l.b16 %v705
    %v1058 = vunpack.c.l.b16 %v706
    %v1059 = vunpack.c.l.b16 %v707
    %v1060 = vpack.c.b16 %v1029, %v1028
    %v1061 = vpack.c.b16 %v1031, %v1030
    %v1062 = vpack.c.b16 %v1033, %v1032
    %v1063 = vpack.c.b16 %v1035, %v1034
    %v1064 = vpack.c.b16 %v1037, %v1036
    %v1065 = vpack.c.b16 %v1039, %v1038
    %v1066 = vpack.c.b16 %v1041, %v1040
    %v1067 = vpack.c.b16 %v1043, %v1042
    %v1068 = vpack.c.b16 %v1045, %v1044
    %v1069 = vpack.c.b16 %v1047, %v1046
    %v1070 = vpack.c.b16 %v1049, %v1048
    %v1071 = vpack.c.b16 %v1051, %v1050
    %v1072 = vpack.c.b16 %v1053, %v1052
    %v1073 = vpack.c.b16 %v1055, %v1054
    %v1074 = vpack.c.b16 %v1057, %v1056
    %v1075 = vpack.c.b16 %v1059, %v1058
    %v1124 = vunpack.c.l.b16 %v772
    %v1125 = vunpack.c.l.b16 %v773
    %v1126 = vunpack.c.l.b16 %v774
    %v1127 = vunpack.c.l.b16 %v775
    %v1128 = vunpack.c.l.b16 %v776
    %v1129 = vunpack.c.l.b16 %v777
    %v1130 = vunpack.c.l.b16 %v778
    %v1131 = vunpack.c.l.b16 %v779
    %v1132 = vunpack.c.l.b16 %v780
    %v1133 = vunpack.c.l.b16 %v781
    %v1134 = vunpack.c.l.b16 %v782
    %v1135 = vunpack.c.l.b16 %v783
    %v1136 = vunpack.c.l.b16 %v784
    %v1137 = vunpack.c.l.b16 %v785
    %v1138 = vunpack.c.l.b16 %v786
    %v1139 = vunpack.c.l.b16 %v787
    %v1140 = vunpack.c.l.b16 %v788
    %v1141 = vunpack.c.l.b16 %v789
    %v1142 = vunpack.c.l.b16 %v790
    %v1143 = vunpack.c.l.b16 %v791
    %v1144 = vunpack.c.l.b16 %v792
    %v1145 = vunpack.c.l.b16 %v793
    %v1146 = vunpack.c.l.b16 %v794
    %v1147 = vunpack.c.l.b16 %v795
    %v1148 = vunpack.c.l.b16 %v796
    %v1149 = vunpack.c.l.b16 %v797
    %v1150 = vunpack.c.l.b16 %v798
    %v1151 = vunpack.c.l.b16 %v799
    %v1152 = vunpack.c.l.b16 %v800
    %v1153 = vunpack.c.l.b16 %v801
    %v1154 = vunpack.c.l.b16 %v802
    %v1155 = vunpack.c.l.b16 %v803
    %v1156 = vpack.c.b16 %v1125, %v1124
    %v1157 = vpack.c.b16 %v1127, %v1126
    %v1158 = vpack.c.b16 %v1129, %v1128
    %v1159 = vpack.c.b16 %v1131, %v1130
    %v1160 = vpack.c.b16 %v1133, %v1132
    %v1161 = vpack.c.b16 %v1135, %v1134
    %v1162 = vpack.c.b16 %v1137, %v1136
    %v1163 = vpack.c.b16 %v1139, %v1138
    %v1164 = vpack.c.b16 %v1141, %v1140
    %v1165 = vpack.c.b16 %v1143, %v1142
    %v1166 = vpack.c.b16 %v1145, %v1144
    %v1167 = vpack.c.b16 %v1147, %v1146
    %v1168 = vpack.c.b16 %v1149, %v1148
    %v1169 = vpack.c.b16 %v1151, %v1150
    %v1170 = vpack.c.b16 %v1153, %v1152
    %v1171 = vpack.c.b16 %v1155, %v1154
    %v1220 = vunpack.c.l.b16 %v868
    %v1221 = vunpack.c.l.b16 %v869
    %v1222 = vunpack.c.l.b16 %v870
    %v1223 = vunpack.c.l.b16 %v871
    %v1224 = vunpack.c.l.b16 %v872
    %v1225 = vunpack.c.l.b16 %v873
    %v1226 = vunpack.c.l.b16 %v874
    %v1227 = vunpack.c.l.b16 %v875
    %v1228 = vunpack.c.l.b16 %v876
    %v1229 = vunpack.c.l.b16 %v877
    %v1230 = vunpack.c.l.b16 %v878
    %v1231 = vunpack.c.l.b16 %v879
    %v1232 = vunpack.c.l.b16 %v880
    %v1233 = vunpack.c.l.b16 %v881
    %v1234 = vunpack.c.l.b16 %v882
    %v1235 = vunpack.c.l.b16 %v883
    %v1236 = vunpack.c.l.b16 %v884
    %v1237 = vunpack.c.l.b16 %v885
    %v1238 = vunpack.c.l.b16 %v886
    %v1239 = vunpack.c.l.b16 %v887
    %v1240 = vunpack.c.l.b16 %v888
    %v1241 = vunpack.c.l.b16 %v889
    %v1242 = vunpack.c.l.b16 %v890
    %v1243 = vunpack.c.l.b16 %v891
    %v1244 = vunpack.c.l.b16 %v892
    %v1245 = vunpack.c.l.b16 %v893
    %v1246 = vunpack.c.l.b16 %v894
    %v1247 = vunpack.c.l.b16 %v895
    %v1248 = vunpack.c.l.b16 %v896
    %v1249 = vunpack.c.l.b16 %v897
    %v1250 = vunpack.c.l.b16 %v898
    %v1251 = vunpack.c.l.b16 %v899
    %v1252 = vpack.c.b16 %v1221, %v1220
    %v1253 = vpack.c.b16 %v1223, %v1222
    %v1254 = vpack.c.b16 %v1225, %v1224
    %v1255 = vpack.c.b16 %v1227, %v1226
    %v1256 = vpack.c.b16 %v1229, %v1228
    %v1257 = vpack.c.b16 %v1231, %v1230
    %v1258 = vpack.c.b16 %v1233, %v1232
    %v1259 = vpack.c.b16 %v1235, %v1234
    %v1260 = vpack.c.b16 %v1237, %v1236
    %v1261 = vpack.c.b16 %v1239, %v1238
    %v1262 = vpack.c.b16 %v1241, %v1240
    %v1263 = vpack.c.b16 %v1243, %v1242
    %v1264 = vpack.c.b16 %v1245, %v1244
    %v1265 = vpack.c.b16 %v1247, %v1246
    %v1266 = vpack.c.b16 %v1249, %v1248
    %v1267 = vpack.c.b16 %v1251, %v1250
    %v1316 = vunpack.c.l.b16 %v964
    %v1317 = vunpack.c.l.b16 %v965
    %v1318 = vunpack.c.l.b16 %v966
    %v1319 = vunpack.c.l.b16 %v967
    %v1320 = vunpack.c.l.b16 %v968
    %v1321 = vunpack.c.l.b16 %v969
    %v1322 = vunpack.c.l.b16 %v970
    %v1323 = vunpack.c.l.b16 %v971
    %v1324 = vunpack.c.l.b16 %v972
    %v1325 = vunpack.c.l.b16 %v973
    %v1326 = vunpack.c.l.b16 %v974
    %v1327 = vunpack.c.l.b16 %v975
    %v1328 = vunpack.c.l.b16 %v976
    %v1329 = vunpack.c.l.b16 %v977
    %v1330 = vunpack.c.l.b16 %v978
    %v1331 = vunpack.c.l.b16 %v979
    %v1332 = vunpack.c.l.b16 %v980
    %v1333 = vunpack.c.l.b16 %v981
    %v1334 = vunpack.c.l.b16 %v982
    %v1335 = vunpack.c.l.b16 %v983
    %v1336 = vunpack.c.l.b16 %v984
    %v1337 = vunpack.c.l.b16 %v985
    %v1338 = vunpack.c.l.b16 %v986
    %v1339 = vunpack.c.l.b16 %v987
    %v1340 = vunpack.c.l.b16 %v988
    %v1341 = vunpack.c.l.b16 %v989
    %v1342 = vunpack.c.l.b16 %v990
    %v1343 = vunpack.c.l.b16 %v991
    %v1344 = vunpack.c.l.b16 %v992
    %v1345 = vunpack.c.l.b16 %v993
    %v1346 = vunpack.c.l.b16 %v994
    %v1347 = vunpack.c.l.b16 %v995
    %v1348 = vpack.c.b16 %v1317, %v1316
    %v1349 = vpack.c.b16 %v1319, %v1318
    %v1350 = vpack.c.b16 %v1321, %v1320
    %v1351 = vpack.c.b16 %v1323, %v1322
    %v1352 = vpack.c.b16 %v1325, %v1324
    %v1353 = vpack.c.b16 %v1327, %v1326
    %v1354 = vpack.c.b16 %v1329, %v1328
    %v1355 = vpack.c.b16 %v1331, %v1330
    %v1356 = vpack.c.b16 %v1333, %v1332
    %v1357 = vpack.c.b16 %v1335, %v1334
    %v1358 = vpack.c.b16 %v1337, %v1336
    %v1359 = vpack.c.b16 %v1339, %v1338
    %v1360 = vpack.c.b16 %v1341, %v1340
    %v1361 = vpack.c.b16 %v1343, %v1342
    %v1362 = vpack.c.b16 %v1345, %v1344
    %v1363 = vpack.c.b16 %v1347, %v1346
    %s1380 = smul.u32 %s30, 16
    %s1381 = smul.addr %s1380, 4
    %s1382 = scalar_lea.vmem %s3, %s1381
    %v1383 = vld [vmem:[%s1382] sm:$0xff]
    %v1384 = vld [vmem:[%s1382 + $0x8] sm:$0xff]
    %v1385 = vld [vmem:[%s1382 + $0x10] sm:$0xff]
    %v1386 = vld [vmem:[%s1382 + $0x18] sm:$0xff]
    %v1387 = vld [vmem:[%s1382 + $0x20] sm:$0xff]
    %v1388 = vld [vmem:[%s1382 + $0x28] sm:$0xff]
    %v1389 = vld [vmem:[%s1382 + $0x30] sm:$0xff]
    %v1390 = vld [vmem:[%s1382 + $0x38] sm:$0xff]
    %s1391 = smul.u32 %s30, 64
    %s1392 = scalar_lea.vmem %s4, %s1391
    %v1393 = vld [vmem:[%s1392] sm:$0xff]
    %v1394 = vld [vmem:[%s1392 + $0x8] sm:$0xff]
    %v1395 = vld [vmem:[%s1392 + $0x10] sm:$0xff]
    %v1396 = vld [vmem:[%s1392 + $0x18] sm:$0xff]
    %v1397 = vld [vmem:[%s1392 + $0x20] sm:$0xff]
    %v1398 = vld [vmem:[%s1392 + $0x28] sm:$0xff]
    %v1399 = vld [vmem:[%s1392 + $0x30] sm:$0xff]
    %v1400 = vld [vmem:[%s1392 + $0x38] sm:$0xff]
    %1402 = vset.pattern.permute.xlu0 0
    %1403 = vperm.xlu0 %1402, %v1393
    %v1404 = vpop.permute.xlu0 %1403
    %1407 = vset.pattern.permute.xlu0 0
    %1408 = vperm.xlu0 %1407, %v1394
    %v1409 = vpop.permute.xlu0 %1408
    %1412 = vset.pattern.permute.xlu0 0
    %1413 = vperm.xlu0 %1412, %v1395
    %v1414 = vpop.permute.xlu0 %1413
    %1417 = vset.pattern.permute.xlu0 0
    %1418 = vperm.xlu0 %1417, %v1396
    %v1419 = vpop.permute.xlu0 %1418
    %1422 = vset.pattern.permute.xlu0 0
    %1423 = vperm.xlu0 %1422, %v1397
    %v1424 = vpop.permute.xlu0 %1423
    %1427 = vset.pattern.permute.xlu0 0
    %1428 = vperm.xlu0 %1427, %v1398
    %v1429 = vpop.permute.xlu0 %1428
    %1432 = vset.pattern.permute.xlu0 0
    %1433 = vperm.xlu0 %1432, %v1399
    %v1434 = vpop.permute.xlu0 %1433
    %1437 = vset.pattern.permute.xlu0 0
    %1438 = vperm.xlu0 %1437, %v1400
    %v1439 = vpop.permute.xlu0 %1438
    %v1449 = vunpack.c.l.b16 %v1383
    %v1450 = vunpack.c.h.b16 %v1383
    %v1451 = vunpack.c.l.b16 %v1384
    %v1452 = vunpack.c.h.b16 %v1384
    %v1453 = vunpack.c.l.b16 %v1385
    %v1454 = vunpack.c.h.b16 %v1385
    %v1455 = vunpack.c.l.b16 %v1386
    %v1456 = vunpack.c.h.b16 %v1386
    %v1457 = vunpack.c.l.b16 %v1387
    %v1458 = vunpack.c.h.b16 %v1387
    %v1459 = vunpack.c.l.b16 %v1388
    %v1460 = vunpack.c.h.b16 %v1388
    %v1461 = vunpack.c.l.b16 %v1389
    %v1462 = vunpack.c.h.b16 %v1389
    %v1463 = vunpack.c.l.b16 %v1390
    %v1464 = vunpack.c.h.b16 %v1390
    %v1465 = vpack.c.b16 %v1451, %v1449
    %v1466 = vpack.c.b16 %v1452, %v1450
    %v1467 = vpack.c.b16 %v1455, %v1453
    %v1468 = vpack.c.b16 %v1456, %v1454
    %v1469 = vpack.c.b16 %v1459, %v1457
    %v1470 = vpack.c.b16 %v1460, %v1458
    %v1471 = vpack.c.b16 %v1463, %v1461
    %v1472 = vpack.c.b16 %v1464, %v1462
    %1481 = vmatpush.bf16.msra.mxu0 %v1067
    %1482 = vmatpush.bf16.msra.mxu0 %v1066
    %1483 = vmatpush.bf16.msra.mxu0 %v1065
    %1484 = vmatpush.bf16.msra.mxu0 %v1064
    %1485 = vmatpush.bf16.msra.mxu0 %v1063
    %1486 = vmatpush.bf16.msra.mxu0 %v1062
    %1487 = vmatpush.bf16.msra.mxu0 %v1061
    %1488 = vmatpush.bf16.msra.mxu0 %v1060
    %1489 = vmatmul.bf16.gmra.mxu0 %v1465
    %v1490 = vpop.f32.mrf.mxu0
    %v1491 = vadd.f32 %v1404, %v1490
    %v1492 = vpop.f32.mrf.mxu0
    %v1493 = vadd.f32 %v1409, %v1492
    %1494 = vmatmul.bf16.gmra.mxu0 %v1467
    %v1495 = vpop.f32.mrf.mxu0
    %v1496 = vadd.f32 %v1414, %v1495
    %v1497 = vpop.f32.mrf.mxu0
    %v1498 = vadd.f32 %v1419, %v1497
    %1499 = vmatmul.bf16.gmra.mxu0 %v1469
    %v1500 = vpop.f32.mrf.mxu0
    %v1501 = vadd.f32 %v1424, %v1500
    %v1502 = vpop.f32.mrf.mxu0
    %v1503 = vadd.f32 %v1429, %v1502
    %1504 = vmatmul.bf16.gmra.mxu0 %v1471
    %v1505 = vpop.f32.mrf.mxu0
    %v1506 = vadd.f32 %v1434, %v1505
    %v1507 = vpop.f32.mrf.mxu0
    %v1508 = vadd.f32 %v1439, %v1507
    %1509 = vdwg.mxu0
    %1510 = vmatpush.bf16.msra.mxu0 %v1075
    %1511 = vmatpush.bf16.msra.mxu0 %v1074
    %1512 = vmatpush.bf16.msra.mxu0 %v1073
    %1513 = vmatpush.bf16.msra.mxu0 %v1072
    %1514 = vmatpush.bf16.msra.mxu0 %v1071
    %1515 = vmatpush.bf16.msra.mxu0 %v1070
    %1516 = vmatpush.bf16.msra.mxu0 %v1069
    %1517 = vmatpush.bf16.msra.mxu0 %v1068
    %1518 = vmatmul.bf16.gmra.mxu0 %v1466
    %v1519 = vpop.f32.mrf.mxu0
    %v1520 = vadd.f32 %v1491, %v1519
    %v1521 = vpop.f32.mrf.mxu0
    %v1522 = vadd.f32 %v1493, %v1521
    %1523 = vmatmul.bf16.gmra.mxu0 %v1468
    %v1524 = vpop.f32.mrf.mxu0
    %v1525 = vadd.f32 %v1496, %v1524
    %v1526 = vpop.f32.mrf.mxu0
    %v1527 = vadd.f32 %v1498, %v1526
    %1528 = vmatmul.bf16.gmra.mxu0 %v1470
    %v1529 = vpop.f32.mrf.mxu0
    %v1530 = vadd.f32 %v1501, %v1529
    %v1531 = vpop.f32.mrf.mxu0
    %v1532 = vadd.f32 %v1503, %v1531
    %1533 = vmatmul.bf16.gmra.mxu0 %v1472
    %v1534 = vpop.f32.mrf.mxu0
    %v1535 = vadd.f32 %v1506, %v1534
    %v1536 = vpop.f32.mrf.mxu0
    %v1537 = vadd.f32 %v1508, %v1536
    %1538 = vdwg.mxu0
    %1539 = vmatpush.bf16.msra.mxu0 %v1163
    %1540 = vmatpush.bf16.msra.mxu0 %v1162
    %1541 = vmatpush.bf16.msra.mxu0 %v1161
    %1542 = vmatpush.bf16.msra.mxu0 %v1160
    %1543 = vmatpush.bf16.msra.mxu0 %v1159
    %1544 = vmatpush.bf16.msra.mxu0 %v1158
    %1545 = vmatpush.bf16.msra.mxu0 %v1157
    %1546 = vmatpush.bf16.msra.mxu0 %v1156
    %1547 = vmatmul.bf16.gmra.mxu0 %v1465
    %v1548 = vpop.f32.mrf.mxu0
    %v1549 = vadd.f32 %v1404, %v1548
    %v1550 = vpop.f32.mrf.mxu0
    %v1551 = vadd.f32 %v1409, %v1550
    %1552 = vmatmul.bf16.gmra.mxu0 %v1467
    %v1553 = vpop.f32.mrf.mxu0
    %v1554 = vadd.f32 %v1414, %v1553
    %v1555 = vpop.f32.mrf.mxu0
    %v1556 = vadd.f32 %v1419, %v1555
    %1557 = vmatmul.bf16.gmra.mxu0 %v1469
    %v1558 = vpop.f32.mrf.mxu0
    %v1559 = vadd.f32 %v1424, %v1558
    %v1560 = vpop.f32.mrf.mxu0
    %v1561 = vadd.f32 %v1429, %v1560
    %1562 = vmatmul.bf16.gmra.mxu0 %v1471
    %v1563 = vpop.f32.mrf.mxu0
    %v1564 = vadd.f32 %v1434, %v1563
    %v1565 = vpop.f32.mrf.mxu0
    %v1566 = vadd.f32 %v1439, %v1565
    %1567 = vdwg.mxu0
    %1568 = vmatpush.bf16.msra.mxu0 %v1171
    %1569 = vmatpush.bf16.msra.mxu0 %v1170
    %1570 = vmatpush.bf16.msra.mxu0 %v1169
    %1571 = vmatpush.bf16.msra.mxu0 %v1168
    %1572 = vmatpush.bf16.msra.mxu0 %v1167
    %1573 = vmatpush.bf16.msra.mxu0 %v1166
    %1574 = vmatpush.bf16.msra.mxu0 %v1165
    %1575 = vmatpush.bf16.msra.mxu0 %v1164
    %1576 = vmatmul.bf16.gmra.mxu0 %v1466
    %v1577 = vpop.f32.mrf.mxu0
    %v1578 = vadd.f32 %v1549, %v1577
    %v1579 = vpop.f32.mrf.mxu0
    %v1580 = vadd.f32 %v1551, %v1579
    %1581 = vmatmul.bf16.gmra.mxu0 %v1468
    %v1582 = vpop.f32.mrf.mxu0
    %v1583 = vadd.f32 %v1554, %v1582
    %v1584 = vpop.f32.mrf.mxu0
    %v1585 = vadd.f32 %v1556, %v1584
    %1586 = vmatmul.bf16.gmra.mxu0 %v1470
    %v1587 = vpop.f32.mrf.mxu0
    %v1588 = vadd.f32 %v1559, %v1587
    %v1589 = vpop.f32.mrf.mxu0
    %v1590 = vadd.f32 %v1561, %v1589
    %1591 = vmatmul.bf16.gmra.mxu0 %v1472
    %v1592 = vpop.f32.mrf.mxu0
    %v1593 = vadd.f32 %v1564, %v1592
    %v1594 = vpop.f32.mrf.mxu0
    %v1595 = vadd.f32 %v1566, %v1594
    %1596 = vdwg.mxu0
    %1597 = vmatpush.bf16.msra.mxu0 %v1259
    %1598 = vmatpush.bf16.msra.mxu0 %v1258
    %1599 = vmatpush.bf16.msra.mxu0 %v1257
    %1600 = vmatpush.bf16.msra.mxu0 %v1256
    %1601 = vmatpush.bf16.msra.mxu0 %v1255
    %1602 = vmatpush.bf16.msra.mxu0 %v1254
    %1603 = vmatpush.bf16.msra.mxu0 %v1253
    %1604 = vmatpush.bf16.msra.mxu0 %v1252
    %1605 = vmatmul.bf16.gmra.mxu0 %v1465
    %v1606 = vpop.f32.mrf.mxu0
    %v1607 = vadd.f32 %v1404, %v1606
    %v1608 = vpop.f32.mrf.mxu0
    %v1609 = vadd.f32 %v1409, %v1608
    %1610 = vmatmul.bf16.gmra.mxu0 %v1467
    %v1611 = vpop.f32.mrf.mxu0
    %v1612 = vadd.f32 %v1414, %v1611
    %v1613 = vpop.f32.mrf.mxu0
    %v1614 = vadd.f32 %v1419, %v1613
    %1615 = vmatmul.bf16.gmra.mxu0 %v1469
    %v1616 = vpop.f32.mrf.mxu0
    %v1617 = vadd.f32 %v1424, %v1616
    %v1618 = vpop.f32.mrf.mxu0
    %v1619 = vadd.f32 %v1429, %v1618
    %1620 = vmatmul.bf16.gmra.mxu0 %v1471
    %v1621 = vpop.f32.mrf.mxu0
    %v1622 = vadd.f32 %v1434, %v1621
    %v1623 = vpop.f32.mrf.mxu0
    %v1624 = vadd.f32 %v1439, %v1623
    %1625 = vdwg.mxu0
    %1626 = vmatpush.bf16.msra.mxu0 %v1267
    %1627 = vmatpush.bf16.msra.mxu0 %v1266
    %1628 = vmatpush.bf16.msra.mxu0 %v1265
    %1629 = vmatpush.bf16.msra.mxu0 %v1264
    %1630 = vmatpush.bf16.msra.mxu0 %v1263
    %1631 = vmatpush.bf16.msra.mxu0 %v1262
    %1632 = vmatpush.bf16.msra.mxu0 %v1261
    %1633 = vmatpush.bf16.msra.mxu0 %v1260
    %1634 = vmatmul.bf16.gmra.mxu0 %v1466
    %v1635 = vpop.f32.mrf.mxu0
    %v1636 = vadd.f32 %v1607, %v1635
    %v1637 = vpop.f32.mrf.mxu0
    %v1638 = vadd.f32 %v1609, %v1637
    %1639 = vmatmul.bf16.gmra.mxu0 %v1468
    %v1640 = vpop.f32.mrf.mxu0
    %v1641 = vadd.f32 %v1612, %v1640
    %v1642 = vpop.f32.mrf.mxu0
    %v1643 = vadd.f32 %v1614, %v1642
    %1644 = vmatmul.bf16.gmra.mxu0 %v1470
    %v1645 = vpop.f32.mrf.mxu0
    %v1646 = vadd.f32 %v1617, %v1645
    %v1647 = vpop.f32.mrf.mxu0
    %v1648 = vadd.f32 %v1619, %v1647
    %1649 = vmatmul.bf16.gmra.mxu0 %v1472
    %v1650 = vpop.f32.mrf.mxu0
    %v1651 = vadd.f32 %v1622, %v1650
    %v1652 = vpop.f32.mrf.mxu0
    %v1653 = vadd.f32 %v1624, %v1652
    %1654 = vdwg.mxu0
    %1655 = vmatpush.bf16.msra.mxu0 %v1355
    %1656 = vmatpush.bf16.msra.mxu0 %v1354
    %1657 = vmatpush.bf16.msra.mxu0 %v1353
    %1658 = vmatpush.bf16.msra.mxu0 %v1352
    %1659 = vmatpush.bf16.msra.mxu0 %v1351
    %1660 = vmatpush.bf16.msra.mxu0 %v1350
    %1661 = vmatpush.bf16.msra.mxu0 %v1349
    %1662 = vmatpush.bf16.msra.mxu0 %v1348
    %1663 = vmatmul.bf16.gmra.mxu0 %v1465
    %v1664 = vpop.f32.mrf.mxu0
    %v1665 = vadd.f32 %v1404, %v1664
    %v1666 = vpop.f32.mrf.mxu0
    %v1667 = vadd.f32 %v1409, %v1666
    %1668 = vmatmul.bf16.gmra.mxu0 %v1467
    %v1669 = vpop.f32.mrf.mxu0
    %v1670 = vadd.f32 %v1414, %v1669
    %v1671 = vpop.f32.mrf.mxu0
    %v1672 = vadd.f32 %v1419, %v1671
    %1673 = vmatmul.bf16.gmra.mxu0 %v1469
    %v1674 = vpop.f32.mrf.mxu0
    %v1675 = vadd.f32 %v1424, %v1674
    %v1676 = vpop.f32.mrf.mxu0
    %v1677 = vadd.f32 %v1429, %v1676
    %1678 = vmatmul.bf16.gmra.mxu0 %v1471
    %v1679 = vpop.f32.mrf.mxu0
    %v1680 = vadd.f32 %v1434, %v1679
    %v1681 = vpop.f32.mrf.mxu0
    %v1682 = vadd.f32 %v1439, %v1681
    %1683 = vdwg.mxu0
    %1684 = vmatpush.bf16.msra.mxu0 %v1363
    %1685 = vmatpush.bf16.msra.mxu0 %v1362
    %1686 = vmatpush.bf16.msra.mxu0 %v1361
    %1687 = vmatpush.bf16.msra.mxu0 %v1360
    %1688 = vmatpush.bf16.msra.mxu0 %v1359
    %1689 = vmatpush.bf16.msra.mxu0 %v1358
    %1690 = vmatpush.bf16.msra.mxu0 %v1357
    %1691 = vmatpush.bf16.msra.mxu0 %v1356
    %1692 = vmatmul.bf16.gmra.mxu0 %v1466
    %v1693 = vpop.f32.mrf.mxu0
    %v1694 = vadd.f32 %v1665, %v1693
    %v1695 = vpop.f32.mrf.mxu0
    %v1696 = vadd.f32 %v1667, %v1695
    %1697 = vmatmul.bf16.gmra.mxu0 %v1468
    %v1698 = vpop.f32.mrf.mxu0
    %v1699 = vadd.f32 %v1670, %v1698
    %v1700 = vpop.f32.mrf.mxu0
    %v1701 = vadd.f32 %v1672, %v1700
    %1702 = vmatmul.bf16.gmra.mxu0 %v1470
    %v1703 = vpop.f32.mrf.mxu0
    %v1704 = vadd.f32 %v1675, %v1703
    %v1705 = vpop.f32.mrf.mxu0
    %v1706 = vadd.f32 %v1677, %v1705
    %1707 = vmatmul.bf16.gmra.mxu0 %v1472
    %v1708 = vpop.f32.mrf.mxu0
    %v1709 = vadd.f32 %v1680, %v1708
    %v1710 = vpop.f32.mrf.mxu0
    %v1711 = vadd.f32 %v1682, %v1710
    %1712 = vdwg.mxu0
    %v1713 = vmax.f32 %v1520, 0.0
    %v1714 = vmax.f32 %v1578, 0.0
    %v1715 = vmax.f32 %v1636, 0.0
    %v1716 = vmax.f32 %v1694, 0.0
    %v1717 = vmax.f32 %v1522, 0.0
    %v1718 = vmax.f32 %v1580, 0.0
    %v1719 = vmax.f32 %v1638, 0.0
    %v1720 = vmax.f32 %v1696, 0.0
    %v1721 = vmax.f32 %v1525, 0.0
    %v1722 = vmax.f32 %v1583, 0.0
    %v1723 = vmax.f32 %v1641, 0.0
    %v1724 = vmax.f32 %v1699, 0.0
    %v1725 = vmax.f32 %v1527, 0.0
    %v1726 = vmax.f32 %v1585, 0.0
    %v1727 = vmax.f32 %v1643, 0.0
    %v1728 = vmax.f32 %v1701, 0.0
    %v1729 = vmax.f32 %v1530, 0.0
    %v1730 = vmax.f32 %v1588, 0.0
    %v1731 = vmax.f32 %v1646, 0.0
    %v1732 = vmax.f32 %v1704, 0.0
    %v1733 = vmax.f32 %v1532, 0.0
    %v1734 = vmax.f32 %v1590, 0.0
    %v1735 = vmax.f32 %v1648, 0.0
    %v1736 = vmax.f32 %v1706, 0.0
    %v1737 = vmax.f32 %v1535, 0.0
    %v1738 = vmax.f32 %v1593, 0.0
    %v1739 = vmax.f32 %v1651, 0.0
    %v1740 = vmax.f32 %v1709, 0.0
    %v1741 = vmax.f32 %v1537, 0.0
    %v1742 = vmax.f32 %v1595, 0.0
    %v1743 = vmax.f32 %v1653, 0.0
    %v1744 = vmax.f32 %v1711, 0.0
    %v1745 = vpack.c.bf16 %v1717, %v1713
    %v1746 = vpack.c.bf16 %v1718, %v1714
    %v1747 = vpack.c.bf16 %v1719, %v1715
    %v1748 = vpack.c.bf16 %v1720, %v1716
    %v1749 = vpack.c.bf16 %v1725, %v1721
    %v1750 = vpack.c.bf16 %v1726, %v1722
    %v1751 = vpack.c.bf16 %v1727, %v1723
    %v1752 = vpack.c.bf16 %v1728, %v1724
    %v1753 = vpack.c.bf16 %v1733, %v1729
    %v1754 = vpack.c.bf16 %v1734, %v1730
    %v1755 = vpack.c.bf16 %v1735, %v1731
    %v1756 = vpack.c.bf16 %v1736, %v1732
    %v1757 = vpack.c.bf16 %v1741, %v1737
    %v1758 = vpack.c.bf16 %v1742, %v1738
    %v1759 = vpack.c.bf16 %v1743, %v1739
    %v1760 = vpack.c.bf16 %v1744, %v1740
    %s1761 = smul.addr %s30, 4
    %s1762 = scalar_lea.vmem %s5, %s1761
    %v1763 = vld [vmem:[%s1762] sm:$0xf]
    %s1764 = smul.u32 %s30, 8
    %s1765 = scalar_lea.vmem %s6, %s1764
    %v1766 = vld [vmem:[%s1765] sm:$0xff]
    %1768 = vset.pattern.permute.xlu0 0
    %1769 = vperm.xlu0 %1768, %v1766
    %v1770 = vpop.permute.xlu0 %1769
    %vm1772 = vcmask 523264
    %v1774 = vsel %vm1772, %v1763, 0
    %1776 = vmatpush.bf16.msra.mxu0 0
    %1777 = vmatpush.bf16.msra.mxu0 0
    %1778 = vmatpush.bf16.msra.mxu0 0
    %1779 = vmatpush.bf16.msra.mxu0 0
    %1780 = vmatpush.bf16.msra.mxu0 %v1757
    %1781 = vmatpush.bf16.msra.mxu0 %v1753
    %1782 = vmatpush.bf16.msra.mxu0 %v1749
    %1783 = vmatpush.bf16.msra.mxu0 %v1745
    %1784 = vmatmul.bf16.gmra.mxu0 %v1774
    %v1785 = vpop.f32.mrf.mxu0
    %v1786 = vadd.f32 %v1770, %v1785
    %v1787 = vpop.f32.mrf.mxu0
    %1788 = vdwg.mxu0
    %1789 = vmatpush.bf16.msra.mxu0 0
    %1790 = vmatpush.bf16.msra.mxu0 0
    %1791 = vmatpush.bf16.msra.mxu0 0
    %1792 = vmatpush.bf16.msra.mxu0 0
    %1793 = vmatpush.bf16.msra.mxu0 %v1758
    %1794 = vmatpush.bf16.msra.mxu0 %v1754
    %1795 = vmatpush.bf16.msra.mxu0 %v1750
    %1796 = vmatpush.bf16.msra.mxu0 %v1746
    %1797 = vmatmul.bf16.gmra.mxu0 %v1774
    %v1798 = vpop.f32.mrf.mxu0
    %v1799 = vadd.f32 %v1770, %v1798
    %v1800 = vpop.f32.mrf.mxu0
    %1801 = vdwg.mxu0
    %1802 = vmatpush.bf16.msra.mxu0 0
    %1803 = vmatpush.bf16.msra.mxu0 0
    %1804 = vmatpush.bf16.msra.mxu0 0
    %1805 = vmatpush.bf16.msra.mxu0 0
    %1806 = vmatpush.bf16.msra.mxu0 %v1759
    %1807 = vmatpush.bf16.msra.mxu0 %v1755
    %1808 = vmatpush.bf16.msra.mxu0 %v1751
    %1809 = vmatpush.bf16.msra.mxu0 %v1747
    %1810 = vmatmul.bf16.gmra.mxu0 %v1774
    %v1811 = vpop.f32.mrf.mxu0
    %v1812 = vadd.f32 %v1770, %v1811
    %v1813 = vpop.f32.mrf.mxu0
    %1814 = vdwg.mxu0
    %1815 = vmatpush.bf16.msra.mxu0 0
    %1816 = vmatpush.bf16.msra.mxu0 0
    %1817 = vmatpush.bf16.msra.mxu0 0
    %1818 = vmatpush.bf16.msra.mxu0 0
    %1819 = vmatpush.bf16.msra.mxu0 %v1760
    %1820 = vmatpush.bf16.msra.mxu0 %v1756
    %1821 = vmatpush.bf16.msra.mxu0 %v1752
    %1822 = vmatpush.bf16.msra.mxu0 %v1748
    %1823 = vmatmul.bf16.gmra.mxu0 %v1774
    %v1824 = vpop.f32.mrf.mxu0
    %v1825 = vadd.f32 %v1770, %v1824
    %v1826 = vpop.f32.mrf.mxu0
    %1827 = vdwg.mxu0
    %v1828 = vmax.f32 %v1786, 0.0
    %v1829 = vmax.f32 %v1799, 0.0
    %v1830 = vmax.f32 %v1812, 0.0
    %v1831 = vmax.f32 %v1825, 0.0
    %s1832 = smul.u32 %s30, 4
    %s1833 = smul.addr %s1832, 8
    %s1834 = scalar_lea.vmem %s7, %s1833
    %1835 = vst [vmem:[%s1834] sm:$0xff] %v1828
    %1836 = vst [vmem:[%s1834 + $0x8] sm:$0xff] %v1829
    %1837 = vst [vmem:[%s1834 + $0x10] sm:$0xff] %v1830
    %1838 = vst [vmem:[%s1834 + $0x18] sm:$0xff] %v1831
  $region34: #{topnet_decoder_forward.13} parent=0 // loop_footer
    %s34 = sadd.s32 1, %s30
  $region35: #{topnet_decoder_forward.13} parent=0 // loop_footer_branch
    %29 = sbr.rel target = $region31
  $region36: #{topnet_decoder_forward.13} parent=0 // loop_exit
    _
  // Predicated region
  $region37: #{topnet_decoder_forward.13} parent=0 // pred_check
    _
  $region38: #{topnet_decoder_forward.13} parent=0 // pred_check_branch
    %1840 = sbr.rel (0) target = $region40
  $region39: #{topnet_decoder_forward.13} parent=0 // pred_region
    _
  $region40: #{topnet_decoder_forward.13} parent=0 // pred_fallthru
    _
  // Predicated region
  $region41: #{topnet_decoder_forward.13} parent=0 // pred_check
    _
  $region42: #{topnet_decoder_forward.13} parent=0 // pred_check_branch
    %1842 = sbr.rel (0) target = $region44
  $region43: #{topnet_decoder_forward.13} parent=0 // pred_region
    _
  $region44: #{topnet_decoder_forward.13} parent=0 // pred_fallthru
    _

// kernel: topnet_decoder_forward.15
$region0: #{topnet_decoder_forward.15}
  #allocation0 [shape = 'u32[]', space=smem, size = 0x4, offset = 0x4, fixed_abs, tag = 'smem constant byte address 0x4 - core index']
  #allocation1 [shape = 'u32[72,128]{1,0:T(1,128)}', space=vmem, size = 0x9000, scoped, tag = 'internal scratch']
  %s0 = inlined_call_operand.vmem [shape: bf16[1,1,8,1024], index: 0, kind: input, shape index: {}]
  %s1 = inlined_call_operand.vmem [shape: bf16[2,256,8], index: 1, kind: input, shape index: {}]
  %s2 = inlined_call_operand.vmem [shape: f32[2,256,128], index: 2, kind: input, shape index: {}]
  %s3 = inlined_call_operand.vmem [shape: bf16[2,64,256], index: 3, kind: input, shape index: {}]
  %s4 = inlined_call_operand.vmem [shape: f32[2,64,1], index: 4, kind: input, shape index: {}]
  %s5 = inlined_call_operand.vmem [shape: bf16[2,3,64], index: 5, kind: input, shape index: {}]
  %s6 = inlined_call_operand.vmem [shape: f32[2,3,1], index: 6, kind: input, shape index: {}]
  %s7 = inlined_call_operand.vmem [shape: f32[1,1,2,3,1024], index: 7, kind: output, shape index: {}]
  %s8 = sld [smem:[#allocation0]]
  $region45: #{topnet_decoder_forward.15} parent=0
    _
  %s10 = ssub.s32 1, %s8
  %s11 = scalar_select 0, %s10, %s8
  // Predicated region
  $region2: #{topnet_decoder_forward.15} parent=0 // pred_check
    _
  $region3: #{topnet_decoder_forward.15} parent=0 // pred_check_branch
    %13 = sbr.rel (0) target = $region5
  $region4: #{topnet_decoder_forward.15} parent=0 // pred_region
    _
  $region5: #{topnet_decoder_forward.15} parent=0 // pred_fallthru
    _
  // Predicated region
  $region6: #{topnet_decoder_forward.15} parent=0 // pred_check
    _
  $region7: #{topnet_decoder_forward.15} parent=0 // pred_check_branch
    %15 = sbr.rel (0) target = $region9
  $region8: #{topnet_decoder_forward.15} parent=0 // pred_region
    _
  $region9: #{topnet_decoder_forward.15} parent=0 // pred_fallthru
    _
  // Predicated region
  $region10: #{topnet_decoder_forward.15} parent=0 // pred_check
    _
  $region11: #{topnet_decoder_forward.15} parent=0 // pred_check_branch
    %17 = sbr.rel (0) target = $region13
  $region12: #{topnet_decoder_forward.15} parent=0 // pred_region
    _
  $region13: #{topnet_decoder_forward.15} parent=0 // pred_fallthru
    _
  // Predicated region
  $region14: #{topnet_decoder_forward.15} parent=0 // pred_check
    _
  $region15: #{topnet_decoder_forward.15} parent=0 // pred_check_branch
    %19 = sbr.rel (0) target = $region17
  $region16: #{topnet_decoder_forward.15} parent=0 // pred_region
    _
  $region17: #{topnet_decoder_forward.15} parent=0 // pred_fallthru
    _
  // Predicated region
  $region18: #{topnet_decoder_forward.15} parent=0 // pred_check
    _
  $region19: #{topnet_decoder_forward.15} parent=0 // pred_check_branch
    %21 = sbr.rel (0) target = $region21
  $region20: #{topnet_decoder_forward.15} parent=0 // pred_region
    _
  $region21: #{topnet_decoder_forward.15} parent=0 // pred_fallthru
    _
  // Predicated region
  $region22: #{topnet_decoder_forward.15} parent=0 // pred_check
    _
  $region23: #{topnet_decoder_forward.15} parent=0 // pred_check_branch
    %23 = sbr.rel (0) target = $region25
  $region24: #{topnet_decoder_forward.15} parent=0 // pred_region
    _
  $region25: #{topnet_decoder_forward.15} parent=0 // pred_fallthru
    _
  // Predicated region
  $region26: #{topnet_decoder_forward.15} parent=0 // pred_check
    _
  $region27: #{topnet_decoder_forward.15} parent=0 // pred_check_branch
    %25 = sbr.rel (0) target = $region29
  $region28: #{topnet_decoder_forward.15} parent=0 // pred_region
    _
  $region29: #{topnet_decoder_forward.15} parent=0 // pred_fallthru
    _
  %v27 = vld [vmem:[%s0] sm:$0xff]
  %v28 = vld [vmem:[%s0 + $0x8] sm:$0xff]
  %v29 = vld [vmem:[%s0 + $0x10] sm:$0xff]
  %v30 = vld [vmem:[%s0 + $0x18] sm:$0xff]
  loop: start=0, step=1, limit=2
  $region30: #{topnet_decoder_forward.15} parent=0 // loop_pre_header
    _
  $region31: #{topnet_decoder_forward.15} parent=0 // loop_header
    %s32 = sphi 0, %s36
    %p33 = scmp.ge.s32.totalorder %s32, 2
  $region32: #{topnet_decoder_forward.15} parent=0 // loop_header_branch
    %35 = sbr.rel (%p33) target = $region36
  $region33: #{topnet_decoder_forward.15} parent=0 // loop_body
    %s37 = smul.u32 %s32, 256
    %s38 = scalar_lea.vmem %s2, %s37
    %v39 = vld [vmem:[%s38] sm:$0xff]
    %v40 = vld [vmem:[%s38 + $0x8] sm:$0xff]
    %v41 = vld [vmem:[%s38 + $0x10] sm:$0xff]
    %v42 = vld [vmem:[%s38 + $0x18] sm:$0xff]
    %v43 = vld [vmem:[%s38 + $0x20] sm:$0xff]
    %v44 = vld [vmem:[%s38 + $0x28] sm:$0xff]
    %v45 = vld [vmem:[%s38 + $0x30] sm:$0xff]
    %v46 = vld [vmem:[%s38 + $0x38] sm:$0xff]
    %v47 = vld [vmem:[%s38 + $0x40] sm:$0xff]
    %v48 = vld [vmem:[%s38 + $0x48] sm:$0xff]
    %v49 = vld [vmem:[%s38 + $0x50] sm:$0xff]
    %v50 = vld [vmem:[%s38 + $0x58] sm:$0xff]
    %v51 = vld [vmem:[%s38 + $0x60] sm:$0xff]
    %v52 = vld [vmem:[%s38 + $0x68] sm:$0xff]
    %v53 = vld [vmem:[%s38 + $0x70] sm:$0xff]
    %v54 = vld [vmem:[%s38 + $0x78] sm:$0xff]
    %v55 = vld [vmem:[%s38 + $0x80] sm:$0xff]
    %v56 = vld [vmem:[%s38 + $0x88] sm:$0xff]
    %v57 = vld [vmem:[%s38 + $0x90] sm:$0xff]
    %v58 = vld [vmem:[%s38 + $0x98] sm:$0xff]
    %v59 = vld [vmem:[%s38 + $0xa0] sm:$0xff]
    %v60 = vld [vmem:[%s38 + $0xa8] sm:$0xff]
    %v61 = vld [vmem:[%s38 + $0xb0] sm:$0xff]
    %v62 = vld [vmem:[%s38 + $0xb8] sm:$0xff]
    %v63 = vld [vmem:[%s38 + $0xc0] sm:$0xff]
    %v64 = vld [vmem:[%s38 + $0xc8] sm:$0xff]
    %v65 = vld [vmem:[%s38 + $0xd0] sm:$0xff]
    %v66 = vld [vmem:[%s38 + $0xd8] sm:$0xff]
    %v67 = vld [vmem:[%s38 + $0xe0] sm:$0xff]
    %v68 = vld [vmem:[%s38 + $0xe8] sm:$0xff]
    %v69 = vld [vmem:[%s38 + $0xf0] sm:$0xff]
    %v70 = vld [vmem:[%s38 + $0xf8] sm:$0xff]
    %s71 = smul.u32 %s32, 32
    %s72 = smul.addr %s71, 4
    %s73 = scalar_lea.vmem %s1, %s72
    %v74 = vld [vmem:[%s73] sm:$0xf]
    %v75 = vld [vmem:[%s73 + $0x4] sm:$0xf]
    %v76 = vld [vmem:[%s73 + $0x8] sm:$0xf]
    %v77 = vld [vmem:[%s73 + $0xc] sm:$0xf]
    %v78 = vld [vmem:[%s73 + $0x10] sm:$0xf]
    %v79 = vld [vmem:[%s73 + $0x14] sm:$0xf]
    %v80 = vld [vmem:[%s73 + $0x18] sm:$0xf]
    %v81 = vld [vmem:[%s73 + $0x1c] sm:$0xf]
    %v82 = vld [vmem:[%s73 + $0x20] sm:$0xf]
    %v83 = vld [vmem:[%s73 + $0x24] sm:$0xf]
    %v84 = vld [vmem:[%s73 + $0x28] sm:$0xf]
    %v85 = vld [vmem:[%s73 + $0x2c] sm:$0xf]
    %v86 = vld [vmem:[%s73 + $0x30] sm:$0xf]
    %v87 = vld [vmem:[%s73 + $0x34] sm:$0xf]
    %v88 = vld [vmem:[%s73 + $0x38] sm:$0xf]
    %v89 = vld [vmem:[%s73 + $0x3c] sm:$0xf]
    %v90 = vld [vmem:[%s73 + $0x40] sm:$0xf]
    %v91 = vld [vmem:[%s73 + $0x44] sm:$0xf]
    %v92 = vld [vmem:[%s73 + $0x48] sm:$0xf]
    %v93 = vld [vmem:[%s73 + $0x4c] sm:$0xf]
    %v94 = vld [vmem:[%s73 + $0x50] sm:$0xf]
    %v95 = vld [vmem:[%s73 + $0x54] sm:$0xf]
    %v96 = vld [vmem:[%s73 + $0x58] sm:$0xf]
    %v97 = vld [vmem:[%s73 + $0x5c] sm:$0xf]
    %v98 = vld [vmem:[%s73 + $0x60] sm:$0xf]
    %v99 = vld [vmem:[%s73 + $0x64] sm:$0xf]
    %v100 = vld [vmem:[%s73 + $0x68] sm:$0xf]
    %v101 = vld [vmem:[%s73 + $0x6c] sm:$0xf]
    %v102 = vld [vmem:[%s73 + $0x70] sm:$0xf]
    %v103 = vld [vmem:[%s73 + $0x74] sm:$0xf]
    %v104 = vld [vmem:[%s73 + $0x78] sm:$0xf]
    %v105 = vld [vmem:[%s73 + $0x7c] sm:$0xf]
    %v138 = vunpack.c.l.b16 %v74
    %v139 = vunpack.c.l.b16 %v75
    %v140 = vunpack.c.l.b16 %v76
    %v141 = vunpack.c.l.b16 %v77
    %v142 = vunpack.c.l.b16 %v78
    %v143 = vunpack.c.l.b16 %v79
    %v144 = vunpack.c.l.b16 %v80
    %v145 = vunpack.c.l.b16 %v81
    %v146 = vunpack.c.l.b16 %v82
    %v147 = vunpack.c.l.b16 %v83
    %v148 = vunpack.c.l.b16 %v84
    %v149 = vunpack.c.l.b16 %v85
    %v150 = vunpack.c.l.b16 %v86
    %v151 = vunpack.c.l.b16 %v87
    %v152 = vunpack.c.l.b16 %v88
    %v153 = vunpack.c.l.b16 %v89
    %v154 = vunpack.c.l.b16 %v90
    %v155 = vunpack.c.l.b16 %v91
    %v156 = vunpack.c.l.b16 %v92
    %v157 = vunpack.c.l.b16 %v93
    %v158 = vunpack.c.l.b16 %v94
    %v159 = vunpack.c.l.b16 %v95
    %v160 = vunpack.c.l.b16 %v96
    %v161 = vunpack.c.l.b16 %v97
    %v162 = vunpack.c.l.b16 %v98
    %v163 = vunpack.c.l.b16 %v99
    %v164 = vunpack.c.l.b16 %v100
    %v165 = vunpack.c.l.b16 %v101
    %v166 = vunpack.c.l.b16 %v102
    %v167 = vunpack.c.l.b16 %v103
    %v168 = vunpack.c.l.b16 %v104
    %v169 = vunpack.c.l.b16 %v105
    %v170 = vpack.c.b16 %v139, %v138
    %v171 = vpack.c.b16 %v141, %v140
    %v172 = vpack.c.b16 %v143, %v142
    %v173 = vpack.c.b16 %v145, %v144
    %v174 = vpack.c.b16 %v147, %v146
    %v175 = vpack.c.b16 %v149, %v148
    %v176 = vpack.c.b16 %v151, %v150
    %v177 = vpack.c.b16 %v153, %v152
    %v178 = vpack.c.b16 %v155, %v154
    %v179 = vpack.c.b16 %v157, %v156
    %v180 = vpack.c.b16 %v159, %v158
    %v181 = vpack.c.b16 %v161, %v160
    %v182 = vpack.c.b16 %v163, %v162
    %v183 = vpack.c.b16 %v165, %v164
    %v184 = vpack.c.b16 %v167, %v166
    %v185 = vpack.c.b16 %v169, %v168
    %v190 = vunpack.c.l.b16 %v27
    %v191 = vunpack.c.h.b16 %v27
    %v192 = vunpack.c.l.b16 %v28
    %v193 = vunpack.c.h.b16 %v28
    %v194 = vunpack.c.l.b16 %v29
    %v195 = vunpack.c.h.b16 %v29
    %v196 = vunpack.c.l.b16 %v30
    %v197 = vunpack.c.h.b16 %v30
    %v198 = vpack.c.b16 %v190, %v190
    %v199 = vpack.c.b16 %v191, %v191
    %v200 = vpack.c.b16 %v192, %v192
    %v201 = vpack.c.b16 %v193, %v193
    %v202 = vpack.c.b16 %v194, %v194
    %v203 = vpack.c.b16 %v195, %v195
    %v204 = vpack.c.b16 %v196, %v196
    %v205 = vpack.c.b16 %v197, %v197
    %vm206 = vcmask 64512
    %v208 = vsel %vm206, %v170, 0
    %v211 = vsel %vm206, %v171, 0
    %v214 = vsel %vm206, %v172, 0
    %v217 = vsel %vm206, %v173, 0
    %v220 = vsel %vm206, %v174, 0
    %v223 = vsel %vm206, %v175, 0
    %v226 = vsel %vm206, %v176, 0
    %v229 = vsel %vm206, %v177, 0
    %v232 = vsel %vm206, %v178, 0
    %v235 = vsel %vm206, %v179, 0
    %v238 = vsel %vm206, %v180, 0
    %v241 = vsel %vm206, %v181, 0
    %v244 = vsel %vm206, %v182, 0
    %v247 = vsel %vm206, %v183, 0
    %v250 = vsel %vm206, %v184, 0
    %v253 = vsel %vm206, %v185, 0
    %vm255 = vcmask 1043456
    %v257 = vsel %vm255, %v198, 0
    %v260 = vsel %vm255, %v199, 0
    %v263 = vsel %vm255, %v200, 0
    %v266 = vsel %vm255, %v201, 0
    %v269 = vsel %vm255, %v202, 0
    %v272 = vsel %vm255, %v203, 0
    %v275 = vsel %vm255, %v204, 0
    %v278 = vsel %vm255, %v205, 0
    %280 = vmatpush.bf16.msra.mxu0 0
    %281 = vmatpush.bf16.msra.mxu0 0
    %282 = vmatpush.bf16.msra.mxu0 0
    %283 = vmatpush.bf16.msra.mxu0 0
    %284 = vmatpush.bf16.msra.mxu0 0
    %285 = vmatpush.bf16.msra.mxu0 0
    %286 = vmatpush.bf16.msra.mxu0 0
    %287 = vmatpush.bf16.msra.mxu0 %v257
    %288 = vmatmul.bf16.gmra.mxu0 %v208
    %v289 = vpop.f32.mrf.mxu0
    %v290 = vadd.f32 0.0, %v289
    %v291 = vpop.f32.mrf.mxu0
    %v292 = vadd.f32 0.0, %v291
    %293 = vmatmul.bf16.gmra.mxu0 %v211
    %v294 = vpop.f32.mrf.mxu0
    %v295 = vadd.f32 0.0, %v294
    %v296 = vpop.f32.mrf.mxu0
    %v297 = vadd.f32 0.0, %v296
    %298 = vmatmul.bf16.gmra.mxu0 %v214
    %v299 = vpop.f32.mrf.mxu0
    %v300 = vadd.f32 0.0, %v299
    %v301 = vpop.f32.mrf.mxu0
    %v302 = vadd.f32 0.0, %v301
    %303 = vmatmul.bf16.gmra.mxu0 %v217
    %v304 = vpop.f32.mrf.mxu0
    %v305 = vadd.f32 0.0, %v304
    %v306 = vpop.f32.mrf.mxu0
    %v307 = vadd.f32 0.0, %v306
    %308 = vmatmul.bf16.gmra.mxu0 %v220
    %v309 = vpop.f32.mrf.mxu0
    %v310 = vadd.f32 0.0, %v309
    %v311 = vpop.f32.mrf.mxu0
    %v312 = vadd.f32 0.0, %v311
    %313 = vmatmul.bf16.gmra.mxu0 %v223
    %v314 = vpop.f32.mrf.mxu0
    %v315 = vadd.f32 0.0, %v314
    %v316 = vpop.f32.mrf.mxu0
    %v317 = vadd.f32 0.0, %v316
    %318 = vmatmul.bf16.gmra.mxu0 %v226
    %v319 = vpop.f32.mrf.mxu0
    %v320 = vadd.f32 0.0, %v319
    %v321 = vpop.f32.mrf.mxu0
    %v322 = vadd.f32 0.0, %v321
    %323 = vmatmul.bf16.gmra.mxu0 %v229
    %v324 = vpop.f32.mrf.mxu0
    %v325 = vadd.f32 0.0, %v324
    %v326 = vpop.f32.mrf.mxu0
    %v327 = vadd.f32 0.0, %v326
    %328 = vmatmul.bf16.gmra.mxu0 %v232
    %v329 = vpop.f32.mrf.mxu0
    %v330 = vadd.f32 0.0, %v329
    %v331 = vpop.f32.mrf.mxu0
    %v332 = vadd.f32 0.0, %v331
    %333 = vmatmul.bf16.gmra.mxu0 %v235
    %v334 = vpop.f32.mrf.mxu0
    %v335 = vadd.f32 0.0, %v334
    %v336 = vpop.f32.mrf.mxu0
    %v337 = vadd.f32 0.0, %v336
    %338 = vmatmul.bf16.gmra.mxu0 %v238
    %v339 = vpop.f32.mrf.mxu0
    %v340 = vadd.f32 0.0, %v339
    %v341 = vpop.f32.mrf.mxu0
    %v342 = vadd.f32 0.0, %v341
    %343 = vmatmul.bf16.gmra.mxu0 %v241
    %v344 = vpop.f32.mrf.mxu0
    %v345 = vadd.f32 0.0, %v344
    %v346 = vpop.f32.mrf.mxu0
    %v347 = vadd.f32 0.0, %v346
    %348 = vmatmul.bf16.gmra.mxu0 %v244
    %v349 = vpop.f32.mrf.mxu0
    %v350 = vadd.f32 0.0, %v349
    %v351 = vpop.f32.mrf.mxu0
    %v352 = vadd.f32 0.0, %v351
    %353 = vmatmul.bf16.gmra.mxu0 %v247
    %v354 = vpop.f32.mrf.mxu0
    %v355 = vadd.f32 0.0, %v354
    %v356 = vpop.f32.mrf.mxu0
    %v357 = vadd.f32 0.0, %v356
    %358 = vmatmul.bf16.gmra.mxu0 %v250
    %v359 = vpop.f32.mrf.mxu0
    %v360 = vadd.f32 0.0, %v359
    %v361 = vpop.f32.mrf.mxu0
    %v362 = vadd.f32 0.0, %v361
    %363 = vmatmul.bf16.gmra.mxu0 %v253
    %v364 = vpop.f32.mrf.mxu0
    %v365 = vadd.f32 0.0, %v364
    %v366 = vpop.f32.mrf.mxu0
    %v367 = vadd.f32 0.0, %v366
    %368 = vdwg.mxu0
    %369 = vmatpush.bf16.msra.mxu0 0
    %370 = vmatpush.bf16.msra.mxu0 0
    %371 = vmatpush.bf16.msra.mxu0 0
    %372 = vmatpush.bf16.msra.mxu0 0
    %373 = vmatpush.bf16.msra.mxu0 0
    %374 = vmatpush.bf16.msra.mxu0 0
    %375 = vmatpush.bf16.msra.mxu0 0
    %376 = vmatpush.bf16.msra.mxu0 %v260
    %377 = vmatmul.bf16.gmra.mxu0 %v208
    %v378 = vpop.f32.mrf.mxu0
    %v379 = vadd.f32 0.0, %v378
    %v380 = vpop.f32.mrf.mxu0
    %v381 = vadd.f32 0.0, %v380
    %382 = vmatmul.bf16.gmra.mxu0 %v211
    %v383 = vpop.f32.mrf.mxu0
    %v384 = vadd.f32 0.0, %v383
    %v385 = vpop.f32.mrf.mxu0
    %v386 = vadd.f32 0.0, %v385
    %387 = vmatmul.bf16.gmra.mxu0 %v214
    %v388 = vpop.f32.mrf.mxu0
    %v389 = vadd.f32 0.0, %v388
    %v390 = vpop.f32.mrf.mxu0
    %v391 = vadd.f32 0.0, %v390
    %392 = vmatmul.bf16.gmra.mxu0 %v217
    %v393 = vpop.f32.mrf.mxu0
    %v394 = vadd.f32 0.0, %v393
    %v395 = vpop.f32.mrf.mxu0
    %v396 = vadd.f32 0.0, %v395
    %397 = vmatmul.bf16.gmra.mxu0 %v220
    %v398 = vpop.f32.mrf.mxu0
    %v399 = vadd.f32 0.0, %v398
    %v400 = vpop.f32.mrf.mxu0
    %v401 = vadd.f32 0.0, %v400
    %402 = vmatmul.bf16.gmra.mxu0 %v223
    %v403 = vpop.f32.mrf.mxu0
    %v404 = vadd.f32 0.0, %v403
    %v405 = vpop.f32.mrf.mxu0
    %v406 = vadd.f32 0.0, %v405
    %407 = vmatmul.bf16.gmra.mxu0 %v226
    %v408 = vpop.f32.mrf.mxu0
    %v409 = vadd.f32 0.0, %v408
    %v410 = vpop.f32.mrf.mxu0
    %v411 = vadd.f32 0.0, %v410
    %412 = vmatmul.bf16.gmra.mxu0 %v229
    %v413 = vpop.f32.mrf.mxu0
    %v414 = vadd.f32 0.0, %v413
    %v415 = vpop.f32.mrf.mxu0
    %v416 = vadd.f32 0.0, %v415
    %417 = vmatmul.bf16.gmra.mxu0 %v232
    %v418 = vpop.f32.mrf.mxu0
    %v419 = vadd.f32 0.0, %v418
    %v420 = vpop.f32.mrf.mxu0
    %v421 = vadd.f32 0.0, %v420
    %422 = vmatmul.bf16.gmra.mxu0 %v235
    %v423 = vpop.f32.mrf.mxu0
    %v424 = vadd.f32 0.0, %v423
    %v425 = vpop.f32.mrf.mxu0
    %v426 = vadd.f32 0.0, %v425
    %427 = vmatmul.bf16.gmra.mxu0 %v238
    %v428 = vpop.f32.mrf.mxu0
    %v429 = vadd.f32 0.0, %v428
    %v430 = vpop.f32.mrf.mxu0
    %v431 = vadd.f32 0.0, %v430
    %432 = vmatmul.bf16.gmra.mxu0 %v241
    %v433 = vpop.f32.mrf.mxu0
    %v434 = vadd.f32 0.0, %v433
    %v435 = vpop.f32.mrf.mxu0
    %v436 = vadd.f32 0.0, %v435
    %437 = vmatmul.bf16.gmra.mxu0 %v244
    %v438 = vpop.f32.mrf.mxu0
    %v439 = vadd.f32 0.0, %v438
    %v440 = vpop.f32.mrf.mxu0
    %v441 = vadd.f32 0.0, %v440
    %442 = vmatmul.bf16.gmra.mxu0 %v247
    %v443 = vpop.f32.mrf.mxu0
    %v444 = vadd.f32 0.0, %v443
    %v445 = vpop.f32.mrf.mxu0
    %v446 = vadd.f32 0.0, %v445
    %447 = vmatmul.bf16.gmra.mxu0 %v250
    %v448 = vpop.f32.mrf.mxu0
    %v449 = vadd.f32 0.0, %v448
    %v450 = vpop.f32.mrf.mxu0
    %v451 = vadd.f32 0.0, %v450
    %452 = vmatmul.bf16.gmra.mxu0 %v253
    %v453 = vpop.f32.mrf.mxu0
    %v454 = vadd.f32 0.0, %v453
    %v455 = vpop.f32.mrf.mxu0
    %v456 = vadd.f32 0.0, %v455
    %457 = vdwg.mxu0
    %458 = vmatpush.bf16.msra.mxu0 0
    %459 = vmatpush.bf16.msra.mxu0 0
    %460 = vmatpush.bf16.msra.mxu0 0
    %461 = vmatpush.bf16.msra.mxu0 0
    %462 = vmatpush.bf16.msra.mxu0 0
    %463 = vmatpush.bf16.msra.mxu0 0
    %464 = vmatpush.bf16.msra.mxu0 0
    %465 = vmatpush.bf16.msra.mxu0 %v263
    %466 = vmatmul.bf16.gmra.mxu0 %v208
    %v467 = vpop.f32.mrf.mxu0
    %v468 = vadd.f32 0.0, %v467
    %v469 = vpop.f32.mrf.mxu0
    %v470 = vadd.f32 0.0, %v469
    %471 = vmatmul.bf16.gmra.mxu0 %v211
    %v472 = vpop.f32.mrf.mxu0
    %v473 = vadd.f32 0.0, %v472
    %v474 = vpop.f32.mrf.mxu0
    %v475 = vadd.f32 0.0, %v474
    %476 = vmatmul.bf16.gmra.mxu0 %v214
    %v477 = vpop.f32.mrf.mxu0
    %v478 = vadd.f32 0.0, %v477
    %v479 = vpop.f32.mrf.mxu0
    %v480 = vadd.f32 0.0, %v479
    %481 = vmatmul.bf16.gmra.mxu0 %v217
    %v482 = vpop.f32.mrf.mxu0
    %v483 = vadd.f32 0.0, %v482
    %v484 = vpop.f32.mrf.mxu0
    %v485 = vadd.f32 0.0, %v484
    %486 = vmatmul.bf16.gmra.mxu0 %v220
    %v487 = vpop.f32.mrf.mxu0
    %v488 = vadd.f32 0.0, %v487
    %v489 = vpop.f32.mrf.mxu0
    %v490 = vadd.f32 0.0, %v489
    %491 = vmatmul.bf16.gmra.mxu0 %v223
    %v492 = vpop.f32.mrf.mxu0
    %v493 = vadd.f32 0.0, %v492
    %v494 = vpop.f32.mrf.mxu0
    %v495 = vadd.f32 0.0, %v494
    %496 = vmatmul.bf16.gmra.mxu0 %v226
    %v497 = vpop.f32.mrf.mxu0
    %v498 = vadd.f32 0.0, %v497
    %v499 = vpop.f32.mrf.mxu0
    %v500 = vadd.f32 0.0, %v499
    %501 = vmatmul.bf16.gmra.mxu0 %v229
    %v502 = vpop.f32.mrf.mxu0
    %v503 = vadd.f32 0.0, %v502
    %v504 = vpop.f32.mrf.mxu0
    %v505 = vadd.f32 0.0, %v504
    %506 = vmatmul.bf16.gmra.mxu0 %v232
    %v507 = vpop.f32.mrf.mxu0
    %v508 = vadd.f32 0.0, %v507
    %v509 = vpop.f32.mrf.mxu0
    %v510 = vadd.f32 0.0, %v509
    %511 = vmatmul.bf16.gmra.mxu0 %v235
    %v512 = vpop.f32.mrf.mxu0
    %v513 = vadd.f32 0.0, %v512
    %v514 = vpop.f32.mrf.mxu0
    %v515 = vadd.f32 0.0, %v514
    %516 = vmatmul.bf16.gmra.mxu0 %v238
    %v517 = vpop.f32.mrf.mxu0
    %v518 = vadd.f32 0.0, %v517
    %v519 = vpop.f32.mrf.mxu0
    %v520 = vadd.f32 0.0, %v519
    %521 = vmatmul.bf16.gmra.mxu0 %v241
    %v522 = vpop.f32.mrf.mxu0
    %v523 = vadd.f32 0.0, %v522
    %v524 = vpop.f32.mrf.mxu0
    %v525 = vadd.f32 0.0, %v524
    %526 = vmatmul.bf16.gmra.mxu0 %v244
    %v527 = vpop.f32.mrf.mxu0
    %v528 = vadd.f32 0.0, %v527
    %v529 = vpop.f32.mrf.mxu0
    %v530 = vadd.f32 0.0, %v529
    %531 = vmatmul.bf16.gmra.mxu0 %v247
    %v532 = vpop.f32.mrf.mxu0
    %v533 = vadd.f32 0.0, %v532
    %v534 = vpop.f32.mrf.mxu0
    %v535 = vadd.f32 0.0, %v534
    %536 = vmatmul.bf16.gmra.mxu0 %v250
    %v537 = vpop.f32.mrf.mxu0
    %v538 = vadd.f32 0.0, %v537
    %v539 = vpop.f32.mrf.mxu0
    %v540 = vadd.f32 0.0, %v539
    %541 = vmatmul.bf16.gmra.mxu0 %v253
    %v542 = vpop.f32.mrf.mxu0
    %v543 = vadd.f32 0.0, %v542
    %v544 = vpop.f32.mrf.mxu0
    %v545 = vadd.f32 0.0, %v544
    %546 = vdwg.mxu0
    %547 = vmatpush.bf16.msra.mxu0 0
    %548 = vmatpush.bf16.msra.mxu0 0
    %549 = vmatpush.bf16.msra.mxu0 0
    %550 = vmatpush.bf16.msra.mxu0 0
    %551 = vmatpush.bf16.msra.mxu0 0
    %552 = vmatpush.bf16.msra.mxu0 0
    %553 = vmatpush.bf16.msra.mxu0 0
    %554 = vmatpush.bf16.msra.mxu0 %v266
    %555 = vmatmul.bf16.gmra.mxu0 %v208
    %v556 = vpop.f32.mrf.mxu0
    %v557 = vadd.f32 0.0, %v556
    %v558 = vpop.f32.mrf.mxu0
    %v559 = vadd.f32 0.0, %v558
    %560 = vmatmul.bf16.gmra.mxu0 %v211
    %v561 = vpop.f32.mrf.mxu0
    %v562 = vadd.f32 0.0, %v561
    %v563 = vpop.f32.mrf.mxu0
    %v564 = vadd.f32 0.0, %v563
    %565 = vmatmul.bf16.gmra.mxu0 %v214
    %v566 = vpop.f32.mrf.mxu0
    %v567 = vadd.f32 0.0, %v566
    %v568 = vpop.f32.mrf.mxu0
    %v569 = vadd.f32 0.0, %v568
    %570 = vmatmul.bf16.gmra.mxu0 %v217
    %v571 = vpop.f32.mrf.mxu0
    %v572 = vadd.f32 0.0, %v571
    %v573 = vpop.f32.mrf.mxu0
    %v574 = vadd.f32 0.0, %v573
    %575 = vmatmul.bf16.gmra.mxu0 %v220
    %v576 = vpop.f32.mrf.mxu0
    %v577 = vadd.f32 0.0, %v576
    %v578 = vpop.f32.mrf.mxu0
    %v579 = vadd.f32 0.0, %v578
    %580 = vmatmul.bf16.gmra.mxu0 %v223
    %v581 = vpop.f32.mrf.mxu0
    %v582 = vadd.f32 0.0, %v581
    %v583 = vpop.f32.mrf.mxu0
    %v584 = vadd.f32 0.0, %v583
    %585 = vmatmul.bf16.gmra.mxu0 %v226
    %v586 = vpop.f32.mrf.mxu0
    %v587 = vadd.f32 0.0, %v586
    %v588 = vpop.f32.mrf.mxu0
    %v589 = vadd.f32 0.0, %v588
    %590 = vmatmul.bf16.gmra.mxu0 %v229
    %v591 = vpop.f32.mrf.mxu0
    %v592 = vadd.f32 0.0, %v591
    %v593 = vpop.f32.mrf.mxu0
    %v594 = vadd.f32 0.0, %v593
    %595 = vmatmul.bf16.gmra.mxu0 %v232
    %v596 = vpop.f32.mrf.mxu0
    %v597 = vadd.f32 0.0, %v596
    %v598 = vpop.f32.mrf.mxu0
    %v599 = vadd.f32 0.0, %v598
    %600 = vmatmul.bf16.gmra.mxu0 %v235
    %v601 = vpop.f32.mrf.mxu0
    %v602 = vadd.f32 0.0, %v601
    %v603 = vpop.f32.mrf.mxu0
    %v604 = vadd.f32 0.0, %v603
    %605 = vmatmul.bf16.gmra.mxu0 %v238
    %v606 = vpop.f32.mrf.mxu0
    %v607 = vadd.f32 0.0, %v606
    %v608 = vpop.f32.mrf.mxu0
    %v609 = vadd.f32 0.0, %v608
    %610 = vmatmul.bf16.gmra.mxu0 %v241
    %v611 = vpop.f32.mrf.mxu0
    %v612 = vadd.f32 0.0, %v611
    %v613 = vpop.f32.mrf.mxu0
    %v614 = vadd.f32 0.0, %v613
    %615 = vmatmul.bf16.gmra.mxu0 %v244
    %v616 = vpop.f32.mrf.mxu0
    %v617 = vadd.f32 0.0, %v616
    %v618 = vpop.f32.mrf.mxu0
    %v619 = vadd.f32 0.0, %v618
    %620 = vmatmul.bf16.gmra.mxu0 %v247
    %v621 = vpop.f32.mrf.mxu0
    %v622 = vadd.f32 0.0, %v621
    %v623 = vpop.f32.mrf.mxu0
    %v624 = vadd.f32 0.0, %v623
    %625 = vmatmul.bf16.gmra.mxu0 %v250
    %v626 = vpop.f32.mrf.mxu0
    %v627 = vadd.f32 0.0, %v626
    %v628 = vpop.f32.mrf.mxu0
    %v629 = vadd.f32 0.0, %v628
    %630 = vmatmul.bf16.gmra.mxu0 %v253
    %v631 = vpop.f32.mrf.mxu0
    %v632 = vadd.f32 0.0, %v631
    %v633 = vpop.f32.mrf.mxu0
    %v634 = vadd.f32 0.0, %v633
    %635 = vdwg.mxu0
    %636 = vmatpush.bf16.msra.mxu0 0
    %637 = vmatpush.bf16.msra.mxu0 0
    %638 = vmatpush.bf16.msra.mxu0 0
    %639 = vmatpush.bf16.msra.mxu0 0
    %640 = vmatpush.bf16.msra.mxu0 0
    %641 = vmatpush.bf16.msra.mxu0 0
    %642 = vmatpush.bf16.msra.mxu0 0
    %643 = vmatpush.bf16.msra.mxu0 %v269
    %644 = vmatmul.bf16.gmra.mxu0 %v208
    %v645 = vpop.f32.mrf.mxu0
    %v646 = vadd.f32 0.0, %v645
    %v647 = vpop.f32.mrf.mxu0
    %v648 = vadd.f32 0.0, %v647
    %649 = vmatmul.bf16.gmra.mxu0 %v211
    %v650 = vpop.f32.mrf.mxu0
    %v651 = vadd.f32 0.0, %v650
    %v652 = vpop.f32.mrf.mxu0
    %v653 = vadd.f32 0.0, %v652
    %654 = vmatmul.bf16.gmra.mxu0 %v214
    %v655 = vpop.f32.mrf.mxu0
    %v656 = vadd.f32 0.0, %v655
    %v657 = vpop.f32.mrf.mxu0
    %v658 = vadd.f32 0.0, %v657
    %659 = vmatmul.bf16.gmra.mxu0 %v217
    %v660 = vpop.f32.mrf.mxu0
    %v661 = vadd.f32 0.0, %v660
    %v662 = vpop.f32.mrf.mxu0
    %v663 = vadd.f32 0.0, %v662
    %664 = vmatmul.bf16.gmra.mxu0 %v220
    %v665 = vpop.f32.mrf.mxu0
    %v666 = vadd.f32 0.0, %v665
    %v667 = vpop.f32.mrf.mxu0
    %v668 = vadd.f32 0.0, %v667
    %669 = vmatmul.bf16.gmra.mxu0 %v223
    %v670 = vpop.f32.mrf.mxu0
    %v671 = vadd.f32 0.0, %v670
    %v672 = vpop.f32.mrf.mxu0
    %v673 = vadd.f32 0.0, %v672
    %674 = vmatmul.bf16.gmra.mxu0 %v226
    %v675 = vpop.f32.mrf.mxu0
    %v676 = vadd.f32 0.0, %v675
    %v677 = vpop.f32.mrf.mxu0
    %v678 = vadd.f32 0.0, %v677
    %679 = vmatmul.bf16.gmra.mxu0 %v229
    %v680 = vpop.f32.mrf.mxu0
    %v681 = vadd.f32 0.0, %v680
    %v682 = vpop.f32.mrf.mxu0
    %v683 = vadd.f32 0.0, %v682
    %684 = vmatmul.bf16.gmra.mxu0 %v232
    %v685 = vpop.f32.mrf.mxu0
    %v686 = vadd.f32 0.0, %v685
    %v687 = vpop.f32.mrf.mxu0
    %v688 = vadd.f32 0.0, %v687
    %689 = vmatmul.bf16.gmra.mxu0 %v235
    %v690 = vpop.f32.mrf.mxu0
    %v691 = vadd.f32 0.0, %v690
    %v692 = vpop.f32.mrf.mxu0
    %v693 = vadd.f32 0.0, %v692
    %694 = vmatmul.bf16.gmra.mxu0 %v238
    %v695 = vpop.f32.mrf.mxu0
    %v696 = vadd.f32 0.0, %v695
    %v697 = vpop.f32.mrf.mxu0
    %v698 = vadd.f32 0.0, %v697
    %699 = vmatmul.bf16.gmra.mxu0 %v241
    %v700 = vpop.f32.mrf.mxu0
    %v701 = vadd.f32 0.0, %v700
    %v702 = vpop.f32.mrf.mxu0
    %v703 = vadd.f32 0.0, %v702
    %704 = vmatmul.bf16.gmra.mxu0 %v244
    %v705 = vpop.f32.mrf.mxu0
    %v706 = vadd.f32 0.0, %v705
    %v707 = vpop.f32.mrf.mxu0
    %v708 = vadd.f32 0.0, %v707
    %709 = vmatmul.bf16.gmra.mxu0 %v247
    %v710 = vpop.f32.mrf.mxu0
    %v711 = vadd.f32 0.0, %v710
    %v712 = vpop.f32.mrf.mxu0
    %v713 = vadd.f32 0.0, %v712
    %714 = vmatmul.bf16.gmra.mxu0 %v250
    %v715 = vpop.f32.mrf.mxu0
    %v716 = vadd.f32 0.0, %v715
    %v717 = vpop.f32.mrf.mxu0
    %v718 = vadd.f32 0.0, %v717
    %719 = vmatmul.bf16.gmra.mxu0 %v253
    %v720 = vpop.f32.mrf.mxu0
    %v721 = vadd.f32 0.0, %v720
    %v722 = vpop.f32.mrf.mxu0
    %v723 = vadd.f32 0.0, %v722
    %724 = vdwg.mxu0
    %725 = vmatpush.bf16.msra.mxu0 0
    %726 = vmatpush.bf16.msra.mxu0 0
    %727 = vmatpush.bf16.msra.mxu0 0
    %728 = vmatpush.bf16.msra.mxu0 0
    %729 = vmatpush.bf16.msra.mxu0 0
    %730 = vmatpush.bf16.msra.mxu0 0
    %731 = vmatpush.bf16.msra.mxu0 0
    %732 = vmatpush.bf16.msra.mxu0 %v272
    %733 = vmatmul.bf16.gmra.mxu0 %v208
    %v734 = vpop.f32.mrf.mxu0
    %v735 = vadd.f32 0.0, %v734
    %v736 = vpop.f32.mrf.mxu0
    %v737 = vadd.f32 0.0, %v736
    %738 = vmatmul.bf16.gmra.mxu0 %v211
    %v739 = vpop.f32.mrf.mxu0
    %v740 = vadd.f32 0.0, %v739
    %v741 = vpop.f32.mrf.mxu0
    %v742 = vadd.f32 0.0, %v741
    %743 = vmatmul.bf16.gmra.mxu0 %v214
    %v744 = vpop.f32.mrf.mxu0
    %v745 = vadd.f32 0.0, %v744
    %v746 = vpop.f32.mrf.mxu0
    %v747 = vadd.f32 0.0, %v746
    %748 = vmatmul.bf16.gmra.mxu0 %v217
    %v749 = vpop.f32.mrf.mxu0
    %v750 = vadd.f32 0.0, %v749
    %v751 = vpop.f32.mrf.mxu0
    %v752 = vadd.f32 0.0, %v751
    %753 = vmatmul.bf16.gmra.mxu0 %v220
    %v754 = vpop.f32.mrf.mxu0
    %v755 = vadd.f32 0.0, %v754
    %v756 = vpop.f32.mrf.mxu0
    %v757 = vadd.f32 0.0, %v756
    %758 = vmatmul.bf16.gmra.mxu0 %v223
    %v759 = vpop.f32.mrf.mxu0
    %v760 = vadd.f32 0.0, %v759
    %v761 = vpop.f32.mrf.mxu0
    %v762 = vadd.f32 0.0, %v761
    %763 = vmatmul.bf16.gmra.mxu0 %v226
    %v764 = vpop.f32.mrf.mxu0
    %v765 = vadd.f32 0.0, %v764
    %v766 = vpop.f32.mrf.mxu0
    %v767 = vadd.f32 0.0, %v766
    %768 = vmatmul.bf16.gmra.mxu0 %v229
    %v769 = vpop.f32.mrf.mxu0
    %v770 = vadd.f32 0.0, %v769
    %v771 = vpop.f32.mrf.mxu0
    %v772 = vadd.f32 0.0, %v771
    %773 = vmatmul.bf16.gmra.mxu0 %v232
    %v774 = vpop.f32.mrf.mxu0
    %v775 = vadd.f32 0.0, %v774
    %v776 = vpop.f32.mrf.mxu0
    %v777 = vadd.f32 0.0, %v776
    %778 = vmatmul.bf16.gmra.mxu0 %v235
    %v779 = vpop.f32.mrf.mxu0
    %v780 = vadd.f32 0.0, %v779
    %v781 = vpop.f32.mrf.mxu0
    %v782 = vadd.f32 0.0, %v781
    %783 = vmatmul.bf16.gmra.mxu0 %v238
    %v784 = vpop.f32.mrf.mxu0
    %v785 = vadd.f32 0.0, %v784
    %v786 = vpop.f32.mrf.mxu0
    %v787 = vadd.f32 0.0, %v786
    %788 = vmatmul.bf16.gmra.mxu0 %v241
    %v789 = vpop.f32.mrf.mxu0
    %v790 = vadd.f32 0.0, %v789
    %v791 = vpop.f32.mrf.mxu0
    %v792 = vadd.f32 0.0, %v791
    %793 = vmatmul.bf16.gmra.mxu0 %v244
    %v794 = vpop.f32.mrf.mxu0
    %v795 = vadd.f32 0.0, %v794
    %v796 = vpop.f32.mrf.mxu0
    %v797 = vadd.f32 0.0, %v796
    %798 = vmatmul.bf16.gmra.mxu0 %v247
    %v799 = vpop.f32.mrf.mxu0
    %v800 = vadd.f32 0.0, %v799
    %v801 = vpop.f32.mrf.mxu0
    %v802 = vadd.f32 0.0, %v801
    %803 = vmatmul.bf16.gmra.mxu0 %v250
    %v804 = vpop.f32.mrf.mxu0
    %v805 = vadd.f32 0.0, %v804
    %v806 = vpop.f32.mrf.mxu0
    %v807 = vadd.f32 0.0, %v806
    %808 = vmatmul.bf16.gmra.mxu0 %v253
    %v809 = vpop.f32.mrf.mxu0
    %v810 = vadd.f32 0.0, %v809
    %v811 = vpop.f32.mrf.mxu0
    %v812 = vadd.f32 0.0, %v811
    %813 = vdwg.mxu0
    %814 = vmatpush.bf16.msra.mxu0 0
    %815 = vmatpush.bf16.msra.mxu0 0
    %816 = vmatpush.bf16.msra.mxu0 0
    %817 = vmatpush.bf16.msra.mxu0 0
    %818 = vmatpush.bf16.msra.mxu0 0
    %819 = vmatpush.bf16.msra.mxu0 0
    %820 = vmatpush.bf16.msra.mxu0 0
    %821 = vmatpush.bf16.msra.mxu0 %v275
    %822 = vmatmul.bf16.gmra.mxu0 %v208
    %v823 = vpop.f32.mrf.mxu0
    %v824 = vadd.f32 0.0, %v823
    %v825 = vpop.f32.mrf.mxu0
    %v826 = vadd.f32 0.0, %v825
    %827 = vmatmul.bf16.gmra.mxu0 %v211
    %v828 = vpop.f32.mrf.mxu0
    %v829 = vadd.f32 0.0, %v828
    %v830 = vpop.f32.mrf.mxu0
    %v831 = vadd.f32 0.0, %v830
    %832 = vmatmul.bf16.gmra.mxu0 %v214
    %v833 = vpop.f32.mrf.mxu0
    %v834 = vadd.f32 0.0, %v833
    %v835 = vpop.f32.mrf.mxu0
    %v836 = vadd.f32 0.0, %v835
    %837 = vmatmul.bf16.gmra.mxu0 %v217
    %v838 = vpop.f32.mrf.mxu0
    %v839 = vadd.f32 0.0, %v838
    %v840 = vpop.f32.mrf.mxu0
    %v841 = vadd.f32 0.0, %v840
    %842 = vmatmul.bf16.gmra.mxu0 %v220
    %v843 = vpop.f32.mrf.mxu0
    %v844 = vadd.f32 0.0, %v843
    %v845 = vpop.f32.mrf.mxu0
    %v846 = vadd.f32 0.0, %v845
    %847 = vmatmul.bf16.gmra.mxu0 %v223
    %v848 = vpop.f32.mrf.mxu0
    %v849 = vadd.f32 0.0, %v848
    %v850 = vpop.f32.mrf.mxu0
    %v851 = vadd.f32 0.0, %v850
    %852 = vmatmul.bf16.gmra.mxu0 %v226
    %v853 = vpop.f32.mrf.mxu0
    %v854 = vadd.f32 0.0, %v853
    %v855 = vpop.f32.mrf.mxu0
    %v856 = vadd.f32 0.0, %v855
    %857 = vmatmul.bf16.gmra.mxu0 %v229
    %v858 = vpop.f32.mrf.mxu0
    %v859 = vadd.f32 0.0, %v858
    %v860 = vpop.f32.mrf.mxu0
    %v861 = vadd.f32 0.0, %v860
    %862 = vmatmul.bf16.gmra.mxu0 %v232
    %v863 = vpop.f32.mrf.mxu0
    %v864 = vadd.f32 0.0, %v863
    %v865 = vpop.f32.mrf.mxu0
    %v866 = vadd.f32 0.0, %v865
    %867 = vmatmul.bf16.gmra.mxu0 %v235
    %v868 = vpop.f32.mrf.mxu0
    %v869 = vadd.f32 0.0, %v868
    %v870 = vpop.f32.mrf.mxu0
    %v871 = vadd.f32 0.0, %v870
    %872 = vmatmul.bf16.gmra.mxu0 %v238
    %v873 = vpop.f32.mrf.mxu0
    %v874 = vadd.f32 0.0, %v873
    %v875 = vpop.f32.mrf.mxu0
    %v876 = vadd.f32 0.0, %v875
    %877 = vmatmul.bf16.gmra.mxu0 %v241
    %v878 = vpop.f32.mrf.mxu0
    %v879 = vadd.f32 0.0, %v878
    %v880 = vpop.f32.mrf.mxu0
    %v881 = vadd.f32 0.0, %v880
    %882 = vmatmul.bf16.gmra.mxu0 %v244
    %v883 = vpop.f32.mrf.mxu0
    %v884 = vadd.f32 0.0, %v883
    %v885 = vpop.f32.mrf.mxu0
    %v886 = vadd.f32 0.0, %v885
    %887 = vmatmul.bf16.gmra.mxu0 %v247
    %v888 = vpop.f32.mrf.mxu0
    %v889 = vadd.f32 0.0, %v888
    %v890 = vpop.f32.mrf.mxu0
    %v891 = vadd.f32 0.0, %v890
    %892 = vmatmul.bf16.gmra.mxu0 %v250
    %v893 = vpop.f32.mrf.mxu0
    %v894 = vadd.f32 0.0, %v893
    %v895 = vpop.f32.mrf.mxu0
    %v896 = vadd.f32 0.0, %v895
    %897 = vmatmul.bf16.gmra.mxu0 %v253
    %v898 = vpop.f32.mrf.mxu0
    %v899 = vadd.f32 0.0, %v898
    %v900 = vpop.f32.mrf.mxu0
    %v901 = vadd.f32 0.0, %v900
    %902 = vdwg.mxu0
    %903 = vmatpush.bf16.msra.mxu0 0
    %904 = vmatpush.bf16.msra.mxu0 0
    %905 = vmatpush.bf16.msra.mxu0 0
    %906 = vmatpush.bf16.msra.mxu0 0
    %907 = vmatpush.bf16.msra.mxu0 0
    %908 = vmatpush.bf16.msra.mxu0 0
    %909 = vmatpush.bf16.msra.mxu0 0
    %910 = vmatpush.bf16.msra.mxu0 %v278
    %911 = vmatmul.bf16.gmra.mxu0 %v208
    %v912 = vpop.f32.mrf.mxu0
    %v913 = vadd.f32 0.0, %v912
    %v914 = vpop.f32.mrf.mxu0
    %v915 = vadd.f32 0.0, %v914
    %916 = vmatmul.bf16.gmra.mxu0 %v211
    %v917 = vpop.f32.mrf.mxu0
    %v918 = vadd.f32 0.0, %v917
    %v919 = vpop.f32.mrf.mxu0
    %v920 = vadd.f32 0.0, %v919
    %921 = vmatmul.bf16.gmra.mxu0 %v214
    %v922 = vpop.f32.mrf.mxu0
    %v923 = vadd.f32 0.0, %v922
    %v924 = vpop.f32.mrf.mxu0
    %v925 = vadd.f32 0.0, %v924
    %926 = vmatmul.bf16.gmra.mxu0 %v217
    %v927 = vpop.f32.mrf.mxu0
    %v928 = vadd.f32 0.0, %v927
    %v929 = vpop.f32.mrf.mxu0
    %v930 = vadd.f32 0.0, %v929
    %931 = vmatmul.bf16.gmra.mxu0 %v220
    %v932 = vpop.f32.mrf.mxu0
    %v933 = vadd.f32 0.0, %v932
    %v934 = vpop.f32.mrf.mxu0
    %v935 = vadd.f32 0.0, %v934
    %936 = vmatmul.bf16.gmra.mxu0 %v223
    %v937 = vpop.f32.mrf.mxu0
    %v938 = vadd.f32 0.0, %v937
    %v939 = vpop.f32.mrf.mxu0
    %v940 = vadd.f32 0.0, %v939
    %941 = vmatmul.bf16.gmra.mxu0 %v226
    %v942 = vpop.f32.mrf.mxu0
    %v943 = vadd.f32 0.0, %v942
    %v944 = vpop.f32.mrf.mxu0
    %v945 = vadd.f32 0.0, %v944
    %946 = vmatmul.bf16.gmra.mxu0 %v229
    %v947 = vpop.f32.mrf.mxu0
    %v948 = vadd.f32 0.0, %v947
    %v949 = vpop.f32.mrf.mxu0
    %v950 = vadd.f32 0.0, %v949
    %951 = vmatmul.bf16.gmra.mxu0 %v232
    %v952 = vpop.f32.mrf.mxu0
    %v953 = vadd.f32 0.0, %v952
    %v954 = vpop.f32.mrf.mxu0
    %v955 = vadd.f32 0.0, %v954
    %956 = vmatmul.bf16.gmra.mxu0 %v235
    %v957 = vpop.f32.mrf.mxu0
    %v958 = vadd.f32 0.0, %v957
    %v959 = vpop.f32.mrf.mxu0
    %v960 = vadd.f32 0.0, %v959
    %961 = vmatmul.bf16.gmra.mxu0 %v238
    %v962 = vpop.f32.mrf.mxu0
    %v963 = vadd.f32 0.0, %v962
    %v964 = vpop.f32.mrf.mxu0
    %v965 = vadd.f32 0.0, %v964
    %966 = vmatmul.bf16.gmra.mxu0 %v241
    %v967 = vpop.f32.mrf.mxu0
    %v968 = vadd.f32 0.0, %v967
    %v969 = vpop.f32.mrf.mxu0
    %v970 = vadd.f32 0.0, %v969
    %971 = vmatmul.bf16.gmra.mxu0 %v244
    %v972 = vpop.f32.mrf.mxu0
    %v973 = vadd.f32 0.0, %v972
    %v974 = vpop.f32.mrf.mxu0
    %v975 = vadd.f32 0.0, %v974
    %976 = vmatmul.bf16.gmra.mxu0 %v247
    %v977 = vpop.f32.mrf.mxu0
    %v978 = vadd.f32 0.0, %v977
    %v979 = vpop.f32.mrf.mxu0
    %v980 = vadd.f32 0.0, %v979
    %981 = vmatmul.bf16.gmra.mxu0 %v250
    %v982 = vpop.f32.mrf.mxu0
    %v983 = vadd.f32 0.0, %v982
    %v984 = vpop.f32.mrf.mxu0
    %v985 = vadd.f32 0.0, %v984
    %986 = vmatmul.bf16.gmra.mxu0 %v253
    %v987 = vpop.f32.mrf.mxu0
    %v988 = vadd.f32 0.0, %v987
    %v989 = vpop.f32.mrf.mxu0
    %v990 = vadd.f32 0.0, %v989
    %991 = vdwg.mxu0
    %v992 = vadd.f32 %v290, %v39
    %v993 = vadd.f32 %v292, %v40
    %v994 = vadd.f32 %v295, %v41
    %v995 = vadd.f32 %v297, %v42
    %v996 = vadd.f32 %v300, %v43
    %v997 = vadd.f32 %v302, %v44
    %v998 = vadd.f32 %v305, %v45
    %v999 = vadd.f32 %v307, %v46
    %v1000 = vadd.f32 %v310, %v47
    %v1001 = vadd.f32 %v312, %v48
    %v1002 = vadd.f32 %v315, %v49
    %v1003 = vadd.f32 %v317, %v50
    %v1004 = vadd.f32 %v320, %v51
    %v1005 = vadd.f32 %v322, %v52
    %v1006 = vadd.f32 %v325, %v53
    %v1007 = vadd.f32 %v327, %v54
    %v1008 = vadd.f32 %v330, %v55
    %v1009 = vadd.f32 %v332, %v56
    %v1010 = vadd.f32 %v335, %v57
    %v1011 = vadd.f32 %v337, %v58
    %v1012 = vadd.f32 %v340, %v59
    %v1013 = vadd.f32 %v342, %v60
    %v1014 = vadd.f32 %v345, %v61
    %v1015 = vadd.f32 %v347, %v62
    %v1016 = vadd.f32 %v350, %v63
    %v1017 = vadd.f32 %v352, %v64
    %v1018 = vadd.f32 %v355, %v65
    %v1019 = vadd.f32 %v357, %v66
    %v1020 = vadd.f32 %v360, %v67
    %v1021 = vadd.f32 %v362, %v68
    %v1022 = vadd.f32 %v365, %v69
    %v1023 = vadd.f32 %v367, %v70
    %v1024 = vmax.f32 %v992, 0.0
    %v1025 = vmax.f32 %v993, 0.0
    %v1026 = vmax.f32 %v994, 0.0
    %v1027 = vmax.f32 %v995, 0.0
    %v1028 = vmax.f32 %v996, 0.0
    %v1029 = vmax.f32 %v997, 0.0
    %v1030 = vmax.f32 %v998, 0.0
    %v1031 = vmax.f32 %v999, 0.0
    %v1032 = vmax.f32 %v1000, 0.0
    %v1033 = vmax.f32 %v1001, 0.0
    %v1034 = vmax.f32 %v1002, 0.0
    %v1035 = vmax.f32 %v1003, 0.0
    %v1036 = vmax.f32 %v1004, 0.0
    %v1037 = vmax.f32 %v1005, 0.0
    %v1038 = vmax.f32 %v1006, 0.0
    %v1039 = vmax.f32 %v1007, 0.0
    %v1040 = vmax.f32 %v1008, 0.0
    %v1041 = vmax.f32 %v1009, 0.0
    %v1042 = vmax.f32 %v1010, 0.0
    %v1043 = vmax.f32 %v1011, 0.0
    %v1044 = vmax.f32 %v1012, 0.0
    %v1045 = vmax.f32 %v1013, 0.0
    %v1046 = vmax.f32 %v1014, 0.0
    %v1047 = vmax.f32 %v1015, 0.0
    %v1048 = vmax.f32 %v1016, 0.0
    %v1049 = vmax.f32 %v1017, 0.0
    %v1050 = vmax.f32 %v1018, 0.0
    %v1051 = vmax.f32 %v1019, 0.0
    %v1052 = vmax.f32 %v1020, 0.0
    %v1053 = vmax.f32 %v1021, 0.0
    %v1054 = vmax.f32 %v1022, 0.0
    %v1055 = vmax.f32 %v1023, 0.0
    %v1056 = vpack.c.bf16 %v1024, %v1024
    %v1057 = vpack.c.bf16 %v1025, %v1025
    %v1058 = vpack.c.bf16 %v1026, %v1026
    %v1059 = vpack.c.bf16 %v1027, %v1027
    %v1060 = vpack.c.bf16 %v1028, %v1028
    %v1061 = vpack.c.bf16 %v1029, %v1029
    %v1062 = vpack.c.bf16 %v1030, %v1030
    %v1063 = vpack.c.bf16 %v1031, %v1031
    %v1064 = vpack.c.bf16 %v1032, %v1032
    %v1065 = vpack.c.bf16 %v1033, %v1033
    %v1066 = vpack.c.bf16 %v1034, %v1034
    %v1067 = vpack.c.bf16 %v1035, %v1035
    %v1068 = vpack.c.bf16 %v1036, %v1036
    %v1069 = vpack.c.bf16 %v1037, %v1037
    %v1070 = vpack.c.bf16 %v1038, %v1038
    %v1071 = vpack.c.bf16 %v1039, %v1039
    %v1072 = vpack.c.bf16 %v1040, %v1040
    %v1073 = vpack.c.bf16 %v1041, %v1041
    %v1074 = vpack.c.bf16 %v1042, %v1042
    %v1075 = vpack.c.bf16 %v1043, %v1043
    %v1076 = vpack.c.bf16 %v1044, %v1044
    %v1077 = vpack.c.bf16 %v1045, %v1045
    %v1078 = vpack.c.bf16 %v1046, %v1046
    %v1079 = vpack.c.bf16 %v1047, %v1047
    %v1080 = vpack.c.bf16 %v1048, %v1048
    %v1081 = vpack.c.bf16 %v1049, %v1049
    %v1082 = vpack.c.bf16 %v1050, %v1050
    %v1083 = vpack.c.bf16 %v1051, %v1051
    %v1084 = vpack.c.bf16 %v1052, %v1052
    %v1085 = vpack.c.bf16 %v1053, %v1053
    %v1086 = vpack.c.bf16 %v1054, %v1054
    %v1087 = vpack.c.bf16 %v1055, %v1055
    %v1088 = vadd.f32 %v379, %v39
    %v1089 = vadd.f32 %v381, %v40
    %v1090 = vadd.f32 %v384, %v41
    %v1091 = vadd.f32 %v386, %v42
    %v1092 = vadd.f32 %v389, %v43
    %v1093 = vadd.f32 %v391, %v44
    %v1094 = vadd.f32 %v394, %v45
    %v1095 = vadd.f32 %v396, %v46
    %v1096 = vadd.f32 %v399, %v47
    %v1097 = vadd.f32 %v401, %v48
    %v1098 = vadd.f32 %v404, %v49
    %v1099 = vadd.f32 %v406, %v50
    %v1100 = vadd.f32 %v409, %v51
    %v1101 = vadd.f32 %v411, %v52
    %v1102 = vadd.f32 %v414, %v53
    %v1103 = vadd.f32 %v416, %v54
    %v1104 = vadd.f32 %v419, %v55
    %v1105 = vadd.f32 %v421, %v56
    %v1106 = vadd.f32 %v424, %v57
    %v1107 = vadd.f32 %v426, %v58
    %v1108 = vadd.f32 %v429, %v59
    %v1109 = vadd.f32 %v431, %v60
    %v1110 = vadd.f32 %v434, %v61
    %v1111 = vadd.f32 %v436, %v62
    %v1112 = vadd.f32 %v439, %v63
    %v1113 = vadd.f32 %v441, %v64
    %v1114 = vadd.f32 %v444, %v65
    %v1115 = vadd.f32 %v446, %v66
    %v1116 = vadd.f32 %v449, %v67
    %v1117 = vadd.f32 %v451, %v68
    %v1118 = vadd.f32 %v454, %v69
    %v1119 = vadd.f32 %v456, %v70
    %v1120 = vmax.f32 %v1088, 0.0
    %v1121 = vmax.f32 %v1089, 0.0
    %v1122 = vmax.f32 %v1090, 0.0
    %v1123 = vmax.f32 %v1091, 0.0
    %v1124 = vmax.f32 %v1092, 0.0
    %v1125 = vmax.f32 %v1093, 0.0
    %v1126 = vmax.f32 %v1094, 0.0
    %v1127 = vmax.f32 %v1095, 0.0
    %v1128 = vmax.f32 %v1096, 0.0
    %v1129 = vmax.f32 %v1097, 0.0
    %v1130 = vmax.f32 %v1098, 0.0
    %v1131 = vmax.f32 %v1099, 0.0
    %v1132 = vmax.f32 %v1100, 0.0
    %v1133 = vmax.f32 %v1101, 0.0
    %v1134 = vmax.f32 %v1102, 0.0
    %v1135 = vmax.f32 %v1103, 0.0
    %v1136 = vmax.f32 %v1104, 0.0
    %v1137 = vmax.f32 %v1105, 0.0
    %v1138 = vmax.f32 %v1106, 0.0
    %v1139 = vmax.f32 %v1107, 0.0
    %v1140 = vmax.f32 %v1108, 0.0
    %v1141 = vmax.f32 %v1109, 0.0
    %v1142 = vmax.f32 %v1110, 0.0
    %v1143 = vmax.f32 %v1111, 0.0
    %v1144 = vmax.f32 %v1112, 0.0
    %v1145 = vmax.f32 %v1113, 0.0
    %v1146 = vmax.f32 %v1114, 0.0
    %v1147 = vmax.f32 %v1115, 0.0
    %v1148 = vmax.f32 %v1116, 0.0
    %v1149 = vmax.f32 %v1117, 0.0
    %v1150 = vmax.f32 %v1118, 0.0
    %v1151 = vmax.f32 %v1119, 0.0
    %v1152 = vpack.c.bf16 %v1120, %v1120
    %v1153 = vpack.c.bf16 %v1121, %v1121
    %v1154 = vpack.c.bf16 %v1122, %v1122
    %v1155 = vpack.c.bf16 %v1123, %v1123
    %v1156 = vpack.c.bf16 %v1124, %v1124
    %v1157 = vpack.c.bf16 %v1125, %v1125
    %v1158 = vpack.c.bf16 %v1126, %v1126
    %v1159 = vpack.c.bf16 %v1127, %v1127
    %v1160 = vpack.c.bf16 %v1128, %v1128
    %v1161 = vpack.c.bf16 %v1129, %v1129
    %v1162 = vpack.c.bf16 %v1130, %v1130
    %v1163 = vpack.c.bf16 %v1131, %v1131
    %v1164 = vpack.c.bf16 %v1132, %v1132
    %v1165 = vpack.c.bf16 %v1133, %v1133
    %v1166 = vpack.c.bf16 %v1134, %v1134
    %v1167 = vpack.c.bf16 %v1135, %v1135
    %v1168 = vpack.c.bf16 %v1136, %v1136
    %v1169 = vpack.c.bf16 %v1137, %v1137
    %v1170 = vpack.c.bf16 %v1138, %v1138
    %v1171 = vpack.c.bf16 %v1139, %v1139
    %v1172 = vpack.c.bf16 %v1140, %v1140
    %v1173 = vpack.c.bf16 %v1141, %v1141
    %v1174 = vpack.c.bf16 %v1142, %v1142
    %v1175 = vpack.c.bf16 %v1143, %v1143
    %v1176 = vpack.c.bf16 %v1144, %v1144
    %v1177 = vpack.c.bf16 %v1145, %v1145
    %v1178 = vpack.c.bf16 %v1146, %v1146
    %v1179 = vpack.c.bf16 %v1147, %v1147
    %v1180 = vpack.c.bf16 %v1148, %v1148
    %v1181 = vpack.c.bf16 %v1149, %v1149
    %v1182 = vpack.c.bf16 %v1150, %v1150
    %v1183 = vpack.c.bf16 %v1151, %v1151
    %v1184 = vadd.f32 %v468, %v39
    %v1185 = vadd.f32 %v470, %v40
    %v1186 = vadd.f32 %v473, %v41
    %v1187 = vadd.f32 %v475, %v42
    %v1188 = vadd.f32 %v478, %v43
    %v1189 = vadd.f32 %v480, %v44
    %v1190 = vadd.f32 %v483, %v45
    %v1191 = vadd.f32 %v485, %v46
    %v1192 = vadd.f32 %v488, %v47
    %v1193 = vadd.f32 %v490, %v48
    %v1194 = vadd.f32 %v493, %v49
    %v1195 = vadd.f32 %v495, %v50
    %v1196 = vadd.f32 %v498, %v51
    %v1197 = vadd.f32 %v500, %v52
    %v1198 = vadd.f32 %v503, %v53
    %v1199 = vadd.f32 %v505, %v54
    %v1200 = vadd.f32 %v508, %v55
    %v1201 = vadd.f32 %v510, %v56
    %v1202 = vadd.f32 %v513, %v57
    %v1203 = vadd.f32 %v515, %v58
    %v1204 = vadd.f32 %v518, %v59
    %v1205 = vadd.f32 %v520, %v60
    %v1206 = vadd.f32 %v523, %v61
    %v1207 = vadd.f32 %v525, %v62
    %v1208 = vadd.f32 %v528, %v63
    %v1209 = vadd.f32 %v530, %v64
    %v1210 = vadd.f32 %v533, %v65
    %v1211 = vadd.f32 %v535, %v66
    %v1212 = vadd.f32 %v538, %v67
    %v1213 = vadd.f32 %v540, %v68
    %v1214 = vadd.f32 %v543, %v69
    %v1215 = vadd.f32 %v545, %v70
    %v1216 = vmax.f32 %v1184, 0.0
    %v1217 = vmax.f32 %v1185, 0.0
    %v1218 = vmax.f32 %v1186, 0.0
    %v1219 = vmax.f32 %v1187, 0.0
    %v1220 = vmax.f32 %v1188, 0.0
    %v1221 = vmax.f32 %v1189, 0.0
    %v1222 = vmax.f32 %v1190, 0.0
    %v1223 = vmax.f32 %v1191, 0.0
    %v1224 = vmax.f32 %v1192, 0.0
    %v1225 = vmax.f32 %v1193, 0.0
    %v1226 = vmax.f32 %v1194, 0.0
    %v1227 = vmax.f32 %v1195, 0.0
    %v1228 = vmax.f32 %v1196, 0.0
    %v1229 = vmax.f32 %v1197, 0.0
    %v1230 = vmax.f32 %v1198, 0.0
    %v1231 = vmax.f32 %v1199, 0.0
    %v1232 = vmax.f32 %v1200, 0.0
    %v1233 = vmax.f32 %v1201, 0.0
    %v1234 = vmax.f32 %v1202, 0.0
    %v1235 = vmax.f32 %v1203, 0.0
    %v1236 = vmax.f32 %v1204, 0.0
    %v1237 = vmax.f32 %v1205, 0.0
    %v1238 = vmax.f32 %v1206, 0.0
    %v1239 = vmax.f32 %v1207, 0.0
    %v1240 = vmax.f32 %v1208, 0.0
    %v1241 = vmax.f32 %v1209, 0.0
    %v1242 = vmax.f32 %v1210, 0.0
    %v1243 = vmax.f32 %v1211, 0.0
    %v1244 = vmax.f32 %v1212, 0.0
    %v1245 = vmax.f32 %v1213, 0.0
    %v1246 = vmax.f32 %v1214, 0.0
    %v1247 = vmax.f32 %v1215, 0.0
    %v1248 = vpack.c.bf16 %v1216, %v1216
    %v1249 = vpack.c.bf16 %v1217, %v1217
    %v1250 = vpack.c.bf16 %v1218, %v1218
    %v1251 = vpack.c.bf16 %v1219, %v1219
    %v1252 = vpack.c.bf16 %v1220, %v1220
    %v1253 = vpack.c.bf16 %v1221, %v1221
    %v1254 = vpack.c.bf16 %v1222, %v1222
    %v1255 = vpack.c.bf16 %v1223, %v1223
    %v1256 = vpack.c.bf16 %v1224, %v1224
    %v1257 = vpack.c.bf16 %v1225, %v1225
    %v1258 = vpack.c.bf16 %v1226, %v1226
    %v1259 = vpack.c.bf16 %v1227, %v1227
    %v1260 = vpack.c.bf16 %v1228, %v1228
    %v1261 = vpack.c.bf16 %v1229, %v1229
    %v1262 = vpack.c.bf16 %v1230, %v1230
    %v1263 = vpack.c.bf16 %v1231, %v1231
    %v1264 = vpack.c.bf16 %v1232, %v1232
    %v1265 = vpack.c.bf16 %v1233, %v1233
    %v1266 = vpack.c.bf16 %v1234, %v1234
    %v1267 = vpack.c.bf16 %v1235, %v1235
    %v1268 = vpack.c.bf16 %v1236, %v1236
    %v1269 = vpack.c.bf16 %v1237, %v1237
    %v1270 = vpack.c.bf16 %v1238, %v1238
    %v1271 = vpack.c.bf16 %v1239, %v1239
    %v1272 = vpack.c.bf16 %v1240, %v1240
    %v1273 = vpack.c.bf16 %v1241, %v1241
    %v1274 = vpack.c.bf16 %v1242, %v1242
    %v1275 = vpack.c.bf16 %v1243, %v1243
    %v1276 = vpack.c.bf16 %v1244, %v1244
    %v1277 = vpack.c.bf16 %v1245, %v1245
    %v1278 = vpack.c.bf16 %v1246, %v1246
    %v1279 = vpack.c.bf16 %v1247, %v1247
    %v1280 = vadd.f32 %v557, %v39
    %v1281 = vadd.f32 %v559, %v40
    %v1282 = vadd.f32 %v562, %v41
    %v1283 = vadd.f32 %v564, %v42
    %v1284 = vadd.f32 %v567, %v43
    %v1285 = vadd.f32 %v569, %v44
    %v1286 = vadd.f32 %v572, %v45
    %v1287 = vadd.f32 %v574, %v46
    %v1288 = vadd.f32 %v577, %v47
    %v1289 = vadd.f32 %v579, %v48
    %v1290 = vadd.f32 %v582, %v49
    %v1291 = vadd.f32 %v584, %v50
    %v1292 = vadd.f32 %v587, %v51
    %v1293 = vadd.f32 %v589, %v52
    %v1294 = vadd.f32 %v592, %v53
    %v1295 = vadd.f32 %v594, %v54
    %v1296 = vadd.f32 %v597, %v55
    %v1297 = vadd.f32 %v599, %v56
    %v1298 = vadd.f32 %v602, %v57
    %v1299 = vadd.f32 %v604, %v58
    %v1300 = vadd.f32 %v607, %v59
    %v1301 = vadd.f32 %v609, %v60
    %v1302 = vadd.f32 %v612, %v61
    %v1303 = vadd.f32 %v614, %v62
    %v1304 = vadd.f32 %v617, %v63
    %v1305 = vadd.f32 %v619, %v64
    %v1306 = vadd.f32 %v622, %v65
    %v1307 = vadd.f32 %v624, %v66
    %v1308 = vadd.f32 %v627, %v67
    %v1309 = vadd.f32 %v629, %v68
    %v1310 = vadd.f32 %v632, %v69
    %v1311 = vadd.f32 %v634, %v70
    %v1312 = vmax.f32 %v1280, 0.0
    %v1313 = vmax.f32 %v1281, 0.0
    %v1314 = vmax.f32 %v1282, 0.0
    %v1315 = vmax.f32 %v1283, 0.0
    %v1316 = vmax.f32 %v1284, 0.0
    %v1317 = vmax.f32 %v1285, 0.0
    %v1318 = vmax.f32 %v1286, 0.0
    %v1319 = vmax.f32 %v1287, 0.0
    %v1320 = vmax.f32 %v1288, 0.0
    %v1321 = vmax.f32 %v1289, 0.0
    %v1322 = vmax.f32 %v1290, 0.0
    %v1323 = vmax.f32 %v1291, 0.0
    %v1324 = vmax.f32 %v1292, 0.0
    %v1325 = vmax.f32 %v1293, 0.0
    %v1326 = vmax.f32 %v1294, 0.0
    %v1327 = vmax.f32 %v1295, 0.0
    %v1328 = vmax.f32 %v1296, 0.0
    %v1329 = vmax.f32 %v1297, 0.0
    %v1330 = vmax.f32 %v1298, 0.0
    %v1331 = vmax.f32 %v1299, 0.0
    %v1332 = vmax.f32 %v1300, 0.0
    %v1333 = vmax.f32 %v1301, 0.0
    %v1334 = vmax.f32 %v1302, 0.0
    %v1335 = vmax.f32 %v1303, 0.0
    %v1336 = vmax.f32 %v1304, 0.0
    %v1337 = vmax.f32 %v1305, 0.0
    %v1338 = vmax.f32 %v1306, 0.0
    %v1339 = vmax.f32 %v1307, 0.0
    %v1340 = vmax.f32 %v1308, 0.0
    %v1341 = vmax.f32 %v1309, 0.0
    %v1342 = vmax.f32 %v1310, 0.0
    %v1343 = vmax.f32 %v1311, 0.0
    %v1344 = vpack.c.bf16 %v1312, %v1312
    %v1345 = vpack.c.bf16 %v1313, %v1313
    %v1346 = vpack.c.bf16 %v1314, %v1314
    %v1347 = vpack.c.bf16 %v1315, %v1315
    %v1348 = vpack.c.bf16 %v1316, %v1316
    %v1349 = vpack.c.bf16 %v1317, %v1317
    %v1350 = vpack.c.bf16 %v1318, %v1318
    %v1351 = vpack.c.bf16 %v1319, %v1319
    %v1352 = vpack.c.bf16 %v1320, %v1320
    %v1353 = vpack.c.bf16 %v1321, %v1321
    %v1354 = vpack.c.bf16 %v1322, %v1322
    %v1355 = vpack.c.bf16 %v1323, %v1323
    %v1356 = vpack.c.bf16 %v1324, %v1324
    %v1357 = vpack.c.bf16 %v1325, %v1325
    %v1358 = vpack.c.bf16 %v1326, %v1326
    %v1359 = vpack.c.bf16 %v1327, %v1327
    %v1360 = vpack.c.bf16 %v1328, %v1328
    %v1361 = vpack.c.bf16 %v1329, %v1329
    %v1362 = vpack.c.bf16 %v1330, %v1330
    %v1363 = vpack.c.bf16 %v1331, %v1331
    %v1364 = vpack.c.bf16 %v1332, %v1332
    %v1365 = vpack.c.bf16 %v1333, %v1333
    %v1366 = vpack.c.bf16 %v1334, %v1334
    %v1367 = vpack.c.bf16 %v1335, %v1335
    %v1368 = vpack.c.bf16 %v1336, %v1336
    %v1369 = vpack.c.bf16 %v1337, %v1337
    %v1370 = vpack.c.bf16 %v1338, %v1338
    %v1371 = vpack.c.bf16 %v1339, %v1339
    %v1372 = vpack.c.bf16 %v1340, %v1340
    %v1373 = vpack.c.bf16 %v1341, %v1341
    %v1374 = vpack.c.bf16 %v1342, %v1342
    %v1375 = vpack.c.bf16 %v1343, %v1343
    %v1376 = vadd.f32 %v646, %v39
    %v1377 = vadd.f32 %v648, %v40
    %v1378 = vadd.f32 %v651, %v41
    %v1379 = vadd.f32 %v653, %v42
    %v1380 = vadd.f32 %v656, %v43
    %v1381 = vadd.f32 %v658, %v44
    %v1382 = vadd.f32 %v661, %v45
    %v1383 = vadd.f32 %v663, %v46
    %v1384 = vadd.f32 %v666, %v47
    %v1385 = vadd.f32 %v668, %v48
    %v1386 = vadd.f32 %v671, %v49
    %v1387 = vadd.f32 %v673, %v50
    %v1388 = vadd.f32 %v676, %v51
    %v1389 = vadd.f32 %v678, %v52
    %v1390 = vadd.f32 %v681, %v53
    %v1391 = vadd.f32 %v683, %v54
    %v1392 = vadd.f32 %v686, %v55
    %v1393 = vadd.f32 %v688, %v56
    %v1394 = vadd.f32 %v691, %v57
    %v1395 = vadd.f32 %v693, %v58
    %v1396 = vadd.f32 %v696, %v59
    %v1397 = vadd.f32 %v698, %v60
    %v1398 = vadd.f32 %v701, %v61
    %v1399 = vadd.f32 %v703, %v62
    %v1400 = vadd.f32 %v706, %v63
    %v1401 = vadd.f32 %v708, %v64
    %v1402 = vadd.f32 %v711, %v65
    %v1403 = vadd.f32 %v713, %v66
    %v1404 = vadd.f32 %v716, %v67
    %v1405 = vadd.f32 %v718, %v68
    %v1406 = vadd.f32 %v721, %v69
    %v1407 = vadd.f32 %v723, %v70
    %v1408 = vmax.f32 %v1376, 0.0
    %v1409 = vmax.f32 %v1377, 0.0
    %v1410 = vmax.f32 %v1378, 0.0
    %v1411 = vmax.f32 %v1379, 0.0
    %v1412 = vmax.f32 %v1380, 0.0
    %v1413 = vmax.f32 %v1381, 0.0
    %v1414 = vmax.f32 %v1382, 0.0
    %v1415 = vmax.f32 %v1383, 0.0
    %v1416 = vmax.f32 %v1384, 0.0
    %v1417 = vmax.f32 %v1385, 0.0
    %v1418 = vmax.f32 %v1386, 0.0
    %v1419 = vmax.f32 %v1387, 0.0
    %v1420 = vmax.f32 %v1388, 0.0
    %v1421 = vmax.f32 %v1389, 0.0
    %v1422 = vmax.f32 %v1390, 0.0
    %v1423 = vmax.f32 %v1391, 0.0
    %v1424 = vmax.f32 %v1392, 0.0
    %v1425 = vmax.f32 %v1393, 0.0
    %v1426 = vmax.f32 %v1394, 0.0
    %v1427 = vmax.f32 %v1395, 0.0
    %v1428 = vmax.f32 %v1396, 0.0
    %v1429 = vmax.f32 %v1397, 0.0
    %v1430 = vmax.f32 %v1398, 0.0
    %v1431 = vmax.f32 %v1399, 0.0
    %v1432 = vmax.f32 %v1400, 0.0
    %v1433 = vmax.f32 %v1401, 0.0
    %v1434 = vmax.f32 %v1402, 0.0
    %v1435 = vmax.f32 %v1403, 0.0
    %v1436 = vmax.f32 %v1404, 0.0
    %v1437 = vmax.f32 %v1405, 0.0
    %v1438 = vmax.f32 %v1406, 0.0
    %v1439 = vmax.f32 %v1407, 0.0
    %v1440 = vpack.c.bf16 %v1408, %v1408
    %v1441 = vpack.c.bf16 %v1409, %v1409
    %v1442 = vpack.c.bf16 %v1410, %v1410
    %v1443 = vpack.c.bf16 %v1411, %v1411
    %v1444 = vpack.c.bf16 %v1412, %v1412
    %v1445 = vpack.c.bf16 %v1413, %v1413
    %v1446 = vpack.c.bf16 %v1414, %v1414
    %v1447 = vpack.c.bf16 %v1415, %v1415
    %v1448 = vpack.c.bf16 %v1416, %v1416
    %v1449 = vpack.c.bf16 %v1417, %v1417
    %v1450 = vpack.c.bf16 %v1418, %v1418
    %v1451 = vpack.c.bf16 %v1419, %v1419
    %v1452 = vpack.c.bf16 %v1420, %v1420
    %v1453 = vpack.c.bf16 %v1421, %v1421
    %v1454 = vpack.c.bf16 %v1422, %v1422
    %v1455 = vpack.c.bf16 %v1423, %v1423
    %v1456 = vpack.c.bf16 %v1424, %v1424
    %v1457 = vpack.c.bf16 %v1425, %v1425
    %v1458 = vpack.c.bf16 %v1426, %v1426
    %v1459 = vpack.c.bf16 %v1427, %v1427
    %v1460 = vpack.c.bf16 %v1428, %v1428
    %v1461 = vpack.c.bf16 %v1429, %v1429
    %v1462 = vpack.c.bf16 %v1430, %v1430
    %v1463 = vpack.c.bf16 %v1431, %v1431
    %v1464 = vpack.c.bf16 %v1432, %v1432
    %v1465 = vpack.c.bf16 %v1433, %v1433
    %v1466 = vpack.c.bf16 %v1434, %v1434
    %v1467 = vpack.c.bf16 %v1435, %v1435
    %v1468 = vpack.c.bf16 %v1436, %v1436
    %v1469 = vpack.c.bf16 %v1437, %v1437
    %v1470 = vpack.c.bf16 %v1438, %v1438
    %v1471 = vpack.c.bf16 %v1439, %v1439
    %v1472 = vadd.f32 %v735, %v39
    %v1473 = vadd.f32 %v737, %v40
    %v1474 = vadd.f32 %v740, %v41
    %v1475 = vadd.f32 %v742, %v42
    %v1476 = vadd.f32 %v745, %v43
    %v1477 = vadd.f32 %v747, %v44
    %v1478 = vadd.f32 %v750, %v45
    %v1479 = vadd.f32 %v752, %v46
    %v1480 = vadd.f32 %v755, %v47
    %v1481 = vadd.f32 %v757, %v48
    %v1482 = vadd.f32 %v760, %v49
    %v1483 = vadd.f32 %v762, %v50
    %v1484 = vadd.f32 %v765, %v51
    %v1485 = vadd.f32 %v767, %v52
    %v1486 = vadd.f32 %v770, %v53
    %v1487 = vadd.f32 %v772, %v54
    %v1488 = vadd.f32 %v775, %v55
    %v1489 = vadd.f32 %v777, %v56
    %v1490 = vadd.f32 %v780, %v57
    %v1491 = vadd.f32 %v782, %v58
    %v1492 = vadd.f32 %v785, %v59
    %v1493 = vadd.f32 %v787, %v60
    %v1494 = vadd.f32 %v790, %v61
    %v1495 = vadd.f32 %v792, %v62
    %v1496 = vadd.f32 %v795, %v63
    %v1497 = vadd.f32 %v797, %v64
    %v1498 = vadd.f32 %v800, %v65
    %v1499 = vadd.f32 %v802, %v66
    %v1500 = vadd.f32 %v805, %v67
    %v1501 = vadd.f32 %v807, %v68
    %v1502 = vadd.f32 %v810, %v69
    %v1503 = vadd.f32 %v812, %v70
    %v1504 = vmax.f32 %v1472, 0.0
    %v1505 = vmax.f32 %v1473, 0.0
    %v1506 = vmax.f32 %v1474, 0.0
    %v1507 = vmax.f32 %v1475, 0.0
    %v1508 = vmax.f32 %v1476, 0.0
    %v1509 = vmax.f32 %v1477, 0.0
    %v1510 = vmax.f32 %v1478, 0.0
    %v1511 = vmax.f32 %v1479, 0.0
    %v1512 = vmax.f32 %v1480, 0.0
    %v1513 = vmax.f32 %v1481, 0.0
    %v1514 = vmax.f32 %v1482, 0.0
    %v1515 = vmax.f32 %v1483, 0.0
    %v1516 = vmax.f32 %v1484, 0.0
    %v1517 = vmax.f32 %v1485, 0.0
    %v1518 = vmax.f32 %v1486, 0.0
    %v1519 = vmax.f32 %v1487, 0.0
    %v1520 = vmax.f32 %v1488, 0.0
    %v1521 = vmax.f32 %v1489, 0.0
    %v1522 = vmax.f32 %v1490, 0.0
    %v1523 = vmax.f32 %v1491, 0.0
    %v1524 = vmax.f32 %v1492, 0.0
    %v1525 = vmax.f32 %v1493, 0.0
    %v1526 = vmax.f32 %v1494, 0.0
    %v1527 = vmax.f32 %v1495, 0.0
    %v1528 = vmax.f32 %v1496, 0.0
    %v1529 = vmax.f32 %v1497, 0.0
    %v1530 = vmax.f32 %v1498, 0.0
    %v1531 = vmax.f32 %v1499, 0.0
    %v1532 = vmax.f32 %v1500, 0.0
    %v1533 = vmax.f32 %v1501, 0.0
    %v1534 = vmax.f32 %v1502, 0.0
    %v1535 = vmax.f32 %v1503, 0.0
    %v1536 = vpack.c.bf16 %v1504, %v1504
    %v1537 = vpack.c.bf16 %v1505, %v1505
    %v1538 = vpack.c.bf16 %v1506, %v1506
    %v1539 = vpack.c.bf16 %v1507, %v1507
    %v1540 = vpack.c.bf16 %v1508, %v1508
    %v1541 = vpack.c.bf16 %v1509, %v1509
    %v1542 = vpack.c.bf16 %v1510, %v1510
    %v1543 = vpack.c.bf16 %v1511, %v1511
    %v1544 = vpack.c.bf16 %v1512, %v1512
    %v1545 = vpack.c.bf16 %v1513, %v1513
    %v1546 = vpack.c.bf16 %v1514, %v1514
    %v1547 = vpack.c.bf16 %v1515, %v1515
    %v1548 = vpack.c.bf16 %v1516, %v1516
    %v1549 = vpack.c.bf16 %v1517, %v1517
    %v1550 = vpack.c.bf16 %v1518, %v1518
    %v1551 = vpack.c.bf16 %v1519, %v1519
    %v1552 = vpack.c.bf16 %v1520, %v1520
    %v1553 = vpack.c.bf16 %v1521, %v1521
    %v1554 = vpack.c.bf16 %v1522, %v1522
    %v1555 = vpack.c.bf16 %v1523, %v1523
    %v1556 = vpack.c.bf16 %v1524, %v1524
    %v1557 = vpack.c.bf16 %v1525, %v1525
    %v1558 = vpack.c.bf16 %v1526, %v1526
    %v1559 = vpack.c.bf16 %v1527, %v1527
    %v1560 = vpack.c.bf16 %v1528, %v1528
    %v1561 = vpack.c.bf16 %v1529, %v1529
    %v1562 = vpack.c.bf16 %v1530, %v1530
    %v1563 = vpack.c.bf16 %v1531, %v1531
    %v1564 = vpack.c.bf16 %v1532, %v1532
    %v1565 = vpack.c.bf16 %v1533, %v1533
    %v1566 = vpack.c.bf16 %v1534, %v1534
    %v1567 = vpack.c.bf16 %v1535, %v1535
    %v1568 = vadd.f32 %v824, %v39
    %v1569 = vadd.f32 %v826, %v40
    %v1570 = vadd.f32 %v829, %v41
    %v1571 = vadd.f32 %v831, %v42
    %v1572 = vadd.f32 %v834, %v43
    %v1573 = vadd.f32 %v836, %v44
    %v1574 = vadd.f32 %v839, %v45
    %v1575 = vadd.f32 %v841, %v46
    %v1576 = vadd.f32 %v844, %v47
    %v1577 = vadd.f32 %v846, %v48
    %v1578 = vadd.f32 %v849, %v49
    %v1579 = vadd.f32 %v851, %v50
    %v1580 = vadd.f32 %v854, %v51
    %v1581 = vadd.f32 %v856, %v52
    %v1582 = vadd.f32 %v859, %v53
    %v1583 = vadd.f32 %v861, %v54
    %v1584 = vadd.f32 %v864, %v55
    %v1585 = vadd.f32 %v866, %v56
    %v1586 = vadd.f32 %v869, %v57
    %v1587 = vadd.f32 %v871, %v58
    %v1588 = vadd.f32 %v874, %v59
    %v1589 = vadd.f32 %v876, %v60
    %v1590 = vadd.f32 %v879, %v61
    %v1591 = vadd.f32 %v881, %v62
    %v1592 = vadd.f32 %v884, %v63
    %v1593 = vadd.f32 %v886, %v64
    %v1594 = vadd.f32 %v889, %v65
    %v1595 = vadd.f32 %v891, %v66
    %v1596 = vadd.f32 %v894, %v67
    %v1597 = vadd.f32 %v896, %v68
    %v1598 = vadd.f32 %v899, %v69
    %v1599 = vadd.f32 %v901, %v70
    %v1600 = vmax.f32 %v1568, 0.0
    %v1601 = vmax.f32 %v1569, 0.0
    %v1602 = vmax.f32 %v1570, 0.0
    %v1603 = vmax.f32 %v1571, 0.0
    %v1604 = vmax.f32 %v1572, 0.0
    %v1605 = vmax.f32 %v1573, 0.0
    %v1606 = vmax.f32 %v1574, 0.0
    %v1607 = vmax.f32 %v1575, 0.0
    %v1608 = vmax.f32 %v1576, 0.0
    %v1609 = vmax.f32 %v1577, 0.0
    %v1610 = vmax.f32 %v1578, 0.0
    %v1611 = vmax.f32 %v1579, 0.0
    %v1612 = vmax.f32 %v1580, 0.0
    %v1613 = vmax.f32 %v1581, 0.0
    %v1614 = vmax.f32 %v1582, 0.0
    %v1615 = vmax.f32 %v1583, 0.0
    %v1616 = vmax.f32 %v1584, 0.0
    %v1617 = vmax.f32 %v1585, 0.0
    %v1618 = vmax.f32 %v1586, 0.0
    %v1619 = vmax.f32 %v1587, 0.0
    %v1620 = vmax.f32 %v1588, 0.0
    %v1621 = vmax.f32 %v1589, 0.0
    %v1622 = vmax.f32 %v1590, 0.0
    %v1623 = vmax.f32 %v1591, 0.0
    %v1624 = vmax.f32 %v1592, 0.0
    %v1625 = vmax.f32 %v1593, 0.0
    %v1626 = vmax.f32 %v1594, 0.0
    %v1627 = vmax.f32 %v1595, 0.0
    %v1628 = vmax.f32 %v1596, 0.0
    %v1629 = vmax.f32 %v1597, 0.0
    %v1630 = vmax.f32 %v1598, 0.0
    %v1631 = vmax.f32 %v1599, 0.0
    %v1632 = vpack.c.bf16 %v1600, %v1600
    %v1633 = vpack.c.bf16 %v1601, %v1601
    %v1634 = vpack.c.bf16 %v1602, %v1602
    %v1635 = vpack.c.bf16 %v1603, %v1603
    %v1636 = vpack.c.bf16 %v1604, %v1604
    %v1637 = vpack.c.bf16 %v1605, %v1605
    %v1638 = vpack.c.bf16 %v1606, %v1606
    %v1639 = vpack.c.bf16 %v1607, %v1607
    %v1640 = vpack.c.bf16 %v1608, %v1608
    %v1641 = vpack.c.bf16 %v1609, %v1609
    %v1642 = vpack.c.bf16 %v1610, %v1610
    %v1643 = vpack.c.bf16 %v1611, %v1611
    %v1644 = vpack.c.bf16 %v1612, %v1612
    %v1645 = vpack.c.bf16 %v1613, %v1613
    %v1646 = vpack.c.bf16 %v1614, %v1614
    %v1647 = vpack.c.bf16 %v1615, %v1615
    %v1648 = vpack.c.bf16 %v1616, %v1616
    %v1649 = vpack.c.bf16 %v1617, %v1617
    %v1650 = vpack.c.bf16 %v1618, %v1618
    %v1651 = vpack.c.bf16 %v1619, %v1619
    %v1652 = vpack.c.bf16 %v1620, %v1620
    %v1653 = vpack.c.bf16 %v1621, %v1621
    %v1654 = vpack.c.bf16 %v1622, %v1622
    %v1655 = vpack.c.bf16 %v1623, %v1623
    %v1656 = vpack.c.bf16 %v1624, %v1624
    %v1657 = vpack.c.bf16 %v1625, %v1625
    %v1658 = vpack.c.bf16 %v1626, %v1626
    %v1659 = vpack.c.bf16 %v1627, %v1627
    %v1660 = vpack.c.bf16 %v1628, %v1628
    %v1661 = vpack.c.bf16 %v1629, %v1629
    %v1662 = vpack.c.bf16 %v1630, %v1630
    %v1663 = vpack.c.bf16 %v1631, %v1631
    %v1664 = vadd.f32 %v913, %v39
    %v1665 = vadd.f32 %v915, %v40
    %v1666 = vadd.f32 %v918, %v41
    %v1667 = vadd.f32 %v920, %v42
    %v1668 = vadd.f32 %v923, %v43
    %v1669 = vadd.f32 %v925, %v44
    %v1670 = vadd.f32 %v928, %v45
    %v1671 = vadd.f32 %v930, %v46
    %v1672 = vadd.f32 %v933, %v47
    %v1673 = vadd.f32 %v935, %v48
    %v1674 = vadd.f32 %v938, %v49
    %v1675 = vadd.f32 %v940, %v50
    %v1676 = vadd.f32 %v943, %v51
    %v1677 = vadd.f32 %v945, %v52
    %v1678 = vadd.f32 %v948, %v53
    %v1679 = vadd.f32 %v950, %v54
    %v1680 = vadd.f32 %v953, %v55
    %v1681 = vadd.f32 %v955, %v56
    %v1682 = vadd.f32 %v958, %v57
    %v1683 = vadd.f32 %v960, %v58
    %v1684 = vadd.f32 %v963, %v59
    %v1685 = vadd.f32 %v965, %v60
    %v1686 = vadd.f32 %v968, %v61
    %v1687 = vadd.f32 %v970, %v62
    %v1688 = vadd.f32 %v973, %v63
    %v1689 = vadd.f32 %v975, %v64
    %v1690 = vadd.f32 %v978, %v65
    %v1691 = vadd.f32 %v980, %v66
    %v1692 = vadd.f32 %v983, %v67
    %v1693 = vadd.f32 %v985, %v68
    %v1694 = vadd.f32 %v988, %v69
    %v1695 = vadd.f32 %v990, %v70
    %v1696 = vmax.f32 %v1664, 0.0
    %v1697 = vmax.f32 %v1665, 0.0
    %v1698 = vmax.f32 %v1666, 0.0
    %v1699 = vmax.f32 %v1667, 0.0
    %v1700 = vmax.f32 %v1668, 0.0
    %v1701 = vmax.f32 %v1669, 0.0
    %v1702 = vmax.f32 %v1670, 0.0
    %v1703 = vmax.f32 %v1671, 0.0
    %v1704 = vmax.f32 %v1672, 0.0
    %v1705 = vmax.f32 %v1673, 0.0
    %v1706 = vmax.f32 %v1674, 0.0
    %v1707 = vmax.f32 %v1675, 0.0
    %v1708 = vmax.f32 %v1676, 0.0
    %v1709 = vmax.f32 %v1677, 0.0
    %v1710 = vmax.f32 %v1678, 0.0
    %v1711 = vmax.f32 %v1679, 0.0
    %v1712 = vmax.f32 %v1680, 0.0
    %v1713 = vmax.f32 %v1681, 0.0
    %v1714 = vmax.f32 %v1682, 0.0
    %v1715 = vmax.f32 %v1683, 0.0
    %v1716 = vmax.f32 %v1684, 0.0
    %v1717 = vmax.f32 %v1685, 0.0
    %v1718 = vmax.f32 %v1686, 0.0
    %v1719 = vmax.f32 %v1687, 0.0
    %v1720 = vmax.f32 %v1688, 0.0
    %v1721 = vmax.f32 %v1689, 0.0
    %v1722 = vmax.f32 %v1690, 0.0
    %v1723 = vmax.f32 %v1691, 0.0
    %v1724 = vmax.f32 %v1692, 0.0
    %v1725 = vmax.f32 %v1693, 0.0
    %v1726 = vmax.f32 %v1694, 0.0
    %v1727 = vmax.f32 %v1695, 0.0
    %v1728 = vpack.c.bf16 %v1696, %v1696
    %v1729 = vpack.c.bf16 %v1697, %v1697
    %v1730 = vpack.c.bf16 %v1698, %v1698
    %v1731 = vpack.c.bf16 %v1699, %v1699
    %v1732 = vpack.c.bf16 %v1700, %v1700
    %v1733 = vpack.c.bf16 %v1701, %v1701
    %v1734 = vpack.c.bf16 %v1702, %v1702
    %v1735 = vpack.c.bf16 %v1703, %v1703
    %v1736 = vpack.c.bf16 %v1704, %v1704
    %v1737 = vpack.c.bf16 %v1705, %v1705
    %v1738 = vpack.c.bf16 %v1706, %v1706
    %v1739 = vpack.c.bf16 %v1707, %v1707
    %v1740 = vpack.c.bf16 %v1708, %v1708
    %v1741 = vpack.c.bf16 %v1709, %v1709
    %v1742 = vpack.c.bf16 %v1710, %v1710
    %v1743 = vpack.c.bf16 %v1711, %v1711
    %v1744 = vpack.c.bf16 %v1712, %v1712
    %v1745 = vpack.c.bf16 %v1713, %v1713
    %v1746 = vpack.c.bf16 %v1714, %v1714
    %v1747 = vpack.c.bf16 %v1715, %v1715
    %v1748 = vpack.c.bf16 %v1716, %v1716
    %v1749 = vpack.c.bf16 %v1717, %v1717
    %v1750 = vpack.c.bf16 %v1718, %v1718
    %v1751 = vpack.c.bf16 %v1719, %v1719
    %v1752 = vpack.c.bf16 %v1720, %v1720
    %v1753 = vpack.c.bf16 %v1721, %v1721
    %v1754 = vpack.c.bf16 %v1722, %v1722
    %v1755 = vpack.c.bf16 %v1723, %v1723
    %v1756 = vpack.c.bf16 %v1724, %v1724
    %v1757 = vpack.c.bf16 %v1725, %v1725
    %v1758 = vpack.c.bf16 %v1726, %v1726
    %v1759 = vpack.c.bf16 %v1727, %v1727
    %v1792 = vunpack.c.l.b16 %v1056
    %v1793 = vunpack.c.l.b16 %v1057
    %v1794 = vunpack.c.l.b16 %v1058
    %v1795 = vunpack.c.l.b16 %v1059
    %v1796 = vunpack.c.l.b16 %v1060
    %v1797 = vunpack.c.l.b16 %v1061
    %v1798 = vunpack.c.l.b16 %v1062
    %v1799 = vunpack.c.l.b16 %v1063
    %v1800 = vunpack.c.l.b16 %v1064
    %v1801 = vunpack.c.l.b16 %v1065
    %v1802 = vunpack.c.l.b16 %v1066
    %v1803 = vunpack.c.l.b16 %v1067
    %v1804 = vunpack.c.l.b16 %v1068
    %v1805 = vunpack.c.l.b16 %v1069
    %v1806 = vunpack.c.l.b16 %v1070
    %v1807 = vunpack.c.l.b16 %v1071
    %v1808 = vunpack.c.l.b16 %v1072
    %v1809 = vunpack.c.l.b16 %v1073
    %v1810 = vunpack.c.l.b16 %v1074
    %v1811 = vunpack.c.l.b16 %v1075
    %v1812 = vunpack.c.l.b16 %v1076
    %v1813 = vunpack.c.l.b16 %v1077
    %v1814 = vunpack.c.l.b16 %v1078
    %v1815 = vunpack.c.l.b16 %v1079
    %v1816 = vunpack.c.l.b16 %v1080
    %v1817 = vunpack.c.l.b16 %v1081
    %v1818 = vunpack.c.l.b16 %v1082
    %v1819 = vunpack.c.l.b16 %v1083
    %v1820 = vunpack.c.l.b16 %v1084
    %v1821 = vunpack.c.l.b16 %v1085
    %v1822 = vunpack.c.l.b16 %v1086
    %v1823 = vunpack.c.l.b16 %v1087
    %v1824 = vpack.c.b16 %v1793, %v1792
    %v1825 = vpack.c.b16 %v1795, %v1794
    %v1826 = vpack.c.b16 %v1797, %v1796
    %v1827 = vpack.c.b16 %v1799, %v1798
    %v1828 = vpack.c.b16 %v1801, %v1800
    %v1829 = vpack.c.b16 %v1803, %v1802
    %v1830 = vpack.c.b16 %v1805, %v1804
    %v1831 = vpack.c.b16 %v1807, %v1806
    %v1832 = vpack.c.b16 %v1809, %v1808
    %v1833 = vpack.c.b16 %v1811, %v1810
    %v1834 = vpack.c.b16 %v1813, %v1812
    %v1835 = vpack.c.b16 %v1815, %v1814
    %v1836 = vpack.c.b16 %v1817, %v1816
    %v1837 = vpack.c.b16 %v1819, %v1818
    %v1838 = vpack.c.b16 %v1821, %v1820
    %v1839 = vpack.c.b16 %v1823, %v1822
    %v1888 = vunpack.c.l.b16 %v1152
    %v1889 = vunpack.c.l.b16 %v1153
    %v1890 = vunpack.c.l.b16 %v1154
    %v1891 = vunpack.c.l.b16 %v1155
    %v1892 = vunpack.c.l.b16 %v1156
    %v1893 = vunpack.c.l.b16 %v1157
    %v1894 = vunpack.c.l.b16 %v1158
    %v1895 = vunpack.c.l.b16 %v1159
    %v1896 = vunpack.c.l.b16 %v1160
    %v1897 = vunpack.c.l.b16 %v1161
    %v1898 = vunpack.c.l.b16 %v1162
    %v1899 = vunpack.c.l.b16 %v1163
    %v1900 = vunpack.c.l.b16 %v1164
    %v1901 = vunpack.c.l.b16 %v1165
    %v1902 = vunpack.c.l.b16 %v1166
    %v1903 = vunpack.c.l.b16 %v1167
    %v1904 = vunpack.c.l.b16 %v1168
    %v1905 = vunpack.c.l.b16 %v1169
    %v1906 = vunpack.c.l.b16 %v1170
    %v1907 = vunpack.c.l.b16 %v1171
    %v1908 = vunpack.c.l.b16 %v1172
    %v1909 = vunpack.c.l.b16 %v1173
    %v1910 = vunpack.c.l.b16 %v1174
    %v1911 = vunpack.c.l.b16 %v1175
    %v1912 = vunpack.c.l.b16 %v1176
    %v1913 = vunpack.c.l.b16 %v1177
    %v1914 = vunpack.c.l.b16 %v1178
    %v1915 = vunpack.c.l.b16 %v1179
    %v1916 = vunpack.c.l.b16 %v1180
    %v1917 = vunpack.c.l.b16 %v1181
    %v1918 = vunpack.c.l.b16 %v1182
    %v1919 = vunpack.c.l.b16 %v1183
    %v1920 = vpack.c.b16 %v1889, %v1888
    %v1921 = vpack.c.b16 %v1891, %v1890
    %v1922 = vpack.c.b16 %v1893, %v1892
    %v1923 = vpack.c.b16 %v1895, %v1894
    %v1924 = vpack.c.b16 %v1897, %v1896
    %v1925 = vpack.c.b16 %v1899, %v1898
    %v1926 = vpack.c.b16 %v1901, %v1900
    %v1927 = vpack.c.b16 %v1903, %v1902
    %v1928 = vpack.c.b16 %v1905, %v1904
    %v1929 = vpack.c.b16 %v1907, %v1906
    %v1930 = vpack.c.b16 %v1909, %v1908
    %v1931 = vpack.c.b16 %v1911, %v1910
    %v1932 = vpack.c.b16 %v1913, %v1912
    %v1933 = vpack.c.b16 %v1915, %v1914
    %v1934 = vpack.c.b16 %v1917, %v1916
    %v1935 = vpack.c.b16 %v1919, %v1918
    %v1984 = vunpack.c.l.b16 %v1248
    %v1985 = vunpack.c.l.b16 %v1249
    %v1986 = vunpack.c.l.b16 %v1250
    %v1987 = vunpack.c.l.b16 %v1251
    %v1988 = vunpack.c.l.b16 %v1252
    %v1989 = vunpack.c.l.b16 %v1253
    %v1990 = vunpack.c.l.b16 %v1254
    %v1991 = vunpack.c.l.b16 %v1255
    %v1992 = vunpack.c.l.b16 %v1256
    %v1993 = vunpack.c.l.b16 %v1257
    %v1994 = vunpack.c.l.b16 %v1258
    %v1995 = vunpack.c.l.b16 %v1259
    %v1996 = vunpack.c.l.b16 %v1260
    %v1997 = vunpack.c.l.b16 %v1261
    %v1998 = vunpack.c.l.b16 %v1262
    %v1999 = vunpack.c.l.b16 %v1263
    %v2000 = vunpack.c.l.b16 %v1264
    %v2001 = vunpack.c.l.b16 %v1265
    %v2002 = vunpack.c.l.b16 %v1266
    %v2003 = vunpack.c.l.b16 %v1267
    %v2004 = vunpack.c.l.b16 %v1268
    %v2005 = vunpack.c.l.b16 %v1269
    %v2006 = vunpack.c.l.b16 %v1270
    %v2007 = vunpack.c.l.b16 %v1271
    %v2008 = vunpack.c.l.b16 %v1272
    %v2009 = vunpack.c.l.b16 %v1273
    %v2010 = vunpack.c.l.b16 %v1274
    %v2011 = vunpack.c.l.b16 %v1275
    %v2012 = vunpack.c.l.b16 %v1276
    %v2013 = vunpack.c.l.b16 %v1277
    %v2014 = vunpack.c.l.b16 %v1278
    %v2015 = vunpack.c.l.b16 %v1279
    %v2016 = vpack.c.b16 %v1985, %v1984
    %v2017 = vpack.c.b16 %v1987, %v1986
    %v2018 = vpack.c.b16 %v1989, %v1988
    %v2019 = vpack.c.b16 %v1991, %v1990
    %v2020 = vpack.c.b16 %v1993, %v1992
    %v2021 = vpack.c.b16 %v1995, %v1994
    %v2022 = vpack.c.b16 %v1997, %v1996
    %v2023 = vpack.c.b16 %v1999, %v1998
    %v2024 = vpack.c.b16 %v2001, %v2000
    %v2025 = vpack.c.b16 %v2003, %v2002
    %v2026 = vpack.c.b16 %v2005, %v2004
    %v2027 = vpack.c.b16 %v2007, %v2006
    %v2028 = vpack.c.b16 %v2009, %v2008
    %v2029 = vpack.c.b16 %v2011, %v2010
    %v2030 = vpack.c.b16 %v2013, %v2012
    %v2031 = vpack.c.b16 %v2015, %v2014
    %v2080 = vunpack.c.l.b16 %v1344
    %v2081 = vunpack.c.l.b16 %v1345
    %v2082 = vunpack.c.l.b16 %v1346
    %v2083 = vunpack.c.l.b16 %v1347
    %v2084 = vunpack.c.l.b16 %v1348
    %v2085 = vunpack.c.l.b16 %v1349
    %v2086 = vunpack.c.l.b16 %v1350
    %v2087 = vunpack.c.l.b16 %v1351
    %v2088 = vunpack.c.l.b16 %v1352
    %v2089 = vunpack.c.l.b16 %v1353
    %v2090 = vunpack.c.l.b16 %v1354
    %v2091 = vunpack.c.l.b16 %v1355
    %v2092 = vunpack.c.l.b16 %v1356
    %v2093 = vunpack.c.l.b16 %v1357
    %v2094 = vunpack.c.l.b16 %v1358
    %v2095 = vunpack.c.l.b16 %v1359
    %v2096 = vunpack.c.l.b16 %v1360
    %v2097 = vunpack.c.l.b16 %v1361
    %v2098 = vunpack.c.l.b16 %v1362
    %v2099 = vunpack.c.l.b16 %v1363
    %v2100 = vunpack.c.l.b16 %v1364
    %v2101 = vunpack.c.l.b16 %v1365
    %v2102 = vunpack.c.l.b16 %v1366
    %v2103 = vunpack.c.l.b16 %v1367
    %v2104 = vunpack.c.l.b16 %v1368
    %v2105 = vunpack.c.l.b16 %v1369
    %v2106 = vunpack.c.l.b16 %v1370
    %v2107 = vunpack.c.l.b16 %v1371
    %v2108 = vunpack.c.l.b16 %v1372
    %v2109 = vunpack.c.l.b16 %v1373
    %v2110 = vunpack.c.l.b16 %v1374
    %v2111 = vunpack.c.l.b16 %v1375
    %v2112 = vpack.c.b16 %v2081, %v2080
    %v2113 = vpack.c.b16 %v2083, %v2082
    %v2114 = vpack.c.b16 %v2085, %v2084
    %v2115 = vpack.c.b16 %v2087, %v2086
    %v2116 = vpack.c.b16 %v2089, %v2088
    %v2117 = vpack.c.b16 %v2091, %v2090
    %v2118 = vpack.c.b16 %v2093, %v2092
    %v2119 = vpack.c.b16 %v2095, %v2094
    %v2120 = vpack.c.b16 %v2097, %v2096
    %v2121 = vpack.c.b16 %v2099, %v2098
    %v2122 = vpack.c.b16 %v2101, %v2100
    %v2123 = vpack.c.b16 %v2103, %v2102
    %v2124 = vpack.c.b16 %v2105, %v2104
    %v2125 = vpack.c.b16 %v2107, %v2106
    %v2126 = vpack.c.b16 %v2109, %v2108
    %v2127 = vpack.c.b16 %v2111, %v2110
    %v2176 = vunpack.c.l.b16 %v1440
    %v2177 = vunpack.c.l.b16 %v1441
    %v2178 = vunpack.c.l.b16 %v1442
    %v2179 = vunpack.c.l.b16 %v1443
    %v2180 = vunpack.c.l.b16 %v1444
    %v2181 = vunpack.c.l.b16 %v1445
    %v2182 = vunpack.c.l.b16 %v1446
    %v2183 = vunpack.c.l.b16 %v1447
    %v2184 = vunpack.c.l.b16 %v1448
    %v2185 = vunpack.c.l.b16 %v1449
    %v2186 = vunpack.c.l.b16 %v1450
    %v2187 = vunpack.c.l.b16 %v1451
    %v2188 = vunpack.c.l.b16 %v1452
    %v2189 = vunpack.c.l.b16 %v1453
    %v2190 = vunpack.c.l.b16 %v1454
    %v2191 = vunpack.c.l.b16 %v1455
    %v2192 = vunpack.c.l.b16 %v1456
    %v2193 = vunpack.c.l.b16 %v1457
    %v2194 = vunpack.c.l.b16 %v1458
    %v2195 = vunpack.c.l.b16 %v1459
    %v2196 = vunpack.c.l.b16 %v1460
    %v2197 = vunpack.c.l.b16 %v1461
    %v2198 = vunpack.c.l.b16 %v1462
    %v2199 = vunpack.c.l.b16 %v1463
    %v2200 = vunpack.c.l.b16 %v1464
    %v2201 = vunpack.c.l.b16 %v1465
    %v2202 = vunpack.c.l.b16 %v1466
    %v2203 = vunpack.c.l.b16 %v1467
    %v2204 = vunpack.c.l.b16 %v1468
    %v2205 = vunpack.c.l.b16 %v1469
    %v2206 = vunpack.c.l.b16 %v1470
    %v2207 = vunpack.c.l.b16 %v1471
    %v2208 = vpack.c.b16 %v2177, %v2176
    %v2209 = vpack.c.b16 %v2179, %v2178
    %v2210 = vpack.c.b16 %v2181, %v2180
    %v2211 = vpack.c.b16 %v2183, %v2182
    %v2212 = vpack.c.b16 %v2185, %v2184
    %v2213 = vpack.c.b16 %v2187, %v2186
    %v2214 = vpack.c.b16 %v2189, %v2188
    %v2215 = vpack.c.b16 %v2191, %v2190
    %v2216 = vpack.c.b16 %v2193, %v2192
    %v2217 = vpack.c.b16 %v2195, %v2194
    %v2218 = vpack.c.b16 %v2197, %v2196
    %v2219 = vpack.c.b16 %v2199, %v2198
    %v2220 = vpack.c.b16 %v2201, %v2200
    %v2221 = vpack.c.b16 %v2203, %v2202
    %v2222 = vpack.c.b16 %v2205, %v2204
    %v2223 = vpack.c.b16 %v2207, %v2206
    %v2272 = vunpack.c.l.b16 %v1536
    %v2273 = vunpack.c.l.b16 %v1537
    %v2274 = vunpack.c.l.b16 %v1538
    %v2275 = vunpack.c.l.b16 %v1539
    %v2276 = vunpack.c.l.b16 %v1540
    %v2277 = vunpack.c.l.b16 %v1541
    %v2278 = vunpack.c.l.b16 %v1542
    %v2279 = vunpack.c.l.b16 %v1543
    %v2280 = vunpack.c.l.b16 %v1544
    %v2281 = vunpack.c.l.b16 %v1545
    %v2282 = vunpack.c.l.b16 %v1546
    %v2283 = vunpack.c.l.b16 %v1547
    %v2284 = vunpack.c.l.b16 %v1548
    %v2285 = vunpack.c.l.b16 %v1549
    %v2286 = vunpack.c.l.b16 %v1550
    %v2287 = vunpack.c.l.b16 %v1551
    %v2288 = vunpack.c.l.b16 %v1552
    %v2289 = vunpack.c.l.b16 %v1553
    %v2290 = vunpack.c.l.b16 %v1554
    %v2291 = vunpack.c.l.b16 %v1555
    %v2292 = vunpack.c.l.b16 %v1556
    %v2293 = vunpack.c.l.b16 %v1557
    %v2294 = vunpack.c.l.b16 %v1558
    %v2295 = vunpack.c.l.b16 %v1559
    %v2296 = vunpack.c.l.b16 %v1560
    %v2297 = vunpack.c.l.b16 %v1561
    %v2298 = vunpack.c.l.b16 %v1562
    %v2299 = vunpack.c.l.b16 %v1563
    %v2300 = vunpack.c.l.b16 %v1564
    %v2301 = vunpack.c.l.b16 %v1565
    %v2302 = vunpack.c.l.b16 %v1566
    %v2303 = vunpack.c.l.b16 %v1567
    %v2304 = vpack.c.b16 %v2273, %v2272
    %v2305 = vpack.c.b16 %v2275, %v2274
    %v2306 = vpack.c.b16 %v2277, %v2276
    %v2307 = vpack.c.b16 %v2279, %v2278
    %v2308 = vpack.c.b16 %v2281, %v2280
    %v2309 = vpack.c.b16 %v2283, %v2282
    %v2310 = vpack.c.b16 %v2285, %v2284
    %v2311 = vpack.c.b16 %v2287, %v2286
    %v2312 = vpack.c.b16 %v2289, %v2288
    %v2313 = vpack.c.b16 %v2291, %v2290
    %v2314 = vpack.c.b16 %v2293, %v2292
    %v2315 = vpack.c.b16 %v2295, %v2294
    %v2316 = vpack.c.b16 %v2297, %v2296
    %v2317 = vpack.c.b16 %v2299, %v2298
    %v2318 = vpack.c.b16 %v2301, %v2300
    %v2319 = vpack.c.b16 %v2303, %v2302
    %v2368 = vunpack.c.l.b16 %v1632
    %v2369 = vunpack.c.l.b16 %v1633
    %v2370 = vunpack.c.l.b16 %v1634
    %v2371 = vunpack.c.l.b16 %v1635
    %v2372 = vunpack.c.l.b16 %v1636
    %v2373 = vunpack.c.l.b16 %v1637
    %v2374 = vunpack.c.l.b16 %v1638
    %v2375 = vunpack.c.l.b16 %v1639
    %v2376 = vunpack.c.l.b16 %v1640
    %v2377 = vunpack.c.l.b16 %v1641
    %v2378 = vunpack.c.l.b16 %v1642
    %v2379 = vunpack.c.l.b16 %v1643
    %v2380 = vunpack.c.l.b16 %v1644
    %v2381 = vunpack.c.l.b16 %v1645
    %v2382 = vunpack.c.l.b16 %v1646
    %v2383 = vunpack.c.l.b16 %v1647
    %v2384 = vunpack.c.l.b16 %v1648
    %v2385 = vunpack.c.l.b16 %v1649
    %v2386 = vunpack.c.l.b16 %v1650
    %v2387 = vunpack.c.l.b16 %v1651
    %v2388 = vunpack.c.l.b16 %v1652
    %v2389 = vunpack.c.l.b16 %v1653
    %v2390 = vunpack.c.l.b16 %v1654
    %v2391 = vunpack.c.l.b16 %v1655
    %v2392 = vunpack.c.l.b16 %v1656
    %v2393 = vunpack.c.l.b16 %v1657
    %v2394 = vunpack.c.l.b16 %v1658
    %v2395 = vunpack.c.l.b16 %v1659
    %v2396 = vunpack.c.l.b16 %v1660
    %v2397 = vunpack.c.l.b16 %v1661
    %v2398 = vunpack.c.l.b16 %v1662
    %v2399 = vunpack.c.l.b16 %v1663
    %v2400 = vpack.c.b16 %v2369, %v2368
    %v2401 = vpack.c.b16 %v2371, %v2370
    %v2402 = vpack.c.b16 %v2373, %v2372
    %v2403 = vpack.c.b16 %v2375, %v2374
    %v2404 = vpack.c.b16 %v2377, %v2376
    %v2405 = vpack.c.b16 %v2379, %v2378
    %v2406 = vpack.c.b16 %v2381, %v2380
    %v2407 = vpack.c.b16 %v2383, %v2382
    %v2408 = vpack.c.b16 %v2385, %v2384
    %v2409 = vpack.c.b16 %v2387, %v2386
    %v2410 = vpack.c.b16 %v2389, %v2388
    %v2411 = vpack.c.b16 %v2391, %v2390
    %v2412 = vpack.c.b16 %v2393, %v2392
    %v2413 = vpack.c.b16 %v2395, %v2394
    %v2414 = vpack.c.b16 %v2397, %v2396
    %v2415 = vpack.c.b16 %v2399, %v2398
    %v2464 = vunpack.c.l.b16 %v1728
    %v2465 = vunpack.c.l.b16 %v1729
    %v2466 = vunpack.c.l.b16 %v1730
    %v2467 = vunpack.c.l.b16 %v1731
    %v2468 = vunpack.c.l.b16 %v1732
    %v2469 = vunpack.c.l.b16 %v1733
    %v2470 = vunpack.c.l.b16 %v1734
    %v2471 = vunpack.c.l.b16 %v1735
    %v2472 = vunpack.c.l.b16 %v1736
    %v2473 = vunpack.c.l.b16 %v1737
    %v2474 = vunpack.c.l.b16 %v1738
    %v2475 = vunpack.c.l.b16 %v1739
    %v2476 = vunpack.c.l.b16 %v1740
    %v2477 = vunpack.c.l.b16 %v1741
    %v2478 = vunpack.c.l.b16 %v1742
    %v2479 = vunpack.c.l.b16 %v1743
    %v2480 = vunpack.c.l.b16 %v1744
    %v2481 = vunpack.c.l.b16 %v1745
    %v2482 = vunpack.c.l.b16 %v1746
    %v2483 = vunpack.c.l.b16 %v1747
    %v2484 = vunpack.c.l.b16 %v1748
    %v2485 = vunpack.c.l.b16 %v1749
    %v2486 = vunpack.c.l.b16 %v1750
    %v2487 = vunpack.c.l.b16 %v1751
    %v2488 = vunpack.c.l.b16 %v1752
    %v2489 = vunpack.c.l.b16 %v1753
    %v2490 = vunpack.c.l.b16 %v1754
    %v2491 = vunpack.c.l.b16 %v1755
    %v2492 = vunpack.c.l.b16 %v1756
    %v2493 = vunpack.c.l.b16 %v1757
    %v2494 = vunpack.c.l.b16 %v1758
    %v2495 = vunpack.c.l.b16 %v1759
    %v2496 = vpack.c.b16 %v2465, %v2464
    %v2497 = vpack.c.b16 %v2467, %v2466
    %v2498 = vpack.c.b16 %v2469, %v2468
    %v2499 = vpack.c.b16 %v2471, %v2470
    %v2500 = vpack.c.b16 %v2473, %v2472
    %v2501 = vpack.c.b16 %v2475, %v2474
    %v2502 = vpack.c.b16 %v2477, %v2476
    %v2503 = vpack.c.b16 %v2479, %v2478
    %v2504 = vpack.c.b16 %v2481, %v2480
    %v2505 = vpack.c.b16 %v2483, %v2482
    %v2506 = vpack.c.b16 %v2485, %v2484
    %v2507 = vpack.c.b16 %v2487, %v2486
    %v2508 = vpack.c.b16 %v2489, %v2488
    %v2509 = vpack.c.b16 %v2491, %v2490
    %v2510 = vpack.c.b16 %v2493, %v2492
    %v2511 = vpack.c.b16 %v2495, %v2494
    %s2528 = smul.u32 %s32, 16
    %s2529 = smul.addr %s2528, 4
    %s2530 = scalar_lea.vmem %s3, %s2529
    %v2531 = vld [vmem:[%s2530] sm:$0xff]
    %v2532 = vld [vmem:[%s2530 + $0x8] sm:$0xff]
    %v2533 = vld [vmem:[%s2530 + $0x10] sm:$0xff]
    %v2534 = vld [vmem:[%s2530 + $0x18] sm:$0xff]
    %v2535 = vld [vmem:[%s2530 + $0x20] sm:$0xff]
    %v2536 = vld [vmem:[%s2530 + $0x28] sm:$0xff]
    %v2537 = vld [vmem:[%s2530 + $0x30] sm:$0xff]
    %v2538 = vld [vmem:[%s2530 + $0x38] sm:$0xff]
    %s2539 = smul.u32 %s32, 64
    %s2540 = scalar_lea.vmem %s4, %s2539
    %v2541 = vld [vmem:[%s2540] sm:$0xff]
    %v2542 = vld [vmem:[%s2540 + $0x8] sm:$0xff]
    %v2543 = vld [vmem:[%s2540 + $0x10] sm:$0xff]
    %v2544 = vld [vmem:[%s2540 + $0x18] sm:$0xff]
    %v2545 = vld [vmem:[%s2540 + $0x20] sm:$0xff]
    %v2546 = vld [vmem:[%s2540 + $0x28] sm:$0xff]
    %v2547 = vld [vmem:[%s2540 + $0x30] sm:$0xff]
    %v2548 = vld [vmem:[%s2540 + $0x38] sm:$0xff]
    %2550 = vset.pattern.permute.xlu0 0
    %2551 = vperm.xlu0 %2550, %v2541
    %v2552 = vpop.permute.xlu0 %2551
    %2555 = vset.pattern.permute.xlu0 0
    %2556 = vperm.xlu0 %2555, %v2542
    %v2557 = vpop.permute.xlu0 %2556
    %2560 = vset.pattern.permute.xlu0 0
    %2561 = vperm.xlu0 %2560, %v2543
    %v2562 = vpop.permute.xlu0 %2561
    %2565 = vset.pattern.permute.xlu0 0
    %2566 = vperm.xlu0 %2565, %v2544
    %v2567 = vpop.permute.xlu0 %2566
    %2570 = vset.pattern.permute.xlu0 0
    %2571 = vperm.xlu0 %2570, %v2545
    %v2572 = vpop.permute.xlu0 %2571
    %2575 = vset.pattern.permute.xlu0 0
    %2576 = vperm.xlu0 %2575, %v2546
    %v2577 = vpop.permute.xlu0 %2576
    %2580 = vset.pattern.permute.xlu0 0
    %2581 = vperm.xlu0 %2580, %v2547
    %v2582 = vpop.permute.xlu0 %2581
    %2585 = vset.pattern.permute.xlu0 0
    %2586 = vperm.xlu0 %2585, %v2548
    %v2587 = vpop.permute.xlu0 %2586
    %v2597 = vunpack.c.l.b16 %v2531
    %v2598 = vunpack.c.h.b16 %v2531
    %v2599 = vunpack.c.l.b16 %v2532
    %v2600 = vunpack.c.h.b16 %v2532
    %v2601 = vunpack.c.l.b16 %v2533
    %v2602 = vunpack.c.h.b16 %v2533
    %v2603 = vunpack.c.l.b16 %v2534
    %v2604 = vunpack.c.h.b16 %v2534
    %v2605 = vunpack.c.l.b16 %v2535
    %v2606 = vunpack.c.h.b16 %v2535
    %v2607 = vunpack.c.l.b16 %v2536
    %v2608 = vunpack.c.h.b16 %v2536
    %v2609 = vunpack.c.l.b16 %v2537
    %v2610 = vunpack.c.h.b16 %v2537
    %v2611 = vunpack.c.l.b16 %v2538
    %v2612 = vunpack.c.h.b16 %v2538
    %v2613 = vpack.c.b16 %v2599, %v2597
    %v2614 = vpack.c.b16 %v2600, %v2598
    %v2615 = vpack.c.b16 %v2603, %v2601
    %v2616 = vpack.c.b16 %v2604, %v2602
    %v2617 = vpack.c.b16 %v2607, %v2605
    %v2618 = vpack.c.b16 %v2608, %v2606
    %v2619 = vpack.c.b16 %v2611, %v2609
    %v2620 = vpack.c.b16 %v2612, %v2610
    %2629 = vmatpush.bf16.msra.mxu0 %v1831
    %2630 = vmatpush.bf16.msra.mxu0 %v1830
    %2631 = vmatpush.bf16.msra.mxu0 %v1829
    %2632 = vmatpush.bf16.msra.mxu0 %v1828
    %2633 = vmatpush.bf16.msra.mxu0 %v1827
    %2634 = vmatpush.bf16.msra.mxu0 %v1826
    %2635 = vmatpush.bf16.msra.mxu0 %v1825
    %2636 = vmatpush.bf16.msra.mxu0 %v1824
    %2637 = vmatmul.bf16.gmra.mxu0 %v2613
    %v2638 = vpop.f32.mrf.mxu0
    %v2639 = vadd.f32 %v2552, %v2638
    %v2640 = vpop.f32.mrf.mxu0
    %v2641 = vadd.f32 %v2557, %v2640
    %2642 = vmatmul.bf16.gmra.mxu0 %v2615
    %v2643 = vpop.f32.mrf.mxu0
    %v2644 = vadd.f32 %v2562, %v2643
    %v2645 = vpop.f32.mrf.mxu0
    %v2646 = vadd.f32 %v2567, %v2645
    %2647 = vmatmul.bf16.gmra.mxu0 %v2617
    %v2648 = vpop.f32.mrf.mxu0
    %v2649 = vadd.f32 %v2572, %v2648
    %v2650 = vpop.f32.mrf.mxu0
    %v2651 = vadd.f32 %v2577, %v2650
    %2652 = vmatmul.bf16.gmra.mxu0 %v2619
    %v2653 = vpop.f32.mrf.mxu0
    %v2654 = vadd.f32 %v2582, %v2653
    %v2655 = vpop.f32.mrf.mxu0
    %v2656 = vadd.f32 %v2587, %v2655
    %2657 = vdwg.mxu0
    %2658 = vmatpush.bf16.msra.mxu0 %v1839
    %2659 = vmatpush.bf16.msra.mxu0 %v1838
    %2660 = vmatpush.bf16.msra.mxu0 %v1837
    %2661 = vmatpush.bf16.msra.mxu0 %v1836
    %2662 = vmatpush.bf16.msra.mxu0 %v1835
    %2663 = vmatpush.bf16.msra.mxu0 %v1834
    %2664 = vmatpush.bf16.msra.mxu0 %v1833
    %2665 = vmatpush.bf16.msra.mxu0 %v1832
    %2666 = vmatmul.bf16.gmra.mxu0 %v2614
    %v2667 = vpop.f32.mrf.mxu0
    %v2668 = vadd.f32 %v2639, %v2667
    %v2669 = vpop.f32.mrf.mxu0
    %v2670 = vadd.f32 %v2641, %v2669
    %2671 = vmatmul.bf16.gmra.mxu0 %v2616
    %v2672 = vpop.f32.mrf.mxu0
    %v2673 = vadd.f32 %v2644, %v2672
    %v2674 = vpop.f32.mrf.mxu0
    %v2675 = vadd.f32 %v2646, %v2674
    %2676 = vmatmul.bf16.gmra.mxu0 %v2618
    %v2677 = vpop.f32.mrf.mxu0
    %v2678 = vadd.f32 %v2649, %v2677
    %v2679 = vpop.f32.mrf.mxu0
    %v2680 = vadd.f32 %v2651, %v2679
    %2681 = vmatmul.bf16.gmra.mxu0 %v2620
    %v2682 = vpop.f32.mrf.mxu0
    %v2683 = vadd.f32 %v2654, %v2682
    %v2684 = vpop.f32.mrf.mxu0
    %v2685 = vadd.f32 %v2656, %v2684
    %2686 = vdwg.mxu0
    %2687 = vmatpush.bf16.msra.mxu0 %v1927
    %2688 = vmatpush.bf16.msra.mxu0 %v1926
    %2689 = vmatpush.bf16.msra.mxu0 %v1925
    %2690 = vmatpush.bf16.msra.mxu0 %v1924
    %2691 = vmatpush.bf16.msra.mxu0 %v1923
    %2692 = vmatpush.bf16.msra.mxu0 %v1922
    %2693 = vmatpush.bf16.msra.mxu0 %v1921
    %2694 = vmatpush.bf16.msra.mxu0 %v1920
    %2695 = vmatmul.bf16.gmra.mxu0 %v2613
    %v2696 = vpop.f32.mrf.mxu0
    %v2697 = vadd.f32 %v2552, %v2696
    %v2698 = vpop.f32.mrf.mxu0
    %v2699 = vadd.f32 %v2557, %v2698
    %2700 = vmatmul.bf16.gmra.mxu0 %v2615
    %v2701 = vpop.f32.mrf.mxu0
    %v2702 = vadd.f32 %v2562, %v2701
    %v2703 = vpop.f32.mrf.mxu0
    %v2704 = vadd.f32 %v2567, %v2703
    %2705 = vmatmul.bf16.gmra.mxu0 %v2617
    %v2706 = vpop.f32.mrf.mxu0
    %v2707 = vadd.f32 %v2572, %v2706
    %v2708 = vpop.f32.mrf.mxu0
    %v2709 = vadd.f32 %v2577, %v2708
    %2710 = vmatmul.bf16.gmra.mxu0 %v2619
    %v2711 = vpop.f32.mrf.mxu0
    %v2712 = vadd.f32 %v2582, %v2711
    %v2713 = vpop.f32.mrf.mxu0
    %v2714 = vadd.f32 %v2587, %v2713
    %2715 = vdwg.mxu0
    %2716 = vmatpush.bf16.msra.mxu0 %v1935
    %2717 = vmatpush.bf16.msra.mxu0 %v1934
    %2718 = vmatpush.bf16.msra.mxu0 %v1933
    %2719 = vmatpush.bf16.msra.mxu0 %v1932
    %2720 = vmatpush.bf16.msra.mxu0 %v1931
    %2721 = vmatpush.bf16.msra.mxu0 %v1930
    %2722 = vmatpush.bf16.msra.mxu0 %v1929
    %2723 = vmatpush.bf16.msra.mxu0 %v1928
    %2724 = vmatmul.bf16.gmra.mxu0 %v2614
    %v2725 = vpop.f32.mrf.mxu0
    %v2726 = vadd.f32 %v2697, %v2725
    %v2727 = vpop.f32.mrf.mxu0
    %v2728 = vadd.f32 %v2699, %v2727
    %2729 = vmatmul.bf16.gmra.mxu0 %v2616
    %v2730 = vpop.f32.mrf.mxu0
    %v2731 = vadd.f32 %v2702, %v2730
    %v2732 = vpop.f32.mrf.mxu0
    %v2733 = vadd.f32 %v2704, %v2732
    %2734 = vmatmul.bf16.gmra.mxu0 %v2618
    %v2735 = vpop.f32.mrf.mxu0
    %v2736 = vadd.f32 %v2707, %v2735
    %v2737 = vpop.f32.mrf.mxu0
    %v2738 = vadd.f32 %v2709, %v2737
    %2739 = vmatmul.bf16.gmra.mxu0 %v2620
    %v2740 = vpop.f32.mrf.mxu0
    %v2741 = vadd.f32 %v2712, %v2740
    %v2742 = vpop.f32.mrf.mxu0
    %v2743 = vadd.f32 %v2714, %v2742
    %2744 = vdwg.mxu0
    %2745 = vmatpush.bf16.msra.mxu0 %v2023
    %2746 = vmatpush.bf16.msra.mxu0 %v2022
    %2747 = vmatpush.bf16.msra.mxu0 %v2021
    %2748 = vmatpush.bf16.msra.mxu0 %v2020
    %2749 = vmatpush.bf16.msra.mxu0 %v2019
    %2750 = vmatpush.bf16.msra.mxu0 %v2018
    %2751 = vmatpush.bf16.msra.mxu0 %v2017
    %2752 = vmatpush.bf16.msra.mxu0 %v2016
    %2753 = vmatmul.bf16.gmra.mxu0 %v2613
    %v2754 = vpop.f32.mrf.mxu0
    %v2755 = vadd.f32 %v2552, %v2754
    %v2756 = vpop.f32.mrf.mxu0
    %v2757 = vadd.f32 %v2557, %v2756
    %2758 = vmatmul.bf16.gmra.mxu0 %v2615
    %v2759 = vpop.f32.mrf.mxu0
    %v2760 = vadd.f32 %v2562, %v2759
    %v2761 = vpop.f32.mrf.mxu0
    %v2762 = vadd.f32 %v2567, %v2761
    %2763 = vmatmul.bf16.gmra.mxu0 %v2617
    %v2764 = vpop.f32.mrf.mxu0
    %v2765 = vadd.f32 %v2572, %v2764
    %v2766 = vpop.f32.mrf.mxu0
    %v2767 = vadd.f32 %v2577, %v2766
    %2768 = vmatmul.bf16.gmra.mxu0 %v2619
    %v2769 = vpop.f32.mrf.mxu0
    %v2770 = vadd.f32 %v2582, %v2769
    %v2771 = vpop.f32.mrf.mxu0
    %v2772 = vadd.f32 %v2587, %v2771
    %2773 = vdwg.mxu0
    %2774 = vmatpush.bf16.msra.mxu0 %v2031
    %2775 = vmatpush.bf16.msra.mxu0 %v2030
    %2776 = vmatpush.bf16.msra.mxu0 %v2029
    %2777 = vmatpush.bf16.msra.mxu0 %v2028
    %2778 = vmatpush.bf16.msra.mxu0 %v2027
    %2779 = vmatpush.bf16.msra.mxu0 %v2026
    %2780 = vmatpush.bf16.msra.mxu0 %v2025
    %2781 = vmatpush.bf16.msra.mxu0 %v2024
    %2782 = vmatmul.bf16.gmra.mxu0 %v2614
    %v2783 = vpop.f32.mrf.mxu0
    %v2784 = vadd.f32 %v2755, %v2783
    %v2785 = vpop.f32.mrf.mxu0
    %v2786 = vadd.f32 %v2757, %v2785
    %2787 = vmatmul.bf16.gmra.mxu0 %v2616
    %v2788 = vpop.f32.mrf.mxu0
    %v2789 = vadd.f32 %v2760, %v2788
    %v2790 = vpop.f32.mrf.mxu0
    %v2791 = vadd.f32 %v2762, %v2790
    %2792 = vmatmul.bf16.gmra.mxu0 %v2618
    %v2793 = vpop.f32.mrf.mxu0
    %v2794 = vadd.f32 %v2765, %v2793
    %v2795 = vpop.f32.mrf.mxu0
    %v2796 = vadd.f32 %v2767, %v2795
    %2797 = vmatmul.bf16.gmra.mxu0 %v2620
    %v2798 = vpop.f32.mrf.mxu0
    %v2799 = vadd.f32 %v2770, %v2798
    %v2800 = vpop.f32.mrf.mxu0
    %v2801 = vadd.f32 %v2772, %v2800
    %2802 = vdwg.mxu0
    %2803 = vmatpush.bf16.msra.mxu0 %v2119
    %2804 = vmatpush.bf16.msra.mxu0 %v2118
    %2805 = vmatpush.bf16.msra.mxu0 %v2117
    %2806 = vmatpush.bf16.msra.mxu0 %v2116
    %2807 = vmatpush.bf16.msra.mxu0 %v2115
    %2808 = vmatpush.bf16.msra.mxu0 %v2114
    %2809 = vmatpush.bf16.msra.mxu0 %v2113
    %2810 = vmatpush.bf16.msra.mxu0 %v2112
    %2811 = vmatmul.bf16.gmra.mxu0 %v2613
    %v2812 = vpop.f32.mrf.mxu0
    %v2813 = vadd.f32 %v2552, %v2812
    %v2814 = vpop.f32.mrf.mxu0
    %v2815 = vadd.f32 %v2557, %v2814
    %2816 = vmatmul.bf16.gmra.mxu0 %v2615
    %v2817 = vpop.f32.mrf.mxu0
    %v2818 = vadd.f32 %v2562, %v2817
    %v2819 = vpop.f32.mrf.mxu0
    %v2820 = vadd.f32 %v2567, %v2819
    %2821 = vmatmul.bf16.gmra.mxu0 %v2617
    %v2822 = vpop.f32.mrf.mxu0
    %v2823 = vadd.f32 %v2572, %v2822
    %v2824 = vpop.f32.mrf.mxu0
    %v2825 = vadd.f32 %v2577, %v2824
    %2826 = vmatmul.bf16.gmra.mxu0 %v2619
    %v2827 = vpop.f32.mrf.mxu0
    %v2828 = vadd.f32 %v2582, %v2827
    %v2829 = vpop.f32.mrf.mxu0
    %v2830 = vadd.f32 %v2587, %v2829
    %2831 = vdwg.mxu0
    %2832 = vmatpush.bf16.msra.mxu0 %v2127
    %2833 = vmatpush.bf16.msra.mxu0 %v2126
    %2834 = vmatpush.bf16.msra.mxu0 %v2125
    %2835 = vmatpush.bf16.msra.mxu0 %v2124
    %2836 = vmatpush.bf16.msra.mxu0 %v2123
    %2837 = vmatpush.bf16.msra.mxu0 %v2122
    %2838 = vmatpush.bf16.msra.mxu0 %v2121
    %2839 = vmatpush.bf16.msra.mxu0 %v2120
    %2840 = vmatmul.bf16.gmra.mxu0 %v2614
    %v2841 = vpop.f32.mrf.mxu0
    %v2842 = vadd.f32 %v2813, %v2841
    %v2843 = vpop.f32.mrf.mxu0
    %v2844 = vadd.f32 %v2815, %v2843
    %2845 = vmatmul.bf16.gmra.mxu0 %v2616
    %v2846 = vpop.f32.mrf.mxu0
    %v2847 = vadd.f32 %v2818, %v2846
    %v2848 = vpop.f32.mrf.mxu0
    %v2849 = vadd.f32 %v2820, %v2848
    %2850 = vmatmul.bf16.gmra.mxu0 %v2618
    %v2851 = vpop.f32.mrf.mxu0
    %v2852 = vadd.f32 %v2823, %v2851
    %v2853 = vpop.f32.mrf.mxu0
    %v2854 = vadd.f32 %v2825, %v2853
    %2855 = vmatmul.bf16.gmra.mxu0 %v2620
    %v2856 = vpop.f32.mrf.mxu0
    %v2857 = vadd.f32 %v2828, %v2856
    %v2858 = vpop.f32.mrf.mxu0
    %v2859 = vadd.f32 %v2830, %v2858
    %2860 = vdwg.mxu0
    %2861 = vmatpush.bf16.msra.mxu0 %v2215
    %2862 = vmatpush.bf16.msra.mxu0 %v2214
    %2863 = vmatpush.bf16.msra.mxu0 %v2213
    %2864 = vmatpush.bf16.msra.mxu0 %v2212
    %2865 = vmatpush.bf16.msra.mxu0 %v2211
    %2866 = vmatpush.bf16.msra.mxu0 %v2210
    %2867 = vmatpush.bf16.msra.mxu0 %v2209
    %2868 = vmatpush.bf16.msra.mxu0 %v2208
    %2869 = vmatmul.bf16.gmra.mxu0 %v2613
    %v2870 = vpop.f32.mrf.mxu0
    %v2871 = vadd.f32 %v2552, %v2870
    %v2872 = vpop.f32.mrf.mxu0
    %v2873 = vadd.f32 %v2557, %v2872
    %2874 = vmatmul.bf16.gmra.mxu0 %v2615
    %v2875 = vpop.f32.mrf.mxu0
    %v2876 = vadd.f32 %v2562, %v2875
    %v2877 = vpop.f32.mrf.mxu0
    %v2878 = vadd.f32 %v2567, %v2877
    %2879 = vmatmul.bf16.gmra.mxu0 %v2617
    %v2880 = vpop.f32.mrf.mxu0
    %v2881 = vadd.f32 %v2572, %v2880
    %v2882 = vpop.f32.mrf.mxu0
    %v2883 = vadd.f32 %v2577, %v2882
    %2884 = vmatmul.bf16.gmra.mxu0 %v2619
    %v2885 = vpop.f32.mrf.mxu0
    %v2886 = vadd.f32 %v2582, %v2885
    %v2887 = vpop.f32.mrf.mxu0
    %v2888 = vadd.f32 %v2587, %v2887
    %2889 = vdwg.mxu0
    %2890 = vmatpush.bf16.msra.mxu0 %v2223
    %2891 = vmatpush.bf16.msra.mxu0 %v2222
    %2892 = vmatpush.bf16.msra.mxu0 %v2221
    %2893 = vmatpush.bf16.msra.mxu0 %v2220
    %2894 = vmatpush.bf16.msra.mxu0 %v2219
    %2895 = vmatpush.bf16.msra.mxu0 %v2218
    %2896 = vmatpush.bf16.msra.mxu0 %v2217
    %2897 = vmatpush.bf16.msra.mxu0 %v2216
    %2898 = vmatmul.bf16.gmra.mxu0 %v2614
    %v2899 = vpop.f32.mrf.mxu0
    %v2900 = vadd.f32 %v2871, %v2899
    %v2901 = vpop.f32.mrf.mxu0
    %v2902 = vadd.f32 %v2873, %v2901
    %2903 = vmatmul.bf16.gmra.mxu0 %v2616
    %v2904 = vpop.f32.mrf.mxu0
    %v2905 = vadd.f32 %v2876, %v2904
    %v2906 = vpop.f32.mrf.mxu0
    %v2907 = vadd.f32 %v2878, %v2906
    %2908 = vmatmul.bf16.gmra.mxu0 %v2618
    %v2909 = vpop.f32.mrf.mxu0
    %v2910 = vadd.f32 %v2881, %v2909
    %v2911 = vpop.f32.mrf.mxu0
    %v2912 = vadd.f32 %v2883, %v2911
    %2913 = vmatmul.bf16.gmra.mxu0 %v2620
    %v2914 = vpop.f32.mrf.mxu0
    %v2915 = vadd.f32 %v2886, %v2914
    %v2916 = vpop.f32.mrf.mxu0
    %v2917 = vadd.f32 %v2888, %v2916
    %2918 = vdwg.mxu0
    %2919 = vmatpush.bf16.msra.mxu0 %v2311
    %2920 = vmatpush.bf16.msra.mxu0 %v2310
    %2921 = vmatpush.bf16.msra.mxu0 %v2309
    %2922 = vmatpush.bf16.msra.mxu0 %v2308
    %2923 = vmatpush.bf16.msra.mxu0 %v2307
    %2924 = vmatpush.bf16.msra.mxu0 %v2306
    %2925 = vmatpush.bf16.msra.mxu0 %v2305
    %2926 = vmatpush.bf16.msra.mxu0 %v2304
    %2927 = vmatmul.bf16.gmra.mxu0 %v2613
    %v2928 = vpop.f32.mrf.mxu0
    %v2929 = vadd.f32 %v2552, %v2928
    %v2930 = vpop.f32.mrf.mxu0
    %v2931 = vadd.f32 %v2557, %v2930
    %2932 = vmatmul.bf16.gmra.mxu0 %v2615
    %v2933 = vpop.f32.mrf.mxu0
    %v2934 = vadd.f32 %v2562, %v2933
    %v2935 = vpop.f32.mrf.mxu0
    %v2936 = vadd.f32 %v2567, %v2935
    %2937 = vmatmul.bf16.gmra.mxu0 %v2617
    %v2938 = vpop.f32.mrf.mxu0
    %v2939 = vadd.f32 %v2572, %v2938
    %v2940 = vpop.f32.mrf.mxu0
    %v2941 = vadd.f32 %v2577, %v2940
    %2942 = vmatmul.bf16.gmra.mxu0 %v2619
    %v2943 = vpop.f32.mrf.mxu0
    %v2944 = vadd.f32 %v2582, %v2943
    %v2945 = vpop.f32.mrf.mxu0
    %v2946 = vadd.f32 %v2587, %v2945
    %2947 = vdwg.mxu0
    %2948 = vmatpush.bf16.msra.mxu0 %v2319
    %2949 = vmatpush.bf16.msra.mxu0 %v2318
    %2950 = vmatpush.bf16.msra.mxu0 %v2317
    %2951 = vmatpush.bf16.msra.mxu0 %v2316
    %2952 = vmatpush.bf16.msra.mxu0 %v2315
    %2953 = vmatpush.bf16.msra.mxu0 %v2314
    %2954 = vmatpush.bf16.msra.mxu0 %v2313
    %2955 = vmatpush.bf16.msra.mxu0 %v2312
    %2956 = vmatmul.bf16.gmra.mxu0 %v2614
    %v2957 = vpop.f32.mrf.mxu0
    %v2958 = vadd.f32 %v2929, %v2957
    %v2959 = vpop.f32.mrf.mxu0
    %v2960 = vadd.f32 %v2931, %v2959
    %2961 = vmatmul.bf16.gmra.mxu0 %v2616
    %v2962 = vpop.f32.mrf.mxu0
    %v2963 = vadd.f32 %v2934, %v2962
    %v2964 = vpop.f32.mrf.mxu0
    %v2965 = vadd.f32 %v2936, %v2964
    %2966 = vmatmul.bf16.gmra.mxu0 %v2618
    %v2967 = vpop.f32.mrf.mxu0
    %v2968 = vadd.f32 %v2939, %v2967
    %v2969 = vpop.f32.mrf.mxu0
    %v2970 = vadd.f32 %v2941, %v2969
    %2971 = vmatmul.bf16.gmra.mxu0 %v2620
    %v2972 = vpop.f32.mrf.mxu0
    %v2973 = vadd.f32 %v2944, %v2972
    %v2974 = vpop.f32.mrf.mxu0
    %v2975 = vadd.f32 %v2946, %v2974
    %2976 = vdwg.mxu0
    %2977 = vmatpush.bf16.msra.mxu0 %v2407
    %2978 = vmatpush.bf16.msra.mxu0 %v2406
    %2979 = vmatpush.bf16.msra.mxu0 %v2405
    %2980 = vmatpush.bf16.msra.mxu0 %v2404
    %2981 = vmatpush.bf16.msra.mxu0 %v2403
    %2982 = vmatpush.bf16.msra.mxu0 %v2402
    %2983 = vmatpush.bf16.msra.mxu0 %v2401
    %2984 = vmatpush.bf16.msra.mxu0 %v2400
    %2985 = vmatmul.bf16.gmra.mxu0 %v2613
    %v2986 = vpop.f32.mrf.mxu0
    %v2987 = vadd.f32 %v2552, %v2986
    %v2988 = vpop.f32.mrf.mxu0
    %v2989 = vadd.f32 %v2557, %v2988
    %2990 = vmatmul.bf16.gmra.mxu0 %v2615
    %v2991 = vpop.f32.mrf.mxu0
    %v2992 = vadd.f32 %v2562, %v2991
    %v2993 = vpop.f32.mrf.mxu0
    %v2994 = vadd.f32 %v2567, %v2993
    %2995 = vmatmul.bf16.gmra.mxu0 %v2617
    %v2996 = vpop.f32.mrf.mxu0
    %v2997 = vadd.f32 %v2572, %v2996
    %v2998 = vpop.f32.mrf.mxu0
    %v2999 = vadd.f32 %v2577, %v2998
    %3000 = vmatmul.bf16.gmra.mxu0 %v2619
    %v3001 = vpop.f32.mrf.mxu0
    %v3002 = vadd.f32 %v2582, %v3001
    %v3003 = vpop.f32.mrf.mxu0
    %v3004 = vadd.f32 %v2587, %v3003
    %3005 = vdwg.mxu0
    %3006 = vmatpush.bf16.msra.mxu0 %v2415
    %3007 = vmatpush.bf16.msra.mxu0 %v2414
    %3008 = vmatpush.bf16.msra.mxu0 %v2413
    %3009 = vmatpush.bf16.msra.mxu0 %v2412
    %3010 = vmatpush.bf16.msra.mxu0 %v2411
    %3011 = vmatpush.bf16.msra.mxu0 %v2410
    %3012 = vmatpush.bf16.msra.mxu0 %v2409
    %3013 = vmatpush.bf16.msra.mxu0 %v2408
    %3014 = vmatmul.bf16.gmra.mxu0 %v2614
    %v3015 = vpop.f32.mrf.mxu0
    %v3016 = vadd.f32 %v2987, %v3015
    %v3017 = vpop.f32.mrf.mxu0
    %v3018 = vadd.f32 %v2989, %v3017
    %3019 = vmatmul.bf16.gmra.mxu0 %v2616
    %v3020 = vpop.f32.mrf.mxu0
    %v3021 = vadd.f32 %v2992, %v3020
    %v3022 = vpop.f32.mrf.mxu0
    %v3023 = vadd.f32 %v2994, %v3022
    %3024 = vmatmul.bf16.gmra.mxu0 %v2618
    %v3025 = vpop.f32.mrf.mxu0
    %v3026 = vadd.f32 %v2997, %v3025
    %v3027 = vpop.f32.mrf.mxu0
    %v3028 = vadd.f32 %v2999, %v3027
    %3029 = vmatmul.bf16.gmra.mxu0 %v2620
    %v3030 = vpop.f32.mrf.mxu0
    %v3031 = vadd.f32 %v3002, %v3030
    %v3032 = vpop.f32.mrf.mxu0
    %v3033 = vadd.f32 %v3004, %v3032
    %3034 = vdwg.mxu0
    %3035 = vmatpush.bf16.msra.mxu0 %v2503
    %3036 = vmatpush.bf16.msra.mxu0 %v2502
    %3037 = vmatpush.bf16.msra.mxu0 %v2501
    %3038 = vmatpush.bf16.msra.mxu0 %v2500
    %3039 = vmatpush.bf16.msra.mxu0 %v2499
    %3040 = vmatpush.bf16.msra.mxu0 %v2498
    %3041 = vmatpush.bf16.msra.mxu0 %v2497
    %3042 = vmatpush.bf16.msra.mxu0 %v2496
    %3043 = vmatmul.bf16.gmra.mxu0 %v2613
    %v3044 = vpop.f32.mrf.mxu0
    %v3045 = vadd.f32 %v2552, %v3044
    %v3046 = vpop.f32.mrf.mxu0
    %v3047 = vadd.f32 %v2557, %v3046
    %3048 = vmatmul.bf16.gmra.mxu0 %v2615
    %v3049 = vpop.f32.mrf.mxu0
    %v3050 = vadd.f32 %v2562, %v3049
    %v3051 = vpop.f32.mrf.mxu0
    %v3052 = vadd.f32 %v2567, %v3051
    %3053 = vmatmul.bf16.gmra.mxu0 %v2617
    %v3054 = vpop.f32.mrf.mxu0
    %v3055 = vadd.f32 %v2572, %v3054
    %v3056 = vpop.f32.mrf.mxu0
    %v3057 = vadd.f32 %v2577, %v3056
    %3058 = vmatmul.bf16.gmra.mxu0 %v2619
    %v3059 = vpop.f32.mrf.mxu0
    %v3060 = vadd.f32 %v2582, %v3059
    %v3061 = vpop.f32.mrf.mxu0
    %v3062 = vadd.f32 %v2587, %v3061
    %3063 = vdwg.mxu0
    %3064 = vmatpush.bf16.msra.mxu0 %v2511
    %3065 = vmatpush.bf16.msra.mxu0 %v2510
    %3066 = vmatpush.bf16.msra.mxu0 %v2509
    %3067 = vmatpush.bf16.msra.mxu0 %v2508
    %3068 = vmatpush.bf16.msra.mxu0 %v2507
    %3069 = vmatpush.bf16.msra.mxu0 %v2506
    %3070 = vmatpush.bf16.msra.mxu0 %v2505
    %3071 = vmatpush.bf16.msra.mxu0 %v2504
    %3072 = vmatmul.bf16.gmra.mxu0 %v2614
    %v3073 = vpop.f32.mrf.mxu0
    %v3074 = vadd.f32 %v3045, %v3073
    %v3075 = vpop.f32.mrf.mxu0
    %v3076 = vadd.f32 %v3047, %v3075
    %3077 = vmatmul.bf16.gmra.mxu0 %v2616
    %v3078 = vpop.f32.mrf.mxu0
    %v3079 = vadd.f32 %v3050, %v3078
    %v3080 = vpop.f32.mrf.mxu0
    %v3081 = vadd.f32 %v3052, %v3080
    %3082 = vmatmul.bf16.gmra.mxu0 %v2618
    %v3083 = vpop.f32.mrf.mxu0
    %v3084 = vadd.f32 %v3055, %v3083
    %v3085 = vpop.f32.mrf.mxu0
    %v3086 = vadd.f32 %v3057, %v3085
    %3087 = vmatmul.bf16.gmra.mxu0 %v2620
    %v3088 = vpop.f32.mrf.mxu0
    %v3089 = vadd.f32 %v3060, %v3088
    %v3090 = vpop.f32.mrf.mxu0
    %v3091 = vadd.f32 %v3062, %v3090
    %3092 = vdwg.mxu0
    %v3093 = vmax.f32 %v2668, 0.0
    %v3094 = vmax.f32 %v2726, 0.0
    %v3095 = vmax.f32 %v2784, 0.0
    %v3096 = vmax.f32 %v2842, 0.0
    %v3097 = vmax.f32 %v2900, 0.0
    %v3098 = vmax.f32 %v2958, 0.0
    %v3099 = vmax.f32 %v3016, 0.0
    %v3100 = vmax.f32 %v3074, 0.0
    %v3101 = vmax.f32 %v2670, 0.0
    %v3102 = vmax.f32 %v2728, 0.0
    %v3103 = vmax.f32 %v2786, 0.0
    %v3104 = vmax.f32 %v2844, 0.0
    %v3105 = vmax.f32 %v2902, 0.0
    %v3106 = vmax.f32 %v2960, 0.0
    %v3107 = vmax.f32 %v3018, 0.0
    %v3108 = vmax.f32 %v3076, 0.0
    %v3109 = vmax.f32 %v2673, 0.0
    %v3110 = vmax.f32 %v2731, 0.0
    %v3111 = vmax.f32 %v2789, 0.0
    %v3112 = vmax.f32 %v2847, 0.0
    %v3113 = vmax.f32 %v2905, 0.0
    %v3114 = vmax.f32 %v2963, 0.0
    %v3115 = vmax.f32 %v3021, 0.0
    %v3116 = vmax.f32 %v3079, 0.0
    %v3117 = vmax.f32 %v2675, 0.0
    %v3118 = vmax.f32 %v2733, 0.0
    %v3119 = vmax.f32 %v2791, 0.0
    %v3120 = vmax.f32 %v2849, 0.0
    %v3121 = vmax.f32 %v2907, 0.0
    %v3122 = vmax.f32 %v2965, 0.0
    %v3123 = vmax.f32 %v3023, 0.0
    %v3124 = vmax.f32 %v3081, 0.0
    %v3125 = vmax.f32 %v2678, 0.0
    %v3126 = vmax.f32 %v2736, 0.0
    %v3127 = vmax.f32 %v2794, 0.0
    %v3128 = vmax.f32 %v2852, 0.0
    %v3129 = vmax.f32 %v2910, 0.0
    %v3130 = vmax.f32 %v2968, 0.0
    %v3131 = vmax.f32 %v3026, 0.0
    %v3132 = vmax.f32 %v3084, 0.0
    %v3133 = vmax.f32 %v2680, 0.0
    %v3134 = vmax.f32 %v2738, 0.0
    %v3135 = vmax.f32 %v2796, 0.0
    %v3136 = vmax.f32 %v2854, 0.0
    %v3137 = vmax.f32 %v2912, 0.0
    %v3138 = vmax.f32 %v2970, 0.0
    %v3139 = vmax.f32 %v3028, 0.0
    %v3140 = vmax.f32 %v3086, 0.0
    %v3141 = vmax.f32 %v2683, 0.0
    %v3142 = vmax.f32 %v2741, 0.0
    %v3143 = vmax.f32 %v2799, 0.0
    %v3144 = vmax.f32 %v2857, 0.0
    %v3145 = vmax.f32 %v2915, 0.0
    %v3146 = vmax.f32 %v2973, 0.0
    %v3147 = vmax.f32 %v3031, 0.0
    %v3148 = vmax.f32 %v3089, 0.0
    %v3149 = vmax.f32 %v2685, 0.0
    %v3150 = vmax.f32 %v2743, 0.0
    %v3151 = vmax.f32 %v2801, 0.0
    %v3152 = vmax.f32 %v2859, 0.0
    %v3153 = vmax.f32 %v2917, 0.0
    %v3154 = vmax.f32 %v2975, 0.0
    %v3155 = vmax.f32 %v3033, 0.0
    %v3156 = vmax.f32 %v3091, 0.0
    %v3157 = vpack.c.bf16 %v3101, %v3093
    %v3158 = vpack.c.bf16 %v3102, %v3094
    %v3159 = vpack.c.bf16 %v3103, %v3095
    %v3160 = vpack.c.bf16 %v3104, %v3096
    %v3161 = vpack.c.bf16 %v3105, %v3097
    %v3162 = vpack.c.bf16 %v3106, %v3098
    %v3163 = vpack.c.bf16 %v3107, %v3099
    %v3164 = vpack.c.bf16 %v3108, %v3100
    %v3165 = vpack.c.bf16 %v3117, %v3109
    %v3166 = vpack.c.bf16 %v3118, %v3110
    %v3167 = vpack.c.bf16 %v3119, %v3111
    %v3168 = vpack.c.bf16 %v3120, %v3112
    %v3169 = vpack.c.bf16 %v3121, %v3113
    %v3170 = vpack.c.bf16 %v3122, %v3114
    %v3171 = vpack.c.bf16 %v3123, %v3115
    %v3172 = vpack.c.bf16 %v3124, %v3116
    %v3173 = vpack.c.bf16 %v3133, %v3125
    %v3174 = vpack.c.bf16 %v3134, %v3126
    %v3175 = vpack.c.bf16 %v3135, %v3127
    %v3176 = vpack.c.bf16 %v3136, %v3128
    %v3177 = vpack.c.bf16 %v3137, %v3129
    %v3178 = vpack.c.bf16 %v3138, %v3130
    %v3179 = vpack.c.bf16 %v3139, %v3131
    %v3180 = vpack.c.bf16 %v3140, %v3132
    %v3181 = vpack.c.bf16 %v3149, %v3141
    %v3182 = vpack.c.bf16 %v3150, %v3142
    %v3183 = vpack.c.bf16 %v3151, %v3143
    %v3184 = vpack.c.bf16 %v3152, %v3144
    %v3185 = vpack.c.bf16 %v3153, %v3145
    %v3186 = vpack.c.bf16 %v3154, %v3146
    %v3187 = vpack.c.bf16 %v3155, %v3147
    %v3188 = vpack.c.bf16 %v3156, %v3148
    %s3189 = smul.addr %s32, 2
    %s3190 = scalar_lea.vmem %s5, %s3189
    %v3191 = vld [vmem:[%s3190] sm:$0x3]
    %s3192 = smul.u32 %s32, 4
    %s3193 = scalar_lea.vmem %s6, %s3192
    %v3194 = vld [vmem:[%s3193] sm:$0x7]
    %3196 = vset.pattern.permute.xlu0 0
    %3197 = vperm.xlu0 %3196, %v3194
    %v3198 = vpop.permute.xlu0 %3197
    %vm3200 = vcmask 523264
    %v3202 = vsel %vm3200, %v3191, 0
    %3204 = vmatpush.bf16.msra.mxu0 0
    %3205 = vmatpush.bf16.msra.mxu0 0
    %3206 = vmatpush.bf16.msra.mxu0 0
    %3207 = vmatpush.bf16.msra.mxu0 0
    %3208 = vmatpush.bf16.msra.mxu0 %v3181
    %3209 = vmatpush.bf16.msra.mxu0 %v3173
    %3210 = vmatpush.bf16.msra.mxu0 %v3165
    %3211 = vmatpush.bf16.msra.mxu0 %v3157
    %3212 = vmatmul.bf16.gmra.mxu0 %v3202
    %v3213 = vpop.f32.mrf.mxu0
    %v3214 = vadd.f32 %v3198, %v3213
    %v3215 = vpop.f32.mrf.mxu0
    %3216 = vdwg.mxu0
    %3217 = vmatpush.bf16.msra.mxu0 0
    %3218 = vmatpush.bf16.msra.mxu0 0
    %3219 = vmatpush.bf16.msra.mxu0 0
    %3220 = vmatpush.bf16.msra.mxu0 0
    %3221 = vmatpush.bf16.msra.mxu0 %v3182
    %3222 = vmatpush.bf16.msra.mxu0 %v3174
    %3223 = vmatpush.bf16.msra.mxu0 %v3166
    %3224 = vmatpush.bf16.msra.mxu0 %v3158
    %3225 = vmatmul.bf16.gmra.mxu0 %v3202
    %v3226 = vpop.f32.mrf.mxu0
    %v3227 = vadd.f32 %v3198, %v3226
    %v3228 = vpop.f32.mrf.mxu0
    %3229 = vdwg.mxu0
    %3230 = vmatpush.bf16.msra.mxu0 0
    %3231 = vmatpush.bf16.msra.mxu0 0
    %3232 = vmatpush.bf16.msra.mxu0 0
    %3233 = vmatpush.bf16.msra.mxu0 0
    %3234 = vmatpush.bf16.msra.mxu0 %v3183
    %3235 = vmatpush.bf16.msra.mxu0 %v3175
    %3236 = vmatpush.bf16.msra.mxu0 %v3167
    %3237 = vmatpush.bf16.msra.mxu0 %v3159
    %3238 = vmatmul.bf16.gmra.mxu0 %v3202
    %v3239 = vpop.f32.mrf.mxu0
    %v3240 = vadd.f32 %v3198, %v3239
    %v3241 = vpop.f32.mrf.mxu0
    %3242 = vdwg.mxu0
    %3243 = vmatpush.bf16.msra.mxu0 0
    %3244 = vmatpush.bf16.msra.mxu0 0
    %3245 = vmatpush.bf16.msra.mxu0 0
    %3246 = vmatpush.bf16.msra.mxu0 0
    %3247 = vmatpush.bf16.msra.mxu0 %v3184
    %3248 = vmatpush.bf16.msra.mxu0 %v3176
    %3249 = vmatpush.bf16.msra.mxu0 %v3168
    %3250 = vmatpush.bf16.msra.mxu0 %v3160
    %3251 = vmatmul.bf16.gmra.mxu0 %v3202
    %v3252 = vpop.f32.mrf.mxu0
    %v3253 = vadd.f32 %v3198, %v3252
    %v3254 = vpop.f32.mrf.mxu0
    %3255 = vdwg.mxu0
    %3256 = vmatpush.bf16.msra.mxu0 0
    %3257 = vmatpush.bf16.msra.mxu0 0
    %3258 = vmatpush.bf16.msra.mxu0 0
    %3259 = vmatpush.bf16.msra.mxu0 0
    %3260 = vmatpush.bf16.msra.mxu0 %v3185
    %3261 = vmatpush.bf16.msra.mxu0 %v3177
    %3262 = vmatpush.bf16.msra.mxu0 %v3169
    %3263 = vmatpush.bf16.msra.mxu0 %v3161
    %3264 = vmatmul.bf16.gmra.mxu0 %v3202
    %v3265 = vpop.f32.mrf.mxu0
    %v3266 = vadd.f32 %v3198, %v3265
    %v3267 = vpop.f32.mrf.mxu0
    %3268 = vdwg.mxu0
    %3269 = vmatpush.bf16.msra.mxu0 0
    %3270 = vmatpush.bf16.msra.mxu0 0
    %3271 = vmatpush.bf16.msra.mxu0 0
    %3272 = vmatpush.bf16.msra.mxu0 0
    %3273 = vmatpush.bf16.msra.mxu0 %v3186
    %3274 = vmatpush.bf16.msra.mxu0 %v3178
    %3275 = vmatpush.bf16.msra.mxu0 %v3170
    %3276 = vmatpush.bf16.msra.mxu0 %v3162
    %3277 = vmatmul.bf16.gmra.mxu0 %v3202
    %v3278 = vpop.f32.mrf.mxu0
    %v3279 = vadd.f32 %v3198, %v3278
    %v3280 = vpop.f32.mrf.mxu0
    %3281 = vdwg.mxu0
    %3282 = vmatpush.bf16.msra.mxu0 0
    %3283 = vmatpush.bf16.msra.mxu0 0
    %3284 = vmatpush.bf16.msra.mxu0 0
    %3285 = vmatpush.bf16.msra.mxu0 0
    %3286 = vmatpush.bf16.msra.mxu0 %v3187
    %3287 = vmatpush.bf16.msra.mxu0 %v3179
    %3288 = vmatpush.bf16.msra.mxu0 %v3171
    %3289 = vmatpush.bf16.msra.mxu0 %v3163
    %3290 = vmatmul.bf16.gmra.mxu0 %v3202
    %v3291 = vpop.f32.mrf.mxu0
    %v3292 = vadd.f32 %v3198, %v3291
    %v3293 = vpop.f32.mrf.mxu0
    %3294 = vdwg.mxu0
    %3295 = vmatpush.bf16.msra.mxu0 0
    %3296 = vmatpush.bf16.msra.mxu0 0
    %3297 = vmatpush.bf16.msra.mxu0 0
    %3298 = vmatpush.bf16.msra.mxu0 0
    %3299 = vmatpush.bf16.msra.mxu0 %v3188
    %3300 = vmatpush.bf16.msra.mxu0 %v3180
    %3301 = vmatpush.bf16.msra.mxu0 %v3172
    %3302 = vmatpush.bf16.msra.mxu0 %v3164
    %3303 = vmatmul.bf16.gmra.mxu0 %v3202
    %v3304 = vpop.f32.mrf.mxu0
    %v3305 = vadd.f32 %v3198, %v3304
    %v3306 = vpop.f32.mrf.mxu0
    %3307 = vdwg.mxu0
    %v3316 = vrot.slane %v3227, 4
    %v3317 = vrot.slane %v3253, 4
    %v3318 = vrot.slane %v3279, 4
    %v3319 = vrot.slane %v3305, 4
    %v3320 = vsel %vm255, %v3214, %v3316
    %v3321 = vsel %vm255, %v3240, %v3317
    %v3322 = vsel %vm255, %v3266, %v3318
    %v3323 = vsel %vm255, %v3292, %v3319
    %s3328 = smul.u32 %s32, 8
    %s3329 = smul.addr %s3328, 4
    %s3330 = scalar_lea.vmem %s7, %s3329
    %3331 = vst [vmem:[%s3330] sm:$0x77] %v3320
    %3332 = vst [vmem:[%s3330 + $0x8] sm:$0x77] %v3321
    %3333 = vst [vmem:[%s3330 + $0x10] sm:$0x77] %v3322
    %3334 = vst [vmem:[%s3330 + $0x18] sm:$0x77] %v3323
  $region34: #{topnet_decoder_forward.15} parent=0 // loop_footer
    %s36 = sadd.s32 1, %s32
  $region35: #{topnet_decoder_forward.15} parent=0 // loop_footer_branch
    %31 = sbr.rel target = $region31
  $region36: #{topnet_decoder_forward.15} parent=0 // loop_exit
    _
  // Predicated region
  $region37: #{topnet_decoder_forward.15} parent=0 // pred_check
    _
  $region38: #{topnet_decoder_forward.15} parent=0 // pred_check_branch
    %3336 = sbr.rel (0) target = $region40
  $region39: #{topnet_decoder_forward.15} parent=0 // pred_region
    _
  $region40: #{topnet_decoder_forward.15} parent=0 // pred_fallthru
    _
  // Predicated region
  $region41: #{topnet_decoder_forward.15} parent=0 // pred_check
    _
  $region42: #{topnet_decoder_forward.15} parent=0 // pred_check_branch
    %3338 = sbr.rel (0) target = $region44
  $region43: #{topnet_decoder_forward.15} parent=0 // pred_region
    _
  $region44: #{topnet_decoder_forward.15} parent=0 // pred_fallthru
    _

</llo_original>
